<compile_context>
chip_gen: v5e
topology: v5e:2x2
jax: 0.10.0
libtpu: 0.0.40
codegen_flags: <defaults>
</compile_context>

<pallas_src>
import functools

import jax
import jax.numpy as jnp
from jax.experimental import pallas as pl
from jax.experimental.pallas import tpu as pltpu

EPS_BN = 1e-5
EPS_IN = 1e-5
EPS_L2 = 1e-12

LANE = 128
SUB = 8
MBASE = 128                     # pad M (rows) to this so tm never collapses to 8
VMEM_LIMIT = 32 * 1024 * 1024   # safe on v5e/v6e/v7x; well above our working set


def _rup(x, m):
    return (x + m - 1) // m * m


def _pick_tile(dim_p, cap, base):
    """Largest multiple of `base` <= cap that divides dim_p (dim_p % base == 0)."""
    best = base
    t = base
    lim = min(cap, dim_p)
    while t <= lim:
        if dim_p % t == 0:
            best = t
        t += base
    return best


# ----------------------------------------------------------------------------
# Pallas kernels
# ----------------------------------------------------------------------------
def _conv_mm_kernel(*refs, relu, has_res, nk):
    """Tiled K-accumulating matmul with fused (shift, [+residual], [ReLU]) epilogue."""
    if has_res:
        a_ref, b_ref, t_ref, r_ref, o_ref, acc_ref = refs
    else:
        a_ref, b_ref, t_ref, o_ref, acc_ref = refs
        r_ref = None

    k = pl.program_id(2)

    @pl.when(k == 0)
    def _():
        acc_ref[...] = jnp.zeros_like(acc_ref)

    acc_ref[...] += jnp.dot(a_ref[...], b_ref[...],
                            preferred_element_type=jnp.float32)

    @pl.when(k == nk - 1)
    def _():
        y = acc_ref[...] + t_ref[...]
        if r_ref is not None:
            y = y + r_ref[...].astype(jnp.float32)
        if relu:
            y = jnp.maximum(y, 0.0)
        o_ref[...] = y.astype(o_ref.dtype)


def _conv_mm_kernel_k1(*refs, relu, has_res):
    """Single-K-step matmul: no scratch accumulator, dot straight into the epilogue."""
    if has_res:
        a_ref, b_ref, t_ref, r_ref, o_ref = refs
    else:
        a_ref, b_ref, t_ref, o_ref = refs
        r_ref = None
    y = jnp.dot(a_ref[...], b_ref[...], preferred_element_type=jnp.float32)
    y = y + t_ref[...]
    if r_ref is not None:
        y = y + r_ref[...].astype(jnp.float32)
    if relu:
        y = jnp.maximum(y, 0.0)
    o_ref[...] = y.astype(o_ref.dtype)


def _ibn_kernel(x_ref, g_ref, b_ref, m_ref, o_ref):
    """IBN-a epilogue: IN(affine) on masked channels, pass-through on rest, then ReLU.
    Two-pass variance in f32; bf16 in/out."""
    x = x_ref[...].astype(jnp.float32)                # (1, HW, ct)
    hw = x.shape[1]
    inv_hw = 1.0 / hw
    mean = jnp.sum(x, axis=1, keepdims=True) * inv_hw
    d = x - mean
    var = jnp.sum(d * d, axis=1, keepdims=True) * inv_hw
    in_y = d * jax.lax.rsqrt(var + EPS_IN) * g_ref[...] + b_ref[...]
    y = jnp.where(m_ref[...] > 0.5, in_y, x)
    o_ref[...] = jnp.maximum(y, 0.0).astype(o_ref.dtype)


def _maxpool_kernel(x_ref, o_ref):
    o_ref[...] = jnp.max(x_ref[...], axis=0)          # reduce over 9 window taps


def _gap_kernel(x_ref, o_ref):
    o_ref[...] = jnp.mean(x_ref[...].astype(jnp.float32), axis=1)   # reduce over H*W


def _head_kernel(x_ref, s_ref, b_ref, o_ref):
    # BatchNorm1d (eval, affine) followed by F.normalize(p=2, dim=1)
    y = x_ref[...] * s_ref[...] + b_ref[...]
    nrm = jnp.maximum(jnp.sqrt(jnp.sum(y * y, axis=1, keepdims=True)), EPS_L2)
    o_ref[...] = y / nrm


# ----------------------------------------------------------------------------
# Pallas wrappers
# ----------------------------------------------------------------------------
def matmul_fused(cols, wmat, shift, residual=None, relu=True,
                 tm_cap=512, tn_cap=256, tk_cap=1024):
    """out = epilogue(cols @ wmat) with per-output-channel shift, optional residual
    add and ReLU.  cols: (M, K) bf16; wmat: (Kw, Np) bf16 pre-padded and BN-scale
    folded; shift: (Np,) f32; residual: (M, Np) bf16.  Output is bf16 (Mp, Np)->[:M]."""
    M, K = cols.shape
    Kw, Np = wmat.shape
    Mp = _rup(M, MBASE)
    tm = _pick_tile(Mp, tm_cap, MBASE)
    tn = _pick_tile(Np, tn_cap, LANE)
    tk = _pick_tile(Kw, tk_cap, LANE)

    # v7x: prefer >=2 blocks on the parallel axes so both TensorCores get work.
    if (Mp // tm) * (Np // tn) < 2:
        if Mp // MBASE >= 2:
            tm = _pick_tile(Mp, max(Mp // 2, MBASE), MBASE)
        elif Np // LANE >= 2:
            tn = _pick_tile(Np, max(Np // 2, LANE), LANE)
    nk = Kw // tk

    a = cols.astype(jnp.bfloat16)
    if Mp != M or Kw != K:
        a = jnp.pad(a, ((0, Mp - M), (0, Kw - K)))
    t2 = shift.reshape(1, Np)

    has_res = residual is not None
    if has_res:
        r = residual.astype(jnp.bfloat16)
        if Mp != M:
            r = jnp.pad(r, ((0, Mp - M), (0, 0)))

    out_shape = jax.ShapeDtypeStruct((Mp, Np), jnp.bfloat16)

    if nk == 1:
        in_specs = [
            pl.BlockSpec((tm, Kw), lambda i, j: (i, 0)),
            pl.BlockSpec((Kw, tn), lambda i, j: (0, j)),
            pl.BlockSpec((1, tn), lambda i, j: (0, j)),
        ]
        args = [a, wmat, t2]
        if has_res:
            in_specs.append(pl.BlockSpec((tm, tn), lambda i, j: (i, j)))
            args.append(r)
        out = pl.pallas_call(
            functools.partial(_conv_mm_kernel_k1, relu=relu, has_res=has_res),
            out_shape=out_shape,
            grid=(Mp // tm, Np // tn),
            in_specs=in_specs,
            out_specs=pl.BlockSpec((tm, tn), lambda i, j: (i, j)),
            compiler_params=pltpu.CompilerParams(
                dimension_semantics=("parallel", "parallel"),
                vmem_limit_bytes=VMEM_LIMIT),
        )(*args)
    else:
        in_specs = [
            pl.BlockSpec((tm, tk), lambda i, j, k: (i, k)),
            pl.BlockSpec((tk, tn), lambda i, j, k: (k, j)),
            pl.BlockSpec((1, tn), lambda i, j, k: (0, j)),
        ]
        args = [a, wmat, t2]
        if has_res:
            in_specs.append(pl.BlockSpec((tm, tn), lambda i, j, k: (i, j)))
            args.append(r)
        out = pl.pallas_call(
            functools.partial(_conv_mm_kernel, relu=relu, has_res=has_res, nk=nk),
            out_shape=out_shape,
            grid=(Mp // tm, Np // tn, nk),
            in_specs=in_specs,
            out_specs=pl.BlockSpec((tm, tn), lambda i, j, k: (i, j)),
            scratch_shapes=[pltpu.VMEM((tm, tn), jnp.float32)],
            compiler_params=pltpu.CompilerParams(
                dimension_semantics=("parallel", "parallel", "arbitrary"),
                vmem_limit_bytes=VMEM_LIMIT),
        )(*args)
    return out[:M]


def conv_bn_act(x, cp, *, stride=1, relu=True, residual=None):
    """Fused conv + BN (scale folded into weights, shift in epilogue) [+res] [+ReLU].
    x: (N, H, W, Cs) bf16 (channel-padded except the raw stem input).
    Returns (N, OH, OW, Np) bf16, channel-padded."""
    N, H, W, Cs = x.shape
    kh, kw, pad = cp['kh'], cp['kw'], cp['pad']
    OH = (H + 2 * pad - kh) // stride + 1
    OW = (W + 2 * pad - kw) // stride + 1
    if kh == 1 and kw == 1:
        xs = x if stride == 1 else x[:, ::stride, ::stride, :]
        cols = xs.reshape(N * OH * OW, Cs)             # zero-copy: already lane-padded bf16
    else:
        # TODO(synk): tap extraction (im2col) is XLA glue; folding the kh*kw taps into
        # the matmul K axis via strided BlockSpec index_maps is not done here.  The taps
        # are now built from the channel-padded bf16 activation so K is lane-aligned.
        cin = cp['cin_use']
        xt = x if cin == Cs else x[..., :cin]
        xp = jnp.pad(xt, ((0, 0), (pad, pad), (pad, pad), (0, 0)))
        taps = [xp[:, i:i + stride * OH:stride, j:j + stride * OW:stride, :]
                for i in range(kh) for j in range(kw)]
        cols = jnp.stack(taps, axis=3).reshape(N * OH * OW, kh * kw * cin)
    out = matmul_fused(cols, cp['w'], cp['shift'], residual=residual, relu=relu)
    return out.reshape(N, OH, OW, cp['w'].shape[1])


def ibn_a(x_nhwc, ibn_p):
    """InstanceNorm2d(affine) on the first-half channels + ReLU over all channels."""
    N, H, W, Cp = x_nhwc.shape
    HW = H * W
    ct = LANE if Cp % LANE == 0 else Cp
    xr = x_nhwc.reshape(N, HW, Cp)
    out = pl.pallas_call(
        _ibn_kernel,
        out_shape=jax.ShapeDtypeStruct((N, HW, Cp), jnp.bfloat16),
        grid=(N, Cp // ct),
        in_specs=[pl.BlockSpec((1, HW, ct), lambda n, c: (n, 0, c)),
                  pl.BlockSpec((1, 1, ct), lambda n, c: (0, 0, c)),
                  pl.BlockSpec((1, 1, ct), lambda n, c: (0, 0, c)),
                  pl.BlockSpec((1, 1, ct), lambda n, c: (0, 0, c))],
        out_specs=pl.BlockSpec((1, HW, ct), lambda n, c: (n, 0, c)),
        compiler_params=pltpu.CompilerParams(
            dimension_semantics=("parallel", "parallel")),
    )(xr, ibn_p['gamma'], ibn_p['beta'], ibn_p['mask'])
    return out.reshape(N, H, W, Cp)


def maxpool_3x3_s2_p1(x_nhwc):
    N, H, W, Cp = x_nhwc.shape
    k, s, pad = 3, 2, 1
    OH = (H + 2 * pad - k) // s + 1
    OW = (W + 2 * pad - k) // s + 1
    # bf16 tap stack (half the previous f32 traffic); padding value -inf.
    xp = jnp.pad(x_nhwc, ((0, 0), (pad, pad), (pad, pad), (0, 0)),
                 constant_values=-jnp.inf)
    taps = [xp[:, i:i + s * OH:s, j:j + s * OW:s, :].reshape(N * OH * OW, Cp)
            for i in range(k) for j in range(k)]
    stk = jnp.stack(taps, axis=0)                      # (9, M, Cp) bf16
    M = N * OH * OW
    Mp = _rup(M, SUB)
    if Mp != M:
        stk = jnp.pad(stk, ((0, 0), (0, Mp - M), (0, 0)),
                      constant_values=-jnp.inf)
    tm = _pick_tile(Mp, 512, SUB)
    out = pl.pallas_call(
        _maxpool_kernel,
        out_shape=jax.ShapeDtypeStruct((Mp, Cp), x_nhwc.dtype),
        grid=(Mp // tm,),
        in_specs=[pl.BlockSpec((9, tm, Cp), lambda i: (0, i, 0))],
        out_specs=pl.BlockSpec((tm, Cp), lambda i: (i, 0)),
        compiler_params=pltpu.CompilerParams(dimension_semantics=("parallel",)),
    )(stk)
    return out[:M].reshape(N, OH, OW, Cp)


def global_avg_pool(x_nhwc):
    N, H, W, Cp = x_nhwc.shape
    xr = x_nhwc.reshape(N, H * W, Cp)
    ct = LANE if Cp % LANE == 0 else Cp
    return pl.pallas_call(
        _gap_kernel,
        out_shape=jax.ShapeDtypeStruct((N, Cp), jnp.float32),
        grid=(Cp // ct,),
        in_specs=[pl.BlockSpec((N, H * W, ct), lambda c: (0, 0, c))],
        out_specs=pl.BlockSpec((N, ct), lambda c: (0, c)),
        compiler_params=pltpu.CompilerParams(dimension_semantics=("parallel",)),
    )(xr)


def head_bn_normalize(feat_padded, scale, shift, C):
    N, Cp = feat_padded.shape
    out = pl.pallas_call(
        _head_kernel,
        out_shape=jax.ShapeDtypeStruct((N, Cp), jnp.float32),
        grid=(1,),
        in_specs=[pl.BlockSpec((N, Cp), lambda i: (0, 0)),
                  pl.BlockSpec((1, Cp), lambda i: (0, 0)),
                  pl.BlockSpec((1, Cp), lambda i: (0, 0))],
        out_specs=pl.BlockSpec((N, Cp), lambda i: (0, 0)),
    )(feat_padded, scale.reshape(1, Cp), shift.reshape(1, Cp))
    return out[:, :C]


# ----------------------------------------------------------------------------
# Model definition (scaled-down ResNet50-IBN-a structure)
# ----------------------------------------------------------------------------
EXPANSION = 4
STEM_OUT = 8
# (planes, num_blocks, first_block_stride, use_ibn)
# layer4 stride is 1 because ResNetIBN forces layer4[0].conv2 / downsample stride -> (1,1)
STAGES = [
    (8, 1, 1, True),
    (16, 1, 2, True),
    (32, 1, 2, True),
    (64, 1, 1, False),
]


def _kaiming_conv(key, kh, kw, cin, cout):
    std = (2.0 / (kh * kw * cout)) ** 0.5              # kaiming_normal_, mode='fan_out'
    return jax.random.normal(key, (kh, kw, cin, cout), jnp.float32) * std


def _bn_init(c):
    # (gamma, beta, running_mean, running_var) — PyTorch defaults
    return (jnp.ones((c,), jnp.float32), jnp.zeros((c,), jnp.float32),
            jnp.zeros((c,), jnp.float32), jnp.ones((c,), jnp.float32))


def build_params(key):
    keys = iter(jax.random.split(key, 128))
    params = {'conv1': _kaiming_conv(next(keys), 7, 7, 3, STEM_OUT),
              'bn1': _bn_init(STEM_OUT)}
    inplanes = STEM_OUT
    stage_blocks = []
    for planes, nblocks, stride, ibn in STAGES:
        blocks = []
        for bi in range(nblocks):
            s = stride if bi == 0 else 1
            blk = {'conv1': _kaiming_conv(next(keys), 1, 1, inplanes, planes)}
            if ibn:
                half = planes // 2
                blk['in_gamma'] = jnp.ones((half,), jnp.float32)
                blk['in_beta'] = jnp.zeros((half,), jnp.float32)
                blk['bn1'] = _bn_init(planes - half)
            else:
                blk['bn1'] = _bn_init(planes)
            blk['conv2'] = _kaiming_conv(next(keys), 3, 3, planes, planes)
            blk['bn2'] = _bn_init(planes)
            blk['conv3'] = _kaiming_conv(next(keys), 1, 1, planes, planes * EXPANSION)
            blk['bn3'] = _bn_init(planes * EXPANSION)
            if s != 1 or inplanes != planes * EXPANSION:
                blk['conv_ds'] = _kaiming_conv(next(keys), 1, 1, inplanes, planes * EXPANSION)
                blk['bn_ds'] = _bn_init(planes * EXPANSION)
            blocks.append(blk)
            inplanes = planes * EXPANSION
        stage_blocks.append(blocks)
    params['stages'] = stage_blocks
    params['feat_bn'] = _bn_init(inplanes)             # BatchNorm1d(out_planes), weight=1, bias=0
    return params


def _bn_fold(bn):
    gamma, beta, mean, var = bn
    scale = gamma / jnp.sqrt(var + EPS_BN)
    return scale, beta - mean * scale


def prep_conv(w_hwio, scale_shift, *, pad, pad_cin=True):
    """Fold BN scale into the weight columns (f32), pad to lane multiples, cast bf16.
    Only the shift remains for the matmul epilogue."""
    kh, kw, cin, cout = w_hwio.shape
    Np = _rup(cout, LANE)
    scale, shift = scale_shift
    wf = w_hwio * scale.reshape(1, 1, 1, cout)         # per-output-channel scale fold
    if pad_cin:                                        # convs fed by channel-padded acts
        cin_use = _rup(cin, LANE)
    else:                                              # stem: raw 3-channel input
        cin_use = cin
    w = jnp.pad(wf, ((0, 0), (0, 0), (0, cin_use - cin), (0, Np - cout)))
    K = kh * kw * cin_use
    Kw = _rup(K, LANE)
    wmat = jnp.pad(w.reshape(K, Np), ((0, Kw - K), (0, 0))).astype(jnp.bfloat16)
    return {'w': wmat,
            'shift': jnp.pad(shift, (0, Np - cout)),
            'kh': kh, 'kw': kw, 'cin_use': cin_use, 'pad': pad}


def prepare_params(params):
    """One-time folding of BN stats into weights + channel padding (no per-call pads)."""
    prep = {'stem': prep_conv(params['conv1'], _bn_fold(params['bn1']),
                              pad=3, pad_cin=False)}
    stages = []
    for (planes, nblocks, stride, ibn), blocks in zip(STAGES, params['stages']):
        pblocks = []
        for bi, blk in enumerate(blocks):
            s = stride if bi == 0 else 1
            pb = {'stride': s}
            Np1 = _rup(planes, LANE)
            if ibn:
                half = blk['in_gamma'].shape[0]
                bs, bt = _bn_fold(blk['bn1'])
                # IN half: identity in the conv epilogue; BN half: folded affine.
                scale1 = jnp.concatenate([jnp.ones((half,), jnp.float32), bs])
                shift1 = jnp.concatenate([jnp.zeros((half,), jnp.float32), bt])
                pb['conv1'] = prep_conv(blk['conv1'], (scale1, shift1), pad=0, pad_cin=True)
                mask = jnp.zeros((Np1,), jnp.float32).at[:half].set(1.0)
                pb['ibn'] = {
                    'gamma': jnp.pad(blk['in_gamma'], (0, Np1 - half)).reshape(1, 1, Np1),
                    'beta': jnp.pad(blk['in_beta'], (0, Np1 - half)).reshape(1, 1, Np1),
                    'mask': mask.reshape(1, 1, Np1),
                }
            else:
                pb['conv1'] = prep_conv(blk['conv1'], _bn_fold(blk['bn1']), pad=0, pad_cin=True)
                pb['ibn'] = None
            pb['conv2'] = prep_conv(blk['conv2'], _bn_fold(blk['bn2']), pad=1, pad_cin=True)
            pb['conv3'] = prep_conv(blk['conv3'], _bn_fold(blk['bn3']), pad=0, pad_cin=True)
            if 'conv_ds' in blk:
                pb['conv_ds'] = prep_conv(blk['conv_ds'], _bn_fold(blk['bn_ds']),
                                          pad=0, pad_cin=True)
            else:
                pb['conv_ds'] = None
            pblocks.append(pb)
        stages.append(pblocks)
    prep['stages'] = stages
    out_planes = STAGES[-1][0] * EXPANSION
    Cp = _rup(out_planes, LANE)
    fs, ft = _bn_fold(params['feat_bn'])
    prep['feat_scale'] = jnp.pad(fs, (0, Cp - out_planes))
    prep['feat_shift'] = jnp.pad(ft, (0, Cp - out_planes))
    prep['out_planes'] = out_planes
    return prep


# ----------------------------------------------------------------------------
# Forward pass
# ----------------------------------------------------------------------------
def bottleneck_forward(x, pb):
    s = pb['stride']
    if pb['ibn'] is not None:
        # IBN-a: conv1 epilogue applies BN affine only to the second half (identity on
        # the first half); the fused IBN kernel then does IN(first half) + ReLU(all).
        out = conv_bn_act(x, pb['conv1'], stride=1, relu=False)
        out = ibn_a(out, pb['ibn'])
    else:
        out = conv_bn_act(x, pb['conv1'], stride=1, relu=True)
    out = conv_bn_act(out, pb['conv2'], stride=s, relu=True)

    if pb['conv_ds'] is not None:
        residual = conv_bn_act(x, pb['conv_ds'], stride=s, relu=False)
    else:
        residual = x if s == 1 else x[:, ::s, ::s, :]
    Nr, Hr, Wr, Cr = residual.shape
    res2d = residual.reshape(Nr * Hr * Wr, Cr)         # bf16, lane-padded

    # conv3 + bn3 + residual add + ReLU, all in one matmul epilogue.
    out = conv_bn_act(out, pb['conv3'], stride=1, relu=True, residual=res2d)
    return out


def resnet_ibn_forward(x_nchw, prep):
    # layout: input is NCHW (PyTorch); compute in channel-padded bf16 NHWC.
    x = jnp.transpose(x_nchw, (0, 2, 3, 1)).astype(jnp.bfloat16)
    x = conv_bn_act(x, prep['stem'], stride=2, relu=True)      # conv7x7/2 + BN + ReLU
    x = maxpool_3x3_s2_p1(x)
    for pblocks in prep['stages']:
        for pb in pblocks:
            x = bottleneck_forward(x, pb)
    feat = global_avg_pool(x)                                  # gap + view -> (N, Cp) f32
    # cut_at_pooling=False, num_features=0, eval mode:
    #   bn_x = feat_bn(feat); return F.normalize(bn_x)
    return head_bn_normalize(feat, prep['feat_scale'], prep['feat_shift'],
                             prep['out_planes'])
    # TODO(synk): dropout / embedding / classifier branches are inactive for the
    # default (num_features=0, dropout=0, num_classes=0, eval) configuration.


if __name__ == "__main__":
    key = jax.random.PRNGKey(0)
    pkey, xkey = jax.random.split(key)
    raw_params = build_params(pkey)
    prep = prepare_params(raw_params)
    x = jax.random.normal(xkey, (2, 3, 32, 32), jnp.float32)   # NCHW, like PyTorch

    fwd = jax.jit(lambda inp: resnet_ibn_forward(inp, prep))
    out = jax.block_until_ready(fwd(x))

    assert out.shape == (2, STAGES[-1][0] * EXPANSION), out.shape
    assert bool(jnp.all(jnp.isfinite(out)))
    # rows are L2-normalized (F.normalize)
    norms = jnp.sqrt(jnp.sum(out * out, axis=1))
    assert bool(jnp.all(jnp.abs(norms - 1.0) < 1e-3)), norms
    print("KERNEL_OK")
</pallas_src>

<mosaic_0001>
module attributes {stable_mosaic.version = 11 : i64} {
  func.func @_conv_mm_kernel_k1(%arg0: i32, %arg1: i32, %arg2: memref<256x256xbf16, #tpu.memory_space<vmem>>, %arg3: memref<256x128xbf16, #tpu.memory_space<vmem>>, %arg4: memref<1x128xf32, #tpu.memory_space<vmem>>, %arg5: memref<256x128xbf16, #tpu.memory_space<vmem>>) attributes {dimension_semantics = [#tpu.dimension_semantics<parallel>, #tpu.dimension_semantics<parallel>], iteration_bounds = array<i64: 2, 1>, scalar_prefetch = 0 : i64, scratch_operands = 0 : i64, tpu.core_type = #tpu.core_type<tc>, window_params = [{transform_indices = @transform_0, window_bounds = array<i64: 256, 256>}, {transform_indices = @transform_1, window_bounds = array<i64: 256, 128>}, {transform_indices = @transform_2, window_bounds = array<i64: 1, 128>}, {transform_indices = @transform_3, window_bounds = array<i64: 256, 128>}]} {
    %c0 = arith.constant 0 : index
    %c0_0 = arith.constant 0 : index
    %0 = vector.load %arg2[%c0, %c0_0] : memref<256x256xbf16, #tpu.memory_space<vmem>>, vector<256x256xbf16>
    %c0_1 = arith.constant 0 : index
    %c0_2 = arith.constant 0 : index
    %1 = vector.load %arg3[%c0_1, %c0_2] : memref<256x128xbf16, #tpu.memory_space<vmem>>, vector<256x128xbf16>
    %cst = arith.constant dense<0.000000e+00> : vector<256x128xf32>
    %2 = tpu.matmul %0, %1, %cst {dimension_numbers = #tpu.dot_dimension_numbers<[1], [0], [0], [1], [0, 0, 1, 1], [], []>} : vector<256x256xbf16>, vector<256x128xbf16>, vector<256x128xf32> -> vector<256x128xf32>
    %c0_3 = arith.constant 0 : index
    %c0_4 = arith.constant 0 : index
    %3 = vector.load %arg4[%c0_3, %c0_4] : memref<1x128xf32, #tpu.memory_space<vmem>>, vector<1x128xf32>
    %4 = vector.broadcast %3 : vector<1x128xf32> to vector<256x128xf32>
    %5 = arith.addf %2, %4 : vector<256x128xf32>
    %cst_5 = arith.constant 0.000000e+00 : f32
    %6 = vector.broadcast %cst_5 : f32 to vector<256x128xf32>
    %7 = arith.maximumf %5, %6 : vector<256x128xf32>
    %8 = arith.truncf %7 : vector<256x128xf32> to vector<256x128xbf16>
    %c0_6 = arith.constant 0 : index
    %c0_7 = arith.constant 0 : index
    %9 = vector.load %arg5[%c0_6, %c0_7] : memref<256x128xbf16, #tpu.memory_space<vmem>>, vector<256x128xbf16>
    tpu.vector_store %arg5[%c0_6, %c0_7], %8 {strides = array<i32>} : memref<256x128xbf16, #tpu.memory_space<vmem>>, vector<256x128xbf16>,
    return
  }
  func.func @transform_0(%arg0: i32, %arg1: i32) -> (i32, i32) {
    %c0_i32 = arith.constant 0 : i32
    %c0_i32_0 = arith.constant 0 : i32
    return %arg0, %c0_i32 : i32, i32
  }
  func.func @transform_1(%arg0: i32, %arg1: i32) -> (i32, i32) {
    %c0_i32 = arith.constant 0 : i32
    %c0_i32_0 = arith.constant 0 : i32
    return %c0_i32, %arg1 : i32, i32
  }
  func.func @transform_2(%arg0: i32, %arg1: i32) -> (i32, i32) {
    %c0_i32 = arith.constant 0 : i32
    %c0_i32_0 = arith.constant 0 : i32
    return %c0_i32, %arg1 : i32, i32
  }
  func.func @transform_3(%arg0: i32, %arg1: i32) -> (i32, i32) {
    %c0_i32 = arith.constant 0 : i32
    return %arg0, %arg1 : i32, i32
  }
}

module attributes {stable_mosaic.version = 11 : i64} {
  func.func @_conv_mm_kernel_k1(%arg0: i32, %arg1: i32, %arg2: memref<128x128xbf16, #tpu.memory_space<vmem>>, %arg3: memref<128x128xbf16, #tpu.memory_space<vmem>>, %arg4: memref<1x128xf32, #tpu.memory_space<vmem>>, %arg5: memref<128x128xbf16, #tpu.memory_space<vmem>>) attributes {dimension_semantics = [#tpu.dimension_semantics<parallel>, #tpu.dimension_semantics<parallel>], iteration_bounds = array<i64: 1, 1>, scalar_prefetch = 0 : i64, scratch_operands = 0 : i64, tpu.core_type = #tpu.core_type<tc>, window_params = [{transform_indices = @transform_0, window_bounds = array<i64: 128, 128>}, {transform_indices = @transform_1, window_bounds = array<i64: 128, 128>}, {transform_indices = @transform_2, window_bounds = array<i64: 1, 128>}, {transform_indices = @transform_3, window_bounds = array<i64: 128, 128>}]} {
    %c0 = arith.constant 0 : index
    %c0_0 = arith.constant 0 : index
    %0 = vector.load %arg2[%c0, %c0_0] : memref<128x128xbf16, #tpu.memory_space<vmem>>, vector<128x128xbf16>
    %c0_1 = arith.constant 0 : index
    %c0_2 = arith.constant 0 : index
    %1 = vector.load %arg3[%c0_1, %c0_2] : memref<128x128xbf16, #tpu.memory_space<vmem>>, vector<128x128xbf16>
    %cst = arith.constant dense<0.000000e+00> : vector<128x128xf32>
    %2 = tpu.matmul %0, %1, %cst {dimension_numbers = #tpu.dot_dimension_numbers<[1], [0], [0], [1], [0, 0, 1, 1], [], []>} : vector<128x128xbf16>, vector<128x128xbf16>, vector<128x128xf32> -> vector<128x128xf32>
    %c0_3 = arith.constant 0 : index
    %c0_4 = arith.constant 0 : index
    %3 = vector.load %arg4[%c0_3, %c0_4] : memref<1x128xf32, #tpu.memory_space<vmem>>, vector<1x128xf32>
    %4 = vector.broadcast %3 : vector<1x128xf32> to vector<128x128xf32>
    %5 = arith.addf %2, %4 : vector<128x128xf32>
    %6 = arith.truncf %5 : vector<128x128xf32> to vector<128x128xbf16>
    %c0_5 = arith.constant 0 : index
    %c0_6 = arith.constant 0 : index
    %7 = vector.load %arg5[%c0_5, %c0_6] : memref<128x128xbf16, #tpu.memory_space<vmem>>, vector<128x128xbf16>
    tpu.vector_store %arg5[%c0_5, %c0_6], %6 {strides = array<i32>} : memref<128x128xbf16, #tpu.memory_space<vmem>>, vector<128x128xbf16>,
    return
  }
  func.func @transform_0(%arg0: i32, %arg1: i32) -> (i32, i32) {
    %c0_i32 = arith.constant 0 : i32
    %c0_i32_0 = arith.constant 0 : i32
    return %arg0, %c0_i32 : i32, i32
  }
  func.func @transform_1(%arg0: i32, %arg1: i32) -> (i32, i32) {
    %c0_i32 = arith.constant 0 : i32
    %c0_i32_0 = arith.constant 0 : i32
    return %c0_i32, %arg1 : i32, i32
  }
  func.func @transform_2(%arg0: i32, %arg1: i32) -> (i32, i32) {
    %c0_i32 = arith.constant 0 : i32
    %c0_i32_0 = arith.constant 0 : i32
    return %c0_i32, %arg1 : i32, i32
  }
  func.func @transform_3(%arg0: i32, %arg1: i32) -> (i32, i32) {
    %c0_i32 = arith.constant 0 : i32
    return %arg0, %arg1 : i32, i32
  }
}

module attributes {stable_mosaic.version = 11 : i64} {
  func.func @_maxpool_kernel(%arg0: i32, %arg1: memref<9x128x128xbf16, #tpu.memory_space<vmem>>, %arg2: memref<128x128xbf16, #tpu.memory_space<vmem>>) attributes {dimension_semantics = [#tpu.dimension_semantics<parallel>], iteration_bounds = array<i64: 1>, scalar_prefetch = 0 : i64, scratch_operands = 0 : i64, tpu.core_type = #tpu.core_type<tc>, window_params = [{transform_indices = @transform_0, window_bounds = array<i64: 9, 128, 128>}, {transform_indices = @transform_1, window_bounds = array<i64: 128, 128>}]} {
    %c0 = arith.constant 0 : index
    %c0_0 = arith.constant 0 : index
    %c0_1 = arith.constant 0 : index
    %0 = vector.load %arg1[%c0, %c0_0, %c0_1] : memref<9x128x128xbf16, #tpu.memory_space<vmem>>, vector<9x128x128xbf16>
    %cst = arith.constant dense<0xFF80> : vector<128x128xbf16>
    %1 = vector.multi_reduction <maximumf>, %0, %cst [0] : vector<9x128x128xbf16> to vector<128x128xbf16>
    %c0_2 = arith.constant 0 : index
    %c0_3 = arith.constant 0 : index
    %2 = vector.load %arg2[%c0_2, %c0_3] : memref<128x128xbf16, #tpu.memory_space<vmem>>, vector<128x128xbf16>
    tpu.vector_store %arg2[%c0_2, %c0_3], %1 {strides = array<i32>} : memref<128x128xbf16, #tpu.memory_space<vmem>>, vector<128x128xbf16>,
    return
  }
  func.func @transform_0(%arg0: i32) -> (i32, i32, i32) {
    %c0_i32 = arith.constant 0 : i32
    %c0_i32_0 = arith.constant 0 : i32
    %c0_i32_1 = arith.constant 0 : i32
    return %c0_i32, %arg0, %c0_i32_0 : i32, i32, i32
  }
  func.func @transform_1(%arg0: i32) -> (i32, i32) {
    %c0_i32 = arith.constant 0 : i32
    %c0_i32_0 = arith.constant 0 : i32
    return %arg0, %c0_i32 : i32, i32
  }
}

module attributes {stable_mosaic.version = 11 : i64} {
  func.func @_ibn_kernel(%arg0: i32, %arg1: i32, %arg2: memref<1x64x128xbf16, #tpu.memory_space<vmem>>, %arg3: memref<1x1x128xf32, #tpu.memory_space<vmem>>, %arg4: memref<1x1x128xf32, #tpu.memory_space<vmem>>, %arg5: memref<1x1x128xf32, #tpu.memory_space<vmem>>, %arg6: memref<1x64x128xbf16, #tpu.memory_space<vmem>>) attributes {dimension_semantics = [#tpu.dimension_semantics<parallel>, #tpu.dimension_semantics<parallel>], iteration_bounds = array<i64: 2, 1>, scalar_prefetch = 0 : i64, scratch_operands = 0 : i64, tpu.core_type = #tpu.core_type<tc>, window_params = [{transform_indices = @transform_0, window_bounds = array<i64: 1, 64, 128>}, {transform_indices = @transform_1, window_bounds = array<i64: 1, 1, 128>}, {transform_indices = @transform_2, window_bounds = array<i64: 1, 1, 128>}, {transform_indices = @transform_3, window_bounds = array<i64: 1, 1, 128>}, {transform_indices = @transform_4, window_bounds = array<i64: 1, 64, 128>}]} {
    %c0 = arith.constant 0 : index
    %c0_0 = arith.constant 0 : index
    %c0_1 = arith.constant 0 : index
    %0 = vector.load %arg2[%c0, %c0_0, %c0_1] : memref<1x64x128xbf16, #tpu.memory_space<vmem>>, vector<1x64x128xbf16>
    %1 = arith.extf %0 : vector<1x64x128xbf16> to vector<1x64x128xf32>
    %cst = arith.constant dense<0.000000e+00> : vector<1x128xf32>
    %2 = vector.multi_reduction <add>, %1, %cst [1] : vector<1x64x128xf32> to vector<1x128xf32>
    %3 = vector.shape_cast %2 : vector<1x128xf32> to vector<1x1x128xf32>
    %cst_2 = arith.constant 1.562500e-02 : f32
    %4 = vector.broadcast %cst_2 : f32 to vector<1x1x128xf32>
    %5 = arith.mulf %3, %4 : vector<1x1x128xf32>
    %6 = vector.broadcast %5 : vector<1x1x128xf32> to vector<1x64x128xf32>
    %7 = arith.subf %1, %6 : vector<1x64x128xf32>
    %8 = arith.mulf %7, %7 : vector<1x64x128xf32>
    %cst_3 = arith.constant dense<0.000000e+00> : vector<1x128xf32>
    %9 = vector.multi_reduction <add>, %8, %cst_3 [1] : vector<1x64x128xf32> to vector<1x128xf32>
    %10 = vector.shape_cast %9 : vector<1x128xf32> to vector<1x1x128xf32>
    %cst_4 = arith.constant 1.562500e-02 : f32
    %11 = vector.broadcast %cst_4 : f32 to vector<1x1x128xf32>
    %12 = arith.mulf %10, %11 : vector<1x1x128xf32>
    %cst_5 = arith.constant 9.99999974E-6 : f32
    %13 = vector.broadcast %cst_5 : f32 to vector<1x1x128xf32>
    %14 = arith.addf %12, %13 : vector<1x1x128xf32>
    %15 = math.rsqrt %14 : vector<1x1x128xf32>
    %16 = vector.broadcast %15 : vector<1x1x128xf32> to vector<1x64x128xf32>
    %17 = arith.mulf %7, %16 : vector<1x64x128xf32>
    %c0_6 = arith.constant 0 : index
    %c0_7 = arith.constant 0 : index
    %c0_8 = arith.constant 0 : index
    %18 = vector.load %arg3[%c0_6, %c0_7, %c0_8] : memref<1x1x128xf32, #tpu.memory_space<vmem>>, vector<1x1x128xf32>
    %19 = vector.broadcast %18 : vector<1x1x128xf32> to vector<1x64x128xf32>
    %20 = arith.mulf %17, %19 : vector<1x64x128xf32>
    %c0_9 = arith.constant 0 : index
    %c0_10 = arith.constant 0 : index
    %c0_11 = arith.constant 0 : index
    %21 = vector.load %arg4[%c0_9, %c0_10, %c0_11] : memref<1x1x128xf32, #tpu.memory_space<vmem>>, vector<1x1x128xf32>
    %22 = vector.broadcast %21 : vector<1x1x128xf32> to vector<1x64x128xf32>
    %23 = arith.addf %20, %22 : vector<1x64x128xf32>
    %c0_12 = arith.constant 0 : index
    %c0_13 = arith.constant 0 : index
    %c0_14 = arith.constant 0 : index
    %24 = vector.load %arg5[%c0_12, %c0_13, %c0_14] : memref<1x1x128xf32, #tpu.memory_space<vmem>>, vector<1x1x128xf32>
    %cst_15 = arith.constant 5.000000e-01 : f32
    %25 = vector.broadcast %cst_15 : f32 to vector<1x1x128xf32>
    %26 = arith.cmpf ogt, %24, %25 : vector<1x1x128xf32>
    %27 = vector.shape_cast %26 : vector<1x1x128xi1> to vector<1x1x128xi1>
    %28 = vector.broadcast %27 : vector<1x1x128xi1> to vector<1x64x128xi1>
    %29 = arith.select %28, %23, %1 : vector<1x64x128xi1>, vector<1x64x128xf32>
    %cst_16 = arith.constant 0.000000e+00 : f32
    %30 = vector.broadcast %cst_16 : f32 to vector<1x64x128xf32>
    %31 = arith.maximumf %29, %30 : vector<1x64x128xf32>
    %32 = arith.truncf %31 : vector<1x64x128xf32> to vector<1x64x128xbf16>
    %c0_17 = arith.constant 0 : index
    %c0_18 = arith.constant 0 : index
    %c0_19 = arith.constant 0 : index
    %33 = vector.load %arg6[%c0_17, %c0_18, %c0_19] : memref<1x64x128xbf16, #tpu.memory_space<vmem>>, vector<1x64x128xbf16>
    tpu.vector_store %arg6[%c0_17, %c0_18, %c0_19], %32 {strides = array<i32>} : memref<1x64x128xbf16, #tpu.memory_space<vmem>>, vector<1x64x128xbf16>,
    return
  }
  func.func @transform_0(%arg0: i32, %arg1: i32) -> (i32, i32, i32) {
    %c0_i32 = arith.constant 0 : i32
    %c0_i32_0 = arith.constant 0 : i32
    return %arg0, %c0_i32, %arg1 : i32, i32, i32
  }
  func.func @transform_1(%arg0: i32, %arg1: i32) -> (i32, i32, i32) {
    %c0_i32 = arith.constant 0 : i32
    %c0_i32_0 = arith.constant 0 : i32
    %c0_i32_1 = arith.constant 0 : i32
    return %c0_i32, %c0_i32_0, %arg1 : i32, i32, i32
  }
  func.func @transform_2(%arg0: i32, %arg1: i32) -> (i32, i32, i32) {
    %c0_i32 = arith.constant 0 : i32
    %c0_i32_0 = arith.constant 0 : i32
    %c0_i32_1 = arith.constant 0 : i32
    return %c0_i32, %c0_i32_0, %arg1 : i32, i32, i32
  }
  func.func @transform_3(%arg0: i32, %arg1: i32) -> (i32, i32, i32) {
    %c0_i32 = arith.constant 0 : i32
    %c0_i32_0 = arith.constant 0 : i32
    %c0_i32_1 = arith.constant 0 : i32
    return %c0_i32, %c0_i32_0, %arg1 : i32, i32, i32
  }
  func.func @transform_4(%arg0: i32, %arg1: i32) -> (i32, i32, i32) {
    %c0_i32 = arith.constant 0 : i32
    %c0_i32_0 = arith.constant 0 : i32
    return %arg0, %c0_i32, %arg1 : i32, i32, i32
  }
}

module attributes {stable_mosaic.version = 11 : i64} {
  func.func @_conv_mm_kernel_k1(%arg0: i32, %arg1: i32, %arg2: memref<128x128xbf16, #tpu.memory_space<vmem>>, %arg3: memref<128x128xbf16, #tpu.memory_space<vmem>>, %arg4: memref<1x128xf32, #tpu.memory_space<vmem>>, %arg5: memref<128x128xbf16, #tpu.memory_space<vmem>>, %arg6: memref<128x128xbf16, #tpu.memory_space<vmem>>) attributes {dimension_semantics = [#tpu.dimension_semantics<parallel>, #tpu.dimension_semantics<parallel>], iteration_bounds = array<i64: 1, 1>, scalar_prefetch = 0 : i64, scratch_operands = 0 : i64, tpu.core_type = #tpu.core_type<tc>, window_params = [{transform_indices = @transform_0, window_bounds = array<i64: 128, 128>}, {transform_indices = @transform_1, window_bounds = array<i64: 128, 128>}, {transform_indices = @transform_2, window_bounds = array<i64: 1, 128>}, {transform_indices = @transform_3, window_bounds = array<i64: 128, 128>}, {transform_indices = @transform_4, window_bounds = array<i64: 128, 128>}]} {
    %c0 = arith.constant 0 : index
    %c0_0 = arith.constant 0 : index
    %0 = vector.load %arg2[%c0, %c0_0] : memref<128x128xbf16, #tpu.memory_space<vmem>>, vector<128x128xbf16>
    %c0_1 = arith.constant 0 : index
    %c0_2 = arith.constant 0 : index
    %1 = vector.load %arg3[%c0_1, %c0_2] : memref<128x128xbf16, #tpu.memory_space<vmem>>, vector<128x128xbf16>
    %cst = arith.constant dense<0.000000e+00> : vector<128x128xf32>
    %2 = tpu.matmul %0, %1, %cst {dimension_numbers = #tpu.dot_dimension_numbers<[1], [0], [0], [1], [0, 0, 1, 1], [], []>} : vector<128x128xbf16>, vector<128x128xbf16>, vector<128x128xf32> -> vector<128x128xf32>
    %c0_3 = arith.constant 0 : index
    %c0_4 = arith.constant 0 : index
    %3 = vector.load %arg4[%c0_3, %c0_4] : memref<1x128xf32, #tpu.memory_space<vmem>>, vector<1x128xf32>
    %4 = vector.broadcast %3 : vector<1x128xf32> to vector<128x128xf32>
    %5 = arith.addf %2, %4 : vector<128x128xf32>
    %c0_5 = arith.constant 0 : index
    %c0_6 = arith.constant 0 : index
    %6 = vector.load %arg5[%c0_5, %c0_6] : memref<128x128xbf16, #tpu.memory_space<vmem>>, vector<128x128xbf16>
    %7 = arith.extf %6 : vector<128x128xbf16> to vector<128x128xf32>
    %8 = arith.addf %5, %7 : vector<128x128xf32>
    %cst_7 = arith.constant 0.000000e+00 : f32
    %9 = vector.broadcast %cst_7 : f32 to vector<128x128xf32>
    %10 = arith.maximumf %8, %9 : vector<128x128xf32>
    %11 = arith.truncf %10 : vector<128x128xf32> to vector<128x128xbf16>
    %c0_8 = arith.constant 0 : index
    %c0_9 = arith.constant 0 : index
    %12 = vector.load %arg6[%c0_8, %c0_9] : memref<128x128xbf16, #tpu.memory_space<vmem>>, vector<128x128xbf16>
    tpu.vector_store %arg6[%c0_8, %c0_9], %11 {strides = array<i32>} : memref<128x128xbf16, #tpu.memory_space<vmem>>, vector<128x128xbf16>,
    return
  }
  func.func @transform_0(%arg0: i32, %arg1: i32) -> (i32, i32) {
    %c0_i32 = arith.constant 0 : i32
    %c0_i32_0 = arith.constant 0 : i32
    return %arg0, %c0_i32 : i32, i32
  }
  func.func @transform_1(%arg0: i32, %arg1: i32) -> (i32, i32) {
    %c0_i32 = arith.constant 0 : i32
    %c0_i32_0 = arith.constant 0 : i32
    return %c0_i32, %arg1 : i32, i32
  }
  func.func @transform_2(%arg0: i32, %arg1: i32) -> (i32, i32) {
    %c0_i32 = arith.constant 0 : i32
    %c0_i32_0 = arith.constant 0 : i32
    return %c0_i32, %arg1 : i32, i32
  }
  func.func @transform_3(%arg0: i32, %arg1: i32) -> (i32, i32) {
    %c0_i32 = arith.constant 0 : i32
    return %arg0, %arg1 : i32, i32
  }
  func.func @transform_4(%arg0: i32, %arg1: i32) -> (i32, i32) {
    %c0_i32 = arith.constant 0 : i32
    return %arg0, %arg1 : i32, i32
  }
}

module attributes {stable_mosaic.version = 11 : i64} {
  func.func @_conv_mm_kernel(%arg0: i32, %arg1: i32, %arg2: i32, %arg3: memref<128x384xbf16, #tpu.memory_space<vmem>>, %arg4: memref<384x128xbf16, #tpu.memory_space<vmem>>, %arg5: memref<1x128xf32, #tpu.memory_space<vmem>>, %arg6: memref<128x128xbf16, #tpu.memory_space<vmem>>, %arg7: memref<128x128xf32, #tpu.memory_space<vmem>>) attributes {dimension_semantics = [#tpu.dimension_semantics<parallel>, #tpu.dimension_semantics<parallel>, #tpu.dimension_semantics<arbitrary>], iteration_bounds = array<i64: 1, 1, 3>, scalar_prefetch = 0 : i64, scratch_operands = 1 : i64, tpu.core_type = #tpu.core_type<tc>, window_params = [{transform_indices = @transform_0, window_bounds = array<i64: 128, 384>}, {transform_indices = @transform_1, window_bounds = array<i64: 384, 128>}, {transform_indices = @transform_2, window_bounds = array<i64: 1, 128>}, {transform_indices = @transform_3, window_bounds = array<i64: 128, 128>}]} {
    %c0_i32 = arith.constant 0 : i32
    %0 = arith.cmpi eq, %arg2, %c0_i32 : i32
    %1 = arith.extui %0 : i1 to i32
    %c0_i32_0 = arith.constant 0 : i32
    %2 = arith.cmpi ne, %1, %c0_i32_0 : i32
    scf.if %2 {
      %cst_9 = arith.constant 0.000000e+00 : f32
      %12 = vector.broadcast %cst_9 : f32 to vector<128x128xf32>
      %c0_10 = arith.constant 0 : index
      %c0_11 = arith.constant 0 : index
      %13 = vector.load %arg7[%c0_10, %c0_11] : memref<128x128xf32, #tpu.memory_space<vmem>>, vector<128x128xf32>
      tpu.vector_store %arg7[%c0_10, %c0_11], %12 {strides = array<i32>} : memref<128x128xf32, #tpu.memory_space<vmem>>, vector<128x128xf32>,
    } else {
    }
    %c0 = arith.constant 0 : index
    %c0_1 = arith.constant 0 : index
    %3 = vector.load %arg7[%c0, %c0_1] : memref<128x128xf32, #tpu.memory_space<vmem>>, vector<128x128xf32>
    %c0_2 = arith.constant 0 : index
    %c0_3 = arith.constant 0 : index
    %4 = vector.load %arg3[%c0_2, %c0_3] : memref<128x384xbf16, #tpu.memory_space<vmem>>, vector<128x384xbf16>
    %c0_4 = arith.constant 0 : index
    %c0_5 = arith.constant 0 : index
    %5 = vector.load %arg4[%c0_4, %c0_5] : memref<384x128xbf16, #tpu.memory_space<vmem>>, vector<384x128xbf16>
    %cst = arith.constant dense<0.000000e+00> : vector<128x128xf32>
    %6 = tpu.matmul %4, %5, %cst {dimension_numbers = #tpu.dot_dimension_numbers<[1], [0], [0], [1], [0, 0, 1, 1], [], []>} : vector<128x384xbf16>, vector<384x128xbf16>, vector<128x128xf32> -> vector<128x128xf32>
    %7 = arith.addf %3, %6 : vector<128x128xf32>
    %c0_6 = arith.constant 0 : index
    %c0_7 = arith.constant 0 : index
    %8 = vector.load %arg7[%c0_6, %c0_7] : memref<128x128xf32, #tpu.memory_space<vmem>>, vector<128x128xf32>
    tpu.vector_store %arg7[%c0_6, %c0_7], %7 {strides = array<i32>} : memref<128x128xf32, #tpu.memory_space<vmem>>, vector<128x128xf32>,
    %c2_i32 = arith.constant 2 : i32
    %9 = arith.cmpi eq, %arg2, %c2_i32 : i32
    %10 = arith.extui %9 : i1 to i32
    %c0_i32_8 = arith.constant 0 : i32
    %11 = arith.cmpi ne, %10, %c0_i32_8 : i32
    scf.if %11 {
      %c0_9 = arith.constant 0 : index
      %c0_10 = arith.constant 0 : index
      %12 = vector.load %arg7[%c0_9, %c0_10] : memref<128x128xf32, #tpu.memory_space<vmem>>, vector<128x128xf32>
      %c0_11 = arith.constant 0 : index
      %c0_12 = arith.constant 0 : index
      %13 = vector.load %arg5[%c0_11, %c0_12] : memref<1x128xf32, #tpu.memory_space<vmem>>, vector<1x128xf32>
      %14 = vector.broadcast %13 : vector<1x128xf32> to vector<128x128xf32>
      %15 = arith.addf %12, %14 : vector<128x128xf32>
      %cst_13 = arith.constant 0.000000e+00 : f32
      %16 = vector.broadcast %cst_13 : f32 to vector<128x128xf32>
      %17 = arith.maximumf %15, %16 : vector<128x128xf32>
      %18 = arith.truncf %17 : vector<128x128xf32> to vector<128x128xbf16>
      %c0_14 = arith.constant 0 : index
      %c0_15 = arith.constant 0 : index
      %19 = vector.load %arg6[%c0_14, %c0_15] : memref<128x128xbf16, #tpu.memory_space<vmem>>, vector<128x128xbf16>
      tpu.vector_store %arg6[%c0_14, %c0_15], %18 {strides = array<i32>} : memref<128x128xbf16, #tpu.memory_space<vmem>>, vector<128x128xbf16>,
    } else {
    }
    return
  }
  func.func @transform_0(%arg0: i32, %arg1: i32, %arg2: i32) -> (i32, i32) {
    %c0_i32 = arith.constant 0 : i32
    return %arg0, %arg2 : i32, i32
  }
  func.func @transform_1(%arg0: i32, %arg1: i32, %arg2: i32) -> (i32, i32) {
    %c0_i32 = arith.constant 0 : i32
    return %arg2, %arg1 : i32, i32
  }
  func.func @transform_2(%arg0: i32, %arg1: i32, %arg2: i32) -> (i32, i32) {
    %c0_i32 = arith.constant 0 : i32
    %c0_i32_0 = arith.constant 0 : i32
    return %c0_i32, %arg1 : i32, i32
  }
  func.func @transform_3(%arg0: i32, %arg1: i32, %arg2: i32) -> (i32, i32) {
    %c0_i32 = arith.constant 0 : i32
    return %arg0, %arg1 : i32, i32
  }
}

module attributes {stable_mosaic.version = 11 : i64} {
  func.func @_ibn_kernel(%arg0: i32, %arg1: i32, %arg2: memref<1x16x128xbf16, #tpu.memory_space<vmem>>, %arg3: memref<1x1x128xf32, #tpu.memory_space<vmem>>, %arg4: memref<1x1x128xf32, #tpu.memory_space<vmem>>, %arg5: memref<1x1x128xf32, #tpu.memory_space<vmem>>, %arg6: memref<1x16x128xbf16, #tpu.memory_space<vmem>>) attributes {dimension_semantics = [#tpu.dimension_semantics<parallel>, #tpu.dimension_semantics<parallel>], iteration_bounds = array<i64: 2, 1>, scalar_prefetch = 0 : i64, scratch_operands = 0 : i64, tpu.core_type = #tpu.core_type<tc>, window_params = [{transform_indices = @transform_0, window_bounds = array<i64: 1, 16, 128>}, {transform_indices = @transform_1, window_bounds = array<i64: 1, 1, 128>}, {transform_indices = @transform_2, window_bounds = array<i64: 1, 1, 128>}, {transform_indices = @transform_3, window_bounds = array<i64: 1, 1, 128>}, {transform_indices = @transform_4, window_bounds = array<i64: 1, 16, 128>}]} {
    %c0 = arith.constant 0 : index
    %c0_0 = arith.constant 0 : index
    %c0_1 = arith.constant 0 : index
    %0 = vector.load %arg2[%c0, %c0_0, %c0_1] : memref<1x16x128xbf16, #tpu.memory_space<vmem>>, vector<1x16x128xbf16>
    %1 = arith.extf %0 : vector<1x16x128xbf16> to vector<1x16x128xf32>
    %cst = arith.constant dense<0.000000e+00> : vector<1x128xf32>
    %2 = vector.multi_reduction <add>, %1, %cst [1] : vector<1x16x128xf32> to vector<1x128xf32>
    %3 = vector.shape_cast %2 : vector<1x128xf32> to vector<1x1x128xf32>
    %cst_2 = arith.constant 6.250000e-02 : f32
    %4 = vector.broadcast %cst_2 : f32 to vector<1x1x128xf32>
    %5 = arith.mulf %3, %4 : vector<1x1x128xf32>
    %6 = vector.broadcast %5 : vector<1x1x128xf32> to vector<1x16x128xf32>
    %7 = arith.subf %1, %6 : vector<1x16x128xf32>
    %8 = arith.mulf %7, %7 : vector<1x16x128xf32>
    %cst_3 = arith.constant dense<0.000000e+00> : vector<1x128xf32>
    %9 = vector.multi_reduction <add>, %8, %cst_3 [1] : vector<1x16x128xf32> to vector<1x128xf32>
    %10 = vector.shape_cast %9 : vector<1x128xf32> to vector<1x1x128xf32>
    %cst_4 = arith.constant 6.250000e-02 : f32
    %11 = vector.broadcast %cst_4 : f32 to vector<1x1x128xf32>
    %12 = arith.mulf %10, %11 : vector<1x1x128xf32>
    %cst_5 = arith.constant 9.99999974E-6 : f32
    %13 = vector.broadcast %cst_5 : f32 to vector<1x1x128xf32>
    %14 = arith.addf %12, %13 : vector<1x1x128xf32>
    %15 = math.rsqrt %14 : vector<1x1x128xf32>
    %16 = vector.broadcast %15 : vector<1x1x128xf32> to vector<1x16x128xf32>
    %17 = arith.mulf %7, %16 : vector<1x16x128xf32>
    %c0_6 = arith.constant 0 : index
    %c0_7 = arith.constant 0 : index
    %c0_8 = arith.constant 0 : index
    %18 = vector.load %arg3[%c0_6, %c0_7, %c0_8] : memref<1x1x128xf32, #tpu.memory_space<vmem>>, vector<1x1x128xf32>
    %19 = vector.broadcast %18 : vector<1x1x128xf32> to vector<1x16x128xf32>
    %20 = arith.mulf %17, %19 : vector<1x16x128xf32>
    %c0_9 = arith.constant 0 : index
    %c0_10 = arith.constant 0 : index
    %c0_11 = arith.constant 0 : index
    %21 = vector.load %arg4[%c0_9, %c0_10, %c0_11] : memref<1x1x128xf32, #tpu.memory_space<vmem>>, vector<1x1x128xf32>
    %22 = vector.broadcast %21 : vector<1x1x128xf32> to vector<1x16x128xf32>
    %23 = arith.addf %20, %22 : vector<1x16x128xf32>
    %c0_12 = arith.constant 0 : index
    %c0_13 = arith.constant 0 : index
    %c0_14 = arith.constant 0 : index
    %24 = vector.load %arg5[%c0_12, %c0_13, %c0_14] : memref<1x1x128xf32, #tpu.memory_space<vmem>>, vector<1x1x128xf32>
    %cst_15 = arith.constant 5.000000e-01 : f32
    %25 = vector.broadcast %cst_15 : f32 to vector<1x1x128xf32>
    %26 = arith.cmpf ogt, %24, %25 : vector<1x1x128xf32>
    %27 = vector.shape_cast %26 : vector<1x1x128xi1> to vector<1x1x128xi1>
    %28 = vector.broadcast %27 : vector<1x1x128xi1> to vector<1x16x128xi1>
    %29 = arith.select %28, %23, %1 : vector<1x16x128xi1>, vector<1x16x128xf32>
    %cst_16 = arith.constant 0.000000e+00 : f32
    %30 = vector.broadcast %cst_16 : f32 to vector<1x16x128xf32>
    %31 = arith.maximumf %29, %30 : vector<1x16x128xf32>
    %32 = arith.truncf %31 : vector<1x16x128xf32> to vector<1x16x128xbf16>
    %c0_17 = arith.constant 0 : index
    %c0_18 = arith.constant 0 : index
    %c0_19 = arith.constant 0 : index
    %33 = vector.load %arg6[%c0_17, %c0_18, %c0_19] : memref<1x16x128xbf16, #tpu.memory_space<vmem>>, vector<1x16x128xbf16>
    tpu.vector_store %arg6[%c0_17, %c0_18, %c0_19], %32 {strides = array<i32>} : memref<1x16x128xbf16, #tpu.memory_space<vmem>>, vector<1x16x128xbf16>,
    return
  }
  func.func @transform_0(%arg0: i32, %arg1: i32) -> (i32, i32, i32) {
    %c0_i32 = arith.constant 0 : i32
    %c0_i32_0 = arith.constant 0 : i32
    return %arg0, %c0_i32, %arg1 : i32, i32, i32
  }
  func.func @transform_1(%arg0: i32, %arg1: i32) -> (i32, i32, i32) {
    %c0_i32 = arith.constant 0 : i32
    %c0_i32_0 = arith.constant 0 : i32
    %c0_i32_1 = arith.constant 0 : i32
    return %c0_i32, %c0_i32_0, %arg1 : i32, i32, i32
  }
  func.func @transform_2(%arg0: i32, %arg1: i32) -> (i32, i32, i32) {
    %c0_i32 = arith.constant 0 : i32
    %c0_i32_0 = arith.constant 0 : i32
    %c0_i32_1 = arith.constant 0 : i32
    return %c0_i32, %c0_i32_0, %arg1 : i32, i32, i32
  }
  func.func @transform_3(%arg0: i32, %arg1: i32) -> (i32, i32, i32) {
    %c0_i32 = arith.constant 0 : i32
    %c0_i32_0 = arith.constant 0 : i32
    %c0_i32_1 = arith.constant 0 : i32
    return %c0_i32, %c0_i32_0, %arg1 : i32, i32, i32
  }
  func.func @transform_4(%arg0: i32, %arg1: i32) -> (i32, i32, i32) {
    %c0_i32 = arith.constant 0 : i32
    %c0_i32_0 = arith.constant 0 : i32
    return %arg0, %c0_i32, %arg1 : i32, i32, i32
  }
}

module attributes {stable_mosaic.version = 11 : i64} {
  func.func @_conv_mm_kernel_k1(%arg0: i32, %arg1: i32, %arg2: memref<128x128xbf16, #tpu.memory_space<vmem>>, %arg3: memref<128x128xbf16, #tpu.memory_space<vmem>>, %arg4: memref<1x128xf32, #tpu.memory_space<vmem>>, %arg5: memref<128x128xbf16, #tpu.memory_space<vmem>>) attributes {dimension_semantics = [#tpu.dimension_semantics<parallel>, #tpu.dimension_semantics<parallel>], iteration_bounds = array<i64: 1, 1>, scalar_prefetch = 0 : i64, scratch_operands = 0 : i64, tpu.core_type = #tpu.core_type<tc>, window_params = [{transform_indices = @transform_0, window_bounds = array<i64: 128, 128>}, {transform_indices = @transform_1, window_bounds = array<i64: 128, 128>}, {transform_indices = @transform_2, window_bounds = array<i64: 1, 128>}, {transform_indices = @transform_3, window_bounds = array<i64: 128, 128>}]} {
    %c0 = arith.constant 0 : index
    %c0_0 = arith.constant 0 : index
    %0 = vector.load %arg2[%c0, %c0_0] : memref<128x128xbf16, #tpu.memory_space<vmem>>, vector<128x128xbf16>
    %c0_1 = arith.constant 0 : index
    %c0_2 = arith.constant 0 : index
    %1 = vector.load %arg3[%c0_1, %c0_2] : memref<128x128xbf16, #tpu.memory_space<vmem>>, vector<128x128xbf16>
    %cst = arith.constant dense<0.000000e+00> : vector<128x128xf32>
    %2 = tpu.matmul %0, %1, %cst {dimension_numbers = #tpu.dot_dimension_numbers<[1], [0], [0], [1], [0, 0, 1, 1], [], []>} : vector<128x128xbf16>, vector<128x128xbf16>, vector<128x128xf32> -> vector<128x128xf32>
    %c0_3 = arith.constant 0 : index
    %c0_4 = arith.constant 0 : index
    %3 = vector.load %arg4[%c0_3, %c0_4] : memref<1x128xf32, #tpu.memory_space<vmem>>, vector<1x128xf32>
    %4 = vector.broadcast %3 : vector<1x128xf32> to vector<128x128xf32>
    %5 = arith.addf %2, %4 : vector<128x128xf32>
    %cst_5 = arith.constant 0.000000e+00 : f32
    %6 = vector.broadcast %cst_5 : f32 to vector<128x128xf32>
    %7 = arith.maximumf %5, %6 : vector<128x128xf32>
    %8 = arith.truncf %7 : vector<128x128xf32> to vector<128x128xbf16>
    %c0_6 = arith.constant 0 : index
    %c0_7 = arith.constant 0 : index
    %9 = vector.load %arg5[%c0_6, %c0_7] : memref<128x128xbf16, #tpu.memory_space<vmem>>, vector<128x128xbf16>
    tpu.vector_store %arg5[%c0_6, %c0_7], %8 {strides = array<i32>} : memref<128x128xbf16, #tpu.memory_space<vmem>>, vector<128x128xbf16>,
    return
  }
  func.func @transform_0(%arg0: i32, %arg1: i32) -> (i32, i32) {
    %c0_i32 = arith.constant 0 : i32
    %c0_i32_0 = arith.constant 0 : i32
    return %arg0, %c0_i32 : i32, i32
  }
  func.func @transform_1(%arg0: i32, %arg1: i32) -> (i32, i32) {
    %c0_i32 = arith.constant 0 : i32
    %c0_i32_0 = arith.constant 0 : i32
    return %c0_i32, %arg1 : i32, i32
  }
  func.func @transform_2(%arg0: i32, %arg1: i32) -> (i32, i32) {
    %c0_i32 = arith.constant 0 : i32
    %c0_i32_0 = arith.constant 0 : i32
    return %c0_i32, %arg1 : i32, i32
  }
  func.func @transform_3(%arg0: i32, %arg1: i32) -> (i32, i32) {
    %c0_i32 = arith.constant 0 : i32
    return %arg0, %arg1 : i32, i32
  }
}

module attributes {stable_mosaic.version = 11 : i64} {
  func.func @_conv_mm_kernel_k1(%arg0: i32, %arg1: i32, %arg2: memref<128x128xbf16, #tpu.memory_space<vmem>>, %arg3: memref<128x128xbf16, #tpu.memory_space<vmem>>, %arg4: memref<1x128xf32, #tpu.memory_space<vmem>>, %arg5: memref<128x128xbf16, #tpu.memory_space<vmem>>) attributes {dimension_semantics = [#tpu.dimension_semantics<parallel>, #tpu.dimension_semantics<parallel>], iteration_bounds = array<i64: 1, 2>, scalar_prefetch = 0 : i64, scratch_operands = 0 : i64, tpu.core_type = #tpu.core_type<tc>, window_params = [{transform_indices = @transform_0, window_bounds = array<i64: 128, 128>}, {transform_indices = @transform_1, window_bounds = array<i64: 128, 128>}, {transform_indices = @transform_2, window_bounds = array<i64: 1, 128>}, {transform_indices = @transform_3, window_bounds = array<i64: 128, 128>}]} {
    %c0 = arith.constant 0 : index
    %c0_0 = arith.constant 0 : index
    %0 = vector.load %arg2[%c0, %c0_0] : memref<128x128xbf16, #tpu.memory_space<vmem>>, vector<128x128xbf16>
    %c0_1 = arith.constant 0 : index
    %c0_2 = arith.constant 0 : index
    %1 = vector.load %arg3[%c0_1, %c0_2] : memref<128x128xbf16, #tpu.memory_space<vmem>>, vector<128x128xbf16>
    %cst = arith.constant dense<0.000000e+00> : vector<128x128xf32>
    %2 = tpu.matmul %0, %1, %cst {dimension_numbers = #tpu.dot_dimension_numbers<[1], [0], [0], [1], [0, 0, 1, 1], [], []>} : vector<128x128xbf16>, vector<128x128xbf16>, vector<128x128xf32> -> vector<128x128xf32>
    %c0_3 = arith.constant 0 : index
    %c0_4 = arith.constant 0 : index
    %3 = vector.load %arg4[%c0_3, %c0_4] : memref<1x128xf32, #tpu.memory_space<vmem>>, vector<1x128xf32>
    %4 = vector.broadcast %3 : vector<1x128xf32> to vector<128x128xf32>
    %5 = arith.addf %2, %4 : vector<128x128xf32>
    %6 = arith.truncf %5 : vector<128x128xf32> to vector<128x128xbf16>
    %c0_5 = arith.constant 0 : index
    %c0_6 = arith.constant 0 : index
    %7 = vector.load %arg5[%c0_5, %c0_6] : memref<128x128xbf16, #tpu.memory_space<vmem>>, vector<128x128xbf16>
    tpu.vector_store %arg5[%c0_5, %c0_6], %6 {strides = array<i32>} : memref<128x128xbf16, #tpu.memory_space<vmem>>, vector<128x128xbf16>,
    return
  }
  func.func @transform_0(%arg0: i32, %arg1: i32) -> (i32, i32) {
    %c0_i32 = arith.constant 0 : i32
    %c0_i32_0 = arith.constant 0 : i32
    return %arg0, %c0_i32 : i32, i32
  }
  func.func @transform_1(%arg0: i32, %arg1: i32) -> (i32, i32) {
    %c0_i32 = arith.constant 0 : i32
    %c0_i32_0 = arith.constant 0 : i32
    return %c0_i32, %arg1 : i32, i32
  }
  func.func @transform_2(%arg0: i32, %arg1: i32) -> (i32, i32) {
    %c0_i32 = arith.constant 0 : i32
    %c0_i32_0 = arith.constant 0 : i32
    return %c0_i32, %arg1 : i32, i32
  }
  func.func @transform_3(%arg0: i32, %arg1: i32) -> (i32, i32) {
    %c0_i32 = arith.constant 0 : i32
    return %arg0, %arg1 : i32, i32
  }
}

module attributes {stable_mosaic.version = 11 : i64} {
  func.func @_conv_mm_kernel_k1(%arg0: i32, %arg1: i32, %arg2: memref<128x128xbf16, #tpu.memory_space<vmem>>, %arg3: memref<128x128xbf16, #tpu.memory_space<vmem>>, %arg4: memref<1x128xf32, #tpu.memory_space<vmem>>, %arg5: memref<128x128xbf16, #tpu.memory_space<vmem>>, %arg6: memref<128x128xbf16, #tpu.memory_space<vmem>>) attributes {dimension_semantics = [#tpu.dimension_semantics<parallel>, #tpu.dimension_semantics<parallel>], iteration_bounds = array<i64: 1, 2>, scalar_prefetch = 0 : i64, scratch_operands = 0 : i64, tpu.core_type = #tpu.core_type<tc>, window_params = [{transform_indices = @transform_0, window_bounds = array<i64: 128, 128>}, {transform_indices = @transform_1, window_bounds = array<i64: 128, 128>}, {transform_indices = @transform_2, window_bounds = array<i64: 1, 128>}, {transform_indices = @transform_3, window_bounds = array<i64: 128, 128>}, {transform_indices = @transform_4, window_bounds = array<i64: 128, 128>}]} {
    %c0 = arith.constant 0 : index
    %c0_0 = arith.constant 0 : index
    %0 = vector.load %arg2[%c0, %c0_0] : memref<128x128xbf16, #tpu.memory_space<vmem>>, vector<128x128xbf16>
    %c0_1 = arith.constant 0 : index
    %c0_2 = arith.constant 0 : index
    %1 = vector.load %arg3[%c0_1, %c0_2] : memref<128x128xbf16, #tpu.memory_space<vmem>>, vector<128x128xbf16>
    %cst = arith.constant dense<0.000000e+00> : vector<128x128xf32>
    %2 = tpu.matmul %0, %1, %cst {dimension_numbers = #tpu.dot_dimension_numbers<[1], [0], [0], [1], [0, 0, 1, 1], [], []>} : vector<128x128xbf16>, vector<128x128xbf16>, vector<128x128xf32> -> vector<128x128xf32>
    %c0_3 = arith.constant 0 : index
    %c0_4 = arith.constant 0 : index
    %3 = vector.load %arg4[%c0_3, %c0_4] : memref<1x128xf32, #tpu.memory_space<vmem>>, vector<1x128xf32>
    %4 = vector.broadcast %3 : vector<1x128xf32> to vector<128x128xf32>
    %5 = arith.addf %2, %4 : vector<128x128xf32>
    %c0_5 = arith.constant 0 : index
    %c0_6 = arith.constant 0 : index
    %6 = vector.load %arg5[%c0_5, %c0_6] : memref<128x128xbf16, #tpu.memory_space<vmem>>, vector<128x128xbf16>
    %7 = arith.extf %6 : vector<128x128xbf16> to vector<128x128xf32>
    %8 = arith.addf %5, %7 : vector<128x128xf32>
    %cst_7 = arith.constant 0.000000e+00 : f32
    %9 = vector.broadcast %cst_7 : f32 to vector<128x128xf32>
    %10 = arith.maximumf %8, %9 : vector<128x128xf32>
    %11 = arith.truncf %10 : vector<128x128xf32> to vector<128x128xbf16>
    %c0_8 = arith.constant 0 : index
    %c0_9 = arith.constant 0 : index
    %12 = vector.load %arg6[%c0_8, %c0_9] : memref<128x128xbf16, #tpu.memory_space<vmem>>, vector<128x128xbf16>
    tpu.vector_store %arg6[%c0_8, %c0_9], %11 {strides = array<i32>} : memref<128x128xbf16, #tpu.memory_space<vmem>>, vector<128x128xbf16>,
    return
  }
  func.func @transform_0(%arg0: i32, %arg1: i32) -> (i32, i32) {
    %c0_i32 = arith.constant 0 : i32
    %c0_i32_0 = arith.constant 0 : i32
    return %arg0, %c0_i32 : i32, i32
  }
  func.func @transform_1(%arg0: i32, %arg1: i32) -> (i32, i32) {
    %c0_i32 = arith.constant 0 : i32
    %c0_i32_0 = arith.constant 0 : i32
    return %c0_i32, %arg1 : i32, i32
  }
  func.func @transform_2(%arg0: i32, %arg1: i32) -> (i32, i32) {
    %c0_i32 = arith.constant 0 : i32
    %c0_i32_0 = arith.constant 0 : i32
    return %c0_i32, %arg1 : i32, i32
  }
  func.func @transform_3(%arg0: i32, %arg1: i32) -> (i32, i32) {
    %c0_i32 = arith.constant 0 : i32
    return %arg0, %arg1 : i32, i32
  }
  func.func @transform_4(%arg0: i32, %arg1: i32) -> (i32, i32) {
    %c0_i32 = arith.constant 0 : i32
    return %arg0, %arg1 : i32, i32
  }
}

module attributes {stable_mosaic.version = 11 : i64} {
  func.func @_gap_kernel(%arg0: i32, %arg1: memref<2x4x128xbf16, #tpu.memory_space<vmem>>, %arg2: memref<2x128xf32, #tpu.memory_space<vmem>>) attributes {dimension_semantics = [#tpu.dimension_semantics<parallel>], iteration_bounds = array<i64: 2>, scalar_prefetch = 0 : i64, scratch_operands = 0 : i64, tpu.core_type = #tpu.core_type<tc>, window_params = [{transform_indices = @transform_0, window_bounds = array<i64: 2, 4, 128>}, {transform_indices = @transform_1, window_bounds = array<i64: 2, 128>}]} {
    %c0 = arith.constant 0 : index
    %c0_0 = arith.constant 0 : index
    %c0_1 = arith.constant 0 : index
    %0 = vector.load %arg1[%c0, %c0_0, %c0_1] : memref<2x4x128xbf16, #tpu.memory_space<vmem>>, vector<2x4x128xbf16>
    %1 = arith.extf %0 : vector<2x4x128xbf16> to vector<2x4x128xf32>
    %cst = arith.constant dense<0.000000e+00> : vector<2x128xf32>
    %2 = vector.multi_reduction <add>, %1, %cst [1] : vector<2x4x128xf32> to vector<2x128xf32>
    %cst_2 = arith.constant 4.000000e+00 : f32
    %3 = vector.broadcast %cst_2 : f32 to vector<2x128xf32>
    %4 = arith.divf %2, %3 : vector<2x128xf32>
    %c0_3 = arith.constant 0 : index
    %c0_4 = arith.constant 0 : index
    %5 = vector.load %arg2[%c0_3, %c0_4] : memref<2x128xf32, #tpu.memory_space<vmem>>, vector<2x128xf32>
    tpu.vector_store %arg2[%c0_3, %c0_4], %4 {strides = array<i32>} : memref<2x128xf32, #tpu.memory_space<vmem>>, vector<2x128xf32>,
    return
  }
  func.func @transform_0(%arg0: i32) -> (i32, i32, i32) {
    %c0_i32 = arith.constant 0 : i32
    %c0_i32_0 = arith.constant 0 : i32
    %c0_i32_1 = arith.constant 0 : i32
    return %c0_i32, %c0_i32_0, %arg0 : i32, i32, i32
  }
  func.func @transform_1(%arg0: i32) -> (i32, i32) {
    %c0_i32 = arith.constant 0 : i32
    %c0_i32_0 = arith.constant 0 : i32
    return %c0_i32, %arg0 : i32, i32
  }
}

module attributes {stable_mosaic.version = 11 : i64} {
  func.func @_head_kernel(%arg0: i32, %arg1: memref<2x256xf32, #tpu.memory_space<vmem>>, %arg2: memref<1x256xf32, #tpu.memory_space<vmem>>, %arg3: memref<1x256xf32, #tpu.memory_space<vmem>>, %arg4: memref<2x256xf32, #tpu.memory_space<vmem>>) attributes {dimension_semantics = [#tpu.dimension_semantics<arbitrary>], iteration_bounds = array<i64: 1>, scalar_prefetch = 0 : i64, scratch_operands = 0 : i64, tpu.core_type = #tpu.core_type<tc>, window_params = [{pipeline_mode = #tpu.pipeline_mode<synchronous>, transform_indices = @transform_0, window_bounds = array<i64: 2, 256>}, {pipeline_mode = #tpu.pipeline_mode<synchronous>, transform_indices = @transform_1, window_bounds = array<i64: 1, 256>}, {pipeline_mode = #tpu.pipeline_mode<synchronous>, transform_indices = @transform_2, window_bounds = array<i64: 1, 256>}, {pipeline_mode = #tpu.pipeline_mode<synchronous>, transform_indices = @transform_3, window_bounds = array<i64: 2, 256>}]} {
    %c0 = arith.constant 0 : index
    %c0_0 = arith.constant 0 : index
    %0 = vector.load %arg1[%c0, %c0_0] : memref<2x256xf32, #tpu.memory_space<vmem>>, vector<2x256xf32>
    %c0_1 = arith.constant 0 : index
    %c0_2 = arith.constant 0 : index
    %1 = vector.load %arg2[%c0_1, %c0_2] : memref<1x256xf32, #tpu.memory_space<vmem>>, vector<1x256xf32>
    %2 = vector.broadcast %1 : vector<1x256xf32> to vector<2x256xf32>
    %3 = arith.mulf %0, %2 : vector<2x256xf32>
    %c0_3 = arith.constant 0 : index
    %c0_4 = arith.constant 0 : index
    %4 = vector.load %arg3[%c0_3, %c0_4] : memref<1x256xf32, #tpu.memory_space<vmem>>, vector<1x256xf32>
    %5 = vector.broadcast %4 : vector<1x256xf32> to vector<2x256xf32>
    %6 = arith.addf %3, %5 : vector<2x256xf32>
    %7 = arith.mulf %6, %6 : vector<2x256xf32>
    %cst = arith.constant dense<0.000000e+00> : vector<2xf32>
    %8 = vector.multi_reduction <add>, %7, %cst [1] : vector<2x256xf32> to vector<2xf32>
    %9 = vector.shape_cast %8 : vector<2xf32> to vector<2x1xf32>
    %10 = math.sqrt %9 : vector<2x1xf32>
    %cst_5 = arith.constant 9.99999996E-13 : f32
    %11 = vector.broadcast %cst_5 : f32 to vector<2x1xf32>
    %12 = arith.maximumf %10, %11 : vector<2x1xf32>
    %13 = vector.broadcast %12 : vector<2x1xf32> to vector<2x256xf32>
    %14 = arith.divf %6, %13 : vector<2x256xf32>
    %c0_6 = arith.constant 0 : index
    %c0_7 = arith.constant 0 : index
    %15 = vector.load %arg4[%c0_6, %c0_7] : memref<2x256xf32, #tpu.memory_space<vmem>>, vector<2x256xf32>
    tpu.vector_store %arg4[%c0_6, %c0_7], %14 {strides = array<i32>} : memref<2x256xf32, #tpu.memory_space<vmem>>, vector<2x256xf32>,
    return
  }
  func.func @transform_0(%arg0: i32) -> (i32, i32) {
    %c0_i32 = arith.constant 0 : i32
    %c0_i32_0 = arith.constant 0 : i32
    %c0_i32_1 = arith.constant 0 : i32
    return %c0_i32, %c0_i32_0 : i32, i32
  }
  func.func @transform_1(%arg0: i32) -> (i32, i32) {
    %c0_i32 = arith.constant 0 : i32
    %c0_i32_0 = arith.constant 0 : i32
    %c0_i32_1 = arith.constant 0 : i32
    return %c0_i32, %c0_i32_0 : i32, i32
  }
  func.func @transform_2(%arg0: i32) -> (i32, i32) {
    %c0_i32 = arith.constant 0 : i32
    %c0_i32_0 = arith.constant 0 : i32
    %c0_i32_1 = arith.constant 0 : i32
    return %c0_i32, %c0_i32_0 : i32, i32
  }
  func.func @transform_3(%arg0: i32) -> (i32, i32) {
    %c0_i32 = arith.constant 0 : i32
    %c0_i32_0 = arith.constant 0 : i32
    %c0_i32_1 = arith.constant 0 : i32
    return %c0_i32, %c0_i32_0 : i32, i32
  }
}

</mosaic_0001>

<llo_original>
// kernel: _lambda_.25
$region0: #{_lambda_.25}
  #allocation0 [shape = 'u32[]', space=smem, size = 0x4, offset = 0x4, fixed_abs, tag = 'smem constant byte address 0x4 - core index']
  #allocation1 [shape = 'u32[72,128]{1,0:T(1,128)}', space=vmem, size = 0x9000, scoped, tag = 'internal scratch']
  %s0 = inlined_call_operand.vmem [shape: bf16[128,128], index: 0, kind: input, shape index: {}]
  %s1 = inlined_call_operand.vmem [shape: bf16[128,128], index: 1, kind: input, shape index: {}]
  %s2 = inlined_call_operand.vmem [shape: f32[1,128], index: 2, kind: input, shape index: {}]
  %s3 = inlined_call_operand.vmem [shape: bf16[128,128], index: 3, kind: output, shape index: {}]
  %s4 = sld [smem:[#allocation0]]
  $region22: #{_lambda_.25} parent=0
    _
  %s6 = ssub.s32 1, %s4
  %s7 = scalar_select 0, %s6, %s4
  // Predicated region
  $region2: #{_lambda_.25} parent=0 // pred_check
    _
  $region3: #{_lambda_.25} parent=0 // pred_check_branch
    %9 = sbr.rel (0) target = $region5
  $region4: #{_lambda_.25} parent=0 // pred_region
    _
  $region5: #{_lambda_.25} parent=0 // pred_fallthru
    _
  // Predicated region
  $region6: #{_lambda_.25} parent=0 // pred_check
    _
  $region7: #{_lambda_.25} parent=0 // pred_check_branch
    %11 = sbr.rel (0) target = $region9
  $region8: #{_lambda_.25} parent=0 // pred_region
    _
  $region9: #{_lambda_.25} parent=0 // pred_fallthru
    _
  // Predicated region
  $region10: #{_lambda_.25} parent=0 // pred_check
    _
  $region11: #{_lambda_.25} parent=0 // pred_check_branch
    %13 = sbr.rel (0) target = $region13
  $region12: #{_lambda_.25} parent=0 // pred_region
    _
  $region13: #{_lambda_.25} parent=0 // pred_fallthru
    _
  %v14 = vld [vmem:[%s0] sm:$0xf]
  %v15 = vld [vmem:[%s0 + $0x4] sm:$0xf]
  %v16 = vld [vmem:[%s0 + $0x8] sm:$0xf]
  %v17 = vld [vmem:[%s0 + $0xc] sm:$0xf]
  %v18 = vld [vmem:[%s0 + $0x10] sm:$0xf]
  %v19 = vld [vmem:[%s0 + $0x14] sm:$0xf]
  %v20 = vld [vmem:[%s0 + $0x18] sm:$0xf]
  %v21 = vld [vmem:[%s0 + $0x1c] sm:$0xf]
  %v22 = vld [vmem:[%s0 + $0x20] sm:$0xf]
  %v23 = vld [vmem:[%s0 + $0x24] sm:$0xf]
  %v24 = vld [vmem:[%s0 + $0x28] sm:$0xf]
  %v25 = vld [vmem:[%s0 + $0x2c] sm:$0xf]
  %v26 = vld [vmem:[%s0 + $0x30] sm:$0xf]
  %v27 = vld [vmem:[%s0 + $0x34] sm:$0xf]
  %v28 = vld [vmem:[%s0 + $0x38] sm:$0xf]
  %v29 = vld [vmem:[%s0 + $0x3c] sm:$0xf]
  %v30 = vld [vmem:[%s1] sm:$0xf]
  %v31 = vld [vmem:[%s1 + $0x4] sm:$0xf]
  %v32 = vld [vmem:[%s1 + $0x8] sm:$0xf]
  %v33 = vld [vmem:[%s1 + $0xc] sm:$0xf]
  %v34 = vld [vmem:[%s1 + $0x10] sm:$0xf]
  %v35 = vld [vmem:[%s1 + $0x14] sm:$0xf]
  %v36 = vld [vmem:[%s1 + $0x18] sm:$0xf]
  %v37 = vld [vmem:[%s1 + $0x1c] sm:$0xf]
  %v38 = vld [vmem:[%s1 + $0x20] sm:$0xf]
  %v39 = vld [vmem:[%s1 + $0x24] sm:$0xf]
  %v40 = vld [vmem:[%s1 + $0x28] sm:$0xf]
  %v41 = vld [vmem:[%s1 + $0x2c] sm:$0xf]
  %v42 = vld [vmem:[%s1 + $0x30] sm:$0xf]
  %v43 = vld [vmem:[%s1 + $0x34] sm:$0xf]
  %v44 = vld [vmem:[%s1 + $0x38] sm:$0xf]
  %v45 = vld [vmem:[%s1 + $0x3c] sm:$0xf]
  %v46 = vld [vmem:[%s2] sm:$0x1]
  %v48 = vperm.slane %v46, 0
  %v66 = vunpack.c.l.b16 %v14
  %v67 = vunpack.c.l.b16 %v15
  %v68 = vunpack.c.l.b16 %v16
  %v69 = vunpack.c.l.b16 %v17
  %v70 = vunpack.c.l.b16 %v18
  %v71 = vunpack.c.l.b16 %v19
  %v72 = vunpack.c.l.b16 %v20
  %v73 = vunpack.c.l.b16 %v21
  %v74 = vunpack.c.l.b16 %v22
  %v75 = vunpack.c.l.b16 %v23
  %v76 = vunpack.c.l.b16 %v24
  %v77 = vunpack.c.l.b16 %v25
  %v78 = vunpack.c.l.b16 %v26
  %v79 = vunpack.c.l.b16 %v27
  %v80 = vunpack.c.l.b16 %v28
  %v81 = vunpack.c.l.b16 %v29
  %v82 = vpack.c.b16 %v67, %v66
  %v83 = vpack.c.b16 %v69, %v68
  %v84 = vpack.c.b16 %v71, %v70
  %v85 = vpack.c.b16 %v73, %v72
  %v86 = vpack.c.b16 %v75, %v74
  %v87 = vpack.c.b16 %v77, %v76
  %v88 = vpack.c.b16 %v79, %v78
  %v89 = vpack.c.b16 %v81, %v80
  %v114 = vunpack.c.l.b16 %v30
  %v115 = vunpack.c.l.b16 %v31
  %v116 = vunpack.c.l.b16 %v32
  %v117 = vunpack.c.l.b16 %v33
  %v118 = vunpack.c.l.b16 %v34
  %v119 = vunpack.c.l.b16 %v35
  %v120 = vunpack.c.l.b16 %v36
  %v121 = vunpack.c.l.b16 %v37
  %v122 = vunpack.c.l.b16 %v38
  %v123 = vunpack.c.l.b16 %v39
  %v124 = vunpack.c.l.b16 %v40
  %v125 = vunpack.c.l.b16 %v41
  %v126 = vunpack.c.l.b16 %v42
  %v127 = vunpack.c.l.b16 %v43
  %v128 = vunpack.c.l.b16 %v44
  %v129 = vunpack.c.l.b16 %v45
  %v130 = vpack.c.b16 %v115, %v114
  %v131 = vpack.c.b16 %v117, %v116
  %v132 = vpack.c.b16 %v119, %v118
  %v133 = vpack.c.b16 %v121, %v120
  %v134 = vpack.c.b16 %v123, %v122
  %v135 = vpack.c.b16 %v125, %v124
  %v136 = vpack.c.b16 %v127, %v126
  %v137 = vpack.c.b16 %v129, %v128
  %146 = vmatpush.bf16.msra.mxu0 %v137
  %147 = vmatpush.bf16.msra.mxu0 %v136
  %148 = vmatpush.bf16.msra.mxu0 %v135
  %149 = vmatpush.bf16.msra.mxu0 %v134
  %150 = vmatpush.bf16.msra.mxu0 %v133
  %151 = vmatpush.bf16.msra.mxu0 %v132
  %152 = vmatpush.bf16.msra.mxu0 %v131
  %153 = vmatpush.bf16.msra.mxu0 %v130
  %154 = vmatmul.bf16.gmra.mxu0 %v82
  %v155 = vpop.f32.mrf.mxu0
  %v156 = vadd.f32 %v48, %v155
  %v157 = vpop.f32.mrf.mxu0
  %v158 = vadd.f32 %v48, %v157
  %159 = vmatmul.bf16.gmra.mxu0 %v83
  %v160 = vpop.f32.mrf.mxu0
  %v161 = vadd.f32 %v48, %v160
  %v162 = vpop.f32.mrf.mxu0
  %v163 = vadd.f32 %v48, %v162
  %164 = vmatmul.bf16.gmra.mxu0 %v84
  %v165 = vpop.f32.mrf.mxu0
  %v166 = vadd.f32 %v48, %v165
  %v167 = vpop.f32.mrf.mxu0
  %v168 = vadd.f32 %v48, %v167
  %169 = vmatmul.bf16.gmra.mxu0 %v85
  %v170 = vpop.f32.mrf.mxu0
  %v171 = vadd.f32 %v48, %v170
  %v172 = vpop.f32.mrf.mxu0
  %v173 = vadd.f32 %v48, %v172
  %174 = vmatmul.bf16.gmra.mxu0 %v86
  %v175 = vpop.f32.mrf.mxu0
  %v176 = vadd.f32 %v48, %v175
  %v177 = vpop.f32.mrf.mxu0
  %v178 = vadd.f32 %v48, %v177
  %179 = vmatmul.bf16.gmra.mxu0 %v87
  %v180 = vpop.f32.mrf.mxu0
  %v181 = vadd.f32 %v48, %v180
  %v182 = vpop.f32.mrf.mxu0
  %v183 = vadd.f32 %v48, %v182
  %184 = vmatmul.bf16.gmra.mxu0 %v88
  %v185 = vpop.f32.mrf.mxu0
  %v186 = vadd.f32 %v48, %v185
  %v187 = vpop.f32.mrf.mxu0
  %v188 = vadd.f32 %v48, %v187
  %189 = vmatmul.bf16.gmra.mxu0 %v89
  %v190 = vpop.f32.mrf.mxu0
  %v191 = vadd.f32 %v48, %v190
  %v192 = vpop.f32.mrf.mxu0
  %v193 = vadd.f32 %v48, %v192
  %194 = vdwg.mxu0
  %v195 = vpack.c.bf16 %v156, %v156
  %v196 = vpack.c.bf16 %v158, %v158
  %v197 = vpack.c.bf16 %v161, %v161
  %v198 = vpack.c.bf16 %v163, %v163
  %v199 = vpack.c.bf16 %v166, %v166
  %v200 = vpack.c.bf16 %v168, %v168
  %v201 = vpack.c.bf16 %v171, %v171
  %v202 = vpack.c.bf16 %v173, %v173
  %v203 = vpack.c.bf16 %v176, %v176
  %v204 = vpack.c.bf16 %v178, %v178
  %v205 = vpack.c.bf16 %v181, %v181
  %v206 = vpack.c.bf16 %v183, %v183
  %v207 = vpack.c.bf16 %v186, %v186
  %v208 = vpack.c.bf16 %v188, %v188
  %v209 = vpack.c.bf16 %v191, %v191
  %v210 = vpack.c.bf16 %v193, %v193
  %211 = vst [vmem:[%s3] sm:$0xf] %v195
  %212 = vst [vmem:[%s3 + $0x4] sm:$0xf] %v196
  %213 = vst [vmem:[%s3 + $0x8] sm:$0xf] %v197
  %214 = vst [vmem:[%s3 + $0xc] sm:$0xf] %v198
  %215 = vst [vmem:[%s3 + $0x10] sm:$0xf] %v199
  %216 = vst [vmem:[%s3 + $0x14] sm:$0xf] %v200
  %217 = vst [vmem:[%s3 + $0x18] sm:$0xf] %v201
  %218 = vst [vmem:[%s3 + $0x1c] sm:$0xf] %v202
  %219 = vst [vmem:[%s3 + $0x20] sm:$0xf] %v203
  %220 = vst [vmem:[%s3 + $0x24] sm:$0xf] %v204
  %221 = vst [vmem:[%s3 + $0x28] sm:$0xf] %v205
  %222 = vst [vmem:[%s3 + $0x2c] sm:$0xf] %v206
  %223 = vst [vmem:[%s3 + $0x30] sm:$0xf] %v207
  %224 = vst [vmem:[%s3 + $0x34] sm:$0xf] %v208
  %225 = vst [vmem:[%s3 + $0x38] sm:$0xf] %v209
  %226 = vst [vmem:[%s3 + $0x3c] sm:$0xf] %v210
  // Predicated region
  $region14: #{_lambda_.25} parent=0 // pred_check
    _
  $region15: #{_lambda_.25} parent=0 // pred_check_branch
    %228 = sbr.rel (0) target = $region17
  $region16: #{_lambda_.25} parent=0 // pred_region
    _
  $region17: #{_lambda_.25} parent=0 // pred_fallthru
    _
  // Predicated region
  $region18: #{_lambda_.25} parent=0 // pred_check
    _
  $region19: #{_lambda_.25} parent=0 // pred_check_branch
    %230 = sbr.rel (0) target = $region21
  $region20: #{_lambda_.25} parent=0 // pred_region
    _
  $region21: #{_lambda_.25} parent=0 // pred_fallthru
    _

// kernel: _lambda_.23
$region0: #{_lambda_.23}
  #allocation0 [shape = 'u32[]', space=smem, size = 0x4, offset = 0x4, fixed_abs, tag = 'smem constant byte address 0x4 - core index']
  #allocation1 [shape = 'u32[72,128]{1,0:T(1,128)}', space=vmem, size = 0x9000, scoped, tag = 'internal scratch']
  %s0 = inlined_call_operand.vmem [shape: bf16[512,256], index: 0, kind: input, shape index: {}]
  %s1 = inlined_call_operand.vmem [shape: bf16[256,128], index: 1, kind: input, shape index: {}]
  %s2 = inlined_call_operand.vmem [shape: f32[1,128], index: 2, kind: input, shape index: {}]
  %s3 = inlined_call_operand.vmem [shape: bf16[512,128], index: 3, kind: output, shape index: {}]
  %s4 = sld [smem:[#allocation0]]
  $region45: #{_lambda_.23} parent=0
    _
  %s6 = ssub.s32 1, %s4
  %s7 = scalar_select 0, %s6, %s4
  loop: start=0, step=1, limit=4
  $region2: #{_lambda_.23} parent=0 // loop_pre_header
    _
  $region3: #{_lambda_.23} parent=0 // loop_header
    %s9 = sphi 0, %s13
    %p10 = scmp.ge.s32.totalorder %s9, 4
    %s16 = sphi 0, %s28
    %s17 = sphi 0, %s24
    %s18 = sphi 0, %s16
    %s19 = sphi 0, %s17
    %s20 = sphi 0, %s18
    %s21 = sphi 0, %s19
    %s31 = sphi 0, %s33
    %s34 = sphi 0, %s31
    %s35 = sphi 0, %s34
    %s51 = sphi 0, %s35
    %s57 = sphi 0, %s59
    %s60 = sphi 0, %s57
    %s61 = sphi 0, %s60
    %s77 = sphi 0, %s61
    %s83 = sphi 0, %s85
    %s86 = sphi 0, %s83
    %s87 = sphi 0, %s86
    %s103 = sphi 0, %s87
    %s111 = sphi 0, %s113
    %s114 = sphi 0, %s111
    %s115 = sphi 0, %s114
    %s131 = sphi 0, %s115
  $region4: #{_lambda_.23} parent=0 // loop_header_branch
    %12 = sbr.rel (%p10) target = $region8
  $region5: #{_lambda_.23} parent=0 // loop_body
    %s14 = ssub.s32 %s9, 1
    %s15 = ssub.s32 %s9, 2
    %s22 = sadd.s32 1, %s17
    %p23 = scmp.ge.s32.totalorder %s22, 1
    %s24 = scalar_select %p23, 0, %s22
    %s25 = sadd.s32 1, %s16
    %s26 = scalar_select %p23, %s25, %s16
    %p27 = scmp.ge.s32.totalorder %s26, 2
    %s28 = scalar_select %p27, 0, %s26
    %s29 = ssub.s32 %s16, %s28
    %p30 = scmp.eq.s32.totalorder %s29, 0
    %s32 = sadd.s32 %s31, 1
    %s33 = scalar_select %p30, %s31, %s32
    %p36 = pneg %p30
    %p37 = scmp.eq.s32.totalorder %s9, 1
    %p38 = por %p36, %p37
    %p39 = scmp.ne.s32.totalorder %s31, %s34
    %p40 = scmp.eq.s32.totalorder %s9, 0
    %p41 = por %p39, %p40
    %p42 = scmp.ne.s32.totalorder %s31, %s34
    %p43 = scmp.eq.s32.totalorder %s14, 1
    %p44 = por %p42, %p43
    %p45 = scmp.ne.s32.totalorder %s34, %s35
    %p46 = scmp.eq.s32.totalorder %s14, 0
    %p47 = por %p45, %p46
    %p48 = scmp.ne.s32.totalorder %s34, %s35
    %p49 = scmp.eq.s32.totalorder %s15, 1
    %p50 = por %p48, %p49
    %p52 = scmp.ne.s32.totalorder %s35, %s51
    %p53 = scmp.eq.s32.totalorder %s15, 0
    %p54 = por %p52, %p53
    %s55 = ssub.s32 %s17, %s24
    %p56 = scmp.eq.s32.totalorder %s55, 0
    %s58 = sadd.s32 %s57, 1
    %s59 = scalar_select %p56, %s57, %s58
    %p62 = pneg %p56
    %p63 = scmp.eq.s32.totalorder %s9, 1
    %p64 = por %p62, %p63
    %p65 = scmp.ne.s32.totalorder %s57, %s60
    %p66 = scmp.eq.s32.totalorder %s9, 0
    %p67 = por %p65, %p66
    %p68 = scmp.ne.s32.totalorder %s57, %s60
    %p69 = scmp.eq.s32.totalorder %s14, 1
    %p70 = por %p68, %p69
    %p71 = scmp.ne.s32.totalorder %s60, %s61
    %p72 = scmp.eq.s32.totalorder %s14, 0
    %p73 = por %p71, %p72
    %p74 = scmp.ne.s32.totalorder %s60, %s61
    %p75 = scmp.eq.s32.totalorder %s15, 1
    %p76 = por %p74, %p75
    %p78 = scmp.ne.s32.totalorder %s61, %s77
    %p79 = scmp.eq.s32.totalorder %s15, 0
    %p80 = por %p78, %p79
    %s81 = ssub.s32 %s17, %s24
    %p82 = scmp.eq.s32.totalorder %s81, 0
    %s84 = sadd.s32 %s83, 1
    %s85 = scalar_select %p82, %s83, %s84
    %p88 = pneg %p82
    %p89 = scmp.eq.s32.totalorder %s9, 1
    %p90 = por %p88, %p89
    %p91 = scmp.ne.s32.totalorder %s83, %s86
    %p92 = scmp.eq.s32.totalorder %s9, 0
    %p93 = por %p91, %p92
    %p94 = scmp.ne.s32.totalorder %s83, %s86
    %p95 = scmp.eq.s32.totalorder %s14, 1
    %p96 = por %p94, %p95
    %p97 = scmp.ne.s32.totalorder %s86, %s87
    %p98 = scmp.eq.s32.totalorder %s14, 0
    %p99 = por %p97, %p98
    %p100 = scmp.ne.s32.totalorder %s86, %s87
    %p101 = scmp.eq.s32.totalorder %s15, 1
    %p102 = por %p100, %p101
    %p104 = scmp.ne.s32.totalorder %s87, %s103
    %p105 = scmp.eq.s32.totalorder %s15, 0
    %p106 = por %p104, %p105
    %s107 = ssub.s32 %s16, %s28
    %s108 = ssub.s32 %s17, %s24
    %s109 = sor.u32 %s107, %s108
    %p110 = scmp.eq.s32.totalorder %s109, 0
    %s112 = sadd.s32 %s111, 1
    %s113 = scalar_select %p110, %s111, %s112
    %p116 = pneg %p110
    %p117 = scmp.eq.s32.totalorder %s9, 1
    %p118 = por %p116, %p117
    %p119 = scmp.ne.s32.totalorder %s111, %s114
    %p120 = scmp.eq.s32.totalorder %s9, 0
    %p121 = por %p119, %p120
    %p122 = scmp.ne.s32.totalorder %s111, %s114
    %p123 = scmp.eq.s32.totalorder %s14, 1
    %p124 = por %p122, %p123
    %p125 = scmp.ne.s32.totalorder %s114, %s115
    %p126 = scmp.eq.s32.totalorder %s14, 0
    %p127 = por %p125, %p126
    %p128 = scmp.ne.s32.totalorder %s114, %s115
    %p129 = scmp.eq.s32.totalorder %s15, 1
    %p130 = por %p128, %p129
    %p132 = scmp.ne.s32.totalorder %s115, %s131
    %p133 = scmp.eq.s32.totalorder %s15, 0
    %p134 = por %p132, %p133
    %p135 = scmp.le.s32.totalorder 1, %s9
    %p136 = scmp.lt.s32.totalorder %s9, 3
    %p137 = pnand %p135, %p136
    %p138 = pneg %p137
    // Predicated region
    $region9: #{_lambda_.23} parent=5 // pred_check
      _
    $region10: #{_lambda_.23} parent=5 // pred_check_branch
      %140 = sbr.rel (%p137) target = $region12
    $region11: #{_lambda_.23} parent=5 // pred_region
      %s141 = ssub.s32 %s9, 1
      // Predicated region
      $region13: #{_lambda_.23} parent=11 // pred_check
        %p142 = pneg %p73
      $region14: #{_lambda_.23} parent=11 // pred_check_branch
        %144 = sbr.rel (%p142) target = $region16
      $region15: #{_lambda_.23} parent=11 // pred_region
        %p145 = scmp.lt.s32.totalorder %s19, 0
        %s146 = scalar_select %p145, %s19, 0
        %s147 = smul.addr %s146, 4
        %s148 = scalar_lea.vmem %s1, %s147
      $region16: #{_lambda_.23} parent=11 // pred_fallthru
        _
      // Predicated region
      $region17: #{_lambda_.23} parent=11 // pred_check
        %p149 = pneg %p99
      $region18: #{_lambda_.23} parent=11 // pred_check_branch
        %151 = sbr.rel (%p149) target = $region20
      $region19: #{_lambda_.23} parent=11 // pred_region
        %p152 = scmp.lt.s32.totalorder %s19, 0
        %s153 = scalar_select %p152, %s19, 0
        %s154 = scalar_lea.vmem %s2, %s153
      $region20: #{_lambda_.23} parent=11 // pred_fallthru
        _
    $region12: #{_lambda_.23} parent=5 // pred_fallthru
      _
    %p155 = scmp.lt.s32.totalorder %s9, 2
    // Predicated region
    $region21: #{_lambda_.23} parent=5 // pred_check
      %p156 = pneg %p155
    $region22: #{_lambda_.23} parent=5 // pred_check_branch
      %158 = sbr.rel (%p156) target = $region24
    $region23: #{_lambda_.23} parent=5 // pred_region
      // Predicated region
      $region25: #{_lambda_.23} parent=23 // pred_check
        %p159 = pneg %p41
      $region26: #{_lambda_.23} parent=23 // pred_check_branch
        %161 = sbr.rel (%p159) target = $region28
      $region27: #{_lambda_.23} parent=23 // pred_region
        %s162 = smul.u32 32, %s16
        %p163 = scmp.lt.s32.totalorder %s162, 63
        %s164 = scalar_select %p163, %s162, 63
        %s165 = smul.addr %s164, 2
        %s166 = smul.addr %s165, 4
        %s167 = scalar_lea.vmem %s0, %s166
        %s168 = smul.u32 32, %s16
      $region28: #{_lambda_.23} parent=23 // pred_fallthru
        _
    $region24: #{_lambda_.23} parent=5 // pred_fallthru
      _
    %p169 = scmp.le.s32.totalorder 1, %s9
    %p170 = scmp.lt.s32.totalorder %s9, 3
    %p171 = pnand %p169, %p170
    %p172 = pneg %p171
    // Predicated region
    $region29: #{_lambda_.23} parent=5 // pred_check
      _
    $region30: #{_lambda_.23} parent=5 // pred_check_branch
      %174 = sbr.rel (%p171) target = $region32
    $region31: #{_lambda_.23} parent=5 // pred_region
      %s175 = ssub.s32 %s9, 1
      %s176 = smul.u32 32, %s18
      %p177 = scmp.lt.s32.totalorder %s176, 63
      %s178 = scalar_select %p177, %s176, 63
      %s179 = smul.addr %s178, 2
      %s180 = smul.addr %s179, 4
      %s181 = scalar_lea.vmem %s0, %s180
      %p182 = pneg %p47
      %p183 = pneg %p44
      %p184 = scmp.lt.s32.totalorder %s19, 0
      %s185 = scalar_select %p184, %s19, 0
      %s186 = smul.addr %s185, 4
      %s187 = scalar_lea.vmem %s1, %s186
      %p188 = pneg %p73
      %p189 = pneg %p70
      %p190 = scmp.lt.s32.totalorder %s19, 0
      %s191 = scalar_select %p190, %s19, 0
      %s192 = scalar_lea.vmem %s2, %s191
      %p193 = pneg %p99
      %p194 = pneg %p96
      %p195 = pneg %p127
      %p196 = pneg %p124
      %s197 = smul.u32 32, %s18
      %p198 = scmp.lt.s32.totalorder %s197, 63
      %s199 = scalar_select %p198, %s197, 63
      %p200 = scmp.lt.s32.totalorder %s19, 0
      %s201 = scalar_select %p200, %s19, 0
      %s202 = sadd.s32 %s201, %s199
      %s203 = smul.addr %s202, 4
      %s204 = scalar_lea.vmem %s3, %s203
      %s205 = smul.u32 32, %s18
      %p206 = scmp.lt.s32.totalorder %s205, 63
      %s207 = scalar_select %p206, %s205, 63
      %s208 = smul.addr %s207, 2
      %s209 = smul.addr %s208, 4
      %s210 = scalar_lea.vmem %s0, %s209
      %s211 = smul.u32 32, %s18
      %p212 = scmp.lt.s32.totalorder %s19, 0
      %s213 = scalar_select %p212, %s19, 0
      %s214 = smul.addr %s213, 4
      %s215 = scalar_lea.vmem %s1, %s214
      %p216 = scmp.lt.s32.totalorder %s19, 0
      %s217 = scalar_select %p216, %s19, 0
      %s218 = scalar_lea.vmem %s2, %s217
      %s219 = smul.u32 32, %s18
      %p220 = scmp.lt.s32.totalorder %s219, 63
      %s221 = scalar_select %p220, %s219, 63
      %p222 = scmp.lt.s32.totalorder %s19, 0
      %s223 = scalar_select %p222, %s19, 0
      %s224 = sadd.s32 %s223, %s221
      %s225 = smul.addr %s224, 4
      %s226 = scalar_lea.vmem %s3, %s225
      %s227 = smul.u32 32, %s18
      %v228 = vld [vmem:[%s210] sm:$0xff]
      %v229 = vld [vmem:[%s210 + $0x8] sm:$0xff]
      %v230 = vld [vmem:[%s210 + $0x10] sm:$0xff]
      %v231 = vld [vmem:[%s210 + $0x18] sm:$0xff]
      %v232 = vld [vmem:[%s210 + $0x20] sm:$0xff]
      %v233 = vld [vmem:[%s210 + $0x28] sm:$0xff]
      %v234 = vld [vmem:[%s210 + $0x30] sm:$0xff]
      %v235 = vld [vmem:[%s210 + $0x38] sm:$0xff]
      %v236 = vld [vmem:[%s210 + $0x40] sm:$0xff]
      %v237 = vld [vmem:[%s210 + $0x48] sm:$0xff]
      %v238 = vld [vmem:[%s210 + $0x50] sm:$0xff]
      %v239 = vld [vmem:[%s210 + $0x58] sm:$0xff]
      %v240 = vld [vmem:[%s210 + $0x60] sm:$0xff]
      %v241 = vld [vmem:[%s210 + $0x68] sm:$0xff]
      %v242 = vld [vmem:[%s210 + $0x70] sm:$0xff]
      %v243 = vld [vmem:[%s210 + $0x78] sm:$0xff]
      %v244 = vld [vmem:[%s210 + $0x80] sm:$0xff]
      %v245 = vld [vmem:[%s210 + $0x88] sm:$0xff]
      %v246 = vld [vmem:[%s210 + $0x90] sm:$0xff]
      %v247 = vld [vmem:[%s210 + $0x98] sm:$0xff]
      %v248 = vld [vmem:[%s210 + $0xa0] sm:$0xff]
      %v249 = vld [vmem:[%s210 + $0xa8] sm:$0xff]
      %v250 = vld [vmem:[%s210 + $0xb0] sm:$0xff]
      %v251 = vld [vmem:[%s210 + $0xb8] sm:$0xff]
      %v252 = vld [vmem:[%s210 + $0xc0] sm:$0xff]
      %v253 = vld [vmem:[%s210 + $0xc8] sm:$0xff]
      %v254 = vld [vmem:[%s210 + $0xd0] sm:$0xff]
      %v255 = vld [vmem:[%s210 + $0xd8] sm:$0xff]
      %v256 = vld [vmem:[%s210 + $0xe0] sm:$0xff]
      %v257 = vld [vmem:[%s210 + $0xe8] sm:$0xff]
      %v258 = vld [vmem:[%s210 + $0xf0] sm:$0xff]
      %v259 = vld [vmem:[%s210 + $0xf8] sm:$0xff]
      %v260 = vld [vmem:[%s215] sm:$0xf]
      %v261 = vld [vmem:[%s215 + $0x4] sm:$0xf]
      %v262 = vld [vmem:[%s215 + $0x8] sm:$0xf]
      %v263 = vld [vmem:[%s215 + $0xc] sm:$0xf]
      %v264 = vld [vmem:[%s215 + $0x10] sm:$0xf]
      %v265 = vld [vmem:[%s215 + $0x14] sm:$0xf]
      %v266 = vld [vmem:[%s215 + $0x18] sm:$0xf]
      %v267 = vld [vmem:[%s215 + $0x1c] sm:$0xf]
      %v268 = vld [vmem:[%s215 + $0x20] sm:$0xf]
      %v269 = vld [vmem:[%s215 + $0x24] sm:$0xf]
      %v270 = vld [vmem:[%s215 + $0x28] sm:$0xf]
      %v271 = vld [vmem:[%s215 + $0x2c] sm:$0xf]
      %v272 = vld [vmem:[%s215 + $0x30] sm:$0xf]
      %v273 = vld [vmem:[%s215 + $0x34] sm:$0xf]
      %v274 = vld [vmem:[%s215 + $0x38] sm:$0xf]
      %v275 = vld [vmem:[%s215 + $0x3c] sm:$0xf]
      %v276 = vld [vmem:[%s215 + $0x40] sm:$0xf]
      %v277 = vld [vmem:[%s215 + $0x44] sm:$0xf]
      %v278 = vld [vmem:[%s215 + $0x48] sm:$0xf]
      %v279 = vld [vmem:[%s215 + $0x4c] sm:$0xf]
      %v280 = vld [vmem:[%s215 + $0x50] sm:$0xf]
      %v281 = vld [vmem:[%s215 + $0x54] sm:$0xf]
      %v282 = vld [vmem:[%s215 + $0x58] sm:$0xf]
      %v283 = vld [vmem:[%s215 + $0x5c] sm:$0xf]
      %v284 = vld [vmem:[%s215 + $0x60] sm:$0xf]
      %v285 = vld [vmem:[%s215 + $0x64] sm:$0xf]
      %v286 = vld [vmem:[%s215 + $0x68] sm:$0xf]
      %v287 = vld [vmem:[%s215 + $0x6c] sm:$0xf]
      %v288 = vld [vmem:[%s215 + $0x70] sm:$0xf]
      %v289 = vld [vmem:[%s215 + $0x74] sm:$0xf]
      %v290 = vld [vmem:[%s215 + $0x78] sm:$0xf]
      %v291 = vld [vmem:[%s215 + $0x7c] sm:$0xf]
      %v292 = vld [vmem:[%s218] sm:$0x1]
      %v294 = vperm.slane %v292, 0
      %v328 = vunpack.c.l.b16 %v228
      %v329 = vunpack.c.h.b16 %v228
      %v330 = vunpack.c.l.b16 %v229
      %v331 = vunpack.c.h.b16 %v229
      %v332 = vunpack.c.l.b16 %v230
      %v333 = vunpack.c.h.b16 %v230
      %v334 = vunpack.c.l.b16 %v231
      %v335 = vunpack.c.h.b16 %v231
      %v336 = vunpack.c.l.b16 %v232
      %v337 = vunpack.c.h.b16 %v232
      %v338 = vunpack.c.l.b16 %v233
      %v339 = vunpack.c.h.b16 %v233
      %v340 = vunpack.c.l.b16 %v234
      %v341 = vunpack.c.h.b16 %v234
      %v342 = vunpack.c.l.b16 %v235
      %v343 = vunpack.c.h.b16 %v235
      %v344 = vunpack.c.l.b16 %v236
      %v345 = vunpack.c.h.b16 %v236
      %v346 = vunpack.c.l.b16 %v237
      %v347 = vunpack.c.h.b16 %v237
      %v348 = vunpack.c.l.b16 %v238
      %v349 = vunpack.c.h.b16 %v238
      %v350 = vunpack.c.l.b16 %v239
      %v351 = vunpack.c.h.b16 %v239
      %v352 = vunpack.c.l.b16 %v240
      %v353 = vunpack.c.h.b16 %v240
      %v354 = vunpack.c.l.b16 %v241
      %v355 = vunpack.c.h.b16 %v241
      %v356 = vunpack.c.l.b16 %v242
      %v357 = vunpack.c.h.b16 %v242
      %v358 = vunpack.c.l.b16 %v243
      %v359 = vunpack.c.h.b16 %v243
      %v360 = vunpack.c.l.b16 %v244
      %v361 = vunpack.c.h.b16 %v244
      %v362 = vunpack.c.l.b16 %v245
      %v363 = vunpack.c.h.b16 %v245
      %v364 = vunpack.c.l.b16 %v246
      %v365 = vunpack.c.h.b16 %v246
      %v366 = vunpack.c.l.b16 %v247
      %v367 = vunpack.c.h.b16 %v247
      %v368 = vunpack.c.l.b16 %v248
      %v369 = vunpack.c.h.b16 %v248
      %v370 = vunpack.c.l.b16 %v249
      %v371 = vunpack.c.h.b16 %v249
      %v372 = vunpack.c.l.b16 %v250
      %v373 = vunpack.c.h.b16 %v250
      %v374 = vunpack.c.l.b16 %v251
      %v375 = vunpack.c.h.b16 %v251
      %v376 = vunpack.c.l.b16 %v252
      %v377 = vunpack.c.h.b16 %v252
      %v378 = vunpack.c.l.b16 %v253
      %v379 = vunpack.c.h.b16 %v253
      %v380 = vunpack.c.l.b16 %v254
      %v381 = vunpack.c.h.b16 %v254
      %v382 = vunpack.c.l.b16 %v255
      %v383 = vunpack.c.h.b16 %v255
      %v384 = vunpack.c.l.b16 %v256
      %v385 = vunpack.c.h.b16 %v256
      %v386 = vunpack.c.l.b16 %v257
      %v387 = vunpack.c.h.b16 %v257
      %v388 = vunpack.c.l.b16 %v258
      %v389 = vunpack.c.h.b16 %v258
      %v390 = vunpack.c.l.b16 %v259
      %v391 = vunpack.c.h.b16 %v259
      %v392 = vpack.c.b16 %v330, %v328
      %v393 = vpack.c.b16 %v331, %v329
      %v394 = vpack.c.b16 %v334, %v332
      %v395 = vpack.c.b16 %v335, %v333
      %v396 = vpack.c.b16 %v338, %v336
      %v397 = vpack.c.b16 %v339, %v337
      %v398 = vpack.c.b16 %v342, %v340
      %v399 = vpack.c.b16 %v343, %v341
      %v400 = vpack.c.b16 %v346, %v344
      %v401 = vpack.c.b16 %v347, %v345
      %v402 = vpack.c.b16 %v350, %v348
      %v403 = vpack.c.b16 %v351, %v349
      %v404 = vpack.c.b16 %v354, %v352
      %v405 = vpack.c.b16 %v355, %v353
      %v406 = vpack.c.b16 %v358, %v356
      %v407 = vpack.c.b16 %v359, %v357
      %v408 = vpack.c.b16 %v362, %v360
      %v409 = vpack.c.b16 %v363, %v361
      %v410 = vpack.c.b16 %v366, %v364
      %v411 = vpack.c.b16 %v367, %v365
      %v412 = vpack.c.b16 %v370, %v368
      %v413 = vpack.c.b16 %v371, %v369
      %v414 = vpack.c.b16 %v374, %v372
      %v415 = vpack.c.b16 %v375, %v373
      %v416 = vpack.c.b16 %v378, %v376
      %v417 = vpack.c.b16 %v379, %v377
      %v418 = vpack.c.b16 %v382, %v380
      %v419 = vpack.c.b16 %v383, %v381
      %v420 = vpack.c.b16 %v386, %v384
      %v421 = vpack.c.b16 %v387, %v385
      %v422 = vpack.c.b16 %v390, %v388
      %v423 = vpack.c.b16 %v391, %v389
      %v488 = vunpack.c.l.b16 %v260
      %v489 = vunpack.c.l.b16 %v261
      %v490 = vunpack.c.l.b16 %v262
      %v491 = vunpack.c.l.b16 %v263
      %v492 = vunpack.c.l.b16 %v264
      %v493 = vunpack.c.l.b16 %v265
      %v494 = vunpack.c.l.b16 %v266
      %v495 = vunpack.c.l.b16 %v267
      %v496 = vunpack.c.l.b16 %v268
      %v497 = vunpack.c.l.b16 %v269
      %v498 = vunpack.c.l.b16 %v270
      %v499 = vunpack.c.l.b16 %v271
      %v500 = vunpack.c.l.b16 %v272
      %v501 = vunpack.c.l.b16 %v273
      %v502 = vunpack.c.l.b16 %v274
      %v503 = vunpack.c.l.b16 %v275
      %v504 = vunpack.c.l.b16 %v276
      %v505 = vunpack.c.l.b16 %v277
      %v506 = vunpack.c.l.b16 %v278
      %v507 = vunpack.c.l.b16 %v279
      %v508 = vunpack.c.l.b16 %v280
      %v509 = vunpack.c.l.b16 %v281
      %v510 = vunpack.c.l.b16 %v282
      %v511 = vunpack.c.l.b16 %v283
      %v512 = vunpack.c.l.b16 %v284
      %v513 = vunpack.c.l.b16 %v285
      %v514 = vunpack.c.l.b16 %v286
      %v515 = vunpack.c.l.b16 %v287
      %v516 = vunpack.c.l.b16 %v288
      %v517 = vunpack.c.l.b16 %v289
      %v518 = vunpack.c.l.b16 %v290
      %v519 = vunpack.c.l.b16 %v291
      %v520 = vpack.c.b16 %v489, %v488
      %v521 = vpack.c.b16 %v491, %v490
      %v522 = vpack.c.b16 %v493, %v492
      %v523 = vpack.c.b16 %v495, %v494
      %v524 = vpack.c.b16 %v497, %v496
      %v525 = vpack.c.b16 %v499, %v498
      %v526 = vpack.c.b16 %v501, %v500
      %v527 = vpack.c.b16 %v503, %v502
      %v528 = vpack.c.b16 %v505, %v504
      %v529 = vpack.c.b16 %v507, %v506
      %v530 = vpack.c.b16 %v509, %v508
      %v531 = vpack.c.b16 %v511, %v510
      %v532 = vpack.c.b16 %v513, %v512
      %v533 = vpack.c.b16 %v515, %v514
      %v534 = vpack.c.b16 %v517, %v516
      %v535 = vpack.c.b16 %v519, %v518
      %552 = vmatpush.bf16.msra.mxu0 %v527
      %553 = vmatpush.bf16.msra.mxu0 %v526
      %554 = vmatpush.bf16.msra.mxu0 %v525
      %555 = vmatpush.bf16.msra.mxu0 %v524
      %556 = vmatpush.bf16.msra.mxu0 %v523
      %557 = vmatpush.bf16.msra.mxu0 %v522
      %558 = vmatpush.bf16.msra.mxu0 %v521
      %559 = vmatpush.bf16.msra.mxu0 %v520
      %560 = vmatmul.bf16.gmra.mxu0 %v392
      %v561 = vpop.f32.mrf.mxu0
      %v562 = vadd.f32 %v294, %v561
      %v563 = vpop.f32.mrf.mxu0
      %v564 = vadd.f32 %v294, %v563
      %565 = vmatmul.bf16.gmra.mxu0 %v394
      %v566 = vpop.f32.mrf.mxu0
      %v567 = vadd.f32 %v294, %v566
      %v568 = vpop.f32.mrf.mxu0
      %v569 = vadd.f32 %v294, %v568
      %570 = vmatmul.bf16.gmra.mxu0 %v396
      %v571 = vpop.f32.mrf.mxu0
      %v572 = vadd.f32 %v294, %v571
      %v573 = vpop.f32.mrf.mxu0
      %v574 = vadd.f32 %v294, %v573
      %575 = vmatmul.bf16.gmra.mxu0 %v398
      %v576 = vpop.f32.mrf.mxu0
      %v577 = vadd.f32 %v294, %v576
      %v578 = vpop.f32.mrf.mxu0
      %v579 = vadd.f32 %v294, %v578
      %580 = vmatmul.bf16.gmra.mxu0 %v400
      %v581 = vpop.f32.mrf.mxu0
      %v582 = vadd.f32 %v294, %v581
      %v583 = vpop.f32.mrf.mxu0
      %v584 = vadd.f32 %v294, %v583
      %585 = vmatmul.bf16.gmra.mxu0 %v402
      %v586 = vpop.f32.mrf.mxu0
      %v587 = vadd.f32 %v294, %v586
      %v588 = vpop.f32.mrf.mxu0
      %v589 = vadd.f32 %v294, %v588
      %590 = vmatmul.bf16.gmra.mxu0 %v404
      %v591 = vpop.f32.mrf.mxu0
      %v592 = vadd.f32 %v294, %v591
      %v593 = vpop.f32.mrf.mxu0
      %v594 = vadd.f32 %v294, %v593
      %595 = vmatmul.bf16.gmra.mxu0 %v406
      %v596 = vpop.f32.mrf.mxu0
      %v597 = vadd.f32 %v294, %v596
      %v598 = vpop.f32.mrf.mxu0
      %v599 = vadd.f32 %v294, %v598
      %600 = vmatmul.bf16.gmra.mxu0 %v408
      %v601 = vpop.f32.mrf.mxu0
      %v602 = vadd.f32 %v294, %v601
      %v603 = vpop.f32.mrf.mxu0
      %v604 = vadd.f32 %v294, %v603
      %605 = vmatmul.bf16.gmra.mxu0 %v410
      %v606 = vpop.f32.mrf.mxu0
      %v607 = vadd.f32 %v294, %v606
      %v608 = vpop.f32.mrf.mxu0
      %v609 = vadd.f32 %v294, %v608
      %610 = vmatmul.bf16.gmra.mxu0 %v412
      %v611 = vpop.f32.mrf.mxu0
      %v612 = vadd.f32 %v294, %v611
      %v613 = vpop.f32.mrf.mxu0
      %v614 = vadd.f32 %v294, %v613
      %615 = vmatmul.bf16.gmra.mxu0 %v414
      %v616 = vpop.f32.mrf.mxu0
      %v617 = vadd.f32 %v294, %v616
      %v618 = vpop.f32.mrf.mxu0
      %v619 = vadd.f32 %v294, %v618
      %620 = vmatmul.bf16.gmra.mxu0 %v416
      %v621 = vpop.f32.mrf.mxu0
      %v622 = vadd.f32 %v294, %v621
      %v623 = vpop.f32.mrf.mxu0
      %v624 = vadd.f32 %v294, %v623
      %625 = vmatmul.bf16.gmra.mxu0 %v418
      %v626 = vpop.f32.mrf.mxu0
      %v627 = vadd.f32 %v294, %v626
      %v628 = vpop.f32.mrf.mxu0
      %v629 = vadd.f32 %v294, %v628
      %630 = vmatmul.bf16.gmra.mxu0 %v420
      %v631 = vpop.f32.mrf.mxu0
      %v632 = vadd.f32 %v294, %v631
      %v633 = vpop.f32.mrf.mxu0
      %v634 = vadd.f32 %v294, %v633
      %635 = vmatmul.bf16.gmra.mxu0 %v422
      %v636 = vpop.f32.mrf.mxu0
      %v637 = vadd.f32 %v294, %v636
      %v638 = vpop.f32.mrf.mxu0
      %v639 = vadd.f32 %v294, %v638
      %640 = vdwg.mxu0
      %641 = vmatpush.bf16.msra.mxu0 %v535
      %642 = vmatpush.bf16.msra.mxu0 %v534
      %643 = vmatpush.bf16.msra.mxu0 %v533
      %644 = vmatpush.bf16.msra.mxu0 %v532
      %645 = vmatpush.bf16.msra.mxu0 %v531
      %646 = vmatpush.bf16.msra.mxu0 %v530
      %647 = vmatpush.bf16.msra.mxu0 %v529
      %648 = vmatpush.bf16.msra.mxu0 %v528
      %649 = vmatmul.bf16.gmra.mxu0 %v393
      %v650 = vpop.f32.mrf.mxu0
      %v651 = vadd.f32 %v562, %v650
      %v652 = vpop.f32.mrf.mxu0
      %v653 = vadd.f32 %v564, %v652
      %654 = vmatmul.bf16.gmra.mxu0 %v395
      %v655 = vpop.f32.mrf.mxu0
      %v656 = vadd.f32 %v567, %v655
      %v657 = vpop.f32.mrf.mxu0
      %v658 = vadd.f32 %v569, %v657
      %659 = vmatmul.bf16.gmra.mxu0 %v397
      %v660 = vpop.f32.mrf.mxu0
      %v661 = vadd.f32 %v572, %v660
      %v662 = vpop.f32.mrf.mxu0
      %v663 = vadd.f32 %v574, %v662
      %664 = vmatmul.bf16.gmra.mxu0 %v399
      %v665 = vpop.f32.mrf.mxu0
      %v666 = vadd.f32 %v577, %v665
      %v667 = vpop.f32.mrf.mxu0
      %v668 = vadd.f32 %v579, %v667
      %669 = vmatmul.bf16.gmra.mxu0 %v401
      %v670 = vpop.f32.mrf.mxu0
      %v671 = vadd.f32 %v582, %v670
      %v672 = vpop.f32.mrf.mxu0
      %v673 = vadd.f32 %v584, %v672
      %674 = vmatmul.bf16.gmra.mxu0 %v403
      %v675 = vpop.f32.mrf.mxu0
      %v676 = vadd.f32 %v587, %v675
      %v677 = vpop.f32.mrf.mxu0
      %v678 = vadd.f32 %v589, %v677
      %679 = vmatmul.bf16.gmra.mxu0 %v405
      %v680 = vpop.f32.mrf.mxu0
      %v681 = vadd.f32 %v592, %v680
      %v682 = vpop.f32.mrf.mxu0
      %v683 = vadd.f32 %v594, %v682
      %684 = vmatmul.bf16.gmra.mxu0 %v407
      %v685 = vpop.f32.mrf.mxu0
      %v686 = vadd.f32 %v597, %v685
      %v687 = vpop.f32.mrf.mxu0
      %v688 = vadd.f32 %v599, %v687
      %689 = vmatmul.bf16.gmra.mxu0 %v409
      %v690 = vpop.f32.mrf.mxu0
      %v691 = vadd.f32 %v602, %v690
      %v692 = vpop.f32.mrf.mxu0
      %v693 = vadd.f32 %v604, %v692
      %694 = vmatmul.bf16.gmra.mxu0 %v411
      %v695 = vpop.f32.mrf.mxu0
      %v696 = vadd.f32 %v607, %v695
      %v697 = vpop.f32.mrf.mxu0
      %v698 = vadd.f32 %v609, %v697
      %699 = vmatmul.bf16.gmra.mxu0 %v413
      %v700 = vpop.f32.mrf.mxu0
      %v701 = vadd.f32 %v612, %v700
      %v702 = vpop.f32.mrf.mxu0
      %v703 = vadd.f32 %v614, %v702
      %704 = vmatmul.bf16.gmra.mxu0 %v415
      %v705 = vpop.f32.mrf.mxu0
      %v706 = vadd.f32 %v617, %v705
      %v707 = vpop.f32.mrf.mxu0
      %v708 = vadd.f32 %v619, %v707
      %709 = vmatmul.bf16.gmra.mxu0 %v417
      %v710 = vpop.f32.mrf.mxu0
      %v711 = vadd.f32 %v622, %v710
      %v712 = vpop.f32.mrf.mxu0
      %v713 = vadd.f32 %v624, %v712
      %714 = vmatmul.bf16.gmra.mxu0 %v419
      %v715 = vpop.f32.mrf.mxu0
      %v716 = vadd.f32 %v627, %v715
      %v717 = vpop.f32.mrf.mxu0
      %v718 = vadd.f32 %v629, %v717
      %719 = vmatmul.bf16.gmra.mxu0 %v421
      %v720 = vpop.f32.mrf.mxu0
      %v721 = vadd.f32 %v632, %v720
      %v722 = vpop.f32.mrf.mxu0
      %v723 = vadd.f32 %v634, %v722
      %724 = vmatmul.bf16.gmra.mxu0 %v423
      %v725 = vpop.f32.mrf.mxu0
      %v726 = vadd.f32 %v637, %v725
      %v727 = vpop.f32.mrf.mxu0
      %v728 = vadd.f32 %v639, %v727
      %729 = vdwg.mxu0
      %v730 = vmax.f32 %v651, 0.0
      %v731 = vmax.f32 %v653, 0.0
      %v732 = vmax.f32 %v656, 0.0
      %v733 = vmax.f32 %v658, 0.0
      %v734 = vmax.f32 %v661, 0.0
      %v735 = vmax.f32 %v663, 0.0
      %v736 = vmax.f32 %v666, 0.0
      %v737 = vmax.f32 %v668, 0.0
      %v738 = vmax.f32 %v671, 0.0
      %v739 = vmax.f32 %v673, 0.0
      %v740 = vmax.f32 %v676, 0.0
      %v741 = vmax.f32 %v678, 0.0
      %v742 = vmax.f32 %v681, 0.0
      %v743 = vmax.f32 %v683, 0.0
      %v744 = vmax.f32 %v686, 0.0
      %v745 = vmax.f32 %v688, 0.0
      %v746 = vmax.f32 %v691, 0.0
      %v747 = vmax.f32 %v693, 0.0
      %v748 = vmax.f32 %v696, 0.0
      %v749 = vmax.f32 %v698, 0.0
      %v750 = vmax.f32 %v701, 0.0
      %v751 = vmax.f32 %v703, 0.0
      %v752 = vmax.f32 %v706, 0.0
      %v753 = vmax.f32 %v708, 0.0
      %v754 = vmax.f32 %v711, 0.0
      %v755 = vmax.f32 %v713, 0.0
      %v756 = vmax.f32 %v716, 0.0
      %v757 = vmax.f32 %v718, 0.0
      %v758 = vmax.f32 %v721, 0.0
      %v759 = vmax.f32 %v723, 0.0
      %v760 = vmax.f32 %v726, 0.0
      %v761 = vmax.f32 %v728, 0.0
      %v762 = vpack.c.bf16 %v730, %v730
      %v763 = vpack.c.bf16 %v731, %v731
      %v764 = vpack.c.bf16 %v732, %v732
      %v765 = vpack.c.bf16 %v733, %v733
      %v766 = vpack.c.bf16 %v734, %v734
      %v767 = vpack.c.bf16 %v735, %v735
      %v768 = vpack.c.bf16 %v736, %v736
      %v769 = vpack.c.bf16 %v737, %v737
      %v770 = vpack.c.bf16 %v738, %v738
      %v771 = vpack.c.bf16 %v739, %v739
      %v772 = vpack.c.bf16 %v740, %v740
      %v773 = vpack.c.bf16 %v741, %v741
      %v774 = vpack.c.bf16 %v742, %v742
      %v775 = vpack.c.bf16 %v743, %v743
      %v776 = vpack.c.bf16 %v744, %v744
      %v777 = vpack.c.bf16 %v745, %v745
      %v778 = vpack.c.bf16 %v746, %v746
      %v779 = vpack.c.bf16 %v747, %v747
      %v780 = vpack.c.bf16 %v748, %v748
      %v781 = vpack.c.bf16 %v749, %v749
      %v782 = vpack.c.bf16 %v750, %v750
      %v783 = vpack.c.bf16 %v751, %v751
      %v784 = vpack.c.bf16 %v752, %v752
      %v785 = vpack.c.bf16 %v753, %v753
      %v786 = vpack.c.bf16 %v754, %v754
      %v787 = vpack.c.bf16 %v755, %v755
      %v788 = vpack.c.bf16 %v756, %v756
      %v789 = vpack.c.bf16 %v757, %v757
      %v790 = vpack.c.bf16 %v758, %v758
      %v791 = vpack.c.bf16 %v759, %v759
      %v792 = vpack.c.bf16 %v760, %v760
      %v793 = vpack.c.bf16 %v761, %v761
      %794 = vst [vmem:[%s226] sm:$0xf] %v762
      %795 = vst [vmem:[%s226 + $0x4] sm:$0xf] %v763
      %796 = vst [vmem:[%s226 + $0x8] sm:$0xf] %v764
      %797 = vst [vmem:[%s226 + $0xc] sm:$0xf] %v765
      %798 = vst [vmem:[%s226 + $0x10] sm:$0xf] %v766
      %799 = vst [vmem:[%s226 + $0x14] sm:$0xf] %v767
      %800 = vst [vmem:[%s226 + $0x18] sm:$0xf] %v768
      %801 = vst [vmem:[%s226 + $0x1c] sm:$0xf] %v769
      %802 = vst [vmem:[%s226 + $0x20] sm:$0xf] %v770
      %803 = vst [vmem:[%s226 + $0x24] sm:$0xf] %v771
      %804 = vst [vmem:[%s226 + $0x28] sm:$0xf] %v772
      %805 = vst [vmem:[%s226 + $0x2c] sm:$0xf] %v773
      %806 = vst [vmem:[%s226 + $0x30] sm:$0xf] %v774
      %807 = vst [vmem:[%s226 + $0x34] sm:$0xf] %v775
      %808 = vst [vmem:[%s226 + $0x38] sm:$0xf] %v776
      %809 = vst [vmem:[%s226 + $0x3c] sm:$0xf] %v777
      %810 = vst [vmem:[%s226 + $0x40] sm:$0xf] %v778
      %811 = vst [vmem:[%s226 + $0x44] sm:$0xf] %v779
      %812 = vst [vmem:[%s226 + $0x48] sm:$0xf] %v780
      %813 = vst [vmem:[%s226 + $0x4c] sm:$0xf] %v781
      %814 = vst [vmem:[%s226 + $0x50] sm:$0xf] %v782
      %815 = vst [vmem:[%s226 + $0x54] sm:$0xf] %v783
      %816 = vst [vmem:[%s226 + $0x58] sm:$0xf] %v784
      %817 = vst [vmem:[%s226 + $0x5c] sm:$0xf] %v785
      %818 = vst [vmem:[%s226 + $0x60] sm:$0xf] %v786
      %819 = vst [vmem:[%s226 + $0x64] sm:$0xf] %v787
      %820 = vst [vmem:[%s226 + $0x68] sm:$0xf] %v788
      %821 = vst [vmem:[%s226 + $0x6c] sm:$0xf] %v789
      %822 = vst [vmem:[%s226 + $0x70] sm:$0xf] %v790
      %823 = vst [vmem:[%s226 + $0x74] sm:$0xf] %v791
      %824 = vst [vmem:[%s226 + $0x78] sm:$0xf] %v792
      %825 = vst [vmem:[%s226 + $0x7c] sm:$0xf] %v793
      %s826 = smul.u32 32, %s18
      %p827 = scmp.lt.s32.totalorder %s826, 63
      %s828 = scalar_select %p827, %s826, 63
      %p829 = scmp.lt.s32.totalorder %s19, 0
      %s830 = scalar_select %p829, %s19, 0
      %s831 = sadd.s32 %s830, %s828
      %s832 = smul.addr %s831, 4
      %s833 = scalar_lea.vmem %s3, %s832
      // Predicated region
      $region33: #{_lambda_.23} parent=31 // pred_check
        %p834 = pneg %p124
      $region34: #{_lambda_.23} parent=31 // pred_check_branch
        %836 = sbr.rel (%p834) target = $region36
      $region35: #{_lambda_.23} parent=31 // pred_region
        %s837 = smul.u32 32, %s18
      $region36: #{_lambda_.23} parent=31 // pred_fallthru
        _
    $region32: #{_lambda_.23} parent=5 // pred_fallthru
      _
    %p838 = scmp.le.s32.totalorder 2, %s9
    // Predicated region
    $region37: #{_lambda_.23} parent=5 // pred_check
      %p839 = pneg %p838
    $region38: #{_lambda_.23} parent=5 // pred_check_branch
      %841 = sbr.rel (%p839) target = $region40
    $region39: #{_lambda_.23} parent=5 // pred_region
      %s842 = ssub.s32 %s9, 2
      // Predicated region
      $region41: #{_lambda_.23} parent=39 // pred_check
        %p843 = pneg %p130
      $region42: #{_lambda_.23} parent=39 // pred_check_branch
        %845 = sbr.rel (%p843) target = $region44
      $region43: #{_lambda_.23} parent=39 // pred_region
        %s846 = smul.u32 32, %s20
        %p847 = scmp.lt.s32.totalorder %s846, 63
        %s848 = scalar_select %p847, %s846, 63
        %p849 = scmp.lt.s32.totalorder %s21, 0
        %s850 = scalar_select %p849, %s21, 0
        %s851 = sadd.s32 %s850, %s848
        %s852 = smul.addr %s851, 4
        %s853 = scalar_lea.vmem %s3, %s852
      $region44: #{_lambda_.23} parent=39 // pred_fallthru
        _
    $region40: #{_lambda_.23} parent=5 // pred_fallthru
      _
  $region6: #{_lambda_.23} parent=0 // loop_footer
    %s13 = sadd.s32 1, %s9
  $region7: #{_lambda_.23} parent=0 // loop_footer_branch
    %8 = sbr.rel target = $region3
  $region8: #{_lambda_.23} parent=0 // loop_exit
    _

// kernel: _lambda_.24
$region0: #{_lambda_.24}
  #allocation0 [shape = 'u32[]', space=smem, size = 0x4, offset = 0x4, fixed_abs, tag = 'smem constant byte address 0x4 - core index']
  #allocation1 [shape = 'u32[72,128]{1,0:T(1,128)}', space=vmem, size = 0x9000, scoped, tag = 'internal scratch']
  %s0 = inlined_call_operand.vmem [shape: bf16[9,128,128], index: 0, kind: input, shape index: {}]
  %s1 = inlined_call_operand.vmem [shape: bf16[128,128], index: 1, kind: output, shape index: {}]
  %s2 = sld [smem:[#allocation0]]
  $region14: #{_lambda_.24} parent=0
    _
  %s4 = ssub.s32 1, %s2
  %s5 = scalar_select 0, %s4, %s2
  // Predicated region
  $region2: #{_lambda_.24} parent=0 // pred_check
    _
  $region3: #{_lambda_.24} parent=0 // pred_check_branch
    %7 = sbr.rel (0) target = $region5
  $region4: #{_lambda_.24} parent=0 // pred_region
    _
  $region5: #{_lambda_.24} parent=0 // pred_fallthru
    _
  %v8 = vld [vmem:[%s0] sm:$0xf]
  %v9 = vld [vmem:[%s0 + $0x4] sm:$0xf]
  %v10 = vld [vmem:[%s0 + $0x8] sm:$0xf]
  %v11 = vld [vmem:[%s0 + $0xc] sm:$0xf]
  %v12 = vld [vmem:[%s0 + $0x10] sm:$0xf]
  %v13 = vld [vmem:[%s0 + $0x14] sm:$0xf]
  %v14 = vld [vmem:[%s0 + $0x18] sm:$0xf]
  %v15 = vld [vmem:[%s0 + $0x1c] sm:$0xf]
  %v16 = vld [vmem:[%s0 + $0x20] sm:$0xf]
  %v17 = vld [vmem:[%s0 + $0x24] sm:$0xf]
  %v18 = vld [vmem:[%s0 + $0x28] sm:$0xf]
  %v19 = vld [vmem:[%s0 + $0x2c] sm:$0xf]
  %v20 = vld [vmem:[%s0 + $0x30] sm:$0xf]
  %v21 = vld [vmem:[%s0 + $0x34] sm:$0xf]
  %v22 = vld [vmem:[%s0 + $0x38] sm:$0xf]
  %v23 = vld [vmem:[%s0 + $0x3c] sm:$0xf]
  %v24 = vld [vmem:[%s0 + $0x40] sm:$0xf]
  %v25 = vld [vmem:[%s0 + $0x44] sm:$0xf]
  %v26 = vld [vmem:[%s0 + $0x48] sm:$0xf]
  %v27 = vld [vmem:[%s0 + $0x4c] sm:$0xf]
  %v28 = vld [vmem:[%s0 + $0x50] sm:$0xf]
  %v29 = vld [vmem:[%s0 + $0x54] sm:$0xf]
  %v30 = vld [vmem:[%s0 + $0x58] sm:$0xf]
  %v31 = vld [vmem:[%s0 + $0x5c] sm:$0xf]
  %v32 = vld [vmem:[%s0 + $0x60] sm:$0xf]
  %v33 = vld [vmem:[%s0 + $0x64] sm:$0xf]
  %v34 = vld [vmem:[%s0 + $0x68] sm:$0xf]
  %v35 = vld [vmem:[%s0 + $0x6c] sm:$0xf]
  %v36 = vld [vmem:[%s0 + $0x70] sm:$0xf]
  %v37 = vld [vmem:[%s0 + $0x74] sm:$0xf]
  %v38 = vld [vmem:[%s0 + $0x78] sm:$0xf]
  %v39 = vld [vmem:[%s0 + $0x7c] sm:$0xf]
  %v40 = vld [vmem:[%s0 + $0x80] sm:$0xf]
  %v41 = vld [vmem:[%s0 + $0x84] sm:$0xf]
  %v42 = vld [vmem:[%s0 + $0x88] sm:$0xf]
  %v43 = vld [vmem:[%s0 + $0x8c] sm:$0xf]
  %v44 = vld [vmem:[%s0 + $0x90] sm:$0xf]
  %v45 = vld [vmem:[%s0 + $0x94] sm:$0xf]
  %v46 = vld [vmem:[%s0 + $0x98] sm:$0xf]
  %v47 = vld [vmem:[%s0 + $0x9c] sm:$0xf]
  %v48 = vld [vmem:[%s0 + $0xa0] sm:$0xf]
  %v49 = vld [vmem:[%s0 + $0xa4] sm:$0xf]
  %v50 = vld [vmem:[%s0 + $0xa8] sm:$0xf]
  %v51 = vld [vmem:[%s0 + $0xac] sm:$0xf]
  %v52 = vld [vmem:[%s0 + $0xb0] sm:$0xf]
  %v53 = vld [vmem:[%s0 + $0xb4] sm:$0xf]
  %v54 = vld [vmem:[%s0 + $0xb8] sm:$0xf]
  %v55 = vld [vmem:[%s0 + $0xbc] sm:$0xf]
  %v56 = vld [vmem:[%s0 + $0xc0] sm:$0xf]
  %v57 = vld [vmem:[%s0 + $0xc4] sm:$0xf]
  %v58 = vld [vmem:[%s0 + $0xc8] sm:$0xf]
  %v59 = vld [vmem:[%s0 + $0xcc] sm:$0xf]
  %v60 = vld [vmem:[%s0 + $0xd0] sm:$0xf]
  %v61 = vld [vmem:[%s0 + $0xd4] sm:$0xf]
  %v62 = vld [vmem:[%s0 + $0xd8] sm:$0xf]
  %v63 = vld [vmem:[%s0 + $0xdc] sm:$0xf]
  %v64 = vld [vmem:[%s0 + $0xe0] sm:$0xf]
  %v65 = vld [vmem:[%s0 + $0xe4] sm:$0xf]
  %v66 = vld [vmem:[%s0 + $0xe8] sm:$0xf]
  %v67 = vld [vmem:[%s0 + $0xec] sm:$0xf]
  %v68 = vld [vmem:[%s0 + $0xf0] sm:$0xf]
  %v69 = vld [vmem:[%s0 + $0xf4] sm:$0xf]
  %v70 = vld [vmem:[%s0 + $0xf8] sm:$0xf]
  %v71 = vld [vmem:[%s0 + $0xfc] sm:$0xf]
  %v72 = vld [vmem:[%s0 + $0x100] sm:$0xf]
  %v73 = vld [vmem:[%s0 + $0x104] sm:$0xf]
  %v74 = vld [vmem:[%s0 + $0x108] sm:$0xf]
  %v75 = vld [vmem:[%s0 + $0x10c] sm:$0xf]
  %v76 = vld [vmem:[%s0 + $0x110] sm:$0xf]
  %v77 = vld [vmem:[%s0 + $0x114] sm:$0xf]
  %v78 = vld [vmem:[%s0 + $0x118] sm:$0xf]
  %v79 = vld [vmem:[%s0 + $0x11c] sm:$0xf]
  %v80 = vld [vmem:[%s0 + $0x120] sm:$0xf]
  %v81 = vld [vmem:[%s0 + $0x124] sm:$0xf]
  %v82 = vld [vmem:[%s0 + $0x128] sm:$0xf]
  %v83 = vld [vmem:[%s0 + $0x12c] sm:$0xf]
  %v84 = vld [vmem:[%s0 + $0x130] sm:$0xf]
  %v85 = vld [vmem:[%s0 + $0x134] sm:$0xf]
  %v86 = vld [vmem:[%s0 + $0x138] sm:$0xf]
  %v87 = vld [vmem:[%s0 + $0x13c] sm:$0xf]
  %v88 = vld [vmem:[%s0 + $0x140] sm:$0xf]
  %v89 = vld [vmem:[%s0 + $0x144] sm:$0xf]
  %v90 = vld [vmem:[%s0 + $0x148] sm:$0xf]
  %v91 = vld [vmem:[%s0 + $0x14c] sm:$0xf]
  %v92 = vld [vmem:[%s0 + $0x150] sm:$0xf]
  %v93 = vld [vmem:[%s0 + $0x154] sm:$0xf]
  %v94 = vld [vmem:[%s0 + $0x158] sm:$0xf]
  %v95 = vld [vmem:[%s0 + $0x15c] sm:$0xf]
  %v96 = vld [vmem:[%s0 + $0x160] sm:$0xf]
  %v97 = vld [vmem:[%s0 + $0x164] sm:$0xf]
  %v98 = vld [vmem:[%s0 + $0x168] sm:$0xf]
  %v99 = vld [vmem:[%s0 + $0x16c] sm:$0xf]
  %v100 = vld [vmem:[%s0 + $0x170] sm:$0xf]
  %v101 = vld [vmem:[%s0 + $0x174] sm:$0xf]
  %v102 = vld [vmem:[%s0 + $0x178] sm:$0xf]
  %v103 = vld [vmem:[%s0 + $0x17c] sm:$0xf]
  %v104 = vld [vmem:[%s0 + $0x180] sm:$0xf]
  %v105 = vld [vmem:[%s0 + $0x184] sm:$0xf]
  %v106 = vld [vmem:[%s0 + $0x188] sm:$0xf]
  %v107 = vld [vmem:[%s0 + $0x18c] sm:$0xf]
  %v108 = vld [vmem:[%s0 + $0x190] sm:$0xf]
  %v109 = vld [vmem:[%s0 + $0x194] sm:$0xf]
  %v110 = vld [vmem:[%s0 + $0x198] sm:$0xf]
  %v111 = vld [vmem:[%s0 + $0x19c] sm:$0xf]
  %v112 = vld [vmem:[%s0 + $0x1a0] sm:$0xf]
  %v113 = vld [vmem:[%s0 + $0x1a4] sm:$0xf]
  %v114 = vld [vmem:[%s0 + $0x1a8] sm:$0xf]
  %v115 = vld [vmem:[%s0 + $0x1ac] sm:$0xf]
  %v116 = vld [vmem:[%s0 + $0x1b0] sm:$0xf]
  %v117 = vld [vmem:[%s0 + $0x1b4] sm:$0xf]
  %v118 = vld [vmem:[%s0 + $0x1b8] sm:$0xf]
  %v119 = vld [vmem:[%s0 + $0x1bc] sm:$0xf]
  %v120 = vld [vmem:[%s0 + $0x1c0] sm:$0xf]
  %v121 = vld [vmem:[%s0 + $0x1c4] sm:$0xf]
  %v122 = vld [vmem:[%s0 + $0x1c8] sm:$0xf]
  %v123 = vld [vmem:[%s0 + $0x1cc] sm:$0xf]
  %v124 = vld [vmem:[%s0 + $0x1d0] sm:$0xf]
  %v125 = vld [vmem:[%s0 + $0x1d4] sm:$0xf]
  %v126 = vld [vmem:[%s0 + $0x1d8] sm:$0xf]
  %v127 = vld [vmem:[%s0 + $0x1dc] sm:$0xf]
  %v128 = vld [vmem:[%s0 + $0x1e0] sm:$0xf]
  %v129 = vld [vmem:[%s0 + $0x1e4] sm:$0xf]
  %v130 = vld [vmem:[%s0 + $0x1e8] sm:$0xf]
  %v131 = vld [vmem:[%s0 + $0x1ec] sm:$0xf]
  %v132 = vld [vmem:[%s0 + $0x1f0] sm:$0xf]
  %v133 = vld [vmem:[%s0 + $0x1f4] sm:$0xf]
  %v134 = vld [vmem:[%s0 + $0x1f8] sm:$0xf]
  %v135 = vld [vmem:[%s0 + $0x1fc] sm:$0xf]
  %v136 = vld [vmem:[%s0 + $0x200] sm:$0xf]
  %v137 = vld [vmem:[%s0 + $0x204] sm:$0xf]
  %v138 = vld [vmem:[%s0 + $0x208] sm:$0xf]
  %v139 = vld [vmem:[%s0 + $0x20c] sm:$0xf]
  %v140 = vld [vmem:[%s0 + $0x210] sm:$0xf]
  %v141 = vld [vmem:[%s0 + $0x214] sm:$0xf]
  %v142 = vld [vmem:[%s0 + $0x218] sm:$0xf]
  %v143 = vld [vmem:[%s0 + $0x21c] sm:$0xf]
  %v144 = vld [vmem:[%s0 + $0x220] sm:$0xf]
  %v145 = vld [vmem:[%s0 + $0x224] sm:$0xf]
  %v146 = vld [vmem:[%s0 + $0x228] sm:$0xf]
  %v147 = vld [vmem:[%s0 + $0x22c] sm:$0xf]
  %v148 = vld [vmem:[%s0 + $0x230] sm:$0xf]
  %v149 = vld [vmem:[%s0 + $0x234] sm:$0xf]
  %v150 = vld [vmem:[%s0 + $0x238] sm:$0xf]
  %v151 = vld [vmem:[%s0 + $0x23c] sm:$0xf]
  %v152 = vunpack.c.l.bf16 %v8
  %v153 = vunpack.c.l.bf16 %v9
  %v154 = vunpack.c.l.bf16 %v10
  %v155 = vunpack.c.l.bf16 %v11
  %v156 = vunpack.c.l.bf16 %v12
  %v157 = vunpack.c.l.bf16 %v13
  %v158 = vunpack.c.l.bf16 %v14
  %v159 = vunpack.c.l.bf16 %v15
  %v160 = vunpack.c.l.bf16 %v16
  %v161 = vunpack.c.l.bf16 %v17
  %v162 = vunpack.c.l.bf16 %v18
  %v163 = vunpack.c.l.bf16 %v19
  %v164 = vunpack.c.l.bf16 %v20
  %v165 = vunpack.c.l.bf16 %v21
  %v166 = vunpack.c.l.bf16 %v22
  %v167 = vunpack.c.l.bf16 %v23
  %v168 = vunpack.c.l.bf16 %v24
  %v169 = vunpack.c.l.bf16 %v25
  %v170 = vunpack.c.l.bf16 %v26
  %v171 = vunpack.c.l.bf16 %v27
  %v172 = vunpack.c.l.bf16 %v28
  %v173 = vunpack.c.l.bf16 %v29
  %v174 = vunpack.c.l.bf16 %v30
  %v175 = vunpack.c.l.bf16 %v31
  %v176 = vunpack.c.l.bf16 %v32
  %v177 = vunpack.c.l.bf16 %v33
  %v178 = vunpack.c.l.bf16 %v34
  %v179 = vunpack.c.l.bf16 %v35
  %v180 = vunpack.c.l.bf16 %v36
  %v181 = vunpack.c.l.bf16 %v37
  %v182 = vunpack.c.l.bf16 %v38
  %v183 = vunpack.c.l.bf16 %v39
  %v184 = vunpack.c.l.bf16 %v40
  %v185 = vunpack.c.l.bf16 %v41
  %v186 = vunpack.c.l.bf16 %v42
  %v187 = vunpack.c.l.bf16 %v43
  %v188 = vunpack.c.l.bf16 %v44
  %v189 = vunpack.c.l.bf16 %v45
  %v190 = vunpack.c.l.bf16 %v46
  %v191 = vunpack.c.l.bf16 %v47
  %v192 = vunpack.c.l.bf16 %v48
  %v193 = vunpack.c.l.bf16 %v49
  %v194 = vunpack.c.l.bf16 %v50
  %v195 = vunpack.c.l.bf16 %v51
  %v196 = vunpack.c.l.bf16 %v52
  %v197 = vunpack.c.l.bf16 %v53
  %v198 = vunpack.c.l.bf16 %v54
  %v199 = vunpack.c.l.bf16 %v55
  %v200 = vunpack.c.l.bf16 %v56
  %v201 = vunpack.c.l.bf16 %v57
  %v202 = vunpack.c.l.bf16 %v58
  %v203 = vunpack.c.l.bf16 %v59
  %v204 = vunpack.c.l.bf16 %v60
  %v205 = vunpack.c.l.bf16 %v61
  %v206 = vunpack.c.l.bf16 %v62
  %v207 = vunpack.c.l.bf16 %v63
  %v208 = vunpack.c.l.bf16 %v64
  %v209 = vunpack.c.l.bf16 %v65
  %v210 = vunpack.c.l.bf16 %v66
  %v211 = vunpack.c.l.bf16 %v67
  %v212 = vunpack.c.l.bf16 %v68
  %v213 = vunpack.c.l.bf16 %v69
  %v214 = vunpack.c.l.bf16 %v70
  %v215 = vunpack.c.l.bf16 %v71
  %v216 = vunpack.c.l.bf16 %v72
  %v217 = vunpack.c.l.bf16 %v73
  %v218 = vunpack.c.l.bf16 %v74
  %v219 = vunpack.c.l.bf16 %v75
  %v220 = vunpack.c.l.bf16 %v76
  %v221 = vunpack.c.l.bf16 %v77
  %v222 = vunpack.c.l.bf16 %v78
  %v223 = vunpack.c.l.bf16 %v79
  %v224 = vunpack.c.l.bf16 %v80
  %v225 = vunpack.c.l.bf16 %v81
  %v226 = vunpack.c.l.bf16 %v82
  %v227 = vunpack.c.l.bf16 %v83
  %v228 = vunpack.c.l.bf16 %v84
  %v229 = vunpack.c.l.bf16 %v85
  %v230 = vunpack.c.l.bf16 %v86
  %v231 = vunpack.c.l.bf16 %v87
  %v232 = vunpack.c.l.bf16 %v88
  %v233 = vunpack.c.l.bf16 %v89
  %v234 = vunpack.c.l.bf16 %v90
  %v235 = vunpack.c.l.bf16 %v91
  %v236 = vunpack.c.l.bf16 %v92
  %v237 = vunpack.c.l.bf16 %v93
  %v238 = vunpack.c.l.bf16 %v94
  %v239 = vunpack.c.l.bf16 %v95
  %v240 = vunpack.c.l.bf16 %v96
  %v241 = vunpack.c.l.bf16 %v97
  %v242 = vunpack.c.l.bf16 %v98
  %v243 = vunpack.c.l.bf16 %v99
  %v244 = vunpack.c.l.bf16 %v100
  %v245 = vunpack.c.l.bf16 %v101
  %v246 = vunpack.c.l.bf16 %v102
  %v247 = vunpack.c.l.bf16 %v103
  %v248 = vunpack.c.l.bf16 %v104
  %v249 = vunpack.c.l.bf16 %v105
  %v250 = vunpack.c.l.bf16 %v106
  %v251 = vunpack.c.l.bf16 %v107
  %v252 = vunpack.c.l.bf16 %v108
  %v253 = vunpack.c.l.bf16 %v109
  %v254 = vunpack.c.l.bf16 %v110
  %v255 = vunpack.c.l.bf16 %v111
  %v256 = vunpack.c.l.bf16 %v112
  %v257 = vunpack.c.l.bf16 %v113
  %v258 = vunpack.c.l.bf16 %v114
  %v259 = vunpack.c.l.bf16 %v115
  %v260 = vunpack.c.l.bf16 %v116
  %v261 = vunpack.c.l.bf16 %v117
  %v262 = vunpack.c.l.bf16 %v118
  %v263 = vunpack.c.l.bf16 %v119
  %v264 = vunpack.c.l.bf16 %v120
  %v265 = vunpack.c.l.bf16 %v121
  %v266 = vunpack.c.l.bf16 %v122
  %v267 = vunpack.c.l.bf16 %v123
  %v268 = vunpack.c.l.bf16 %v124
  %v269 = vunpack.c.l.bf16 %v125
  %v270 = vunpack.c.l.bf16 %v126
  %v271 = vunpack.c.l.bf16 %v127
  %v272 = vunpack.c.l.bf16 %v128
  %v273 = vunpack.c.l.bf16 %v129
  %v274 = vunpack.c.l.bf16 %v130
  %v275 = vunpack.c.l.bf16 %v131
  %v276 = vunpack.c.l.bf16 %v132
  %v277 = vunpack.c.l.bf16 %v133
  %v278 = vunpack.c.l.bf16 %v134
  %v279 = vunpack.c.l.bf16 %v135
  %v280 = vunpack.c.l.bf16 %v136
  %v281 = vunpack.c.l.bf16 %v137
  %v282 = vunpack.c.l.bf16 %v138
  %v283 = vunpack.c.l.bf16 %v139
  %v284 = vunpack.c.l.bf16 %v140
  %v285 = vunpack.c.l.bf16 %v141
  %v286 = vunpack.c.l.bf16 %v142
  %v287 = vunpack.c.l.bf16 %v143
  %v288 = vunpack.c.l.bf16 %v144
  %v289 = vunpack.c.l.bf16 %v145
  %v290 = vunpack.c.l.bf16 %v146
  %v291 = vunpack.c.l.bf16 %v147
  %v292 = vunpack.c.l.bf16 %v148
  %v293 = vunpack.c.l.bf16 %v149
  %v294 = vunpack.c.l.bf16 %v150
  %v295 = vunpack.c.l.bf16 %v151
  %v296 = vmax.f32 %v152, %v168
  %v297 = vmax.f32 %v296, %v184
  %v298 = vmax.f32 %v297, %v200
  %v299 = vmax.f32 %v298, %v216
  %v300 = vmax.f32 %v299, %v232
  %v301 = vmax.f32 %v300, %v248
  %v302 = vmax.f32 %v301, %v264
  %v303 = vmax.f32 %v302, %v280
  %v304 = vmax.f32 %v153, %v169
  %v305 = vmax.f32 %v304, %v185
  %v306 = vmax.f32 %v305, %v201
  %v307 = vmax.f32 %v306, %v217
  %v308 = vmax.f32 %v307, %v233
  %v309 = vmax.f32 %v308, %v249
  %v310 = vmax.f32 %v309, %v265
  %v311 = vmax.f32 %v310, %v281
  %v312 = vmax.f32 %v154, %v170
  %v313 = vmax.f32 %v312, %v186
  %v314 = vmax.f32 %v313, %v202
  %v315 = vmax.f32 %v314, %v218
  %v316 = vmax.f32 %v315, %v234
  %v317 = vmax.f32 %v316, %v250
  %v318 = vmax.f32 %v317, %v266
  %v319 = vmax.f32 %v318, %v282
  %v320 = vmax.f32 %v155, %v171
  %v321 = vmax.f32 %v320, %v187
  %v322 = vmax.f32 %v321, %v203
  %v323 = vmax.f32 %v322, %v219
  %v324 = vmax.f32 %v323, %v235
  %v325 = vmax.f32 %v324, %v251
  %v326 = vmax.f32 %v325, %v267
  %v327 = vmax.f32 %v326, %v283
  %v328 = vmax.f32 %v156, %v172
  %v329 = vmax.f32 %v328, %v188
  %v330 = vmax.f32 %v329, %v204
  %v331 = vmax.f32 %v330, %v220
  %v332 = vmax.f32 %v331, %v236
  %v333 = vmax.f32 %v332, %v252
  %v334 = vmax.f32 %v333, %v268
  %v335 = vmax.f32 %v334, %v284
  %v336 = vmax.f32 %v157, %v173
  %v337 = vmax.f32 %v336, %v189
  %v338 = vmax.f32 %v337, %v205
  %v339 = vmax.f32 %v338, %v221
  %v340 = vmax.f32 %v339, %v237
  %v341 = vmax.f32 %v340, %v253
  %v342 = vmax.f32 %v341, %v269
  %v343 = vmax.f32 %v342, %v285
  %v344 = vmax.f32 %v158, %v174
  %v345 = vmax.f32 %v344, %v190
  %v346 = vmax.f32 %v345, %v206
  %v347 = vmax.f32 %v346, %v222
  %v348 = vmax.f32 %v347, %v238
  %v349 = vmax.f32 %v348, %v254
  %v350 = vmax.f32 %v349, %v270
  %v351 = vmax.f32 %v350, %v286
  %v352 = vmax.f32 %v159, %v175
  %v353 = vmax.f32 %v352, %v191
  %v354 = vmax.f32 %v353, %v207
  %v355 = vmax.f32 %v354, %v223
  %v356 = vmax.f32 %v355, %v239
  %v357 = vmax.f32 %v356, %v255
  %v358 = vmax.f32 %v357, %v271
  %v359 = vmax.f32 %v358, %v287
  %v360 = vmax.f32 %v160, %v176
  %v361 = vmax.f32 %v360, %v192
  %v362 = vmax.f32 %v361, %v208
  %v363 = vmax.f32 %v362, %v224
  %v364 = vmax.f32 %v363, %v240
  %v365 = vmax.f32 %v364, %v256
  %v366 = vmax.f32 %v365, %v272
  %v367 = vmax.f32 %v366, %v288
  %v368 = vmax.f32 %v161, %v177
  %v369 = vmax.f32 %v368, %v193
  %v370 = vmax.f32 %v369, %v209
  %v371 = vmax.f32 %v370, %v225
  %v372 = vmax.f32 %v371, %v241
  %v373 = vmax.f32 %v372, %v257
  %v374 = vmax.f32 %v373, %v273
  %v375 = vmax.f32 %v374, %v289
  %v376 = vmax.f32 %v162, %v178
  %v377 = vmax.f32 %v376, %v194
  %v378 = vmax.f32 %v377, %v210
  %v379 = vmax.f32 %v378, %v226
  %v380 = vmax.f32 %v379, %v242
  %v381 = vmax.f32 %v380, %v258
  %v382 = vmax.f32 %v381, %v274
  %v383 = vmax.f32 %v382, %v290
  %v384 = vmax.f32 %v163, %v179
  %v385 = vmax.f32 %v384, %v195
  %v386 = vmax.f32 %v385, %v211
  %v387 = vmax.f32 %v386, %v227
  %v388 = vmax.f32 %v387, %v243
  %v389 = vmax.f32 %v388, %v259
  %v390 = vmax.f32 %v389, %v275
  %v391 = vmax.f32 %v390, %v291
  %v392 = vmax.f32 %v164, %v180
  %v393 = vmax.f32 %v392, %v196
  %v394 = vmax.f32 %v393, %v212
  %v395 = vmax.f32 %v394, %v228
  %v396 = vmax.f32 %v395, %v244
  %v397 = vmax.f32 %v396, %v260
  %v398 = vmax.f32 %v397, %v276
  %v399 = vmax.f32 %v398, %v292
  %v400 = vmax.f32 %v165, %v181
  %v401 = vmax.f32 %v400, %v197
  %v402 = vmax.f32 %v401, %v213
  %v403 = vmax.f32 %v402, %v229
  %v404 = vmax.f32 %v403, %v245
  %v405 = vmax.f32 %v404, %v261
  %v406 = vmax.f32 %v405, %v277
  %v407 = vmax.f32 %v406, %v293
  %v408 = vmax.f32 %v166, %v182
  %v409 = vmax.f32 %v408, %v198
  %v410 = vmax.f32 %v409, %v214
  %v411 = vmax.f32 %v410, %v230
  %v412 = vmax.f32 %v411, %v246
  %v413 = vmax.f32 %v412, %v262
  %v414 = vmax.f32 %v413, %v278
  %v415 = vmax.f32 %v414, %v294
  %v416 = vmax.f32 %v167, %v183
  %v417 = vmax.f32 %v416, %v199
  %v418 = vmax.f32 %v417, %v215
  %v419 = vmax.f32 %v418, %v231
  %v420 = vmax.f32 %v419, %v247
  %v421 = vmax.f32 %v420, %v263
  %v422 = vmax.f32 %v421, %v279
  %v423 = vmax.f32 %v422, %v295
  %v424 = vpack.c.bf16 %v303, %v303
  %v425 = vpack.c.bf16 %v311, %v311
  %v426 = vpack.c.bf16 %v319, %v319
  %v427 = vpack.c.bf16 %v327, %v327
  %v428 = vpack.c.bf16 %v335, %v335
  %v429 = vpack.c.bf16 %v343, %v343
  %v430 = vpack.c.bf16 %v351, %v351
  %v431 = vpack.c.bf16 %v359, %v359
  %v432 = vpack.c.bf16 %v367, %v367
  %v433 = vpack.c.bf16 %v375, %v375
  %v434 = vpack.c.bf16 %v383, %v383
  %v435 = vpack.c.bf16 %v391, %v391
  %v436 = vpack.c.bf16 %v399, %v399
  %v437 = vpack.c.bf16 %v407, %v407
  %v438 = vpack.c.bf16 %v415, %v415
  %v439 = vpack.c.bf16 %v423, %v423
  %440 = vst [vmem:[%s1] sm:$0xf] %v424
  %441 = vst [vmem:[%s1 + $0x4] sm:$0xf] %v425
  %442 = vst [vmem:[%s1 + $0x8] sm:$0xf] %v426
  %443 = vst [vmem:[%s1 + $0xc] sm:$0xf] %v427
  %444 = vst [vmem:[%s1 + $0x10] sm:$0xf] %v428
  %445 = vst [vmem:[%s1 + $0x14] sm:$0xf] %v429
  %446 = vst [vmem:[%s1 + $0x18] sm:$0xf] %v430
  %447 = vst [vmem:[%s1 + $0x1c] sm:$0xf] %v431
  %448 = vst [vmem:[%s1 + $0x20] sm:$0xf] %v432
  %449 = vst [vmem:[%s1 + $0x24] sm:$0xf] %v433
  %450 = vst [vmem:[%s1 + $0x28] sm:$0xf] %v434
  %451 = vst [vmem:[%s1 + $0x2c] sm:$0xf] %v435
  %452 = vst [vmem:[%s1 + $0x30] sm:$0xf] %v436
  %453 = vst [vmem:[%s1 + $0x34] sm:$0xf] %v437
  %454 = vst [vmem:[%s1 + $0x38] sm:$0xf] %v438
  %455 = vst [vmem:[%s1 + $0x3c] sm:$0xf] %v439
  // Predicated region
  $region6: #{_lambda_.24} parent=0 // pred_check
    _
  $region7: #{_lambda_.24} parent=0 // pred_check_branch
    %457 = sbr.rel (0) target = $region9
  $region8: #{_lambda_.24} parent=0 // pred_region
    _
  $region9: #{_lambda_.24} parent=0 // pred_fallthru
    _
  // Predicated region
  $region10: #{_lambda_.24} parent=0 // pred_check
    _
  $region11: #{_lambda_.24} parent=0 // pred_check_branch
    %459 = sbr.rel (0) target = $region13
  $region12: #{_lambda_.24} parent=0 // pred_region
    _
  $region13: #{_lambda_.24} parent=0 // pred_fallthru
    _

// kernel: _lambda_.26
$region0: #{_lambda_.26}
  #allocation0 [shape = 'u32[]', space=smem, size = 0x4, offset = 0x4, fixed_abs, tag = 'smem constant byte address 0x4 - core index']
  #allocation1 [shape = 'u32[72,128]{1,0:T(1,128)}', space=vmem, size = 0x9000, scoped, tag = 'internal scratch']
  %s0 = inlined_call_operand.vmem [shape: bf16[2,64,128], index: 0, kind: input, shape index: {}]
  %s1 = inlined_call_operand.vmem [shape: f32[1,1,128], index: 1, kind: input, shape index: {}, may-alias: {1,3}]
  %s2 = inlined_call_operand.vmem [shape: f32[1,1,128], index: 2, kind: input, shape index: {}]
  %s3 = inlined_call_operand.vmem [shape: f32[1,1,128], index: 3, kind: input, shape index: {}, may-alias: {1,3}]
  %s4 = inlined_call_operand.vmem [shape: bf16[2,64,128], index: 4, kind: output, shape index: {}]
  %s5 = sld [smem:[#allocation0]]
  $region49: #{_lambda_.26} parent=0
    _
  %s7 = ssub.s32 1, %s5
  %s8 = scalar_select 0, %s7, %s5
  loop: start=0, step=1, limit=4
  $region2: #{_lambda_.26} parent=0 // loop_pre_header
    _
  $region3: #{_lambda_.26} parent=0 // loop_header
    %s10 = sphi 0, %s14
    %p11 = scmp.ge.s32.totalorder %s10, 4
    %s17 = sphi 0, %s29
    %s18 = sphi 0, %s25
    %s19 = sphi 0, %s17
    %s20 = sphi 0, %s18
    %s21 = sphi 0, %s19
    %s22 = sphi 0, %s20
    %s34 = sphi 0, %s36
    %s37 = sphi 0, %s34
    %s38 = sphi 0, %s37
    %s54 = sphi 0, %s38
    %s60 = sphi 0, %s62
    %s63 = sphi 0, %s60
    %s64 = sphi 0, %s63
    %s80 = sphi 0, %s64
    %s86 = sphi 0, %s88
    %s89 = sphi 0, %s86
    %s90 = sphi 0, %s89
    %s106 = sphi 0, %s90
    %s112 = sphi 0, %s114
    %s115 = sphi 0, %s112
    %s116 = sphi 0, %s115
    %s132 = sphi 0, %s116
    %s140 = sphi 0, %s142
    %s143 = sphi 0, %s140
    %s144 = sphi 0, %s143
    %s160 = sphi 0, %s144
  $region4: #{_lambda_.26} parent=0 // loop_header_branch
    %13 = sbr.rel (%p11) target = $region8
  $region5: #{_lambda_.26} parent=0 // loop_body
    %s15 = ssub.s32 %s10, 1
    %s16 = ssub.s32 %s10, 2
    %s23 = sadd.s32 1, %s18
    %p24 = scmp.ge.s32.totalorder %s23, 1
    %s25 = scalar_select %p24, 0, %s23
    %s26 = sadd.s32 1, %s17
    %s27 = scalar_select %p24, %s26, %s17
    %p28 = scmp.ge.s32.totalorder %s27, 2
    %s29 = scalar_select %p28, 0, %s27
    %s30 = ssub.s32 %s17, %s29
    %s31 = ssub.s32 %s18, %s25
    %s32 = sor.u32 %s30, %s31
    %p33 = scmp.eq.s32.totalorder %s32, 0
    %s35 = sadd.s32 %s34, 1
    %s36 = scalar_select %p33, %s34, %s35
    %p39 = pneg %p33
    %p40 = scmp.eq.s32.totalorder %s10, 1
    %p41 = por %p39, %p40
    %p42 = scmp.ne.s32.totalorder %s34, %s37
    %p43 = scmp.eq.s32.totalorder %s10, 0
    %p44 = por %p42, %p43
    %p45 = scmp.ne.s32.totalorder %s34, %s37
    %p46 = scmp.eq.s32.totalorder %s15, 1
    %p47 = por %p45, %p46
    %p48 = scmp.ne.s32.totalorder %s37, %s38
    %p49 = scmp.eq.s32.totalorder %s15, 0
    %p50 = por %p48, %p49
    %p51 = scmp.ne.s32.totalorder %s37, %s38
    %p52 = scmp.eq.s32.totalorder %s16, 1
    %p53 = por %p51, %p52
    %p55 = scmp.ne.s32.totalorder %s38, %s54
    %p56 = scmp.eq.s32.totalorder %s16, 0
    %p57 = por %p55, %p56
    %s58 = ssub.s32 %s18, %s25
    %p59 = scmp.eq.s32.totalorder %s58, 0
    %s61 = sadd.s32 %s60, 1
    %s62 = scalar_select %p59, %s60, %s61
    %p65 = pneg %p59
    %p66 = scmp.eq.s32.totalorder %s10, 1
    %p67 = por %p65, %p66
    %p68 = scmp.ne.s32.totalorder %s60, %s63
    %p69 = scmp.eq.s32.totalorder %s10, 0
    %p70 = por %p68, %p69
    %p71 = scmp.ne.s32.totalorder %s60, %s63
    %p72 = scmp.eq.s32.totalorder %s15, 1
    %p73 = por %p71, %p72
    %p74 = scmp.ne.s32.totalorder %s63, %s64
    %p75 = scmp.eq.s32.totalorder %s15, 0
    %p76 = por %p74, %p75
    %p77 = scmp.ne.s32.totalorder %s63, %s64
    %p78 = scmp.eq.s32.totalorder %s16, 1
    %p79 = por %p77, %p78
    %p81 = scmp.ne.s32.totalorder %s64, %s80
    %p82 = scmp.eq.s32.totalorder %s16, 0
    %p83 = por %p81, %p82
    %s84 = ssub.s32 %s18, %s25
    %p85 = scmp.eq.s32.totalorder %s84, 0
    %s87 = sadd.s32 %s86, 1
    %s88 = scalar_select %p85, %s86, %s87
    %p91 = pneg %p85
    %p92 = scmp.eq.s32.totalorder %s10, 1
    %p93 = por %p91, %p92
    %p94 = scmp.ne.s32.totalorder %s86, %s89
    %p95 = scmp.eq.s32.totalorder %s10, 0
    %p96 = por %p94, %p95
    %p97 = scmp.ne.s32.totalorder %s86, %s89
    %p98 = scmp.eq.s32.totalorder %s15, 1
    %p99 = por %p97, %p98
    %p100 = scmp.ne.s32.totalorder %s89, %s90
    %p101 = scmp.eq.s32.totalorder %s15, 0
    %p102 = por %p100, %p101
    %p103 = scmp.ne.s32.totalorder %s89, %s90
    %p104 = scmp.eq.s32.totalorder %s16, 1
    %p105 = por %p103, %p104
    %p107 = scmp.ne.s32.totalorder %s90, %s106
    %p108 = scmp.eq.s32.totalorder %s16, 0
    %p109 = por %p107, %p108
    %s110 = ssub.s32 %s18, %s25
    %p111 = scmp.eq.s32.totalorder %s110, 0
    %s113 = sadd.s32 %s112, 1
    %s114 = scalar_select %p111, %s112, %s113
    %p117 = pneg %p111
    %p118 = scmp.eq.s32.totalorder %s10, 1
    %p119 = por %p117, %p118
    %p120 = scmp.ne.s32.totalorder %s112, %s115
    %p121 = scmp.eq.s32.totalorder %s10, 0
    %p122 = por %p120, %p121
    %p123 = scmp.ne.s32.totalorder %s112, %s115
    %p124 = scmp.eq.s32.totalorder %s15, 1
    %p125 = por %p123, %p124
    %p126 = scmp.ne.s32.totalorder %s115, %s116
    %p127 = scmp.eq.s32.totalorder %s15, 0
    %p128 = por %p126, %p127
    %p129 = scmp.ne.s32.totalorder %s115, %s116
    %p130 = scmp.eq.s32.totalorder %s16, 1
    %p131 = por %p129, %p130
    %p133 = scmp.ne.s32.totalorder %s116, %s132
    %p134 = scmp.eq.s32.totalorder %s16, 0
    %p135 = por %p133, %p134
    %s136 = ssub.s32 %s17, %s29
    %s137 = ssub.s32 %s18, %s25
    %s138 = sor.u32 %s136, %s137
    %p139 = scmp.eq.s32.totalorder %s138, 0
    %s141 = sadd.s32 %s140, 1
    %s142 = scalar_select %p139, %s140, %s141
    %p145 = pneg %p139
    %p146 = scmp.eq.s32.totalorder %s10, 1
    %p147 = por %p145, %p146
    %p148 = scmp.ne.s32.totalorder %s140, %s143
    %p149 = scmp.eq.s32.totalorder %s10, 0
    %p150 = por %p148, %p149
    %p151 = scmp.ne.s32.totalorder %s140, %s143
    %p152 = scmp.eq.s32.totalorder %s15, 1
    %p153 = por %p151, %p152
    %p154 = scmp.ne.s32.totalorder %s143, %s144
    %p155 = scmp.eq.s32.totalorder %s15, 0
    %p156 = por %p154, %p155
    %p157 = scmp.ne.s32.totalorder %s143, %s144
    %p158 = scmp.eq.s32.totalorder %s16, 1
    %p159 = por %p157, %p158
    %p161 = scmp.ne.s32.totalorder %s144, %s160
    %p162 = scmp.eq.s32.totalorder %s16, 0
    %p163 = por %p161, %p162
    %p164 = scmp.le.s32.totalorder 1, %s10
    %p165 = scmp.lt.s32.totalorder %s10, 3
    %p166 = pnand %p164, %p165
    %p167 = pneg %p166
    // Predicated region
    $region9: #{_lambda_.26} parent=5 // pred_check
      _
    $region10: #{_lambda_.26} parent=5 // pred_check_branch
      %169 = sbr.rel (%p166) target = $region12
    $region11: #{_lambda_.26} parent=5 // pred_region
      %s170 = ssub.s32 %s10, 1
      // Predicated region
      $region13: #{_lambda_.26} parent=11 // pred_check
        %p171 = pneg %p76
      $region14: #{_lambda_.26} parent=11 // pred_check_branch
        %173 = sbr.rel (%p171) target = $region16
      $region15: #{_lambda_.26} parent=11 // pred_region
        %p174 = scmp.lt.s32.totalorder %s20, 0
        %s175 = scalar_select %p174, %s20, 0
        %s176 = scalar_lea.vmem %s1, %s175
      $region16: #{_lambda_.26} parent=11 // pred_fallthru
        _
      // Predicated region
      $region17: #{_lambda_.26} parent=11 // pred_check
        %p177 = pneg %p102
      $region18: #{_lambda_.26} parent=11 // pred_check_branch
        %179 = sbr.rel (%p177) target = $region20
      $region19: #{_lambda_.26} parent=11 // pred_region
        %p180 = scmp.lt.s32.totalorder %s20, 0
        %s181 = scalar_select %p180, %s20, 0
        %s182 = scalar_lea.vmem %s2, %s181
      $region20: #{_lambda_.26} parent=11 // pred_fallthru
        _
      // Predicated region
      $region21: #{_lambda_.26} parent=11 // pred_check
        %p183 = pneg %p128
      $region22: #{_lambda_.26} parent=11 // pred_check_branch
        %185 = sbr.rel (%p183) target = $region24
      $region23: #{_lambda_.26} parent=11 // pred_region
        %p186 = scmp.lt.s32.totalorder %s20, 0
        %s187 = scalar_select %p186, %s20, 0
        %s188 = scalar_lea.vmem %s3, %s187
      $region24: #{_lambda_.26} parent=11 // pred_fallthru
        _
    $region12: #{_lambda_.26} parent=5 // pred_fallthru
      _
    %p189 = scmp.lt.s32.totalorder %s10, 2
    // Predicated region
    $region25: #{_lambda_.26} parent=5 // pred_check
      %p190 = pneg %p189
    $region26: #{_lambda_.26} parent=5 // pred_check_branch
      %192 = sbr.rel (%p190) target = $region28
    $region27: #{_lambda_.26} parent=5 // pred_region
      // Predicated region
      $region29: #{_lambda_.26} parent=27 // pred_check
        %p193 = pneg %p44
      $region30: #{_lambda_.26} parent=27 // pred_check_branch
        %195 = sbr.rel (%p193) target = $region32
      $region31: #{_lambda_.26} parent=27 // pred_region
        %p196 = scmp.lt.s32.totalorder %s17, 1
        %s197 = scalar_select %p196, %s17, 1
        %p198 = scmp.lt.s32.totalorder %s18, 0
        %s199 = scalar_select %p198, %s18, 0
        %s200 = smul.addr %s197, 8
        %s201 = sadd.s32 %s199, %s200
        %s202 = smul.addr %s201, 4
        %s203 = scalar_lea.vmem %s0, %s202
      $region32: #{_lambda_.26} parent=27 // pred_fallthru
        _
    $region28: #{_lambda_.26} parent=5 // pred_fallthru
      _
    %p204 = scmp.le.s32.totalorder 1, %s10
    %p205 = scmp.lt.s32.totalorder %s10, 3
    %p206 = pnand %p204, %p205
    %p207 = pneg %p206
    // Predicated region
    $region33: #{_lambda_.26} parent=5 // pred_check
      _
    $region34: #{_lambda_.26} parent=5 // pred_check_branch
      %209 = sbr.rel (%p206) target = $region36
    $region35: #{_lambda_.26} parent=5 // pred_region
      %s210 = ssub.s32 %s10, 1
      %p211 = scmp.lt.s32.totalorder %s19, 1
      %s212 = scalar_select %p211, %s19, 1
      %p213 = scmp.lt.s32.totalorder %s20, 0
      %s214 = scalar_select %p213, %s20, 0
      %s215 = smul.addr %s212, 8
      %s216 = sadd.s32 %s214, %s215
      %s217 = smul.addr %s216, 4
      %s218 = scalar_lea.vmem %s0, %s217
      %p219 = pneg %p50
      %p220 = pneg %p47
      %p221 = scmp.lt.s32.totalorder %s20, 0
      %s222 = scalar_select %p221, %s20, 0
      %s223 = scalar_lea.vmem %s1, %s222
      %p224 = pneg %p76
      %p225 = pneg %p73
      %p226 = scmp.lt.s32.totalorder %s20, 0
      %s227 = scalar_select %p226, %s20, 0
      %s228 = scalar_lea.vmem %s2, %s227
      %p229 = pneg %p102
      %p230 = pneg %p99
      %p231 = scmp.lt.s32.totalorder %s20, 0
      %s232 = scalar_select %p231, %s20, 0
      %s233 = scalar_lea.vmem %s3, %s232
      %p234 = pneg %p128
      %p235 = pneg %p125
      %p236 = pneg %p156
      %p237 = pneg %p153
      %p238 = scmp.lt.s32.totalorder %s19, 1
      %s239 = scalar_select %p238, %s19, 1
      %p240 = scmp.lt.s32.totalorder %s20, 0
      %s241 = scalar_select %p240, %s20, 0
      %s242 = smul.addr %s239, 8
      %s243 = sadd.s32 %s241, %s242
      %s244 = smul.addr %s243, 4
      %s245 = scalar_lea.vmem %s4, %s244
      %p246 = scmp.lt.s32.totalorder %s19, 1
      %s247 = scalar_select %p246, %s19, 1
      %p248 = scmp.lt.s32.totalorder %s20, 0
      %s249 = scalar_select %p248, %s20, 0
      %s250 = smul.addr %s247, 8
      %s251 = sadd.s32 %s249, %s250
      %s252 = smul.addr %s251, 4
      %s253 = scalar_lea.vmem %s0, %s252
      %p254 = scmp.lt.s32.totalorder %s20, 0
      %s255 = scalar_select %p254, %s20, 0
      %s256 = scalar_lea.vmem %s1, %s255
      %p257 = scmp.lt.s32.totalorder %s20, 0
      %s258 = scalar_select %p257, %s20, 0
      %s259 = scalar_lea.vmem %s2, %s258
      %p260 = scmp.lt.s32.totalorder %s20, 0
      %s261 = scalar_select %p260, %s20, 0
      %s262 = scalar_lea.vmem %s3, %s261
      %p263 = scmp.lt.s32.totalorder %s19, 1
      %s264 = scalar_select %p263, %s19, 1
      %p265 = scmp.lt.s32.totalorder %s20, 0
      %s266 = scalar_select %p265, %s20, 0
      %s267 = smul.addr %s264, 8
      %s268 = sadd.s32 %s266, %s267
      %s269 = smul.addr %s268, 4
      %s270 = scalar_lea.vmem %s4, %s269
      %v271 = vld [vmem:[%s253] sm:$0xf]
      %v272 = vld [vmem:[%s253 + $0x4] sm:$0xf]
      %v273 = vld [vmem:[%s253 + $0x8] sm:$0xf]
      %v274 = vld [vmem:[%s253 + $0xc] sm:$0xf]
      %v275 = vld [vmem:[%s253 + $0x10] sm:$0xf]
      %v276 = vld [vmem:[%s253 + $0x14] sm:$0xf]
      %v277 = vld [vmem:[%s253 + $0x18] sm:$0xf]
      %v278 = vld [vmem:[%s253 + $0x1c] sm:$0xf]
      %v279 = vunpack.c.l.bf16 %v271
      %v280 = vunpack.c.l.bf16 %v272
      %v281 = vunpack.c.l.bf16 %v273
      %v282 = vunpack.c.l.bf16 %v274
      %v283 = vunpack.c.l.bf16 %v275
      %v284 = vunpack.c.l.bf16 %v276
      %v285 = vunpack.c.l.bf16 %v277
      %v286 = vunpack.c.l.bf16 %v278
      %v287 = vadd.f32 %v279, %v280
      %v288 = vadd.f32 %v287, %v281
      %v289 = vadd.f32 %v288, %v282
      %v290 = vadd.f32 %v289, %v283
      %v291 = vadd.f32 %v290, %v284
      %v292 = vadd.f32 %v291, %v285
      %v293 = vadd.f32 %v292, %v286
      %v294 = vrot.slane %v293, 4
      %v295 = vadd.f32 %v293, %v294
      %v296 = vrot.slane %v295, 2
      %v297 = vadd.f32 %v295, %v296
      %v298 = vrot.slane %v297, 1
      %v299 = vadd.f32 %v297, %v298
      %v300 = vmul.f32 %v299, 0.015625
      %v301 = vsub.f32 %v279, %v300
      %v302 = vsub.f32 %v280, %v300
      %v303 = vsub.f32 %v281, %v300
      %v304 = vsub.f32 %v282, %v300
      %v305 = vsub.f32 %v283, %v300
      %v306 = vsub.f32 %v284, %v300
      %v307 = vsub.f32 %v285, %v300
      %v308 = vsub.f32 %v286, %v300
      %v309 = vmul.f32 %v301, %v301
      %v310 = vmul.f32 %v302, %v302
      %v311 = vmul.f32 %v303, %v303
      %v312 = vmul.f32 %v304, %v304
      %v313 = vmul.f32 %v305, %v305
      %v314 = vmul.f32 %v306, %v306
      %v315 = vmul.f32 %v307, %v307
      %v316 = vmul.f32 %v308, %v308
      %v317 = vadd.f32 %v309, %v310
      %v318 = vadd.f32 %v317, %v311
      %v319 = vadd.f32 %v318, %v312
      %v320 = vadd.f32 %v319, %v313
      %v321 = vadd.f32 %v320, %v314
      %v322 = vadd.f32 %v321, %v315
      %v323 = vadd.f32 %v322, %v316
      %v324 = vrot.slane %v323, 4
      %v325 = vadd.f32 %v323, %v324
      %v326 = vrot.slane %v325, 2
      %v327 = vadd.f32 %v325, %v326
      %v328 = vrot.slane %v327, 1
      %v329 = vadd.f32 %v327, %v328
      %v330 = vmul.f32 %v329, 0.015625
      %v331 = vadd.f32 %v330, 1e-05
      %v332 = vrsqrt.pop %v331
      %v333 = vmul.f32 %v332, %v331
      %v334 = vmul.f32 %v333, %v332
      %v335 = vmul.f32 0.5, %v334
      %v336 = vsub.f32 1.5, %v335
      %v337 = vmul.f32 %v332, %v336
      %vm338 = vweird.f32 %v331
      %vm339 = vweird.f32 %v332
      %vm340 = vmor %vm338, %vm339
      %v341 = vsel %vm340, %v332, %v337
      %v342 = vmul.f32 %v301, %v341
      %v343 = vmul.f32 %v302, %v341
      %v344 = vmul.f32 %v303, %v341
      %v345 = vmul.f32 %v304, %v341
      %v346 = vmul.f32 %v305, %v341
      %v347 = vmul.f32 %v306, %v341
      %v348 = vmul.f32 %v307, %v341
      %v349 = vmul.f32 %v308, %v341
      %v350 = vld [vmem:[%s256] sm:$0x1]
      %v352 = vperm.slane %v350, 0
      %v354 = vmul.f32 %v342, %v352
      %v355 = vmul.f32 %v343, %v352
      %v356 = vmul.f32 %v344, %v352
      %v357 = vmul.f32 %v345, %v352
      %v358 = vmul.f32 %v346, %v352
      %v359 = vmul.f32 %v347, %v352
      %v360 = vmul.f32 %v348, %v352
      %v361 = vmul.f32 %v349, %v352
      %v362 = vld [vmem:[%s259] sm:$0x1]
      %v364 = vperm.slane %v362, 0
      %v366 = vadd.f32 %v354, %v364
      %v367 = vadd.f32 %v355, %v364
      %v368 = vadd.f32 %v356, %v364
      %v369 = vadd.f32 %v357, %v364
      %v370 = vadd.f32 %v358, %v364
      %v371 = vadd.f32 %v359, %v364
      %v372 = vadd.f32 %v360, %v364
      %v373 = vadd.f32 %v361, %v364
      %v374 = vld [vmem:[%s262] sm:$0x1]
      %vm375 = vcmp.gt.f32.partialorder %v374, 0.5
      %v376 = vsel %vm375, 1, 0
      %v377 = vperm.slane %v376, 0
      %vm378 = vcmp.eq.s32.totalorder %v377, 1
      %v379 = vsel %vm378, %v366, %v279
      %v380 = vsel %vm378, %v367, %v280
      %v381 = vsel %vm378, %v368, %v281
      %v382 = vsel %vm378, %v369, %v282
      %v383 = vsel %vm378, %v370, %v283
      %v384 = vsel %vm378, %v371, %v284
      %v385 = vsel %vm378, %v372, %v285
      %v386 = vsel %vm378, %v373, %v286
      %v387 = vmax.f32 %v379, 0.0
      %v388 = vmax.f32 %v380, 0.0
      %v389 = vmax.f32 %v381, 0.0
      %v390 = vmax.f32 %v382, 0.0
      %v391 = vmax.f32 %v383, 0.0
      %v392 = vmax.f32 %v384, 0.0
      %v393 = vmax.f32 %v385, 0.0
      %v394 = vmax.f32 %v386, 0.0
      %v395 = vpack.c.bf16 %v387, %v387
      %v396 = vpack.c.bf16 %v388, %v388
      %v397 = vpack.c.bf16 %v389, %v389
      %v398 = vpack.c.bf16 %v390, %v390
      %v399 = vpack.c.bf16 %v391, %v391
      %v400 = vpack.c.bf16 %v392, %v392
      %v401 = vpack.c.bf16 %v393, %v393
      %v402 = vpack.c.bf16 %v394, %v394
      %403 = vst [vmem:[%s270] sm:$0xf] %v395
      %404 = vst [vmem:[%s270 + $0x4] sm:$0xf] %v396
      %405 = vst [vmem:[%s270 + $0x8] sm:$0xf] %v397
      %406 = vst [vmem:[%s270 + $0xc] sm:$0xf] %v398
      %407 = vst [vmem:[%s270 + $0x10] sm:$0xf] %v399
      %408 = vst [vmem:[%s270 + $0x14] sm:$0xf] %v400
      %409 = vst [vmem:[%s270 + $0x18] sm:$0xf] %v401
      %410 = vst [vmem:[%s270 + $0x1c] sm:$0xf] %v402
      %p411 = scmp.lt.s32.totalorder %s19, 1
      %s412 = scalar_select %p411, %s19, 1
      %p413 = scmp.lt.s32.totalorder %s20, 0
      %s414 = scalar_select %p413, %s20, 0
      %s415 = smul.addr %s412, 8
      %s416 = sadd.s32 %s414, %s415
      %s417 = smul.addr %s416, 4
      %s418 = scalar_lea.vmem %s4, %s417
      // Predicated region
      $region37: #{_lambda_.26} parent=35 // pred_check
        %p419 = pneg %p153
      $region38: #{_lambda_.26} parent=35 // pred_check_branch
        %421 = sbr.rel (%p419) target = $region40
      $region39: #{_lambda_.26} parent=35 // pred_region
        _
      $region40: #{_lambda_.26} parent=35 // pred_fallthru
        _
    $region36: #{_lambda_.26} parent=5 // pred_fallthru
      _
    %p422 = scmp.le.s32.totalorder 2, %s10
    // Predicated region
    $region41: #{_lambda_.26} parent=5 // pred_check
      %p423 = pneg %p422
    $region42: #{_lambda_.26} parent=5 // pred_check_branch
      %425 = sbr.rel (%p423) target = $region44
    $region43: #{_lambda_.26} parent=5 // pred_region
      %s426 = ssub.s32 %s10, 2
      // Predicated region
      $region45: #{_lambda_.26} parent=43 // pred_check
        %p427 = pneg %p159
      $region46: #{_lambda_.26} parent=43 // pred_check_branch
        %429 = sbr.rel (%p427) target = $region48
      $region47: #{_lambda_.26} parent=43 // pred_region
        %p430 = scmp.lt.s32.totalorder %s21, 1
        %s431 = scalar_select %p430, %s21, 1
        %p432 = scmp.lt.s32.totalorder %s22, 0
        %s433 = scalar_select %p432, %s22, 0
        %s434 = smul.addr %s431, 8
        %s435 = sadd.s32 %s433, %s434
        %s436 = smul.addr %s435, 4
        %s437 = scalar_lea.vmem %s4, %s436
      $region48: #{_lambda_.26} parent=43 // pred_fallthru
        _
    $region44: #{_lambda_.26} parent=5 // pred_fallthru
      _
  $region6: #{_lambda_.26} parent=0 // loop_footer
    %s14 = sadd.s32 1, %s10
  $region7: #{_lambda_.26} parent=0 // loop_footer_branch
    %9 = sbr.rel target = $region3
  $region8: #{_lambda_.26} parent=0 // loop_exit
    _

// kernel: _lambda_.29
$region0: #{_lambda_.29}
  #allocation0 [shape = 'u32[]', space=smem, size = 0x4, offset = 0x4, fixed_abs, tag = 'smem constant byte address 0x4 - core index']
  #allocation1 [shape = 'u32[72,128]{1,0:T(1,128)}', space=vmem, size = 0x9000, scoped, tag = 'internal scratch']
  %s0 = inlined_call_operand.vmem [shape: bf16[128,128], index: 0, kind: input, shape index: {}]
  %s1 = inlined_call_operand.vmem [shape: bf16[128,128], index: 1, kind: input, shape index: {}]
  %s2 = inlined_call_operand.vmem [shape: f32[1,128], index: 2, kind: input, shape index: {}]
  %s3 = inlined_call_operand.vmem [shape: bf16[128,128], index: 3, kind: input, shape index: {}]
  %s4 = inlined_call_operand.vmem [shape: bf16[128,128], index: 4, kind: output, shape index: {}]
  %s5 = sld [smem:[#allocation0]]
  $region26: #{_lambda_.29} parent=0
    _
  %s7 = ssub.s32 1, %s5
  %s8 = scalar_select 0, %s7, %s5
  // Predicated region
  $region2: #{_lambda_.29} parent=0 // pred_check
    _
  $region3: #{_lambda_.29} parent=0 // pred_check_branch
    %10 = sbr.rel (0) target = $region5
  $region4: #{_lambda_.29} parent=0 // pred_region
    _
  $region5: #{_lambda_.29} parent=0 // pred_fallthru
    _
  // Predicated region
  $region6: #{_lambda_.29} parent=0 // pred_check
    _
  $region7: #{_lambda_.29} parent=0 // pred_check_branch
    %12 = sbr.rel (0) target = $region9
  $region8: #{_lambda_.29} parent=0 // pred_region
    _
  $region9: #{_lambda_.29} parent=0 // pred_fallthru
    _
  // Predicated region
  $region10: #{_lambda_.29} parent=0 // pred_check
    _
  $region11: #{_lambda_.29} parent=0 // pred_check_branch
    %14 = sbr.rel (0) target = $region13
  $region12: #{_lambda_.29} parent=0 // pred_region
    _
  $region13: #{_lambda_.29} parent=0 // pred_fallthru
    _
  // Predicated region
  $region14: #{_lambda_.29} parent=0 // pred_check
    _
  $region15: #{_lambda_.29} parent=0 // pred_check_branch
    %16 = sbr.rel (0) target = $region17
  $region16: #{_lambda_.29} parent=0 // pred_region
    _
  $region17: #{_lambda_.29} parent=0 // pred_fallthru
    _
  %v17 = vld [vmem:[%s0] sm:$0xf]
  %v18 = vld [vmem:[%s0 + $0x4] sm:$0xf]
  %v19 = vld [vmem:[%s0 + $0x8] sm:$0xf]
  %v20 = vld [vmem:[%s0 + $0xc] sm:$0xf]
  %v21 = vld [vmem:[%s0 + $0x10] sm:$0xf]
  %v22 = vld [vmem:[%s0 + $0x14] sm:$0xf]
  %v23 = vld [vmem:[%s0 + $0x18] sm:$0xf]
  %v24 = vld [vmem:[%s0 + $0x1c] sm:$0xf]
  %v25 = vld [vmem:[%s0 + $0x20] sm:$0xf]
  %v26 = vld [vmem:[%s0 + $0x24] sm:$0xf]
  %v27 = vld [vmem:[%s0 + $0x28] sm:$0xf]
  %v28 = vld [vmem:[%s0 + $0x2c] sm:$0xf]
  %v29 = vld [vmem:[%s0 + $0x30] sm:$0xf]
  %v30 = vld [vmem:[%s0 + $0x34] sm:$0xf]
  %v31 = vld [vmem:[%s0 + $0x38] sm:$0xf]
  %v32 = vld [vmem:[%s0 + $0x3c] sm:$0xf]
  %v33 = vld [vmem:[%s1] sm:$0xf]
  %v34 = vld [vmem:[%s1 + $0x4] sm:$0xf]
  %v35 = vld [vmem:[%s1 + $0x8] sm:$0xf]
  %v36 = vld [vmem:[%s1 + $0xc] sm:$0xf]
  %v37 = vld [vmem:[%s1 + $0x10] sm:$0xf]
  %v38 = vld [vmem:[%s1 + $0x14] sm:$0xf]
  %v39 = vld [vmem:[%s1 + $0x18] sm:$0xf]
  %v40 = vld [vmem:[%s1 + $0x1c] sm:$0xf]
  %v41 = vld [vmem:[%s1 + $0x20] sm:$0xf]
  %v42 = vld [vmem:[%s1 + $0x24] sm:$0xf]
  %v43 = vld [vmem:[%s1 + $0x28] sm:$0xf]
  %v44 = vld [vmem:[%s1 + $0x2c] sm:$0xf]
  %v45 = vld [vmem:[%s1 + $0x30] sm:$0xf]
  %v46 = vld [vmem:[%s1 + $0x34] sm:$0xf]
  %v47 = vld [vmem:[%s1 + $0x38] sm:$0xf]
  %v48 = vld [vmem:[%s1 + $0x3c] sm:$0xf]
  %v49 = vld [vmem:[%s2] sm:$0x1]
  %v51 = vperm.slane %v49, 0
  %v69 = vunpack.c.l.b16 %v17
  %v70 = vunpack.c.l.b16 %v18
  %v71 = vunpack.c.l.b16 %v19
  %v72 = vunpack.c.l.b16 %v20
  %v73 = vunpack.c.l.b16 %v21
  %v74 = vunpack.c.l.b16 %v22
  %v75 = vunpack.c.l.b16 %v23
  %v76 = vunpack.c.l.b16 %v24
  %v77 = vunpack.c.l.b16 %v25
  %v78 = vunpack.c.l.b16 %v26
  %v79 = vunpack.c.l.b16 %v27
  %v80 = vunpack.c.l.b16 %v28
  %v81 = vunpack.c.l.b16 %v29
  %v82 = vunpack.c.l.b16 %v30
  %v83 = vunpack.c.l.b16 %v31
  %v84 = vunpack.c.l.b16 %v32
  %v85 = vpack.c.b16 %v70, %v69
  %v86 = vpack.c.b16 %v72, %v71
  %v87 = vpack.c.b16 %v74, %v73
  %v88 = vpack.c.b16 %v76, %v75
  %v89 = vpack.c.b16 %v78, %v77
  %v90 = vpack.c.b16 %v80, %v79
  %v91 = vpack.c.b16 %v82, %v81
  %v92 = vpack.c.b16 %v84, %v83
  %v117 = vunpack.c.l.b16 %v33
  %v118 = vunpack.c.l.b16 %v34
  %v119 = vunpack.c.l.b16 %v35
  %v120 = vunpack.c.l.b16 %v36
  %v121 = vunpack.c.l.b16 %v37
  %v122 = vunpack.c.l.b16 %v38
  %v123 = vunpack.c.l.b16 %v39
  %v124 = vunpack.c.l.b16 %v40
  %v125 = vunpack.c.l.b16 %v41
  %v126 = vunpack.c.l.b16 %v42
  %v127 = vunpack.c.l.b16 %v43
  %v128 = vunpack.c.l.b16 %v44
  %v129 = vunpack.c.l.b16 %v45
  %v130 = vunpack.c.l.b16 %v46
  %v131 = vunpack.c.l.b16 %v47
  %v132 = vunpack.c.l.b16 %v48
  %v133 = vpack.c.b16 %v118, %v117
  %v134 = vpack.c.b16 %v120, %v119
  %v135 = vpack.c.b16 %v122, %v121
  %v136 = vpack.c.b16 %v124, %v123
  %v137 = vpack.c.b16 %v126, %v125
  %v138 = vpack.c.b16 %v128, %v127
  %v139 = vpack.c.b16 %v130, %v129
  %v140 = vpack.c.b16 %v132, %v131
  %149 = vmatpush.bf16.msra.mxu0 %v140
  %150 = vmatpush.bf16.msra.mxu0 %v139
  %151 = vmatpush.bf16.msra.mxu0 %v138
  %152 = vmatpush.bf16.msra.mxu0 %v137
  %153 = vmatpush.bf16.msra.mxu0 %v136
  %154 = vmatpush.bf16.msra.mxu0 %v135
  %155 = vmatpush.bf16.msra.mxu0 %v134
  %156 = vmatpush.bf16.msra.mxu0 %v133
  %157 = vmatmul.bf16.gmra.mxu0 %v85
  %v158 = vpop.f32.mrf.mxu0
  %v159 = vadd.f32 %v51, %v158
  %v160 = vpop.f32.mrf.mxu0
  %v161 = vadd.f32 %v51, %v160
  %162 = vmatmul.bf16.gmra.mxu0 %v86
  %v163 = vpop.f32.mrf.mxu0
  %v164 = vadd.f32 %v51, %v163
  %v165 = vpop.f32.mrf.mxu0
  %v166 = vadd.f32 %v51, %v165
  %167 = vmatmul.bf16.gmra.mxu0 %v87
  %v168 = vpop.f32.mrf.mxu0
  %v169 = vadd.f32 %v51, %v168
  %v170 = vpop.f32.mrf.mxu0
  %v171 = vadd.f32 %v51, %v170
  %172 = vmatmul.bf16.gmra.mxu0 %v88
  %v173 = vpop.f32.mrf.mxu0
  %v174 = vadd.f32 %v51, %v173
  %v175 = vpop.f32.mrf.mxu0
  %v176 = vadd.f32 %v51, %v175
  %177 = vmatmul.bf16.gmra.mxu0 %v89
  %v178 = vpop.f32.mrf.mxu0
  %v179 = vadd.f32 %v51, %v178
  %v180 = vpop.f32.mrf.mxu0
  %v181 = vadd.f32 %v51, %v180
  %182 = vmatmul.bf16.gmra.mxu0 %v90
  %v183 = vpop.f32.mrf.mxu0
  %v184 = vadd.f32 %v51, %v183
  %v185 = vpop.f32.mrf.mxu0
  %v186 = vadd.f32 %v51, %v185
  %187 = vmatmul.bf16.gmra.mxu0 %v91
  %v188 = vpop.f32.mrf.mxu0
  %v189 = vadd.f32 %v51, %v188
  %v190 = vpop.f32.mrf.mxu0
  %v191 = vadd.f32 %v51, %v190
  %192 = vmatmul.bf16.gmra.mxu0 %v92
  %v193 = vpop.f32.mrf.mxu0
  %v194 = vadd.f32 %v51, %v193
  %v195 = vpop.f32.mrf.mxu0
  %v196 = vadd.f32 %v51, %v195
  %197 = vdwg.mxu0
  %v198 = vld [vmem:[%s3] sm:$0xf]
  %v199 = vld [vmem:[%s3 + $0x4] sm:$0xf]
  %v200 = vld [vmem:[%s3 + $0x8] sm:$0xf]
  %v201 = vld [vmem:[%s3 + $0xc] sm:$0xf]
  %v202 = vld [vmem:[%s3 + $0x10] sm:$0xf]
  %v203 = vld [vmem:[%s3 + $0x14] sm:$0xf]
  %v204 = vld [vmem:[%s3 + $0x18] sm:$0xf]
  %v205 = vld [vmem:[%s3 + $0x1c] sm:$0xf]
  %v206 = vld [vmem:[%s3 + $0x20] sm:$0xf]
  %v207 = vld [vmem:[%s3 + $0x24] sm:$0xf]
  %v208 = vld [vmem:[%s3 + $0x28] sm:$0xf]
  %v209 = vld [vmem:[%s3 + $0x2c] sm:$0xf]
  %v210 = vld [vmem:[%s3 + $0x30] sm:$0xf]
  %v211 = vld [vmem:[%s3 + $0x34] sm:$0xf]
  %v212 = vld [vmem:[%s3 + $0x38] sm:$0xf]
  %v213 = vld [vmem:[%s3 + $0x3c] sm:$0xf]
  %v214 = vunpack.c.l.bf16 %v198
  %v215 = vunpack.c.l.bf16 %v199
  %v216 = vunpack.c.l.bf16 %v200
  %v217 = vunpack.c.l.bf16 %v201
  %v218 = vunpack.c.l.bf16 %v202
  %v219 = vunpack.c.l.bf16 %v203
  %v220 = vunpack.c.l.bf16 %v204
  %v221 = vunpack.c.l.bf16 %v205
  %v222 = vunpack.c.l.bf16 %v206
  %v223 = vunpack.c.l.bf16 %v207
  %v224 = vunpack.c.l.bf16 %v208
  %v225 = vunpack.c.l.bf16 %v209
  %v226 = vunpack.c.l.bf16 %v210
  %v227 = vunpack.c.l.bf16 %v211
  %v228 = vunpack.c.l.bf16 %v212
  %v229 = vunpack.c.l.bf16 %v213
  %v230 = vadd.f32 %v159, %v214
  %v231 = vadd.f32 %v161, %v215
  %v232 = vadd.f32 %v164, %v216
  %v233 = vadd.f32 %v166, %v217
  %v234 = vadd.f32 %v169, %v218
  %v235 = vadd.f32 %v171, %v219
  %v236 = vadd.f32 %v174, %v220
  %v237 = vadd.f32 %v176, %v221
  %v238 = vadd.f32 %v179, %v222
  %v239 = vadd.f32 %v181, %v223
  %v240 = vadd.f32 %v184, %v224
  %v241 = vadd.f32 %v186, %v225
  %v242 = vadd.f32 %v189, %v226
  %v243 = vadd.f32 %v191, %v227
  %v244 = vadd.f32 %v194, %v228
  %v245 = vadd.f32 %v196, %v229
  %v246 = vmax.f32 %v230, 0.0
  %v247 = vmax.f32 %v231, 0.0
  %v248 = vmax.f32 %v232, 0.0
  %v249 = vmax.f32 %v233, 0.0
  %v250 = vmax.f32 %v234, 0.0
  %v251 = vmax.f32 %v235, 0.0
  %v252 = vmax.f32 %v236, 0.0
  %v253 = vmax.f32 %v237, 0.0
  %v254 = vmax.f32 %v238, 0.0
  %v255 = vmax.f32 %v239, 0.0
  %v256 = vmax.f32 %v240, 0.0
  %v257 = vmax.f32 %v241, 0.0
  %v258 = vmax.f32 %v242, 0.0
  %v259 = vmax.f32 %v243, 0.0
  %v260 = vmax.f32 %v244, 0.0
  %v261 = vmax.f32 %v245, 0.0
  %v262 = vpack.c.bf16 %v246, %v246
  %v263 = vpack.c.bf16 %v247, %v247
  %v264 = vpack.c.bf16 %v248, %v248
  %v265 = vpack.c.bf16 %v249, %v249
  %v266 = vpack.c.bf16 %v250, %v250
  %v267 = vpack.c.bf16 %v251, %v251
  %v268 = vpack.c.bf16 %v252, %v252
  %v269 = vpack.c.bf16 %v253, %v253
  %v270 = vpack.c.bf16 %v254, %v254
  %v271 = vpack.c.bf16 %v255, %v255
  %v272 = vpack.c.bf16 %v256, %v256
  %v273 = vpack.c.bf16 %v257, %v257
  %v274 = vpack.c.bf16 %v258, %v258
  %v275 = vpack.c.bf16 %v259, %v259
  %v276 = vpack.c.bf16 %v260, %v260
  %v277 = vpack.c.bf16 %v261, %v261
  %278 = vst [vmem:[%s4] sm:$0xf] %v262
  %279 = vst [vmem:[%s4 + $0x4] sm:$0xf] %v263
  %280 = vst [vmem:[%s4 + $0x8] sm:$0xf] %v264
  %281 = vst [vmem:[%s4 + $0xc] sm:$0xf] %v265
  %282 = vst [vmem:[%s4 + $0x10] sm:$0xf] %v266
  %283 = vst [vmem:[%s4 + $0x14] sm:$0xf] %v267
  %284 = vst [vmem:[%s4 + $0x18] sm:$0xf] %v268
  %285 = vst [vmem:[%s4 + $0x1c] sm:$0xf] %v269
  %286 = vst [vmem:[%s4 + $0x20] sm:$0xf] %v270
  %287 = vst [vmem:[%s4 + $0x24] sm:$0xf] %v271
  %288 = vst [vmem:[%s4 + $0x28] sm:$0xf] %v272
  %289 = vst [vmem:[%s4 + $0x2c] sm:$0xf] %v273
  %290 = vst [vmem:[%s4 + $0x30] sm:$0xf] %v274
  %291 = vst [vmem:[%s4 + $0x34] sm:$0xf] %v275
  %292 = vst [vmem:[%s4 + $0x38] sm:$0xf] %v276
  %293 = vst [vmem:[%s4 + $0x3c] sm:$0xf] %v277
  // Predicated region
  $region18: #{_lambda_.29} parent=0 // pred_check
    _
  $region19: #{_lambda_.29} parent=0 // pred_check_branch
    %295 = sbr.rel (0) target = $region21
  $region20: #{_lambda_.29} parent=0 // pred_region
    _
  $region21: #{_lambda_.29} parent=0 // pred_fallthru
    _
  // Predicated region
  $region22: #{_lambda_.29} parent=0 // pred_check
    _
  $region23: #{_lambda_.29} parent=0 // pred_check_branch
    %297 = sbr.rel (0) target = $region25
  $region24: #{_lambda_.29} parent=0 // pred_region
    _
  $region25: #{_lambda_.29} parent=0 // pred_fallthru
    _

// kernel: _lambda_.27
$region0: #{_lambda_.27}
  #allocation0 [shape = 'u32[]', space=smem, size = 0x4, offset = 0x4, fixed_abs, tag = 'smem constant byte address 0x4 - core index']
  #allocation1 [shape = 'u32[72,128]{1,0:T(1,128)}', space=vmem, size = 0x9000, scoped, tag = 'internal scratch']
  #allocation2 [shape = 'f32[128,128]{1,0:T(8,128)}', space=vmem, size = 0x10000, scoped, tag = 'scratch operand']
  %s0 = inlined_call_operand.vmem [shape: bf16[128,1152], index: 0, kind: input, shape index: {}]
  %s1 = inlined_call_operand.vmem [shape: bf16[1152,128], index: 1, kind: input, shape index: {}]
  %s2 = inlined_call_operand.vmem [shape: f32[1,128], index: 2, kind: input, shape index: {}]
  %s3 = inlined_call_operand.vmem [shape: bf16[128,128], index: 3, kind: output, shape index: {}]
  %s4 = sld [smem:[#allocation0]]
  $region79: #{_lambda_.27} parent=0
    _
  %s6 = ssub.s32 1, %s4
  %s7 = scalar_select 0, %s6, %s4
  $region1: #{_lambda_.27} parent=0
    #allocation3 [shape = 'u8[196608]{0}', space=vmem, size = 0x30000, scoped, tag = 'input window, operand 0']
    loop: start=0, step=1, limit=5
    $region2: #{_lambda_.27} parent=1 // loop_pre_header
      _
    $region3: #{_lambda_.27} parent=1 // loop_header
      %s9 = sphi 0, %s13
      %p10 = scmp.ge.s32.totalorder %s9, 5
      %s16 = sphi 0, %s35
      %s17 = sphi 0, %s31
      %s18 = sphi 0, %s27
      %s19 = sphi 0, %s16
      %s20 = sphi 0, %s17
      %s21 = sphi 0, %s18
      %s22 = sphi 0, %s19
      %s23 = sphi 0, %s20
      %s24 = sphi 0, %s21
      %s40 = sphi 0, %s42
      %s43 = sphi 0, %s40
      %s44 = sphi 0, %s43
      %s60 = sphi 0, %s44
      %s68 = sphi 0, %s70
      %s71 = sphi 0, %s68
      %s72 = sphi 0, %s71
      %s88 = sphi 0, %s72
      %s94 = sphi 0, %s96
      %s97 = sphi 0, %s94
      %s98 = sphi 0, %s97
      %s114 = sphi 0, %s98
      %s122 = sphi 0, %s124
      %s125 = sphi 0, %s122
      %s126 = sphi 0, %s125
      %s142 = sphi 0, %s126
    $region4: #{_lambda_.27} parent=1 // loop_header_branch
      %12 = sbr.rel (%p10) target = $region8
    $region5: #{_lambda_.27} parent=1 // loop_body
      %s14 = ssub.s32 %s9, 1
      %s15 = ssub.s32 %s9, 2
      %s25 = sadd.s32 1, %s18
      %p26 = scmp.ge.s32.totalorder %s25, 3
      %s27 = scalar_select %p26, 0, %s25
      %s28 = sadd.s32 1, %s17
      %s29 = scalar_select %p26, %s28, %s17
      %p30 = scmp.ge.s32.totalorder %s29, 1
      %s31 = scalar_select %p30, 0, %s29
      %s32 = sadd.s32 1, %s16
      %s33 = scalar_select %p30, %s32, %s16
      %p34 = scmp.ge.s32.totalorder %s33, 1
      %s35 = scalar_select %p34, 0, %s33
      %s36 = ssub.s32 %s16, %s35
      %s37 = ssub.s32 %s18, %s27
      %s38 = sor.u32 %s36, %s37
      %p39 = scmp.eq.s32.totalorder %s38, 0
      %s41 = sadd.s32 %s40, 1
      %s42 = scalar_select %p39, %s40, %s41
      %p45 = pneg %p39
      %p46 = scmp.eq.s32.totalorder %s9, 2
      %p47 = por %p45, %p46
      %p48 = scmp.ne.s32.totalorder %s40, %s43
      %p49 = scmp.eq.s32.totalorder %s9, 0
      %p50 = por %p48, %p49
      %p51 = scmp.ne.s32.totalorder %s40, %s43
      %p52 = scmp.eq.s32.totalorder %s14, 2
      %p53 = por %p51, %p52
      %p54 = scmp.ne.s32.totalorder %s43, %s44
      %p55 = scmp.eq.s32.totalorder %s14, 0
      %p56 = por %p54, %p55
      %p57 = scmp.ne.s32.totalorder %s43, %s44
      %p58 = scmp.eq.s32.totalorder %s15, 2
      %p59 = por %p57, %p58
      %p61 = scmp.ne.s32.totalorder %s44, %s60
      %p62 = scmp.eq.s32.totalorder %s15, 0
      %p63 = por %p61, %p62
      %s64 = ssub.s32 %s18, %s27
      %s65 = ssub.s32 %s17, %s31
      %s66 = sor.u32 %s64, %s65
      %p67 = scmp.eq.s32.totalorder %s66, 0
      %s69 = sadd.s32 %s68, 1
      %s70 = scalar_select %p67, %s68, %s69
      %p73 = pneg %p67
      %p74 = scmp.eq.s32.totalorder %s9, 2
      %p75 = por %p73, %p74
      %p76 = scmp.ne.s32.totalorder %s68, %s71
      %p77 = scmp.eq.s32.totalorder %s9, 0
      %p78 = por %p76, %p77
      %p79 = scmp.ne.s32.totalorder %s68, %s71
      %p80 = scmp.eq.s32.totalorder %s14, 2
      %p81 = por %p79, %p80
      %p82 = scmp.ne.s32.totalorder %s71, %s72
      %p83 = scmp.eq.s32.totalorder %s14, 0
      %p84 = por %p82, %p83
      %p85 = scmp.ne.s32.totalorder %s71, %s72
      %p86 = scmp.eq.s32.totalorder %s15, 2
      %p87 = por %p85, %p86
      %p89 = scmp.ne.s32.totalorder %s72, %s88
      %p90 = scmp.eq.s32.totalorder %s15, 0
      %p91 = por %p89, %p90
      %s92 = ssub.s32 %s17, %s31
      %p93 = scmp.eq.s32.totalorder %s92, 0
      %s95 = sadd.s32 %s94, 1
      %s96 = scalar_select %p93, %s94, %s95
      %p99 = pneg %p93
      %p100 = scmp.eq.s32.totalorder %s9, 2
      %p101 = por %p99, %p100
      %p102 = scmp.ne.s32.totalorder %s94, %s97
      %p103 = scmp.eq.s32.totalorder %s9, 0
      %p104 = por %p102, %p103
      %p105 = scmp.ne.s32.totalorder %s94, %s97
      %p106 = scmp.eq.s32.totalorder %s14, 2
      %p107 = por %p105, %p106
      %p108 = scmp.ne.s32.totalorder %s97, %s98
      %p109 = scmp.eq.s32.totalorder %s14, 0
      %p110 = por %p108, %p109
      %p111 = scmp.ne.s32.totalorder %s97, %s98
      %p112 = scmp.eq.s32.totalorder %s15, 2
      %p113 = por %p111, %p112
      %p115 = scmp.ne.s32.totalorder %s98, %s114
      %p116 = scmp.eq.s32.totalorder %s15, 0
      %p117 = por %p115, %p116
      %s118 = ssub.s32 %s16, %s35
      %s119 = ssub.s32 %s17, %s31
      %s120 = sor.u32 %s118, %s119
      %p121 = scmp.eq.s32.totalorder %s120, 0
      %s123 = sadd.s32 %s122, 1
      %s124 = scalar_select %p121, %s122, %s123
      %p127 = pneg %p121
      %p128 = scmp.eq.s32.totalorder %s9, 2
      %p129 = por %p127, %p128
      %p130 = scmp.ne.s32.totalorder %s122, %s125
      %p131 = scmp.eq.s32.totalorder %s9, 0
      %p132 = por %p130, %p131
      %p133 = scmp.ne.s32.totalorder %s122, %s125
      %p134 = scmp.eq.s32.totalorder %s14, 2
      %p135 = por %p133, %p134
      %p136 = scmp.ne.s32.totalorder %s125, %s126
      %p137 = scmp.eq.s32.totalorder %s14, 0
      %p138 = por %p136, %p137
      %p139 = scmp.ne.s32.totalorder %s125, %s126
      %p140 = scmp.eq.s32.totalorder %s15, 2
      %p141 = por %p139, %p140
      %p143 = scmp.ne.s32.totalorder %s126, %s142
      %p144 = scmp.eq.s32.totalorder %s15, 0
      %p145 = por %p143, %p144
      %p146 = scmp.le.s32.totalorder 1, %s9
      %p147 = scmp.lt.s32.totalorder %s9, 4
      %p148 = pnand %p146, %p147
      %p149 = pneg %p148
      // Predicated region
      $region9: #{_lambda_.27} parent=5 // pred_check
        _
      $region10: #{_lambda_.27} parent=5 // pred_check_branch
        %151 = sbr.rel (%p148) target = $region12
      $region11: #{_lambda_.27} parent=5 // pred_region
        %s152 = ssub.s32 %s9, 1
        // Predicated region
        $region13: #{_lambda_.27} parent=11 // pred_check
          %p153 = pneg %p110
        $region14: #{_lambda_.27} parent=11 // pred_check_branch
          %155 = sbr.rel (%p153) target = $region16
        $region15: #{_lambda_.27} parent=11 // pred_region
          %p156 = scmp.lt.s32.totalorder %s20, 0
          %s157 = scalar_select %p156, %s20, 0
          %s158 = scalar_lea.vmem %s2, %s157
        $region16: #{_lambda_.27} parent=11 // pred_fallthru
          _
      $region12: #{_lambda_.27} parent=5 // pred_fallthru
        _
      %p159 = scmp.lt.s32.totalorder %s9, 3
      // Predicated region
      $region17: #{_lambda_.27} parent=5 // pred_check
        %p160 = pneg %p159
      $region18: #{_lambda_.27} parent=5 // pred_check_branch
        %162 = sbr.rel (%p160) target = $region20
      $region19: #{_lambda_.27} parent=5 // pred_region
        // Predicated region
        $region21: #{_lambda_.27} parent=19 // pred_check
          %p163 = pneg %p50
        $region22: #{_lambda_.27} parent=19 // pred_check_branch
          %165 = sbr.rel (%p163) target = $region24
        $region23: #{_lambda_.27} parent=19 // pred_region
          %s166 = sand.u32 %s40, 1
          %s167 = sand.u32 %s40, 1
          %s168 = smul.addr %s167, 192
          %s169 = scalar_lea.vmem [#allocation3], %s168
          %s170 = smul.u32 16, %s16
          %s171 = smul.u32 3, %s18
          %s172 = smul.addr %s170, 9
          %s173 = sadd.s32 %s171, %s172
          %s174 = smul.addr %s173, 4
          %s175 = scalar_lea.vmem %s0, %s174
          // Predicated region
          $region25: #{_lambda_.27} parent=23 // pred_check
            _
          $region26: #{_lambda_.27} parent=23 // pred_check_branch
            %177 = sbr.rel (0) target = $region28
          $region27: #{_lambda_.27} parent=23 // pred_region
            // Predicated region
            $region29: #{_lambda_.27} parent=27 // pred_check
              _
            $region30: #{_lambda_.27} parent=27 // pred_check_branch
              %179 = sbr.rel (0) target = $region32
            $region31: #{_lambda_.27} parent=27 // pred_region
              %s180 = scalar_lea.vmem %s175, 8
              %s181 = scalar_lea.vmem %s169, 8 [#allocation3]
              loop: start=0, step=1, limit=1
              $region33: #{_lambda_.27} parent=31 // loop_pre_header
                _
              $region34: #{_lambda_.27} parent=31 // loop_header
                %s183 = sphi 0, %s187
                %p184 = scmp.ge.s32.totalorder %s183, 1
                %s188 = sphi %s175, %s175
                %s189 = sphi %s169, %s169
              $region35: #{_lambda_.27} parent=31 // loop_header_branch
                %186 = sbr.rel (%p184) target = $region39
              $region36: #{_lambda_.27} parent=31 // loop_body
                %v190 = vld [vmem:[%s188] sm:$0xff]
                %191 = vst [vmem:[%s189] sm:$0xff] %v190
                %v192 = vld [vmem:[%s188 + $0x24] sm:$0xff]
                %193 = vst [vmem:[%s189 + $0xc] sm:$0xff] %v192
                %v194 = vld [vmem:[%s188 + $0x48] sm:$0xff]
                %195 = vst [vmem:[%s189 + $0x18] sm:$0xff] %v194
                %v196 = vld [vmem:[%s188 + $0x6c] sm:$0xff]
                %197 = vst [vmem:[%s189 + $0x24] sm:$0xff] %v196
                %v198 = vld [vmem:[%s188 + $0x90] sm:$0xff]
                %199 = vst [vmem:[%s189 + $0x30] sm:$0xff] %v198
                %v200 = vld [vmem:[%s188 + $0xb4] sm:$0xff]
                %201 = vst [vmem:[%s189 + $0x3c] sm:$0xff] %v200
                %v202 = vld [vmem:[%s188 + $0xd8] sm:$0xff]
                %203 = vst [vmem:[%s189 + $0x48] sm:$0xff] %v202
                %v204 = vld [vmem:[%s188 + $0xfc] sm:$0xff]
                %205 = vst [vmem:[%s189 + $0x54] sm:$0xff] %v204
                %v206 = vld [vmem:[%s188 + $0x120] sm:$0xff]
                %207 = vst [vmem:[%s189 + $0x60] sm:$0xff] %v206
                %v208 = vld [vmem:[%s188 + $0x144] sm:$0xff]
                %209 = vst [vmem:[%s189 + $0x6c] sm:$0xff] %v208
                %v210 = vld [vmem:[%s188 + $0x168] sm:$0xff]
                %211 = vst [vmem:[%s189 + $0x78] sm:$0xff] %v210
                %v212 = vld [vmem:[%s188 + $0x18c] sm:$0xff]
                %213 = vst [vmem:[%s189 + $0x84] sm:$0xff] %v212
                %v214 = vld [vmem:[%s188 + $0x1b0] sm:$0xff]
                %215 = vst [vmem:[%s189 + $0x90] sm:$0xff] %v214
                %v216 = vld [vmem:[%s188 + $0x1d4] sm:$0xff]
                %217 = vst [vmem:[%s189 + $0x9c] sm:$0xff] %v216
                %v218 = vld [vmem:[%s188 + $0x1f8] sm:$0xff]
                %219 = vst [vmem:[%s189 + $0xa8] sm:$0xff] %v218
                %v220 = vld [vmem:[%s188 + $0x21c] sm:$0xff]
                %221 = vst [vmem:[%s189 + $0xb4] sm:$0xff] %v220
              $region37: #{_lambda_.27} parent=31 // loop_footer
                %s187 = sadd.s32 1, %s183
              $region38: #{_lambda_.27} parent=31 // loop_footer_branch
                %182 = sbr.rel target = $region34
              $region39: #{_lambda_.27} parent=31 // loop_exit
                _
              %s223 = ssub.s32 16, 1
              loop: start=0, step=1, limit=1
              $region40: #{_lambda_.27} parent=31 // loop_pre_header
                _
              $region41: #{_lambda_.27} parent=31 // loop_header
                %s225 = sphi 0, %s229
                %p226 = scmp.ge.s32.totalorder %s225, 1
                %s230 = sphi %s180, %s180
                %s231 = sphi %s181, %s181
              $region42: #{_lambda_.27} parent=31 // loop_header_branch
                %228 = sbr.rel (%p226) target = $region46
              $region43: #{_lambda_.27} parent=31 // loop_body
                %v232 = vld [vmem:[%s230] sm:%s223]
                %233 = vst [vmem:[%s231] sm:%s223] %v232
                %v234 = vld [vmem:[%s230 + $0x24] sm:%s223]
                %235 = vst [vmem:[%s231 + $0xc] sm:%s223] %v234
                %v236 = vld [vmem:[%s230 + $0x48] sm:%s223]
                %237 = vst [vmem:[%s231 + $0x18] sm:%s223] %v236
                %v238 = vld [vmem:[%s230 + $0x6c] sm:%s223]
                %239 = vst [vmem:[%s231 + $0x24] sm:%s223] %v238
                %v240 = vld [vmem:[%s230 + $0x90] sm:%s223]
                %241 = vst [vmem:[%s231 + $0x30] sm:%s223] %v240
                %v242 = vld [vmem:[%s230 + $0xb4] sm:%s223]
                %243 = vst [vmem:[%s231 + $0x3c] sm:%s223] %v242
                %v244 = vld [vmem:[%s230 + $0xd8] sm:%s223]
                %245 = vst [vmem:[%s231 + $0x48] sm:%s223] %v244
                %v246 = vld [vmem:[%s230 + $0xfc] sm:%s223]
                %247 = vst [vmem:[%s231 + $0x54] sm:%s223] %v246
                %v248 = vld [vmem:[%s230 + $0x120] sm:%s223]
                %249 = vst [vmem:[%s231 + $0x60] sm:%s223] %v248
                %v250 = vld [vmem:[%s230 + $0x144] sm:%s223]
                %251 = vst [vmem:[%s231 + $0x6c] sm:%s223] %v250
                %v252 = vld [vmem:[%s230 + $0x168] sm:%s223]
                %253 = vst [vmem:[%s231 + $0x78] sm:%s223] %v252
                %v254 = vld [vmem:[%s230 + $0x18c] sm:%s223]
                %255 = vst [vmem:[%s231 + $0x84] sm:%s223] %v254
                %v256 = vld [vmem:[%s230 + $0x1b0] sm:%s223]
                %257 = vst [vmem:[%s231 + $0x90] sm:%s223] %v256
                %v258 = vld [vmem:[%s230 + $0x1d4] sm:%s223]
                %259 = vst [vmem:[%s231 + $0x9c] sm:%s223] %v258
                %v260 = vld [vmem:[%s230 + $0x1f8] sm:%s223]
                %261 = vst [vmem:[%s231 + $0xa8] sm:%s223] %v260
                %v262 = vld [vmem:[%s230 + $0x21c] sm:%s223]
                %263 = vst [vmem:[%s231 + $0xb4] sm:%s223] %v262
              $region44: #{_lambda_.27} parent=31 // loop_footer
                %s229 = sadd.s32 1, %s225
              $region45: #{_lambda_.27} parent=31 // loop_footer_branch
                %224 = sbr.rel target = $region41
              $region46: #{_lambda_.27} parent=31 // loop_exit
                _
            $region32: #{_lambda_.27} parent=27 // pred_fallthru
              _
          $region28: #{_lambda_.27} parent=23 // pred_fallthru
            _
          %264 = vnop
        $region24: #{_lambda_.27} parent=19 // pred_fallthru
          _
        // Predicated region
        $region47: #{_lambda_.27} parent=19 // pred_check
          %p265 = pneg %p78
        $region48: #{_lambda_.27} parent=19 // pred_check_branch
          %267 = sbr.rel (%p265) target = $region50
        $region49: #{_lambda_.27} parent=19 // pred_region
          %s268 = smul.u32 48, %s18
          %p269 = scmp.lt.s32.totalorder %s268, 143
          %s270 = scalar_select %p269, %s268, 143
          %p271 = scmp.lt.s32.totalorder %s17, 0
          %s272 = scalar_select %p271, %s17, 0
          %s273 = sadd.s32 %s272, %s270
          %s274 = smul.addr %s273, 4
          %s275 = scalar_lea.vmem %s1, %s274
          %s276 = smul.u32 48, %s18
        $region50: #{_lambda_.27} parent=19 // pred_fallthru
          _
      $region20: #{_lambda_.27} parent=5 // pred_fallthru
        _
      %p277 = scmp.le.s32.totalorder 1, %s9
      %p278 = scmp.lt.s32.totalorder %s9, 4
      %p279 = pnand %p277, %p278
      %p280 = pneg %p279
      // Predicated region
      $region51: #{_lambda_.27} parent=5 // pred_check
        _
      $region52: #{_lambda_.27} parent=5 // pred_check_branch
        %282 = sbr.rel (%p279) target = $region54
      $region53: #{_lambda_.27} parent=5 // pred_region
        %s283 = ssub.s32 %s9, 1
        %s284 = sand.u32 %s43, 1
        %s285 = sand.u32 %s43, 1
        %s286 = smul.addr %s285, 192
        %s287 = scalar_lea.vmem [#allocation3], %s286
        // Predicated region
        $region55: #{_lambda_.27} parent=53 // pred_check
          %p288 = pneg %p56
        $region56: #{_lambda_.27} parent=53 // pred_check_branch
          %290 = sbr.rel (%p288) target = $region58
        $region57: #{_lambda_.27} parent=53 // pred_region
          _
        $region58: #{_lambda_.27} parent=53 // pred_fallthru
          _
        %s291 = sand.u32 %s43, 1
        %s292 = sand.u32 %s43, 1
        %s293 = smul.addr %s292, 192
        %s294 = scalar_lea.vmem [#allocation3], %s293
        %p295 = pneg %p56
        %p296 = pneg %p53
        %s297 = smul.u32 48, %s21
        %p298 = scmp.lt.s32.totalorder %s297, 143
        %s299 = scalar_select %p298, %s297, 143
        %p300 = scmp.lt.s32.totalorder %s20, 0
        %s301 = scalar_select %p300, %s20, 0
        %s302 = sadd.s32 %s301, %s299
        %s303 = smul.addr %s302, 4
        %s304 = scalar_lea.vmem %s1, %s303
        %p305 = pneg %p84
        %p306 = pneg %p81
        %p307 = scmp.lt.s32.totalorder %s20, 0
        %s308 = scalar_select %p307, %s20, 0
        %s309 = scalar_lea.vmem %s2, %s308
        %p310 = pneg %p110
        %p311 = pneg %p107
        %p312 = pneg %p138
        %p313 = pneg %p135
        %s314 = smul.u32 16, %s19
        %p315 = scmp.lt.s32.totalorder %s314, 15
        %s316 = scalar_select %p315, %s314, 15
        %p317 = scmp.lt.s32.totalorder %s20, 0
        %s318 = scalar_select %p317, %s20, 0
        %s319 = sadd.s32 %s318, %s316
        %s320 = smul.addr %s319, 4
        %s321 = scalar_lea.vmem %s3, %s320
        %s322 = smul.u32 16, %s19
        %s323 = smul.u32 3, %s21
        %s324 = smul.u32 48, %s21
        %p325 = scmp.lt.s32.totalorder %s324, 143
        %s326 = scalar_select %p325, %s324, 143
        %p327 = scmp.lt.s32.totalorder %s20, 0
        %s328 = scalar_select %p327, %s20, 0
        %s329 = sadd.s32 %s328, %s326
        %s330 = smul.addr %s329, 4
        %s331 = scalar_lea.vmem %s1, %s330
        %s332 = smul.u32 48, %s21
        %p333 = scmp.lt.s32.totalorder %s20, 0
        %s334 = scalar_select %p333, %s20, 0
        %s335 = scalar_lea.vmem %s2, %s334
        %s336 = smul.u32 16, %s19
        %p337 = scmp.lt.s32.totalorder %s336, 15
        %s338 = scalar_select %p337, %s336, 15
        %p339 = scmp.lt.s32.totalorder %s20, 0
        %s340 = scalar_select %p339, %s20, 0
        %s341 = sadd.s32 %s340, %s338
        %s342 = smul.addr %s341, 4
        %s343 = scalar_lea.vmem %s3, %s342
        %s344 = smul.u32 16, %s19
        %p345 = scmp.eq.s32.totalorder %s21, 0
        // Predicated region
        $region59: #{_lambda_.27} parent=53 // pred_check
          %p346 = pneg %p345
        $region60: #{_lambda_.27} parent=53 // pred_check_branch
          %348 = sbr.rel (%p346) target = $region62
        $region61: #{_lambda_.27} parent=53 // pred_region
          %349 = vst [vmem:[#allocation2] sm:$0xff] 0.0
          %350 = vst [vmem:[#allocation2 + $0x8] sm:$0xff] 0.0
          %351 = vst [vmem:[#allocation2 + $0x10] sm:$0xff] 0.0
          %352 = vst [vmem:[#allocation2 + $0x18] sm:$0xff] 0.0
          %353 = vst [vmem:[#allocation2 + $0x20] sm:$0xff] 0.0
          %354 = vst [vmem:[#allocation2 + $0x28] sm:$0xff] 0.0
          %355 = vst [vmem:[#allocation2 + $0x30] sm:$0xff] 0.0
          %356 = vst [vmem:[#allocation2 + $0x38] sm:$0xff] 0.0
          %357 = vst [vmem:[#allocation2 + $0x40] sm:$0xff] 0.0
          %358 = vst [vmem:[#allocation2 + $0x48] sm:$0xff] 0.0
          %359 = vst [vmem:[#allocation2 + $0x50] sm:$0xff] 0.0
          %360 = vst [vmem:[#allocation2 + $0x58] sm:$0xff] 0.0
          %361 = vst [vmem:[#allocation2 + $0x60] sm:$0xff] 0.0
          %362 = vst [vmem:[#allocation2 + $0x68] sm:$0xff] 0.0
          %363 = vst [vmem:[#allocation2 + $0x70] sm:$0xff] 0.0
          %364 = vst [vmem:[#allocation2 + $0x78] sm:$0xff] 0.0
        $region62: #{_lambda_.27} parent=53 // pred_fallthru
          _
        %v365 = vld [vmem:[#allocation2] sm:$0xff]
        %v366 = vld [vmem:[#allocation2 + $0x8] sm:$0xff]
        %v367 = vld [vmem:[#allocation2 + $0x10] sm:$0xff]
        %v368 = vld [vmem:[#allocation2 + $0x18] sm:$0xff]
        %v369 = vld [vmem:[#allocation2 + $0x20] sm:$0xff]
        %v370 = vld [vmem:[#allocation2 + $0x28] sm:$0xff]
        %v371 = vld [vmem:[#allocation2 + $0x30] sm:$0xff]
        %v372 = vld [vmem:[#allocation2 + $0x38] sm:$0xff]
        %v373 = vld [vmem:[#allocation2 + $0x40] sm:$0xff]
        %v374 = vld [vmem:[#allocation2 + $0x48] sm:$0xff]
        %v375 = vld [vmem:[#allocation2 + $0x50] sm:$0xff]
        %v376 = vld [vmem:[#allocation2 + $0x58] sm:$0xff]
        %v377 = vld [vmem:[#allocation2 + $0x60] sm:$0xff]
        %v378 = vld [vmem:[#allocation2 + $0x68] sm:$0xff]
        %v379 = vld [vmem:[#allocation2 + $0x70] sm:$0xff]
        %v380 = vld [vmem:[#allocation2 + $0x78] sm:$0xff]
        %v381 = vld [vmem:[%s287] sm:$0xff]
        %v382 = vld [vmem:[%s287 + $0x8] sm:$0xf]
        %v383 = vld [vmem:[%s287 + $0xc] sm:$0xff]
        %v384 = vld [vmem:[%s287 + $0x14] sm:$0xf]
        %v385 = vld [vmem:[%s287 + $0x18] sm:$0xff]
        %v386 = vld [vmem:[%s287 + $0x20] sm:$0xf]
        %v387 = vld [vmem:[%s287 + $0x24] sm:$0xff]
        %v388 = vld [vmem:[%s287 + $0x2c] sm:$0xf]
        %v389 = vld [vmem:[%s287 + $0x30] sm:$0xff]
        %v390 = vld [vmem:[%s287 + $0x38] sm:$0xf]
        %v391 = vld [vmem:[%s287 + $0x3c] sm:$0xff]
        %v392 = vld [vmem:[%s287 + $0x44] sm:$0xf]
        %v393 = vld [vmem:[%s287 + $0x48] sm:$0xff]
        %v394 = vld [vmem:[%s287 + $0x50] sm:$0xf]
        %v395 = vld [vmem:[%s287 + $0x54] sm:$0xff]
        %v396 = vld [vmem:[%s287 + $0x5c] sm:$0xf]
        %v397 = vld [vmem:[%s287 + $0x60] sm:$0xff]
        %v398 = vld [vmem:[%s287 + $0x68] sm:$0xf]
        %v399 = vld [vmem:[%s287 + $0x6c] sm:$0xff]
        %v400 = vld [vmem:[%s287 + $0x74] sm:$0xf]
        %v401 = vld [vmem:[%s287 + $0x78] sm:$0xff]
        %v402 = vld [vmem:[%s287 + $0x80] sm:$0xf]
        %v403 = vld [vmem:[%s287 + $0x84] sm:$0xff]
        %v404 = vld [vmem:[%s287 + $0x8c] sm:$0xf]
        %v405 = vld [vmem:[%s287 + $0x90] sm:$0xff]
        %v406 = vld [vmem:[%s287 + $0x98] sm:$0xf]
        %v407 = vld [vmem:[%s287 + $0x9c] sm:$0xff]
        %v408 = vld [vmem:[%s287 + $0xa4] sm:$0xf]
        %v409 = vld [vmem:[%s287 + $0xa8] sm:$0xff]
        %v410 = vld [vmem:[%s287 + $0xb0] sm:$0xf]
        %v411 = vld [vmem:[%s287 + $0xb4] sm:$0xff]
        %v412 = vld [vmem:[%s287 + $0xbc] sm:$0xf]
        %v413 = vld [vmem:[%s331] sm:$0xf]
        %v414 = vld [vmem:[%s331 + $0x4] sm:$0xf]
        %v415 = vld [vmem:[%s331 + $0x8] sm:$0xf]
        %v416 = vld [vmem:[%s331 + $0xc] sm:$0xf]
        %v417 = vld [vmem:[%s331 + $0x10] sm:$0xf]
        %v418 = vld [vmem:[%s331 + $0x14] sm:$0xf]
        %v419 = vld [vmem:[%s331 + $0x18] sm:$0xf]
        %v420 = vld [vmem:[%s331 + $0x1c] sm:$0xf]
        %v421 = vld [vmem:[%s331 + $0x20] sm:$0xf]
        %v422 = vld [vmem:[%s331 + $0x24] sm:$0xf]
        %v423 = vld [vmem:[%s331 + $0x28] sm:$0xf]
        %v424 = vld [vmem:[%s331 + $0x2c] sm:$0xf]
        %v425 = vld [vmem:[%s331 + $0x30] sm:$0xf]
        %v426 = vld [vmem:[%s331 + $0x34] sm:$0xf]
        %v427 = vld [vmem:[%s331 + $0x38] sm:$0xf]
        %v428 = vld [vmem:[%s331 + $0x3c] sm:$0xf]
        %v429 = vld [vmem:[%s331 + $0x40] sm:$0xf]
        %v430 = vld [vmem:[%s331 + $0x44] sm:$0xf]
        %v431 = vld [vmem:[%s331 + $0x48] sm:$0xf]
        %v432 = vld [vmem:[%s331 + $0x4c] sm:$0xf]
        %v433 = vld [vmem:[%s331 + $0x50] sm:$0xf]
        %v434 = vld [vmem:[%s331 + $0x54] sm:$0xf]
        %v435 = vld [vmem:[%s331 + $0x58] sm:$0xf]
        %v436 = vld [vmem:[%s331 + $0x5c] sm:$0xf]
        %v437 = vld [vmem:[%s331 + $0x60] sm:$0xf]
        %v438 = vld [vmem:[%s331 + $0x64] sm:$0xf]
        %v439 = vld [vmem:[%s331 + $0x68] sm:$0xf]
        %v440 = vld [vmem:[%s331 + $0x6c] sm:$0xf]
        %v441 = vld [vmem:[%s331 + $0x70] sm:$0xf]
        %v442 = vld [vmem:[%s331 + $0x74] sm:$0xf]
        %v443 = vld [vmem:[%s331 + $0x78] sm:$0xf]
        %v444 = vld [vmem:[%s331 + $0x7c] sm:$0xf]
        %v445 = vld [vmem:[%s331 + $0x80] sm:$0xf]
        %v446 = vld [vmem:[%s331 + $0x84] sm:$0xf]
        %v447 = vld [vmem:[%s331 + $0x88] sm:$0xf]
        %v448 = vld [vmem:[%s331 + $0x8c] sm:$0xf]
        %v449 = vld [vmem:[%s331 + $0x90] sm:$0xf]
        %v450 = vld [vmem:[%s331 + $0x94] sm:$0xf]
        %v451 = vld [vmem:[%s331 + $0x98] sm:$0xf]
        %v452 = vld [vmem:[%s331 + $0x9c] sm:$0xf]
        %v453 = vld [vmem:[%s331 + $0xa0] sm:$0xf]
        %v454 = vld [vmem:[%s331 + $0xa4] sm:$0xf]
        %v455 = vld [vmem:[%s331 + $0xa8] sm:$0xf]
        %v456 = vld [vmem:[%s331 + $0xac] sm:$0xf]
        %v457 = vld [vmem:[%s331 + $0xb0] sm:$0xf]
        %v458 = vld [vmem:[%s331 + $0xb4] sm:$0xf]
        %v459 = vld [vmem:[%s331 + $0xb8] sm:$0xf]
        %v460 = vld [vmem:[%s331 + $0xbc] sm:$0xf]
        %v493 = vunpack.c.l.b16 %v381
        %v494 = vunpack.c.h.b16 %v381
        %v495 = vunpack.c.l.b16 %v382
        %v496 = vunpack.c.l.b16 %v383
        %v497 = vunpack.c.h.b16 %v383
        %v498 = vunpack.c.l.b16 %v384
        %v499 = vunpack.c.l.b16 %v385
        %v500 = vunpack.c.h.b16 %v385
        %v501 = vunpack.c.l.b16 %v386
        %v502 = vunpack.c.l.b16 %v387
        %v503 = vunpack.c.h.b16 %v387
        %v504 = vunpack.c.l.b16 %v388
        %v505 = vunpack.c.l.b16 %v389
        %v506 = vunpack.c.h.b16 %v389
        %v507 = vunpack.c.l.b16 %v390
        %v508 = vunpack.c.l.b16 %v391
        %v509 = vunpack.c.h.b16 %v391
        %v510 = vunpack.c.l.b16 %v392
        %v511 = vunpack.c.l.b16 %v393
        %v512 = vunpack.c.h.b16 %v393
        %v513 = vunpack.c.l.b16 %v394
        %v514 = vunpack.c.l.b16 %v395
        %v515 = vunpack.c.h.b16 %v395
        %v516 = vunpack.c.l.b16 %v396
        %v517 = vunpack.c.l.b16 %v397
        %v518 = vunpack.c.h.b16 %v397
        %v519 = vunpack.c.l.b16 %v398
        %v520 = vunpack.c.l.b16 %v399
        %v521 = vunpack.c.h.b16 %v399
        %v522 = vunpack.c.l.b16 %v400
        %v523 = vunpack.c.l.b16 %v401
        %v524 = vunpack.c.h.b16 %v401
        %v525 = vunpack.c.l.b16 %v402
        %v526 = vunpack.c.l.b16 %v403
        %v527 = vunpack.c.h.b16 %v403
        %v528 = vunpack.c.l.b16 %v404
        %v529 = vunpack.c.l.b16 %v405
        %v530 = vunpack.c.h.b16 %v405
        %v531 = vunpack.c.l.b16 %v406
        %v532 = vunpack.c.l.b16 %v407
        %v533 = vunpack.c.h.b16 %v407
        %v534 = vunpack.c.l.b16 %v408
        %v535 = vunpack.c.l.b16 %v409
        %v536 = vunpack.c.h.b16 %v409
        %v537 = vunpack.c.l.b16 %v410
        %v538 = vunpack.c.l.b16 %v411
        %v539 = vunpack.c.h.b16 %v411
        %v540 = vunpack.c.l.b16 %v412
        %v541 = vpack.c.b16 %v496, %v493
        %v542 = vpack.c.b16 %v497, %v494
        %v543 = vpack.c.b16 %v498, %v495
        %v544 = vpack.c.b16 %v502, %v499
        %v545 = vpack.c.b16 %v503, %v500
        %v546 = vpack.c.b16 %v504, %v501
        %v547 = vpack.c.b16 %v508, %v505
        %v548 = vpack.c.b16 %v509, %v506
        %v549 = vpack.c.b16 %v510, %v507
        %v550 = vpack.c.b16 %v514, %v511
        %v551 = vpack.c.b16 %v515, %v512
        %v552 = vpack.c.b16 %v516, %v513
        %v553 = vpack.c.b16 %v520, %v517
        %v554 = vpack.c.b16 %v521, %v518
        %v555 = vpack.c.b16 %v522, %v519
        %v556 = vpack.c.b16 %v526, %v523
        %v557 = vpack.c.b16 %v527, %v524
        %v558 = vpack.c.b16 %v528, %v525
        %v559 = vpack.c.b16 %v532, %v529
        %v560 = vpack.c.b16 %v533, %v530
        %v561 = vpack.c.b16 %v534, %v531
        %v562 = vpack.c.b16 %v538, %v535
        %v563 = vpack.c.b16 %v539, %v536
        %v564 = vpack.c.b16 %v540, %v537
        %v637 = vunpack.c.l.b16 %v413
        %v638 = vunpack.c.l.b16 %v414
        %v639 = vunpack.c.l.b16 %v415
        %v640 = vunpack.c.l.b16 %v416
        %v641 = vunpack.c.l.b16 %v417
        %v642 = vunpack.c.l.b16 %v418
        %v643 = vunpack.c.l.b16 %v419
        %v644 = vunpack.c.l.b16 %v420
        %v645 = vunpack.c.l.b16 %v421
        %v646 = vunpack.c.l.b16 %v422
        %v647 = vunpack.c.l.b16 %v423
        %v648 = vunpack.c.l.b16 %v424
        %v649 = vunpack.c.l.b16 %v425
        %v650 = vunpack.c.l.b16 %v426
        %v651 = vunpack.c.l.b16 %v427
        %v652 = vunpack.c.l.b16 %v428
        %v653 = vunpack.c.l.b16 %v429
        %v654 = vunpack.c.l.b16 %v430
        %v655 = vunpack.c.l.b16 %v431
        %v656 = vunpack.c.l.b16 %v432
        %v657 = vunpack.c.l.b16 %v433
        %v658 = vunpack.c.l.b16 %v434
        %v659 = vunpack.c.l.b16 %v435
        %v660 = vunpack.c.l.b16 %v436
        %v661 = vunpack.c.l.b16 %v437
        %v662 = vunpack.c.l.b16 %v438
        %v663 = vunpack.c.l.b16 %v439
        %v664 = vunpack.c.l.b16 %v440
        %v665 = vunpack.c.l.b16 %v441
        %v666 = vunpack.c.l.b16 %v442
        %v667 = vunpack.c.l.b16 %v443
        %v668 = vunpack.c.l.b16 %v444
        %v669 = vunpack.c.l.b16 %v445
        %v670 = vunpack.c.l.b16 %v446
        %v671 = vunpack.c.l.b16 %v447
        %v672 = vunpack.c.l.b16 %v448
        %v673 = vunpack.c.l.b16 %v449
        %v674 = vunpack.c.l.b16 %v450
        %v675 = vunpack.c.l.b16 %v451
        %v676 = vunpack.c.l.b16 %v452
        %v677 = vunpack.c.l.b16 %v453
        %v678 = vunpack.c.l.b16 %v454
        %v679 = vunpack.c.l.b16 %v455
        %v680 = vunpack.c.l.b16 %v456
        %v681 = vunpack.c.l.b16 %v457
        %v682 = vunpack.c.l.b16 %v458
        %v683 = vunpack.c.l.b16 %v459
        %v684 = vunpack.c.l.b16 %v460
        %v685 = vpack.c.b16 %v638, %v637
        %v686 = vpack.c.b16 %v640, %v639
        %v687 = vpack.c.b16 %v642, %v641
        %v688 = vpack.c.b16 %v644, %v643
        %v689 = vpack.c.b16 %v646, %v645
        %v690 = vpack.c.b16 %v648, %v647
        %v691 = vpack.c.b16 %v650, %v649
        %v692 = vpack.c.b16 %v652, %v651
        %v693 = vpack.c.b16 %v654, %v653
        %v694 = vpack.c.b16 %v656, %v655
        %v695 = vpack.c.b16 %v658, %v657
        %v696 = vpack.c.b16 %v660, %v659
        %v697 = vpack.c.b16 %v662, %v661
        %v698 = vpack.c.b16 %v664, %v663
        %v699 = vpack.c.b16 %v666, %v665
        %v700 = vpack.c.b16 %v668, %v667
        %v701 = vpack.c.b16 %v670, %v669
        %v702 = vpack.c.b16 %v672, %v671
        %v703 = vpack.c.b16 %v674, %v673
        %v704 = vpack.c.b16 %v676, %v675
        %v705 = vpack.c.b16 %v678, %v677
        %v706 = vpack.c.b16 %v680, %v679
        %v707 = vpack.c.b16 %v682, %v681
        %v708 = vpack.c.b16 %v684, %v683
        %733 = vmatpush.bf16.msra.mxu0 %v692
        %734 = vmatpush.bf16.msra.mxu0 %v691
        %735 = vmatpush.bf16.msra.mxu0 %v690
        %736 = vmatpush.bf16.msra.mxu0 %v689
        %737 = vmatpush.bf16.msra.mxu0 %v688
        %738 = vmatpush.bf16.msra.mxu0 %v687
        %739 = vmatpush.bf16.msra.mxu0 %v686
        %740 = vmatpush.bf16.msra.mxu0 %v685
        %741 = vmatmul.bf16.gmra.mxu0 %v541
        %v742 = vpop.f32.mrf.mxu0
        %v743 = vadd.f32 0.0, %v742
        %v744 = vpop.f32.mrf.mxu0
        %v745 = vadd.f32 0.0, %v744
        %746 = vmatmul.bf16.gmra.mxu0 %v544
        %v747 = vpop.f32.mrf.mxu0
        %v748 = vadd.f32 0.0, %v747
        %v749 = vpop.f32.mrf.mxu0
        %v750 = vadd.f32 0.0, %v749
        %751 = vmatmul.bf16.gmra.mxu0 %v547
        %v752 = vpop.f32.mrf.mxu0
        %v753 = vadd.f32 0.0, %v752
        %v754 = vpop.f32.mrf.mxu0
        %v755 = vadd.f32 0.0, %v754
        %756 = vmatmul.bf16.gmra.mxu0 %v550
        %v757 = vpop.f32.mrf.mxu0
        %v758 = vadd.f32 0.0, %v757
        %v759 = vpop.f32.mrf.mxu0
        %v760 = vadd.f32 0.0, %v759
        %761 = vmatmul.bf16.gmra.mxu0 %v553
        %v762 = vpop.f32.mrf.mxu0
        %v763 = vadd.f32 0.0, %v762
        %v764 = vpop.f32.mrf.mxu0
        %v765 = vadd.f32 0.0, %v764
        %766 = vmatmul.bf16.gmra.mxu0 %v556
        %v767 = vpop.f32.mrf.mxu0
        %v768 = vadd.f32 0.0, %v767
        %v769 = vpop.f32.mrf.mxu0
        %v770 = vadd.f32 0.0, %v769
        %771 = vmatmul.bf16.gmra.mxu0 %v559
        %v772 = vpop.f32.mrf.mxu0
        %v773 = vadd.f32 0.0, %v772
        %v774 = vpop.f32.mrf.mxu0
        %v775 = vadd.f32 0.0, %v774
        %776 = vmatmul.bf16.gmra.mxu0 %v562
        %v777 = vpop.f32.mrf.mxu0
        %v778 = vadd.f32 0.0, %v777
        %v779 = vpop.f32.mrf.mxu0
        %v780 = vadd.f32 0.0, %v779
        %781 = vdwg.mxu0
        %782 = vmatpush.bf16.msra.mxu0 %v700
        %783 = vmatpush.bf16.msra.mxu0 %v699
        %784 = vmatpush.bf16.msra.mxu0 %v698
        %785 = vmatpush.bf16.msra.mxu0 %v697
        %786 = vmatpush.bf16.msra.mxu0 %v696
        %787 = vmatpush.bf16.msra.mxu0 %v695
        %788 = vmatpush.bf16.msra.mxu0 %v694
        %789 = vmatpush.bf16.msra.mxu0 %v693
        %790 = vmatmul.bf16.gmra.mxu0 %v542
        %v791 = vpop.f32.mrf.mxu0
        %v792 = vadd.f32 %v743, %v791
        %v793 = vpop.f32.mrf.mxu0
        %v794 = vadd.f32 %v745, %v793
        %795 = vmatmul.bf16.gmra.mxu0 %v545
        %v796 = vpop.f32.mrf.mxu0
        %v797 = vadd.f32 %v748, %v796
        %v798 = vpop.f32.mrf.mxu0
        %v799 = vadd.f32 %v750, %v798
        %800 = vmatmul.bf16.gmra.mxu0 %v548
        %v801 = vpop.f32.mrf.mxu0
        %v802 = vadd.f32 %v753, %v801
        %v803 = vpop.f32.mrf.mxu0
        %v804 = vadd.f32 %v755, %v803
        %805 = vmatmul.bf16.gmra.mxu0 %v551
        %v806 = vpop.f32.mrf.mxu0
        %v807 = vadd.f32 %v758, %v806
        %v808 = vpop.f32.mrf.mxu0
        %v809 = vadd.f32 %v760, %v808
        %810 = vmatmul.bf16.gmra.mxu0 %v554
        %v811 = vpop.f32.mrf.mxu0
        %v812 = vadd.f32 %v763, %v811
        %v813 = vpop.f32.mrf.mxu0
        %v814 = vadd.f32 %v765, %v813
        %815 = vmatmul.bf16.gmra.mxu0 %v557
        %v816 = vpop.f32.mrf.mxu0
        %v817 = vadd.f32 %v768, %v816
        %v818 = vpop.f32.mrf.mxu0
        %v819 = vadd.f32 %v770, %v818
        %820 = vmatmul.bf16.gmra.mxu0 %v560
        %v821 = vpop.f32.mrf.mxu0
        %v822 = vadd.f32 %v773, %v821
        %v823 = vpop.f32.mrf.mxu0
        %v824 = vadd.f32 %v775, %v823
        %825 = vmatmul.bf16.gmra.mxu0 %v563
        %v826 = vpop.f32.mrf.mxu0
        %v827 = vadd.f32 %v778, %v826
        %v828 = vpop.f32.mrf.mxu0
        %v829 = vadd.f32 %v780, %v828
        %830 = vdwg.mxu0
        %831 = vmatpush.bf16.msra.mxu0 %v708
        %832 = vmatpush.bf16.msra.mxu0 %v707
        %833 = vmatpush.bf16.msra.mxu0 %v706
        %834 = vmatpush.bf16.msra.mxu0 %v705
        %835 = vmatpush.bf16.msra.mxu0 %v704
        %836 = vmatpush.bf16.msra.mxu0 %v703
        %837 = vmatpush.bf16.msra.mxu0 %v702
        %838 = vmatpush.bf16.msra.mxu0 %v701
        %839 = vmatmul.bf16.gmra.mxu0 %v543
        %v840 = vpop.f32.mrf.mxu0
        %v841 = vadd.f32 %v792, %v840
        %v842 = vpop.f32.mrf.mxu0
        %v843 = vadd.f32 %v794, %v842
        %844 = vmatmul.bf16.gmra.mxu0 %v546
        %v845 = vpop.f32.mrf.mxu0
        %v846 = vadd.f32 %v797, %v845
        %v847 = vpop.f32.mrf.mxu0
        %v848 = vadd.f32 %v799, %v847
        %849 = vmatmul.bf16.gmra.mxu0 %v549
        %v850 = vpop.f32.mrf.mxu0
        %v851 = vadd.f32 %v802, %v850
        %v852 = vpop.f32.mrf.mxu0
        %v853 = vadd.f32 %v804, %v852
        %854 = vmatmul.bf16.gmra.mxu0 %v552
        %v855 = vpop.f32.mrf.mxu0
        %v856 = vadd.f32 %v807, %v855
        %v857 = vpop.f32.mrf.mxu0
        %v858 = vadd.f32 %v809, %v857
        %859 = vmatmul.bf16.gmra.mxu0 %v555
        %v860 = vpop.f32.mrf.mxu0
        %v861 = vadd.f32 %v812, %v860
        %v862 = vpop.f32.mrf.mxu0
        %v863 = vadd.f32 %v814, %v862
        %864 = vmatmul.bf16.gmra.mxu0 %v558
        %v865 = vpop.f32.mrf.mxu0
        %v866 = vadd.f32 %v817, %v865
        %v867 = vpop.f32.mrf.mxu0
        %v868 = vadd.f32 %v819, %v867
        %869 = vmatmul.bf16.gmra.mxu0 %v561
        %v870 = vpop.f32.mrf.mxu0
        %v871 = vadd.f32 %v822, %v870
        %v872 = vpop.f32.mrf.mxu0
        %v873 = vadd.f32 %v824, %v872
        %874 = vmatmul.bf16.gmra.mxu0 %v564
        %v875 = vpop.f32.mrf.mxu0
        %v876 = vadd.f32 %v827, %v875
        %v877 = vpop.f32.mrf.mxu0
        %v878 = vadd.f32 %v829, %v877
        %879 = vdwg.mxu0
        %v880 = vadd.f32 %v365, %v841
        %v881 = vadd.f32 %v366, %v843
        %v882 = vadd.f32 %v367, %v846
        %v883 = vadd.f32 %v368, %v848
        %v884 = vadd.f32 %v369, %v851
        %v885 = vadd.f32 %v370, %v853
        %v886 = vadd.f32 %v371, %v856
        %v887 = vadd.f32 %v372, %v858
        %v888 = vadd.f32 %v373, %v861
        %v889 = vadd.f32 %v374, %v863
        %v890 = vadd.f32 %v375, %v866
        %v891 = vadd.f32 %v376, %v868
        %v892 = vadd.f32 %v377, %v871
        %v893 = vadd.f32 %v378, %v873
        %v894 = vadd.f32 %v379, %v876
        %v895 = vadd.f32 %v380, %v878
        %896 = vst [vmem:[#allocation2] sm:$0xff] %v880
        %897 = vst [vmem:[#allocation2 + $0x8] sm:$0xff] %v881
        %898 = vst [vmem:[#allocation2 + $0x10] sm:$0xff] %v882
        %899 = vst [vmem:[#allocation2 + $0x18] sm:$0xff] %v883
        %900 = vst [vmem:[#allocation2 + $0x20] sm:$0xff] %v884
        %901 = vst [vmem:[#allocation2 + $0x28] sm:$0xff] %v885
        %902 = vst [vmem:[#allocation2 + $0x30] sm:$0xff] %v886
        %903 = vst [vmem:[#allocation2 + $0x38] sm:$0xff] %v887
        %904 = vst [vmem:[#allocation2 + $0x40] sm:$0xff] %v888
        %905 = vst [vmem:[#allocation2 + $0x48] sm:$0xff] %v889
        %906 = vst [vmem:[#allocation2 + $0x50] sm:$0xff] %v890
        %907 = vst [vmem:[#allocation2 + $0x58] sm:$0xff] %v891
        %908 = vst [vmem:[#allocation2 + $0x60] sm:$0xff] %v892
        %909 = vst [vmem:[#allocation2 + $0x68] sm:$0xff] %v893
        %910 = vst [vmem:[#allocation2 + $0x70] sm:$0xff] %v894
        %911 = vst [vmem:[#allocation2 + $0x78] sm:$0xff] %v895
        %p912 = scmp.eq.s32.totalorder %s21, 2
        // Predicated region
        $region63: #{_lambda_.27} parent=53 // pred_check
          %p913 = pneg %p912
        $region64: #{_lambda_.27} parent=53 // pred_check_branch
          %915 = sbr.rel (%p913) target = $region66
        $region65: #{_lambda_.27} parent=53 // pred_region
          %v916 = vld [vmem:[#allocation2] sm:$0xff]
          %v917 = vld [vmem:[#allocation2 + $0x8] sm:$0xff]
          %v918 = vld [vmem:[#allocation2 + $0x10] sm:$0xff]
          %v919 = vld [vmem:[#allocation2 + $0x18] sm:$0xff]
          %v920 = vld [vmem:[#allocation2 + $0x20] sm:$0xff]
          %v921 = vld [vmem:[#allocation2 + $0x28] sm:$0xff]
          %v922 = vld [vmem:[#allocation2 + $0x30] sm:$0xff]
          %v923 = vld [vmem:[#allocation2 + $0x38] sm:$0xff]
          %v924 = vld [vmem:[#allocation2 + $0x40] sm:$0xff]
          %v925 = vld [vmem:[#allocation2 + $0x48] sm:$0xff]
          %v926 = vld [vmem:[#allocation2 + $0x50] sm:$0xff]
          %v927 = vld [vmem:[#allocation2 + $0x58] sm:$0xff]
          %v928 = vld [vmem:[#allocation2 + $0x60] sm:$0xff]
          %v929 = vld [vmem:[#allocation2 + $0x68] sm:$0xff]
          %v930 = vld [vmem:[#allocation2 + $0x70] sm:$0xff]
          %v931 = vld [vmem:[#allocation2 + $0x78] sm:$0xff]
          %v932 = vld [vmem:[%s335] sm:$0x1]
          %v934 = vperm.slane %v932, 0
          %v936 = vadd.f32 %v916, %v934
          %v937 = vadd.f32 %v917, %v934
          %v938 = vadd.f32 %v918, %v934
          %v939 = vadd.f32 %v919, %v934
          %v940 = vadd.f32 %v920, %v934
          %v941 = vadd.f32 %v921, %v934
          %v942 = vadd.f32 %v922, %v934
          %v943 = vadd.f32 %v923, %v934
          %v944 = vadd.f32 %v924, %v934
          %v945 = vadd.f32 %v925, %v934
          %v946 = vadd.f32 %v926, %v934
          %v947 = vadd.f32 %v927, %v934
          %v948 = vadd.f32 %v928, %v934
          %v949 = vadd.f32 %v929, %v934
          %v950 = vadd.f32 %v930, %v934
          %v951 = vadd.f32 %v931, %v934
          %v952 = vmax.f32 %v936, 0.0
          %v953 = vmax.f32 %v937, 0.0
          %v954 = vmax.f32 %v938, 0.0
          %v955 = vmax.f32 %v939, 0.0
          %v956 = vmax.f32 %v940, 0.0
          %v957 = vmax.f32 %v941, 0.0
          %v958 = vmax.f32 %v942, 0.0
          %v959 = vmax.f32 %v943, 0.0
          %v960 = vmax.f32 %v944, 0.0
          %v961 = vmax.f32 %v945, 0.0
          %v962 = vmax.f32 %v946, 0.0
          %v963 = vmax.f32 %v947, 0.0
          %v964 = vmax.f32 %v948, 0.0
          %v965 = vmax.f32 %v949, 0.0
          %v966 = vmax.f32 %v950, 0.0
          %v967 = vmax.f32 %v951, 0.0
          %v968 = vpack.c.bf16 %v952, %v952
          %v969 = vpack.c.bf16 %v953, %v953
          %v970 = vpack.c.bf16 %v954, %v954
          %v971 = vpack.c.bf16 %v955, %v955
          %v972 = vpack.c.bf16 %v956, %v956
          %v973 = vpack.c.bf16 %v957, %v957
          %v974 = vpack.c.bf16 %v958, %v958
          %v975 = vpack.c.bf16 %v959, %v959
          %v976 = vpack.c.bf16 %v960, %v960
          %v977 = vpack.c.bf16 %v961, %v961
          %v978 = vpack.c.bf16 %v962, %v962
          %v979 = vpack.c.bf16 %v963, %v963
          %v980 = vpack.c.bf16 %v964, %v964
          %v981 = vpack.c.bf16 %v965, %v965
          %v982 = vpack.c.bf16 %v966, %v966
          %v983 = vpack.c.bf16 %v967, %v967
          %984 = vst [vmem:[%s343] sm:$0xf] %v968
          %985 = vst [vmem:[%s343 + $0x4] sm:$0xf] %v969
          %986 = vst [vmem:[%s343 + $0x8] sm:$0xf] %v970
          %987 = vst [vmem:[%s343 + $0xc] sm:$0xf] %v971
          %988 = vst [vmem:[%s343 + $0x10] sm:$0xf] %v972
          %989 = vst [vmem:[%s343 + $0x14] sm:$0xf] %v973
          %990 = vst [vmem:[%s343 + $0x18] sm:$0xf] %v974
          %991 = vst [vmem:[%s343 + $0x1c] sm:$0xf] %v975
          %992 = vst [vmem:[%s343 + $0x20] sm:$0xf] %v976
          %993 = vst [vmem:[%s343 + $0x24] sm:$0xf] %v977
          %994 = vst [vmem:[%s343 + $0x28] sm:$0xf] %v978
          %995 = vst [vmem:[%s343 + $0x2c] sm:$0xf] %v979
          %996 = vst [vmem:[%s343 + $0x30] sm:$0xf] %v980
          %997 = vst [vmem:[%s343 + $0x34] sm:$0xf] %v981
          %998 = vst [vmem:[%s343 + $0x38] sm:$0xf] %v982
          %999 = vst [vmem:[%s343 + $0x3c] sm:$0xf] %v983
        $region66: #{_lambda_.27} parent=53 // pred_fallthru
          _
        %s1000 = smul.u32 16, %s19
        %p1001 = scmp.lt.s32.totalorder %s1000, 15
        %s1002 = scalar_select %p1001, %s1000, 15
        %p1003 = scmp.lt.s32.totalorder %s20, 0
        %s1004 = scalar_select %p1003, %s20, 0
        %s1005 = sadd.s32 %s1004, %s1002
        %s1006 = smul.addr %s1005, 4
        %s1007 = scalar_lea.vmem %s3, %s1006
        // Predicated region
        $region67: #{_lambda_.27} parent=53 // pred_check
          %p1008 = pneg %p135
        $region68: #{_lambda_.27} parent=53 // pred_check_branch
          %1010 = sbr.rel (%p1008) target = $region70
        $region69: #{_lambda_.27} parent=53 // pred_region
          %s1011 = smul.u32 16, %s19
        $region70: #{_lambda_.27} parent=53 // pred_fallthru
          _
        // Predicated region
        $region71: #{_lambda_.27} parent=53 // pred_check
          %p1012 = pneg %p135
        $region72: #{_lambda_.27} parent=53 // pred_check_branch
          %1014 = sbr.rel (%p1012) target = $region74
        $region73: #{_lambda_.27} parent=53 // pred_region
          %s1015 = smul.u32 16, %s19
          %p1016 = scmp.lt.s32.totalorder %s1015, 15
          %s1017 = scalar_select %p1016, %s1015, 15
          %p1018 = scmp.lt.s32.totalorder %s20, 0
          %s1019 = scalar_select %p1018, %s20, 0
          %s1020 = sadd.s32 %s1019, %s1017
          %s1021 = smul.addr %s1020, 4
          %s1022 = scalar_lea.vmem %s3, %s1021
        $region74: #{_lambda_.27} parent=53 // pred_fallthru
          _
      $region54: #{_lambda_.27} parent=5 // pred_fallthru
        _
      %p1023 = scmp.le.s32.totalorder 2, %s9
      // Predicated region
      $region75: #{_lambda_.27} parent=5 // pred_check
        %p1024 = pneg %p1023
      $region76: #{_lambda_.27} parent=5 // pred_check_branch
        %1026 = sbr.rel (%p1024) target = $region78
      $region77: #{_lambda_.27} parent=5 // pred_region
        %s1027 = ssub.s32 %s9, 2
      $region78: #{_lambda_.27} parent=5 // pred_fallthru
        _
    $region6: #{_lambda_.27} parent=1 // loop_footer
      %s13 = sadd.s32 1, %s9
    $region7: #{_lambda_.27} parent=1 // loop_footer_branch
      %8 = sbr.rel target = $region3
    $region8: #{_lambda_.27} parent=1 // loop_exit
      _

// kernel: _lambda_.36
$region0: #{_lambda_.36}
  #allocation0 [shape = 'u32[]', space=smem, size = 0x4, offset = 0x4, fixed_abs, tag = 'smem constant byte address 0x4 - core index']
  #allocation1 [shape = 'u32[72,128]{1,0:T(1,128)}', space=vmem, size = 0x9000, scoped, tag = 'internal scratch']
  %s0 = inlined_call_operand.vmem [shape: bf16[2,16,128], index: 0, kind: input, shape index: {}]
  %s1 = inlined_call_operand.vmem [shape: f32[1,1,128], index: 1, kind: input, shape index: {}, may-alias: {1,3}]
  %s2 = inlined_call_operand.vmem [shape: f32[1,1,128], index: 2, kind: input, shape index: {}]
  %s3 = inlined_call_operand.vmem [shape: f32[1,1,128], index: 3, kind: input, shape index: {}, may-alias: {1,3}]
  %s4 = inlined_call_operand.vmem [shape: bf16[2,16,128], index: 4, kind: output, shape index: {}]
  %s5 = sld [smem:[#allocation0]]
  $region49: #{_lambda_.36} parent=0
    _
  %s7 = ssub.s32 1, %s5
  %s8 = scalar_select 0, %s7, %s5
  loop: start=0, step=1, limit=4
  $region2: #{_lambda_.36} parent=0 // loop_pre_header
    _
  $region3: #{_lambda_.36} parent=0 // loop_header
    %s10 = sphi 0, %s14
    %p11 = scmp.ge.s32.totalorder %s10, 4
    %s17 = sphi 0, %s29
    %s18 = sphi 0, %s25
    %s19 = sphi 0, %s17
    %s20 = sphi 0, %s18
    %s21 = sphi 0, %s19
    %s22 = sphi 0, %s20
    %s34 = sphi 0, %s36
    %s37 = sphi 0, %s34
    %s38 = sphi 0, %s37
    %s54 = sphi 0, %s38
    %s60 = sphi 0, %s62
    %s63 = sphi 0, %s60
    %s64 = sphi 0, %s63
    %s80 = sphi 0, %s64
    %s86 = sphi 0, %s88
    %s89 = sphi 0, %s86
    %s90 = sphi 0, %s89
    %s106 = sphi 0, %s90
    %s112 = sphi 0, %s114
    %s115 = sphi 0, %s112
    %s116 = sphi 0, %s115
    %s132 = sphi 0, %s116
    %s140 = sphi 0, %s142
    %s143 = sphi 0, %s140
    %s144 = sphi 0, %s143
    %s160 = sphi 0, %s144
  $region4: #{_lambda_.36} parent=0 // loop_header_branch
    %13 = sbr.rel (%p11) target = $region8
  $region5: #{_lambda_.36} parent=0 // loop_body
    %s15 = ssub.s32 %s10, 1
    %s16 = ssub.s32 %s10, 2
    %s23 = sadd.s32 1, %s18
    %p24 = scmp.ge.s32.totalorder %s23, 1
    %s25 = scalar_select %p24, 0, %s23
    %s26 = sadd.s32 1, %s17
    %s27 = scalar_select %p24, %s26, %s17
    %p28 = scmp.ge.s32.totalorder %s27, 2
    %s29 = scalar_select %p28, 0, %s27
    %s30 = ssub.s32 %s17, %s29
    %s31 = ssub.s32 %s18, %s25
    %s32 = sor.u32 %s30, %s31
    %p33 = scmp.eq.s32.totalorder %s32, 0
    %s35 = sadd.s32 %s34, 1
    %s36 = scalar_select %p33, %s34, %s35
    %p39 = pneg %p33
    %p40 = scmp.eq.s32.totalorder %s10, 1
    %p41 = por %p39, %p40
    %p42 = scmp.ne.s32.totalorder %s34, %s37
    %p43 = scmp.eq.s32.totalorder %s10, 0
    %p44 = por %p42, %p43
    %p45 = scmp.ne.s32.totalorder %s34, %s37
    %p46 = scmp.eq.s32.totalorder %s15, 1
    %p47 = por %p45, %p46
    %p48 = scmp.ne.s32.totalorder %s37, %s38
    %p49 = scmp.eq.s32.totalorder %s15, 0
    %p50 = por %p48, %p49
    %p51 = scmp.ne.s32.totalorder %s37, %s38
    %p52 = scmp.eq.s32.totalorder %s16, 1
    %p53 = por %p51, %p52
    %p55 = scmp.ne.s32.totalorder %s38, %s54
    %p56 = scmp.eq.s32.totalorder %s16, 0
    %p57 = por %p55, %p56
    %s58 = ssub.s32 %s18, %s25
    %p59 = scmp.eq.s32.totalorder %s58, 0
    %s61 = sadd.s32 %s60, 1
    %s62 = scalar_select %p59, %s60, %s61
    %p65 = pneg %p59
    %p66 = scmp.eq.s32.totalorder %s10, 1
    %p67 = por %p65, %p66
    %p68 = scmp.ne.s32.totalorder %s60, %s63
    %p69 = scmp.eq.s32.totalorder %s10, 0
    %p70 = por %p68, %p69
    %p71 = scmp.ne.s32.totalorder %s60, %s63
    %p72 = scmp.eq.s32.totalorder %s15, 1
    %p73 = por %p71, %p72
    %p74 = scmp.ne.s32.totalorder %s63, %s64
    %p75 = scmp.eq.s32.totalorder %s15, 0
    %p76 = por %p74, %p75
    %p77 = scmp.ne.s32.totalorder %s63, %s64
    %p78 = scmp.eq.s32.totalorder %s16, 1
    %p79 = por %p77, %p78
    %p81 = scmp.ne.s32.totalorder %s64, %s80
    %p82 = scmp.eq.s32.totalorder %s16, 0
    %p83 = por %p81, %p82
    %s84 = ssub.s32 %s18, %s25
    %p85 = scmp.eq.s32.totalorder %s84, 0
    %s87 = sadd.s32 %s86, 1
    %s88 = scalar_select %p85, %s86, %s87
    %p91 = pneg %p85
    %p92 = scmp.eq.s32.totalorder %s10, 1
    %p93 = por %p91, %p92
    %p94 = scmp.ne.s32.totalorder %s86, %s89
    %p95 = scmp.eq.s32.totalorder %s10, 0
    %p96 = por %p94, %p95
    %p97 = scmp.ne.s32.totalorder %s86, %s89
    %p98 = scmp.eq.s32.totalorder %s15, 1
    %p99 = por %p97, %p98
    %p100 = scmp.ne.s32.totalorder %s89, %s90
    %p101 = scmp.eq.s32.totalorder %s15, 0
    %p102 = por %p100, %p101
    %p103 = scmp.ne.s32.totalorder %s89, %s90
    %p104 = scmp.eq.s32.totalorder %s16, 1
    %p105 = por %p103, %p104
    %p107 = scmp.ne.s32.totalorder %s90, %s106
    %p108 = scmp.eq.s32.totalorder %s16, 0
    %p109 = por %p107, %p108
    %s110 = ssub.s32 %s18, %s25
    %p111 = scmp.eq.s32.totalorder %s110, 0
    %s113 = sadd.s32 %s112, 1
    %s114 = scalar_select %p111, %s112, %s113
    %p117 = pneg %p111
    %p118 = scmp.eq.s32.totalorder %s10, 1
    %p119 = por %p117, %p118
    %p120 = scmp.ne.s32.totalorder %s112, %s115
    %p121 = scmp.eq.s32.totalorder %s10, 0
    %p122 = por %p120, %p121
    %p123 = scmp.ne.s32.totalorder %s112, %s115
    %p124 = scmp.eq.s32.totalorder %s15, 1
    %p125 = por %p123, %p124
    %p126 = scmp.ne.s32.totalorder %s115, %s116
    %p127 = scmp.eq.s32.totalorder %s15, 0
    %p128 = por %p126, %p127
    %p129 = scmp.ne.s32.totalorder %s115, %s116
    %p130 = scmp.eq.s32.totalorder %s16, 1
    %p131 = por %p129, %p130
    %p133 = scmp.ne.s32.totalorder %s116, %s132
    %p134 = scmp.eq.s32.totalorder %s16, 0
    %p135 = por %p133, %p134
    %s136 = ssub.s32 %s17, %s29
    %s137 = ssub.s32 %s18, %s25
    %s138 = sor.u32 %s136, %s137
    %p139 = scmp.eq.s32.totalorder %s138, 0
    %s141 = sadd.s32 %s140, 1
    %s142 = scalar_select %p139, %s140, %s141
    %p145 = pneg %p139
    %p146 = scmp.eq.s32.totalorder %s10, 1
    %p147 = por %p145, %p146
    %p148 = scmp.ne.s32.totalorder %s140, %s143
    %p149 = scmp.eq.s32.totalorder %s10, 0
    %p150 = por %p148, %p149
    %p151 = scmp.ne.s32.totalorder %s140, %s143
    %p152 = scmp.eq.s32.totalorder %s15, 1
    %p153 = por %p151, %p152
    %p154 = scmp.ne.s32.totalorder %s143, %s144
    %p155 = scmp.eq.s32.totalorder %s15, 0
    %p156 = por %p154, %p155
    %p157 = scmp.ne.s32.totalorder %s143, %s144
    %p158 = scmp.eq.s32.totalorder %s16, 1
    %p159 = por %p157, %p158
    %p161 = scmp.ne.s32.totalorder %s144, %s160
    %p162 = scmp.eq.s32.totalorder %s16, 0
    %p163 = por %p161, %p162
    %p164 = scmp.le.s32.totalorder 1, %s10
    %p165 = scmp.lt.s32.totalorder %s10, 3
    %p166 = pnand %p164, %p165
    %p167 = pneg %p166
    // Predicated region
    $region9: #{_lambda_.36} parent=5 // pred_check
      _
    $region10: #{_lambda_.36} parent=5 // pred_check_branch
      %169 = sbr.rel (%p166) target = $region12
    $region11: #{_lambda_.36} parent=5 // pred_region
      %s170 = ssub.s32 %s10, 1
      // Predicated region
      $region13: #{_lambda_.36} parent=11 // pred_check
        %p171 = pneg %p76
      $region14: #{_lambda_.36} parent=11 // pred_check_branch
        %173 = sbr.rel (%p171) target = $region16
      $region15: #{_lambda_.36} parent=11 // pred_region
        %p174 = scmp.lt.s32.totalorder %s20, 0
        %s175 = scalar_select %p174, %s20, 0
        %s176 = scalar_lea.vmem %s1, %s175
      $region16: #{_lambda_.36} parent=11 // pred_fallthru
        _
      // Predicated region
      $region17: #{_lambda_.36} parent=11 // pred_check
        %p177 = pneg %p102
      $region18: #{_lambda_.36} parent=11 // pred_check_branch
        %179 = sbr.rel (%p177) target = $region20
      $region19: #{_lambda_.36} parent=11 // pred_region
        %p180 = scmp.lt.s32.totalorder %s20, 0
        %s181 = scalar_select %p180, %s20, 0
        %s182 = scalar_lea.vmem %s2, %s181
      $region20: #{_lambda_.36} parent=11 // pred_fallthru
        _
      // Predicated region
      $region21: #{_lambda_.36} parent=11 // pred_check
        %p183 = pneg %p128
      $region22: #{_lambda_.36} parent=11 // pred_check_branch
        %185 = sbr.rel (%p183) target = $region24
      $region23: #{_lambda_.36} parent=11 // pred_region
        %p186 = scmp.lt.s32.totalorder %s20, 0
        %s187 = scalar_select %p186, %s20, 0
        %s188 = scalar_lea.vmem %s3, %s187
      $region24: #{_lambda_.36} parent=11 // pred_fallthru
        _
    $region12: #{_lambda_.36} parent=5 // pred_fallthru
      _
    %p189 = scmp.lt.s32.totalorder %s10, 2
    // Predicated region
    $region25: #{_lambda_.36} parent=5 // pred_check
      %p190 = pneg %p189
    $region26: #{_lambda_.36} parent=5 // pred_check_branch
      %192 = sbr.rel (%p190) target = $region28
    $region27: #{_lambda_.36} parent=5 // pred_region
      // Predicated region
      $region29: #{_lambda_.36} parent=27 // pred_check
        %p193 = pneg %p44
      $region30: #{_lambda_.36} parent=27 // pred_check_branch
        %195 = sbr.rel (%p193) target = $region32
      $region31: #{_lambda_.36} parent=27 // pred_region
        %p196 = scmp.lt.s32.totalorder %s17, 1
        %s197 = scalar_select %p196, %s17, 1
        %p198 = scmp.lt.s32.totalorder %s18, 0
        %s199 = scalar_select %p198, %s18, 0
        %s200 = smul.addr %s197, 2
        %s201 = sadd.s32 %s199, %s200
        %s202 = smul.addr %s201, 4
        %s203 = scalar_lea.vmem %s0, %s202
      $region32: #{_lambda_.36} parent=27 // pred_fallthru
        _
    $region28: #{_lambda_.36} parent=5 // pred_fallthru
      _
    %p204 = scmp.le.s32.totalorder 1, %s10
    %p205 = scmp.lt.s32.totalorder %s10, 3
    %p206 = pnand %p204, %p205
    %p207 = pneg %p206
    // Predicated region
    $region33: #{_lambda_.36} parent=5 // pred_check
      _
    $region34: #{_lambda_.36} parent=5 // pred_check_branch
      %209 = sbr.rel (%p206) target = $region36
    $region35: #{_lambda_.36} parent=5 // pred_region
      %s210 = ssub.s32 %s10, 1
      %p211 = scmp.lt.s32.totalorder %s19, 1
      %s212 = scalar_select %p211, %s19, 1
      %p213 = scmp.lt.s32.totalorder %s20, 0
      %s214 = scalar_select %p213, %s20, 0
      %s215 = smul.addr %s212, 2
      %s216 = sadd.s32 %s214, %s215
      %s217 = smul.addr %s216, 4
      %s218 = scalar_lea.vmem %s0, %s217
      %p219 = pneg %p50
      %p220 = pneg %p47
      %p221 = scmp.lt.s32.totalorder %s20, 0
      %s222 = scalar_select %p221, %s20, 0
      %s223 = scalar_lea.vmem %s1, %s222
      %p224 = pneg %p76
      %p225 = pneg %p73
      %p226 = scmp.lt.s32.totalorder %s20, 0
      %s227 = scalar_select %p226, %s20, 0
      %s228 = scalar_lea.vmem %s2, %s227
      %p229 = pneg %p102
      %p230 = pneg %p99
      %p231 = scmp.lt.s32.totalorder %s20, 0
      %s232 = scalar_select %p231, %s20, 0
      %s233 = scalar_lea.vmem %s3, %s232
      %p234 = pneg %p128
      %p235 = pneg %p125
      %p236 = pneg %p156
      %p237 = pneg %p153
      %p238 = scmp.lt.s32.totalorder %s19, 1
      %s239 = scalar_select %p238, %s19, 1
      %p240 = scmp.lt.s32.totalorder %s20, 0
      %s241 = scalar_select %p240, %s20, 0
      %s242 = smul.addr %s239, 2
      %s243 = sadd.s32 %s241, %s242
      %s244 = smul.addr %s243, 4
      %s245 = scalar_lea.vmem %s4, %s244
      %p246 = scmp.lt.s32.totalorder %s19, 1
      %s247 = scalar_select %p246, %s19, 1
      %p248 = scmp.lt.s32.totalorder %s20, 0
      %s249 = scalar_select %p248, %s20, 0
      %s250 = smul.addr %s247, 2
      %s251 = sadd.s32 %s249, %s250
      %s252 = smul.addr %s251, 4
      %s253 = scalar_lea.vmem %s0, %s252
      %p254 = scmp.lt.s32.totalorder %s20, 0
      %s255 = scalar_select %p254, %s20, 0
      %s256 = scalar_lea.vmem %s1, %s255
      %p257 = scmp.lt.s32.totalorder %s20, 0
      %s258 = scalar_select %p257, %s20, 0
      %s259 = scalar_lea.vmem %s2, %s258
      %p260 = scmp.lt.s32.totalorder %s20, 0
      %s261 = scalar_select %p260, %s20, 0
      %s262 = scalar_lea.vmem %s3, %s261
      %p263 = scmp.lt.s32.totalorder %s19, 1
      %s264 = scalar_select %p263, %s19, 1
      %p265 = scmp.lt.s32.totalorder %s20, 0
      %s266 = scalar_select %p265, %s20, 0
      %s267 = smul.addr %s264, 2
      %s268 = sadd.s32 %s266, %s267
      %s269 = smul.addr %s268, 4
      %s270 = scalar_lea.vmem %s4, %s269
      %v271 = vld [vmem:[%s253] sm:$0xf]
      %v272 = vld [vmem:[%s253 + $0x4] sm:$0xf]
      %v273 = vunpack.c.l.bf16 %v271
      %v274 = vunpack.c.l.bf16 %v272
      %v275 = vadd.f32 %v273, %v274
      %v276 = vrot.slane %v275, 4
      %v277 = vadd.f32 %v275, %v276
      %v278 = vrot.slane %v277, 2
      %v279 = vadd.f32 %v277, %v278
      %v280 = vrot.slane %v279, 1
      %v281 = vadd.f32 %v279, %v280
      %v282 = vmul.f32 %v281, 0.0625
      %v283 = vsub.f32 %v273, %v282
      %v284 = vsub.f32 %v274, %v282
      %v285 = vmul.f32 %v283, %v283
      %v286 = vmul.f32 %v284, %v284
      %v287 = vadd.f32 %v285, %v286
      %v288 = vrot.slane %v287, 4
      %v289 = vadd.f32 %v287, %v288
      %v290 = vrot.slane %v289, 2
      %v291 = vadd.f32 %v289, %v290
      %v292 = vrot.slane %v291, 1
      %v293 = vadd.f32 %v291, %v292
      %v294 = vmul.f32 %v293, 0.0625
      %v295 = vadd.f32 %v294, 1e-05
      %v296 = vrsqrt.pop %v295
      %v297 = vmul.f32 %v296, %v295
      %v298 = vmul.f32 %v297, %v296
      %v299 = vmul.f32 0.5, %v298
      %v300 = vsub.f32 1.5, %v299
      %v301 = vmul.f32 %v296, %v300
      %vm302 = vweird.f32 %v295
      %vm303 = vweird.f32 %v296
      %vm304 = vmor %vm302, %vm303
      %v305 = vsel %vm304, %v296, %v301
      %v306 = vmul.f32 %v283, %v305
      %v307 = vmul.f32 %v284, %v305
      %v308 = vld [vmem:[%s256] sm:$0x1]
      %v310 = vperm.slane %v308, 0
      %v312 = vmul.f32 %v306, %v310
      %v313 = vmul.f32 %v307, %v310
      %v314 = vld [vmem:[%s259] sm:$0x1]
      %v316 = vperm.slane %v314, 0
      %v318 = vadd.f32 %v312, %v316
      %v319 = vadd.f32 %v313, %v316
      %v320 = vld [vmem:[%s262] sm:$0x1]
      %vm321 = vcmp.gt.f32.partialorder %v320, 0.5
      %v322 = vsel %vm321, 1, 0
      %v323 = vperm.slane %v322, 0
      %vm324 = vcmp.eq.s32.totalorder %v323, 1
      %v325 = vsel %vm324, %v318, %v273
      %v326 = vsel %vm324, %v319, %v274
      %v327 = vmax.f32 %v325, 0.0
      %v328 = vmax.f32 %v326, 0.0
      %v329 = vpack.c.bf16 %v327, %v327
      %v330 = vpack.c.bf16 %v328, %v328
      %331 = vst [vmem:[%s270] sm:$0xf] %v329
      %332 = vst [vmem:[%s270 + $0x4] sm:$0xf] %v330
      %p333 = scmp.lt.s32.totalorder %s19, 1
      %s334 = scalar_select %p333, %s19, 1
      %p335 = scmp.lt.s32.totalorder %s20, 0
      %s336 = scalar_select %p335, %s20, 0
      %s337 = smul.addr %s334, 2
      %s338 = sadd.s32 %s336, %s337
      %s339 = smul.addr %s338, 4
      %s340 = scalar_lea.vmem %s4, %s339
      // Predicated region
      $region37: #{_lambda_.36} parent=35 // pred_check
        %p341 = pneg %p153
      $region38: #{_lambda_.36} parent=35 // pred_check_branch
        %343 = sbr.rel (%p341) target = $region40
      $region39: #{_lambda_.36} parent=35 // pred_region
        _
      $region40: #{_lambda_.36} parent=35 // pred_fallthru
        _
    $region36: #{_lambda_.36} parent=5 // pred_fallthru
      _
    %p344 = scmp.le.s32.totalorder 2, %s10
    // Predicated region
    $region41: #{_lambda_.36} parent=5 // pred_check
      %p345 = pneg %p344
    $region42: #{_lambda_.36} parent=5 // pred_check_branch
      %347 = sbr.rel (%p345) target = $region44
    $region43: #{_lambda_.36} parent=5 // pred_region
      %s348 = ssub.s32 %s10, 2
      // Predicated region
      $region45: #{_lambda_.36} parent=43 // pred_check
        %p349 = pneg %p159
      $region46: #{_lambda_.36} parent=43 // pred_check_branch
        %351 = sbr.rel (%p349) target = $region48
      $region47: #{_lambda_.36} parent=43 // pred_region
        %p352 = scmp.lt.s32.totalorder %s21, 1
        %s353 = scalar_select %p352, %s21, 1
        %p354 = scmp.lt.s32.totalorder %s22, 0
        %s355 = scalar_select %p354, %s22, 0
        %s356 = smul.addr %s353, 2
        %s357 = sadd.s32 %s355, %s356
        %s358 = smul.addr %s357, 4
        %s359 = scalar_lea.vmem %s4, %s358
      $region48: #{_lambda_.36} parent=43 // pred_fallthru
        _
    $region44: #{_lambda_.36} parent=5 // pred_fallthru
      _
  $region6: #{_lambda_.36} parent=0 // loop_footer
    %s14 = sadd.s32 1, %s10
  $region7: #{_lambda_.36} parent=0 // loop_footer_branch
    %9 = sbr.rel target = $region3
  $region8: #{_lambda_.36} parent=0 // loop_exit
    _

// kernel: _lambda_.40
$region0: #{_lambda_.40}
  #allocation0 [shape = 'u32[]', space=smem, size = 0x4, offset = 0x4, fixed_abs, tag = 'smem constant byte address 0x4 - core index']
  #allocation1 [shape = 'u32[72,128]{1,0:T(1,128)}', space=vmem, size = 0x9000, scoped, tag = 'internal scratch']
  %s0 = inlined_call_operand.vmem [shape: bf16[128,128], index: 0, kind: input, shape index: {}]
  %s1 = inlined_call_operand.vmem [shape: bf16[128,128], index: 1, kind: input, shape index: {}]
  %s2 = inlined_call_operand.vmem [shape: f32[1,128], index: 2, kind: input, shape index: {}]
  %s3 = inlined_call_operand.vmem [shape: bf16[128,128], index: 3, kind: output, shape index: {}]
  %s4 = sld [smem:[#allocation0]]
  $region22: #{_lambda_.40} parent=0
    _
  %s6 = ssub.s32 1, %s4
  %s7 = scalar_select 0, %s6, %s4
  // Predicated region
  $region2: #{_lambda_.40} parent=0 // pred_check
    _
  $region3: #{_lambda_.40} parent=0 // pred_check_branch
    %9 = sbr.rel (0) target = $region5
  $region4: #{_lambda_.40} parent=0 // pred_region
    _
  $region5: #{_lambda_.40} parent=0 // pred_fallthru
    _
  // Predicated region
  $region6: #{_lambda_.40} parent=0 // pred_check
    _
  $region7: #{_lambda_.40} parent=0 // pred_check_branch
    %11 = sbr.rel (0) target = $region9
  $region8: #{_lambda_.40} parent=0 // pred_region
    _
  $region9: #{_lambda_.40} parent=0 // pred_fallthru
    _
  // Predicated region
  $region10: #{_lambda_.40} parent=0 // pred_check
    _
  $region11: #{_lambda_.40} parent=0 // pred_check_branch
    %13 = sbr.rel (0) target = $region13
  $region12: #{_lambda_.40} parent=0 // pred_region
    _
  $region13: #{_lambda_.40} parent=0 // pred_fallthru
    _
  %v14 = vld [vmem:[%s0] sm:$0xf]
  %v15 = vld [vmem:[%s0 + $0x4] sm:$0xf]
  %v16 = vld [vmem:[%s0 + $0x8] sm:$0xf]
  %v17 = vld [vmem:[%s0 + $0xc] sm:$0xf]
  %v18 = vld [vmem:[%s0 + $0x10] sm:$0xf]
  %v19 = vld [vmem:[%s0 + $0x14] sm:$0xf]
  %v20 = vld [vmem:[%s0 + $0x18] sm:$0xf]
  %v21 = vld [vmem:[%s0 + $0x1c] sm:$0xf]
  %v22 = vld [vmem:[%s0 + $0x20] sm:$0xf]
  %v23 = vld [vmem:[%s0 + $0x24] sm:$0xf]
  %v24 = vld [vmem:[%s0 + $0x28] sm:$0xf]
  %v25 = vld [vmem:[%s0 + $0x2c] sm:$0xf]
  %v26 = vld [vmem:[%s0 + $0x30] sm:$0xf]
  %v27 = vld [vmem:[%s0 + $0x34] sm:$0xf]
  %v28 = vld [vmem:[%s0 + $0x38] sm:$0xf]
  %v29 = vld [vmem:[%s0 + $0x3c] sm:$0xf]
  %v30 = vld [vmem:[%s1] sm:$0xf]
  %v31 = vld [vmem:[%s1 + $0x4] sm:$0xf]
  %v32 = vld [vmem:[%s1 + $0x8] sm:$0xf]
  %v33 = vld [vmem:[%s1 + $0xc] sm:$0xf]
  %v34 = vld [vmem:[%s1 + $0x10] sm:$0xf]
  %v35 = vld [vmem:[%s1 + $0x14] sm:$0xf]
  %v36 = vld [vmem:[%s1 + $0x18] sm:$0xf]
  %v37 = vld [vmem:[%s1 + $0x1c] sm:$0xf]
  %v38 = vld [vmem:[%s1 + $0x20] sm:$0xf]
  %v39 = vld [vmem:[%s1 + $0x24] sm:$0xf]
  %v40 = vld [vmem:[%s1 + $0x28] sm:$0xf]
  %v41 = vld [vmem:[%s1 + $0x2c] sm:$0xf]
  %v42 = vld [vmem:[%s1 + $0x30] sm:$0xf]
  %v43 = vld [vmem:[%s1 + $0x34] sm:$0xf]
  %v44 = vld [vmem:[%s1 + $0x38] sm:$0xf]
  %v45 = vld [vmem:[%s1 + $0x3c] sm:$0xf]
  %v46 = vld [vmem:[%s2] sm:$0x1]
  %v48 = vperm.slane %v46, 0
  %v66 = vunpack.c.l.b16 %v14
  %v67 = vunpack.c.l.b16 %v15
  %v68 = vunpack.c.l.b16 %v16
  %v69 = vunpack.c.l.b16 %v17
  %v70 = vunpack.c.l.b16 %v18
  %v71 = vunpack.c.l.b16 %v19
  %v72 = vunpack.c.l.b16 %v20
  %v73 = vunpack.c.l.b16 %v21
  %v74 = vunpack.c.l.b16 %v22
  %v75 = vunpack.c.l.b16 %v23
  %v76 = vunpack.c.l.b16 %v24
  %v77 = vunpack.c.l.b16 %v25
  %v78 = vunpack.c.l.b16 %v26
  %v79 = vunpack.c.l.b16 %v27
  %v80 = vunpack.c.l.b16 %v28
  %v81 = vunpack.c.l.b16 %v29
  %v82 = vpack.c.b16 %v67, %v66
  %v83 = vpack.c.b16 %v69, %v68
  %v84 = vpack.c.b16 %v71, %v70
  %v85 = vpack.c.b16 %v73, %v72
  %v86 = vpack.c.b16 %v75, %v74
  %v87 = vpack.c.b16 %v77, %v76
  %v88 = vpack.c.b16 %v79, %v78
  %v89 = vpack.c.b16 %v81, %v80
  %v114 = vunpack.c.l.b16 %v30
  %v115 = vunpack.c.l.b16 %v31
  %v116 = vunpack.c.l.b16 %v32
  %v117 = vunpack.c.l.b16 %v33
  %v118 = vunpack.c.l.b16 %v34
  %v119 = vunpack.c.l.b16 %v35
  %v120 = vunpack.c.l.b16 %v36
  %v121 = vunpack.c.l.b16 %v37
  %v122 = vunpack.c.l.b16 %v38
  %v123 = vunpack.c.l.b16 %v39
  %v124 = vunpack.c.l.b16 %v40
  %v125 = vunpack.c.l.b16 %v41
  %v126 = vunpack.c.l.b16 %v42
  %v127 = vunpack.c.l.b16 %v43
  %v128 = vunpack.c.l.b16 %v44
  %v129 = vunpack.c.l.b16 %v45
  %v130 = vpack.c.b16 %v115, %v114
  %v131 = vpack.c.b16 %v117, %v116
  %v132 = vpack.c.b16 %v119, %v118
  %v133 = vpack.c.b16 %v121, %v120
  %v134 = vpack.c.b16 %v123, %v122
  %v135 = vpack.c.b16 %v125, %v124
  %v136 = vpack.c.b16 %v127, %v126
  %v137 = vpack.c.b16 %v129, %v128
  %146 = vmatpush.bf16.msra.mxu0 %v137
  %147 = vmatpush.bf16.msra.mxu0 %v136
  %148 = vmatpush.bf16.msra.mxu0 %v135
  %149 = vmatpush.bf16.msra.mxu0 %v134
  %150 = vmatpush.bf16.msra.mxu0 %v133
  %151 = vmatpush.bf16.msra.mxu0 %v132
  %152 = vmatpush.bf16.msra.mxu0 %v131
  %153 = vmatpush.bf16.msra.mxu0 %v130
  %154 = vmatmul.bf16.gmra.mxu0 %v82
  %v155 = vpop.f32.mrf.mxu0
  %v156 = vadd.f32 %v48, %v155
  %v157 = vpop.f32.mrf.mxu0
  %v158 = vadd.f32 %v48, %v157
  %159 = vmatmul.bf16.gmra.mxu0 %v83
  %v160 = vpop.f32.mrf.mxu0
  %v161 = vadd.f32 %v48, %v160
  %v162 = vpop.f32.mrf.mxu0
  %v163 = vadd.f32 %v48, %v162
  %164 = vmatmul.bf16.gmra.mxu0 %v84
  %v165 = vpop.f32.mrf.mxu0
  %v166 = vadd.f32 %v48, %v165
  %v167 = vpop.f32.mrf.mxu0
  %v168 = vadd.f32 %v48, %v167
  %169 = vmatmul.bf16.gmra.mxu0 %v85
  %v170 = vpop.f32.mrf.mxu0
  %v171 = vadd.f32 %v48, %v170
  %v172 = vpop.f32.mrf.mxu0
  %v173 = vadd.f32 %v48, %v172
  %174 = vmatmul.bf16.gmra.mxu0 %v86
  %v175 = vpop.f32.mrf.mxu0
  %v176 = vadd.f32 %v48, %v175
  %v177 = vpop.f32.mrf.mxu0
  %v178 = vadd.f32 %v48, %v177
  %179 = vmatmul.bf16.gmra.mxu0 %v87
  %v180 = vpop.f32.mrf.mxu0
  %v181 = vadd.f32 %v48, %v180
  %v182 = vpop.f32.mrf.mxu0
  %v183 = vadd.f32 %v48, %v182
  %184 = vmatmul.bf16.gmra.mxu0 %v88
  %v185 = vpop.f32.mrf.mxu0
  %v186 = vadd.f32 %v48, %v185
  %v187 = vpop.f32.mrf.mxu0
  %v188 = vadd.f32 %v48, %v187
  %189 = vmatmul.bf16.gmra.mxu0 %v89
  %v190 = vpop.f32.mrf.mxu0
  %v191 = vadd.f32 %v48, %v190
  %v192 = vpop.f32.mrf.mxu0
  %v193 = vadd.f32 %v48, %v192
  %194 = vdwg.mxu0
  %v195 = vmax.f32 %v156, 0.0
  %v196 = vmax.f32 %v158, 0.0
  %v197 = vmax.f32 %v161, 0.0
  %v198 = vmax.f32 %v163, 0.0
  %v199 = vmax.f32 %v166, 0.0
  %v200 = vmax.f32 %v168, 0.0
  %v201 = vmax.f32 %v171, 0.0
  %v202 = vmax.f32 %v173, 0.0
  %v203 = vmax.f32 %v176, 0.0
  %v204 = vmax.f32 %v178, 0.0
  %v205 = vmax.f32 %v181, 0.0
  %v206 = vmax.f32 %v183, 0.0
  %v207 = vmax.f32 %v186, 0.0
  %v208 = vmax.f32 %v188, 0.0
  %v209 = vmax.f32 %v191, 0.0
  %v210 = vmax.f32 %v193, 0.0
  %v211 = vpack.c.bf16 %v195, %v195
  %v212 = vpack.c.bf16 %v196, %v196
  %v213 = vpack.c.bf16 %v197, %v197
  %v214 = vpack.c.bf16 %v198, %v198
  %v215 = vpack.c.bf16 %v199, %v199
  %v216 = vpack.c.bf16 %v200, %v200
  %v217 = vpack.c.bf16 %v201, %v201
  %v218 = vpack.c.bf16 %v202, %v202
  %v219 = vpack.c.bf16 %v203, %v203
  %v220 = vpack.c.bf16 %v204, %v204
  %v221 = vpack.c.bf16 %v205, %v205
  %v222 = vpack.c.bf16 %v206, %v206
  %v223 = vpack.c.bf16 %v207, %v207
  %v224 = vpack.c.bf16 %v208, %v208
  %v225 = vpack.c.bf16 %v209, %v209
  %v226 = vpack.c.bf16 %v210, %v210
  %227 = vst [vmem:[%s3] sm:$0xf] %v211
  %228 = vst [vmem:[%s3 + $0x4] sm:$0xf] %v212
  %229 = vst [vmem:[%s3 + $0x8] sm:$0xf] %v213
  %230 = vst [vmem:[%s3 + $0xc] sm:$0xf] %v214
  %231 = vst [vmem:[%s3 + $0x10] sm:$0xf] %v215
  %232 = vst [vmem:[%s3 + $0x14] sm:$0xf] %v216
  %233 = vst [vmem:[%s3 + $0x18] sm:$0xf] %v217
  %234 = vst [vmem:[%s3 + $0x1c] sm:$0xf] %v218
  %235 = vst [vmem:[%s3 + $0x20] sm:$0xf] %v219
  %236 = vst [vmem:[%s3 + $0x24] sm:$0xf] %v220
  %237 = vst [vmem:[%s3 + $0x28] sm:$0xf] %v221
  %238 = vst [vmem:[%s3 + $0x2c] sm:$0xf] %v222
  %239 = vst [vmem:[%s3 + $0x30] sm:$0xf] %v223
  %240 = vst [vmem:[%s3 + $0x34] sm:$0xf] %v224
  %241 = vst [vmem:[%s3 + $0x38] sm:$0xf] %v225
  %242 = vst [vmem:[%s3 + $0x3c] sm:$0xf] %v226
  // Predicated region
  $region14: #{_lambda_.40} parent=0 // pred_check
    _
  $region15: #{_lambda_.40} parent=0 // pred_check_branch
    %244 = sbr.rel (0) target = $region17
  $region16: #{_lambda_.40} parent=0 // pred_region
    _
  $region17: #{_lambda_.40} parent=0 // pred_fallthru
    _
  // Predicated region
  $region18: #{_lambda_.40} parent=0 // pred_check
    _
  $region19: #{_lambda_.40} parent=0 // pred_check_branch
    %246 = sbr.rel (0) target = $region21
  $region20: #{_lambda_.40} parent=0 // pred_region
    _
  $region21: #{_lambda_.40} parent=0 // pred_fallthru
    _

// kernel: _lambda_.42
$region0: #{_lambda_.42}
  #allocation0 [shape = 'u32[]', space=smem, size = 0x4, offset = 0x4, fixed_abs, tag = 'smem constant byte address 0x4 - core index']
  #allocation1 [shape = 'u32[72,128]{1,0:T(1,128)}', space=vmem, size = 0x9000, scoped, tag = 'internal scratch']
  %s0 = inlined_call_operand.vmem [shape: bf16[128,128], index: 0, kind: input, shape index: {}]
  %s1 = inlined_call_operand.vmem [shape: bf16[128,256], index: 1, kind: input, shape index: {}]
  %s2 = inlined_call_operand.vmem [shape: f32[1,256], index: 2, kind: input, shape index: {}]
  %s3 = inlined_call_operand.vmem [shape: bf16[128,256], index: 3, kind: output, shape index: {}]
  %s4 = sld [smem:[#allocation0]]
  $region123: #{_lambda_.42} parent=0
    _
  %s6 = ssub.s32 1, %s4
  %s7 = scalar_select 0, %s6, %s4
  $region1: #{_lambda_.42} parent=0
    #allocation2 [shape = 'u8[65536]{0}', space=vmem, size = 0x10000, scoped, tag = 'input window, operand 1']
    #allocation3 [shape = 'u8[65536]{0}', space=vmem, size = 0x10000, scoped, tag = 'output window, operand 0']
    loop: start=0, step=1, limit=4
    $region2: #{_lambda_.42} parent=1 // loop_pre_header
      _
    $region3: #{_lambda_.42} parent=1 // loop_header
      %s9 = sphi 0, %s13
      %p10 = scmp.ge.s32.totalorder %s9, 4
      %s16 = sphi 0, %s28
      %s17 = sphi 0, %s24
      %s18 = sphi 0, %s16
      %s19 = sphi 0, %s17
      %s20 = sphi 0, %s18
      %s21 = sphi 0, %s19
      %s31 = sphi 0, %s33
      %s34 = sphi 0, %s31
      %s35 = sphi 0, %s34
      %s51 = sphi 0, %s35
      %s57 = sphi 0, %s59
      %s60 = sphi 0, %s57
      %s61 = sphi 0, %s60
      %s77 = sphi 0, %s61
      %s83 = sphi 0, %s85
      %s86 = sphi 0, %s83
      %s87 = sphi 0, %s86
      %s103 = sphi 0, %s87
      %s111 = sphi 0, %s113
      %s114 = sphi 0, %s111
      %s115 = sphi 0, %s114
      %s131 = sphi 0, %s115
    $region4: #{_lambda_.42} parent=1 // loop_header_branch
      %12 = sbr.rel (%p10) target = $region8
    $region5: #{_lambda_.42} parent=1 // loop_body
      %s14 = ssub.s32 %s9, 1
      %s15 = ssub.s32 %s9, 2
      %s22 = sadd.s32 1, %s17
      %p23 = scmp.ge.s32.totalorder %s22, 2
      %s24 = scalar_select %p23, 0, %s22
      %s25 = sadd.s32 1, %s16
      %s26 = scalar_select %p23, %s25, %s16
      %p27 = scmp.ge.s32.totalorder %s26, 1
      %s28 = scalar_select %p27, 0, %s26
      %s29 = ssub.s32 %s16, %s28
      %p30 = scmp.eq.s32.totalorder %s29, 0
      %s32 = sadd.s32 %s31, 1
      %s33 = scalar_select %p30, %s31, %s32
      %p36 = pneg %p30
      %p37 = scmp.eq.s32.totalorder %s9, 1
      %p38 = por %p36, %p37
      %p39 = scmp.ne.s32.totalorder %s31, %s34
      %p40 = scmp.eq.s32.totalorder %s9, 0
      %p41 = por %p39, %p40
      %p42 = scmp.ne.s32.totalorder %s31, %s34
      %p43 = scmp.eq.s32.totalorder %s14, 1
      %p44 = por %p42, %p43
      %p45 = scmp.ne.s32.totalorder %s34, %s35
      %p46 = scmp.eq.s32.totalorder %s14, 0
      %p47 = por %p45, %p46
      %p48 = scmp.ne.s32.totalorder %s34, %s35
      %p49 = scmp.eq.s32.totalorder %s15, 1
      %p50 = por %p48, %p49
      %p52 = scmp.ne.s32.totalorder %s35, %s51
      %p53 = scmp.eq.s32.totalorder %s15, 0
      %p54 = por %p52, %p53
      %s55 = ssub.s32 %s17, %s24
      %p56 = scmp.eq.s32.totalorder %s55, 0
      %s58 = sadd.s32 %s57, 1
      %s59 = scalar_select %p56, %s57, %s58
      %p62 = pneg %p56
      %p63 = scmp.eq.s32.totalorder %s9, 1
      %p64 = por %p62, %p63
      %p65 = scmp.ne.s32.totalorder %s57, %s60
      %p66 = scmp.eq.s32.totalorder %s9, 0
      %p67 = por %p65, %p66
      %p68 = scmp.ne.s32.totalorder %s57, %s60
      %p69 = scmp.eq.s32.totalorder %s14, 1
      %p70 = por %p68, %p69
      %p71 = scmp.ne.s32.totalorder %s60, %s61
      %p72 = scmp.eq.s32.totalorder %s14, 0
      %p73 = por %p71, %p72
      %p74 = scmp.ne.s32.totalorder %s60, %s61
      %p75 = scmp.eq.s32.totalorder %s15, 1
      %p76 = por %p74, %p75
      %p78 = scmp.ne.s32.totalorder %s61, %s77
      %p79 = scmp.eq.s32.totalorder %s15, 0
      %p80 = por %p78, %p79
      %s81 = ssub.s32 %s17, %s24
      %p82 = scmp.eq.s32.totalorder %s81, 0
      %s84 = sadd.s32 %s83, 1
      %s85 = scalar_select %p82, %s83, %s84
      %p88 = pneg %p82
      %p89 = scmp.eq.s32.totalorder %s9, 1
      %p90 = por %p88, %p89
      %p91 = scmp.ne.s32.totalorder %s83, %s86
      %p92 = scmp.eq.s32.totalorder %s9, 0
      %p93 = por %p91, %p92
      %p94 = scmp.ne.s32.totalorder %s83, %s86
      %p95 = scmp.eq.s32.totalorder %s14, 1
      %p96 = por %p94, %p95
      %p97 = scmp.ne.s32.totalorder %s86, %s87
      %p98 = scmp.eq.s32.totalorder %s14, 0
      %p99 = por %p97, %p98
      %p100 = scmp.ne.s32.totalorder %s86, %s87
      %p101 = scmp.eq.s32.totalorder %s15, 1
      %p102 = por %p100, %p101
      %p104 = scmp.ne.s32.totalorder %s87, %s103
      %p105 = scmp.eq.s32.totalorder %s15, 0
      %p106 = por %p104, %p105
      %s107 = ssub.s32 %s16, %s28
      %s108 = ssub.s32 %s17, %s24
      %s109 = sor.u32 %s107, %s108
      %p110 = scmp.eq.s32.totalorder %s109, 0
      %s112 = sadd.s32 %s111, 1
      %s113 = scalar_select %p110, %s111, %s112
      %p116 = pneg %p110
      %p117 = scmp.eq.s32.totalorder %s9, 1
      %p118 = por %p116, %p117
      %p119 = scmp.ne.s32.totalorder %s111, %s114
      %p120 = scmp.eq.s32.totalorder %s9, 0
      %p121 = por %p119, %p120
      %p122 = scmp.ne.s32.totalorder %s111, %s114
      %p123 = scmp.eq.s32.totalorder %s14, 1
      %p124 = por %p122, %p123
      %p125 = scmp.ne.s32.totalorder %s114, %s115
      %p126 = scmp.eq.s32.totalorder %s14, 0
      %p127 = por %p125, %p126
      %p128 = scmp.ne.s32.totalorder %s114, %s115
      %p129 = scmp.eq.s32.totalorder %s15, 1
      %p130 = por %p128, %p129
      %p132 = scmp.ne.s32.totalorder %s115, %s131
      %p133 = scmp.eq.s32.totalorder %s15, 0
      %p134 = por %p132, %p133
      %p135 = scmp.le.s32.totalorder 1, %s9
      %p136 = scmp.lt.s32.totalorder %s9, 3
      %p137 = pnand %p135, %p136
      %p138 = pneg %p137
      // Predicated region
      $region9: #{_lambda_.42} parent=5 // pred_check
        _
      $region10: #{_lambda_.42} parent=5 // pred_check_branch
        %140 = sbr.rel (%p137) target = $region12
      $region11: #{_lambda_.42} parent=5 // pred_region
        %s141 = ssub.s32 %s9, 1
        // Predicated region
        $region13: #{_lambda_.42} parent=11 // pred_check
          %p142 = pneg %p47
        $region14: #{_lambda_.42} parent=11 // pred_check_branch
          %144 = sbr.rel (%p142) target = $region16
        $region15: #{_lambda_.42} parent=11 // pred_region
          %s145 = smul.u32 16, %s18
          %p146 = scmp.lt.s32.totalorder %s145, 15
          %s147 = scalar_select %p146, %s145, 15
          %s148 = smul.addr %s147, 4
          %s149 = scalar_lea.vmem %s0, %s148
          %s150 = smul.u32 16, %s18
        $region16: #{_lambda_.42} parent=11 // pred_fallthru
          _
      $region12: #{_lambda_.42} parent=5 // pred_fallthru
        _
      %p151 = scmp.lt.s32.totalorder %s9, 2
      // Predicated region
      $region17: #{_lambda_.42} parent=5 // pred_check
        %p152 = pneg %p151
      $region18: #{_lambda_.42} parent=5 // pred_check_branch
        %154 = sbr.rel (%p152) target = $region20
      $region19: #{_lambda_.42} parent=5 // pred_region
        // Predicated region
        $region21: #{_lambda_.42} parent=19 // pred_check
          %p155 = pneg %p67
        $region22: #{_lambda_.42} parent=19 // pred_check_branch
          %157 = sbr.rel (%p155) target = $region24
        $region23: #{_lambda_.42} parent=19 // pred_region
          %s158 = sand.u32 %s57, 1
          %s159 = sand.u32 %s57, 1
          %s160 = smul.addr %s159, 64
          %s161 = scalar_lea.vmem [#allocation2], %s160
          %s162 = smul.addr %s17, 4
          %s163 = scalar_lea.vmem %s1, %s162
          // Predicated region
          $region25: #{_lambda_.42} parent=23 // pred_check
            _
          $region26: #{_lambda_.42} parent=23 // pred_check_branch
            %165 = sbr.rel (0) target = $region28
          $region27: #{_lambda_.42} parent=23 // pred_region
            // Predicated region
            $region29: #{_lambda_.42} parent=27 // pred_check
              _
            $region30: #{_lambda_.42} parent=27 // pred_check_branch
              %167 = sbr.rel target = $region32
            $region31: #{_lambda_.42} parent=27 // pred_region
              // Predicated region
              $region44: #{_lambda_.42} parent=31 // pred_check
                _
              $region45: #{_lambda_.42} parent=31 // pred_check_branch
                %213 = sbr.rel (0) target = $region47
              $region46: #{_lambda_.42} parent=31 // pred_region
                loop: start=0, step=1, limit=1
                $region48: #{_lambda_.42} parent=46 // loop_pre_header
                  _
                $region49: #{_lambda_.42} parent=46 // loop_header
                  %s215 = sphi 0, %s219
                  %p216 = scmp.ge.s32.totalorder %s215, 1
                  %s220 = sphi %s163, %s163
                  %s221 = sphi %s161, %s161
                $region50: #{_lambda_.42} parent=46 // loop_header_branch
                  %218 = sbr.rel (%p216) target = $region54
                $region51: #{_lambda_.42} parent=46 // loop_body
                  _
                $region52: #{_lambda_.42} parent=46 // loop_footer
                  %s219 = sadd.s32 1, %s215
                $region53: #{_lambda_.42} parent=46 // loop_footer_branch
                  %214 = sbr.rel target = $region49
                $region54: #{_lambda_.42} parent=46 // loop_exit
                  _
                %s223 = ssub.s32 16, 1
                loop: start=0, step=1, limit=1
                $region55: #{_lambda_.42} parent=46 // loop_pre_header
                  _
                $region56: #{_lambda_.42} parent=46 // loop_header
                  %s225 = sphi 0, %s229
                  %p226 = scmp.ge.s32.totalorder %s225, 1
                  %s230 = sphi %s163, %s163
                  %s231 = sphi %s161, %s161
                $region57: #{_lambda_.42} parent=46 // loop_header_branch
                  %228 = sbr.rel (%p226) target = $region61
                $region58: #{_lambda_.42} parent=46 // loop_body
                  %v232 = vld [vmem:[%s230] sm:%s223]
                  %233 = vst [vmem:[%s231] sm:%s223] %v232
                  %v234 = vld [vmem:[%s230 + $0x8] sm:%s223]
                  %235 = vst [vmem:[%s231 + $0x4] sm:%s223] %v234
                  %v236 = vld [vmem:[%s230 + $0x10] sm:%s223]
                  %237 = vst [vmem:[%s231 + $0x8] sm:%s223] %v236
                  %v238 = vld [vmem:[%s230 + $0x18] sm:%s223]
                  %239 = vst [vmem:[%s231 + $0xc] sm:%s223] %v238
                  %v240 = vld [vmem:[%s230 + $0x20] sm:%s223]
                  %241 = vst [vmem:[%s231 + $0x10] sm:%s223] %v240
                  %v242 = vld [vmem:[%s230 + $0x28] sm:%s223]
                  %243 = vst [vmem:[%s231 + $0x14] sm:%s223] %v242
                  %v244 = vld [vmem:[%s230 + $0x30] sm:%s223]
                  %245 = vst [vmem:[%s231 + $0x18] sm:%s223] %v244
                  %v246 = vld [vmem:[%s230 + $0x38] sm:%s223]
                  %247 = vst [vmem:[%s231 + $0x1c] sm:%s223] %v246
                  %v248 = vld [vmem:[%s230 + $0x40] sm:%s223]
                  %249 = vst [vmem:[%s231 + $0x20] sm:%s223] %v248
                  %v250 = vld [vmem:[%s230 + $0x48] sm:%s223]
                  %251 = vst [vmem:[%s231 + $0x24] sm:%s223] %v250
                  %v252 = vld [vmem:[%s230 + $0x50] sm:%s223]
                  %253 = vst [vmem:[%s231 + $0x28] sm:%s223] %v252
                  %v254 = vld [vmem:[%s230 + $0x58] sm:%s223]
                  %255 = vst [vmem:[%s231 + $0x2c] sm:%s223] %v254
                  %v256 = vld [vmem:[%s230 + $0x60] sm:%s223]
                  %257 = vst [vmem:[%s231 + $0x30] sm:%s223] %v256
                  %v258 = vld [vmem:[%s230 + $0x68] sm:%s223]
                  %259 = vst [vmem:[%s231 + $0x34] sm:%s223] %v258
                  %v260 = vld [vmem:[%s230 + $0x70] sm:%s223]
                  %261 = vst [vmem:[%s231 + $0x38] sm:%s223] %v260
                  %v262 = vld [vmem:[%s230 + $0x78] sm:%s223]
                  %263 = vst [vmem:[%s231 + $0x3c] sm:%s223] %v262
                $region59: #{_lambda_.42} parent=46 // loop_footer
                  %s229 = sadd.s32 1, %s225
                $region60: #{_lambda_.42} parent=46 // loop_footer_branch
                  %224 = sbr.rel target = $region56
                $region61: #{_lambda_.42} parent=46 // loop_exit
                  _
              $region47: #{_lambda_.42} parent=31 // pred_fallthru
                _
            $region32: #{_lambda_.42} parent=27 // pred_fallthru
              _
            // Predicated region
            $region33: #{_lambda_.42} parent=27 // pred_check
              _
            $region34: #{_lambda_.42} parent=27 // pred_check_branch
              %169 = sbr.rel (0) target = $region36
            $region35: #{_lambda_.42} parent=27 // pred_region
              %s171 = ssub.s32 16, 1
              loop: start=0, step=1, limit=1
              $region37: #{_lambda_.42} parent=35 // loop_pre_header
                _
              $region38: #{_lambda_.42} parent=35 // loop_header
                %s173 = sphi 0, %s177
                %p174 = scmp.ge.s32.totalorder %s173, 1
                %s178 = sphi %s163, %s163
                %s179 = sphi %s161, %s161
              $region39: #{_lambda_.42} parent=35 // loop_header_branch
                %176 = sbr.rel (%p174) target = $region43
              $region40: #{_lambda_.42} parent=35 // loop_body
                %v180 = vld [vmem:[%s178] sm:%s171]
                %181 = vst [vmem:[%s179] sm:%s171] %v180
                %v182 = vld [vmem:[%s178 + $0x8] sm:%s171]
                %183 = vst [vmem:[%s179 + $0x4] sm:%s171] %v182
                %v184 = vld [vmem:[%s178 + $0x10] sm:%s171]
                %185 = vst [vmem:[%s179 + $0x8] sm:%s171] %v184
                %v186 = vld [vmem:[%s178 + $0x18] sm:%s171]
                %187 = vst [vmem:[%s179 + $0xc] sm:%s171] %v186
                %v188 = vld [vmem:[%s178 + $0x20] sm:%s171]
                %189 = vst [vmem:[%s179 + $0x10] sm:%s171] %v188
                %v190 = vld [vmem:[%s178 + $0x28] sm:%s171]
                %191 = vst [vmem:[%s179 + $0x14] sm:%s171] %v190
                %v192 = vld [vmem:[%s178 + $0x30] sm:%s171]
                %193 = vst [vmem:[%s179 + $0x18] sm:%s171] %v192
                %v194 = vld [vmem:[%s178 + $0x38] sm:%s171]
                %195 = vst [vmem:[%s179 + $0x1c] sm:%s171] %v194
                %v196 = vld [vmem:[%s178 + $0x40] sm:%s171]
                %197 = vst [vmem:[%s179 + $0x20] sm:%s171] %v196
                %v198 = vld [vmem:[%s178 + $0x48] sm:%s171]
                %199 = vst [vmem:[%s179 + $0x24] sm:%s171] %v198
                %v200 = vld [vmem:[%s178 + $0x50] sm:%s171]
                %201 = vst [vmem:[%s179 + $0x28] sm:%s171] %v200
                %v202 = vld [vmem:[%s178 + $0x58] sm:%s171]
                %203 = vst [vmem:[%s179 + $0x2c] sm:%s171] %v202
                %v204 = vld [vmem:[%s178 + $0x60] sm:%s171]
                %205 = vst [vmem:[%s179 + $0x30] sm:%s171] %v204
                %v206 = vld [vmem:[%s178 + $0x68] sm:%s171]
                %207 = vst [vmem:[%s179 + $0x34] sm:%s171] %v206
                %v208 = vld [vmem:[%s178 + $0x70] sm:%s171]
                %209 = vst [vmem:[%s179 + $0x38] sm:%s171] %v208
                %v210 = vld [vmem:[%s178 + $0x78] sm:%s171]
                %211 = vst [vmem:[%s179 + $0x3c] sm:%s171] %v210
              $region41: #{_lambda_.42} parent=35 // loop_footer
                %s177 = sadd.s32 1, %s173
              $region42: #{_lambda_.42} parent=35 // loop_footer_branch
                %172 = sbr.rel target = $region38
              $region43: #{_lambda_.42} parent=35 // loop_exit
                _
            $region36: #{_lambda_.42} parent=27 // pred_fallthru
              _
          $region28: #{_lambda_.42} parent=23 // pred_fallthru
            _
          %264 = vnop
        $region24: #{_lambda_.42} parent=19 // pred_fallthru
          _
        // Predicated region
        $region62: #{_lambda_.42} parent=19 // pred_check
          %p265 = pneg %p93
        $region63: #{_lambda_.42} parent=19 // pred_check_branch
          %267 = sbr.rel (%p265) target = $region65
        $region64: #{_lambda_.42} parent=19 // pred_region
          %p268 = scmp.lt.s32.totalorder %s17, 1
          %s269 = scalar_select %p268, %s17, 1
          %s270 = scalar_lea.vmem %s2, %s269
        $region65: #{_lambda_.42} parent=19 // pred_fallthru
          _
      $region20: #{_lambda_.42} parent=5 // pred_fallthru
        _
      %p271 = scmp.le.s32.totalorder 1, %s9
      %p272 = scmp.lt.s32.totalorder %s9, 3
      %p273 = pnand %p271, %p272
      %p274 = pneg %p273
      // Predicated region
      $region66: #{_lambda_.42} parent=5 // pred_check
        _
      $region67: #{_lambda_.42} parent=5 // pred_check_branch
        %276 = sbr.rel (%p273) target = $region69
      $region68: #{_lambda_.42} parent=5 // pred_region
        %s277 = ssub.s32 %s9, 1
        %s278 = sand.u32 %s60, 1
        %s279 = sand.u32 %s60, 1
        %s280 = smul.addr %s279, 64
        %s281 = scalar_lea.vmem [#allocation2], %s280
        // Predicated region
        $region70: #{_lambda_.42} parent=68 // pred_check
          %p282 = pneg %p73
        $region71: #{_lambda_.42} parent=68 // pred_check_branch
          %284 = sbr.rel (%p282) target = $region73
        $region72: #{_lambda_.42} parent=68 // pred_region
          _
        $region73: #{_lambda_.42} parent=68 // pred_fallthru
          _
        %s285 = smul.u32 16, %s18
        %p286 = scmp.lt.s32.totalorder %s285, 15
        %s287 = scalar_select %p286, %s285, 15
        %s288 = smul.addr %s287, 4
        %s289 = scalar_lea.vmem %s0, %s288
        %p290 = pneg %p47
        %p291 = pneg %p44
        %s292 = sand.u32 %s60, 1
        %s293 = sand.u32 %s60, 1
        %s294 = smul.addr %s293, 64
        %s295 = scalar_lea.vmem [#allocation2], %s294
        %p296 = pneg %p73
        %p297 = pneg %p70
        %p298 = scmp.lt.s32.totalorder %s19, 1
        %s299 = scalar_select %p298, %s19, 1
        %s300 = scalar_lea.vmem %s2, %s299
        %p301 = pneg %p99
        %p302 = pneg %p96
        %p303 = pneg %p127
        %p304 = pneg %p124
        %s305 = sand.u32 %s114, 1
        %s306 = sand.u32 %s114, 1
        %s307 = smul.addr %s306, 64
        %s308 = scalar_lea.vmem [#allocation3], %s307
        %s309 = smul.u32 16, %s18
        %p310 = scmp.lt.s32.totalorder %s309, 15
        %s311 = scalar_select %p310, %s309, 15
        %s312 = smul.addr %s311, 4
        %s313 = scalar_lea.vmem %s0, %s312
        %s314 = smul.u32 16, %s18
        %p315 = scmp.lt.s32.totalorder %s19, 1
        %s316 = scalar_select %p315, %s19, 1
        %s317 = scalar_lea.vmem %s2, %s316
        %s318 = smul.u32 16, %s18
        %v319 = vld [vmem:[%s313] sm:$0xf]
        %v320 = vld [vmem:[%s313 + $0x4] sm:$0xf]
        %v321 = vld [vmem:[%s313 + $0x8] sm:$0xf]
        %v322 = vld [vmem:[%s313 + $0xc] sm:$0xf]
        %v323 = vld [vmem:[%s313 + $0x10] sm:$0xf]
        %v324 = vld [vmem:[%s313 + $0x14] sm:$0xf]
        %v325 = vld [vmem:[%s313 + $0x18] sm:$0xf]
        %v326 = vld [vmem:[%s313 + $0x1c] sm:$0xf]
        %v327 = vld [vmem:[%s313 + $0x20] sm:$0xf]
        %v328 = vld [vmem:[%s313 + $0x24] sm:$0xf]
        %v329 = vld [vmem:[%s313 + $0x28] sm:$0xf]
        %v330 = vld [vmem:[%s313 + $0x2c] sm:$0xf]
        %v331 = vld [vmem:[%s313 + $0x30] sm:$0xf]
        %v332 = vld [vmem:[%s313 + $0x34] sm:$0xf]
        %v333 = vld [vmem:[%s313 + $0x38] sm:$0xf]
        %v334 = vld [vmem:[%s313 + $0x3c] sm:$0xf]
        %v335 = vld [vmem:[%s281] sm:$0xf]
        %v336 = vld [vmem:[%s281 + $0x4] sm:$0xf]
        %v337 = vld [vmem:[%s281 + $0x8] sm:$0xf]
        %v338 = vld [vmem:[%s281 + $0xc] sm:$0xf]
        %v339 = vld [vmem:[%s281 + $0x10] sm:$0xf]
        %v340 = vld [vmem:[%s281 + $0x14] sm:$0xf]
        %v341 = vld [vmem:[%s281 + $0x18] sm:$0xf]
        %v342 = vld [vmem:[%s281 + $0x1c] sm:$0xf]
        %v343 = vld [vmem:[%s281 + $0x20] sm:$0xf]
        %v344 = vld [vmem:[%s281 + $0x24] sm:$0xf]
        %v345 = vld [vmem:[%s281 + $0x28] sm:$0xf]
        %v346 = vld [vmem:[%s281 + $0x2c] sm:$0xf]
        %v347 = vld [vmem:[%s281 + $0x30] sm:$0xf]
        %v348 = vld [vmem:[%s281 + $0x34] sm:$0xf]
        %v349 = vld [vmem:[%s281 + $0x38] sm:$0xf]
        %v350 = vld [vmem:[%s281 + $0x3c] sm:$0xf]
        %v351 = vld [vmem:[%s317] sm:$0x1]
        %v353 = vperm.slane %v351, 0
        %v371 = vunpack.c.l.b16 %v319
        %v372 = vunpack.c.l.b16 %v320
        %v373 = vunpack.c.l.b16 %v321
        %v374 = vunpack.c.l.b16 %v322
        %v375 = vunpack.c.l.b16 %v323
        %v376 = vunpack.c.l.b16 %v324
        %v377 = vunpack.c.l.b16 %v325
        %v378 = vunpack.c.l.b16 %v326
        %v379 = vunpack.c.l.b16 %v327
        %v380 = vunpack.c.l.b16 %v328
        %v381 = vunpack.c.l.b16 %v329
        %v382 = vunpack.c.l.b16 %v330
        %v383 = vunpack.c.l.b16 %v331
        %v384 = vunpack.c.l.b16 %v332
        %v385 = vunpack.c.l.b16 %v333
        %v386 = vunpack.c.l.b16 %v334
        %v387 = vpack.c.b16 %v372, %v371
        %v388 = vpack.c.b16 %v374, %v373
        %v389 = vpack.c.b16 %v376, %v375
        %v390 = vpack.c.b16 %v378, %v377
        %v391 = vpack.c.b16 %v380, %v379
        %v392 = vpack.c.b16 %v382, %v381
        %v393 = vpack.c.b16 %v384, %v383
        %v394 = vpack.c.b16 %v386, %v385
        %v419 = vunpack.c.l.b16 %v335
        %v420 = vunpack.c.l.b16 %v336
        %v421 = vunpack.c.l.b16 %v337
        %v422 = vunpack.c.l.b16 %v338
        %v423 = vunpack.c.l.b16 %v339
        %v424 = vunpack.c.l.b16 %v340
        %v425 = vunpack.c.l.b16 %v341
        %v426 = vunpack.c.l.b16 %v342
        %v427 = vunpack.c.l.b16 %v343
        %v428 = vunpack.c.l.b16 %v344
        %v429 = vunpack.c.l.b16 %v345
        %v430 = vunpack.c.l.b16 %v346
        %v431 = vunpack.c.l.b16 %v347
        %v432 = vunpack.c.l.b16 %v348
        %v433 = vunpack.c.l.b16 %v349
        %v434 = vunpack.c.l.b16 %v350
        %v435 = vpack.c.b16 %v420, %v419
        %v436 = vpack.c.b16 %v422, %v421
        %v437 = vpack.c.b16 %v424, %v423
        %v438 = vpack.c.b16 %v426, %v425
        %v439 = vpack.c.b16 %v428, %v427
        %v440 = vpack.c.b16 %v430, %v429
        %v441 = vpack.c.b16 %v432, %v431
        %v442 = vpack.c.b16 %v434, %v433
        %451 = vmatpush.bf16.msra.mxu0 %v442
        %452 = vmatpush.bf16.msra.mxu0 %v441
        %453 = vmatpush.bf16.msra.mxu0 %v440
        %454 = vmatpush.bf16.msra.mxu0 %v439
        %455 = vmatpush.bf16.msra.mxu0 %v438
        %456 = vmatpush.bf16.msra.mxu0 %v437
        %457 = vmatpush.bf16.msra.mxu0 %v436
        %458 = vmatpush.bf16.msra.mxu0 %v435
        %459 = vmatmul.bf16.gmra.mxu0 %v387
        %v460 = vpop.f32.mrf.mxu0
        %v461 = vadd.f32 %v353, %v460
        %v462 = vpop.f32.mrf.mxu0
        %v463 = vadd.f32 %v353, %v462
        %464 = vmatmul.bf16.gmra.mxu0 %v388
        %v465 = vpop.f32.mrf.mxu0
        %v466 = vadd.f32 %v353, %v465
        %v467 = vpop.f32.mrf.mxu0
        %v468 = vadd.f32 %v353, %v467
        %469 = vmatmul.bf16.gmra.mxu0 %v389
        %v470 = vpop.f32.mrf.mxu0
        %v471 = vadd.f32 %v353, %v470
        %v472 = vpop.f32.mrf.mxu0
        %v473 = vadd.f32 %v353, %v472
        %474 = vmatmul.bf16.gmra.mxu0 %v390
        %v475 = vpop.f32.mrf.mxu0
        %v476 = vadd.f32 %v353, %v475
        %v477 = vpop.f32.mrf.mxu0
        %v478 = vadd.f32 %v353, %v477
        %479 = vmatmul.bf16.gmra.mxu0 %v391
        %v480 = vpop.f32.mrf.mxu0
        %v481 = vadd.f32 %v353, %v480
        %v482 = vpop.f32.mrf.mxu0
        %v483 = vadd.f32 %v353, %v482
        %484 = vmatmul.bf16.gmra.mxu0 %v392
        %v485 = vpop.f32.mrf.mxu0
        %v486 = vadd.f32 %v353, %v485
        %v487 = vpop.f32.mrf.mxu0
        %v488 = vadd.f32 %v353, %v487
        %489 = vmatmul.bf16.gmra.mxu0 %v393
        %v490 = vpop.f32.mrf.mxu0
        %v491 = vadd.f32 %v353, %v490
        %v492 = vpop.f32.mrf.mxu0
        %v493 = vadd.f32 %v353, %v492
        %494 = vmatmul.bf16.gmra.mxu0 %v394
        %v495 = vpop.f32.mrf.mxu0
        %v496 = vadd.f32 %v353, %v495
        %v497 = vpop.f32.mrf.mxu0
        %v498 = vadd.f32 %v353, %v497
        %499 = vdwg.mxu0
        %v500 = vpack.c.bf16 %v461, %v461
        %v501 = vpack.c.bf16 %v463, %v463
        %v502 = vpack.c.bf16 %v466, %v466
        %v503 = vpack.c.bf16 %v468, %v468
        %v504 = vpack.c.bf16 %v471, %v471
        %v505 = vpack.c.bf16 %v473, %v473
        %v506 = vpack.c.bf16 %v476, %v476
        %v507 = vpack.c.bf16 %v478, %v478
        %v508 = vpack.c.bf16 %v481, %v481
        %v509 = vpack.c.bf16 %v483, %v483
        %v510 = vpack.c.bf16 %v486, %v486
        %v511 = vpack.c.bf16 %v488, %v488
        %v512 = vpack.c.bf16 %v491, %v491
        %v513 = vpack.c.bf16 %v493, %v493
        %v514 = vpack.c.bf16 %v496, %v496
        %v515 = vpack.c.bf16 %v498, %v498
        %516 = vst [vmem:[%s308] sm:$0xf] %v500
        %517 = vst [vmem:[%s308 + $0x4] sm:$0xf] %v501
        %518 = vst [vmem:[%s308 + $0x8] sm:$0xf] %v502
        %519 = vst [vmem:[%s308 + $0xc] sm:$0xf] %v503
        %520 = vst [vmem:[%s308 + $0x10] sm:$0xf] %v504
        %521 = vst [vmem:[%s308 + $0x14] sm:$0xf] %v505
        %522 = vst [vmem:[%s308 + $0x18] sm:$0xf] %v506
        %523 = vst [vmem:[%s308 + $0x1c] sm:$0xf] %v507
        %524 = vst [vmem:[%s308 + $0x20] sm:$0xf] %v508
        %525 = vst [vmem:[%s308 + $0x24] sm:$0xf] %v509
        %526 = vst [vmem:[%s308 + $0x28] sm:$0xf] %v510
        %527 = vst [vmem:[%s308 + $0x2c] sm:$0xf] %v511
        %528 = vst [vmem:[%s308 + $0x30] sm:$0xf] %v512
        %529 = vst [vmem:[%s308 + $0x34] sm:$0xf] %v513
        %530 = vst [vmem:[%s308 + $0x38] sm:$0xf] %v514
        %531 = vst [vmem:[%s308 + $0x3c] sm:$0xf] %v515
        %s532 = sand.u32 %s114, 1
        %s533 = sand.u32 %s114, 1
        %s534 = smul.addr %s533, 64
        %s535 = scalar_lea.vmem [#allocation3], %s534
        // Predicated region
        $region74: #{_lambda_.42} parent=68 // pred_check
          %p536 = pneg %p124
        $region75: #{_lambda_.42} parent=68 // pred_check_branch
          %538 = sbr.rel (%p536) target = $region77
        $region76: #{_lambda_.42} parent=68 // pred_region
          %s539 = smul.u32 16, %s18
          %s540 = smul.addr %s539, 2
          %s541 = sadd.s32 %s19, %s540
          %s542 = smul.addr %s541, 4
          %s543 = scalar_lea.vmem %s3, %s542
          // Predicated region
          $region78: #{_lambda_.42} parent=76 // pred_check
            _
          $region79: #{_lambda_.42} parent=76 // pred_check_branch
            %545 = sbr.rel (0) target = $region81
          $region80: #{_lambda_.42} parent=76 // pred_region
            // Predicated region
            $region82: #{_lambda_.42} parent=80 // pred_check
              _
            $region83: #{_lambda_.42} parent=80 // pred_check_branch
              %547 = sbr.rel target = $region85
            $region84: #{_lambda_.42} parent=80 // pred_region
              // Predicated region
              $region97: #{_lambda_.42} parent=84 // pred_check
                _
              $region98: #{_lambda_.42} parent=84 // pred_check_branch
                %593 = sbr.rel (0) target = $region100
              $region99: #{_lambda_.42} parent=84 // pred_region
                loop: start=0, step=1, limit=1
                $region101: #{_lambda_.42} parent=99 // loop_pre_header
                  _
                $region102: #{_lambda_.42} parent=99 // loop_header
                  %s595 = sphi 0, %s599
                  %p596 = scmp.ge.s32.totalorder %s595, 1
                  %s600 = sphi %s535, %s535
                  %s601 = sphi %s543, %s543
                $region103: #{_lambda_.42} parent=99 // loop_header_branch
                  %598 = sbr.rel (%p596) target = $region107
                $region104: #{_lambda_.42} parent=99 // loop_body
                  _
                $region105: #{_lambda_.42} parent=99 // loop_footer
                  %s599 = sadd.s32 1, %s595
                $region106: #{_lambda_.42} parent=99 // loop_footer_branch
                  %594 = sbr.rel target = $region102
                $region107: #{_lambda_.42} parent=99 // loop_exit
                  _
                %s603 = ssub.s32 16, 1
                loop: start=0, step=1, limit=1
                $region108: #{_lambda_.42} parent=99 // loop_pre_header
                  _
                $region109: #{_lambda_.42} parent=99 // loop_header
                  %s605 = sphi 0, %s609
                  %p606 = scmp.ge.s32.totalorder %s605, 1
                  %s610 = sphi %s535, %s535
                  %s611 = sphi %s543, %s543
                $region110: #{_lambda_.42} parent=99 // loop_header_branch
                  %608 = sbr.rel (%p606) target = $region114
                $region111: #{_lambda_.42} parent=99 // loop_body
                  %v612 = vld [vmem:[%s610] sm:%s603]
                  %613 = vst [vmem:[%s611] sm:%s603] %v612
                  %v614 = vld [vmem:[%s610 + $0x4] sm:%s603]
                  %615 = vst [vmem:[%s611 + $0x8] sm:%s603] %v614
                  %v616 = vld [vmem:[%s610 + $0x8] sm:%s603]
                  %617 = vst [vmem:[%s611 + $0x10] sm:%s603] %v616
                  %v618 = vld [vmem:[%s610 + $0xc] sm:%s603]
                  %619 = vst [vmem:[%s611 + $0x18] sm:%s603] %v618
                  %v620 = vld [vmem:[%s610 + $0x10] sm:%s603]
                  %621 = vst [vmem:[%s611 + $0x20] sm:%s603] %v620
                  %v622 = vld [vmem:[%s610 + $0x14] sm:%s603]
                  %623 = vst [vmem:[%s611 + $0x28] sm:%s603] %v622
                  %v624 = vld [vmem:[%s610 + $0x18] sm:%s603]
                  %625 = vst [vmem:[%s611 + $0x30] sm:%s603] %v624
                  %v626 = vld [vmem:[%s610 + $0x1c] sm:%s603]
                  %627 = vst [vmem:[%s611 + $0x38] sm:%s603] %v626
                  %v628 = vld [vmem:[%s610 + $0x20] sm:%s603]
                  %629 = vst [vmem:[%s611 + $0x40] sm:%s603] %v628
                  %v630 = vld [vmem:[%s610 + $0x24] sm:%s603]
                  %631 = vst [vmem:[%s611 + $0x48] sm:%s603] %v630
                  %v632 = vld [vmem:[%s610 + $0x28] sm:%s603]
                  %633 = vst [vmem:[%s611 + $0x50] sm:%s603] %v632
                  %v634 = vld [vmem:[%s610 + $0x2c] sm:%s603]
                  %635 = vst [vmem:[%s611 + $0x58] sm:%s603] %v634
                  %v636 = vld [vmem:[%s610 + $0x30] sm:%s603]
                  %637 = vst [vmem:[%s611 + $0x60] sm:%s603] %v636
                  %v638 = vld [vmem:[%s610 + $0x34] sm:%s603]
                  %639 = vst [vmem:[%s611 + $0x68] sm:%s603] %v638
                  %v640 = vld [vmem:[%s610 + $0x38] sm:%s603]
                  %641 = vst [vmem:[%s611 + $0x70] sm:%s603] %v640
                  %v642 = vld [vmem:[%s610 + $0x3c] sm:%s603]
                  %643 = vst [vmem:[%s611 + $0x78] sm:%s603] %v642
                $region112: #{_lambda_.42} parent=99 // loop_footer
                  %s609 = sadd.s32 1, %s605
                $region113: #{_lambda_.42} parent=99 // loop_footer_branch
                  %604 = sbr.rel target = $region109
                $region114: #{_lambda_.42} parent=99 // loop_exit
                  _
              $region100: #{_lambda_.42} parent=84 // pred_fallthru
                _
            $region85: #{_lambda_.42} parent=80 // pred_fallthru
              _
            // Predicated region
            $region86: #{_lambda_.42} parent=80 // pred_check
              _
            $region87: #{_lambda_.42} parent=80 // pred_check_branch
              %549 = sbr.rel (0) target = $region89
            $region88: #{_lambda_.42} parent=80 // pred_region
              %s551 = ssub.s32 16, 1
              loop: start=0, step=1, limit=1
              $region90: #{_lambda_.42} parent=88 // loop_pre_header
                _
              $region91: #{_lambda_.42} parent=88 // loop_header
                %s553 = sphi 0, %s557
                %p554 = scmp.ge.s32.totalorder %s553, 1
                %s558 = sphi %s535, %s535
                %s559 = sphi %s543, %s543
              $region92: #{_lambda_.42} parent=88 // loop_header_branch
                %556 = sbr.rel (%p554) target = $region96
              $region93: #{_lambda_.42} parent=88 // loop_body
                %v560 = vld [vmem:[%s558] sm:%s551]
                %561 = vst [vmem:[%s559] sm:%s551] %v560
                %v562 = vld [vmem:[%s558 + $0x4] sm:%s551]
                %563 = vst [vmem:[%s559 + $0x8] sm:%s551] %v562
                %v564 = vld [vmem:[%s558 + $0x8] sm:%s551]
                %565 = vst [vmem:[%s559 + $0x10] sm:%s551] %v564
                %v566 = vld [vmem:[%s558 + $0xc] sm:%s551]
                %567 = vst [vmem:[%s559 + $0x18] sm:%s551] %v566
                %v568 = vld [vmem:[%s558 + $0x10] sm:%s551]
                %569 = vst [vmem:[%s559 + $0x20] sm:%s551] %v568
                %v570 = vld [vmem:[%s558 + $0x14] sm:%s551]
                %571 = vst [vmem:[%s559 + $0x28] sm:%s551] %v570
                %v572 = vld [vmem:[%s558 + $0x18] sm:%s551]
                %573 = vst [vmem:[%s559 + $0x30] sm:%s551] %v572
                %v574 = vld [vmem:[%s558 + $0x1c] sm:%s551]
                %575 = vst [vmem:[%s559 + $0x38] sm:%s551] %v574
                %v576 = vld [vmem:[%s558 + $0x20] sm:%s551]
                %577 = vst [vmem:[%s559 + $0x40] sm:%s551] %v576
                %v578 = vld [vmem:[%s558 + $0x24] sm:%s551]
                %579 = vst [vmem:[%s559 + $0x48] sm:%s551] %v578
                %v580 = vld [vmem:[%s558 + $0x28] sm:%s551]
                %581 = vst [vmem:[%s559 + $0x50] sm:%s551] %v580
                %v582 = vld [vmem:[%s558 + $0x2c] sm:%s551]
                %583 = vst [vmem:[%s559 + $0x58] sm:%s551] %v582
                %v584 = vld [vmem:[%s558 + $0x30] sm:%s551]
                %585 = vst [vmem:[%s559 + $0x60] sm:%s551] %v584
                %v586 = vld [vmem:[%s558 + $0x34] sm:%s551]
                %587 = vst [vmem:[%s559 + $0x68] sm:%s551] %v586
                %v588 = vld [vmem:[%s558 + $0x38] sm:%s551]
                %589 = vst [vmem:[%s559 + $0x70] sm:%s551] %v588
                %v590 = vld [vmem:[%s558 + $0x3c] sm:%s551]
                %591 = vst [vmem:[%s559 + $0x78] sm:%s551] %v590
              $region94: #{_lambda_.42} parent=88 // loop_footer
                %s557 = sadd.s32 1, %s553
              $region95: #{_lambda_.42} parent=88 // loop_footer_branch
                %552 = sbr.rel target = $region91
              $region96: #{_lambda_.42} parent=88 // loop_exit
                _
            $region89: #{_lambda_.42} parent=80 // pred_fallthru
              _
          $region81: #{_lambda_.42} parent=76 // pred_fallthru
            _
          %644 = vnop
        $region77: #{_lambda_.42} parent=68 // pred_fallthru
          _
      $region69: #{_lambda_.42} parent=5 // pred_fallthru
        _
      %p645 = scmp.le.s32.totalorder 2, %s9
      // Predicated region
      $region115: #{_lambda_.42} parent=5 // pred_check
        %p646 = pneg %p645
      $region116: #{_lambda_.42} parent=5 // pred_check_branch
        %648 = sbr.rel (%p646) target = $region118
      $region117: #{_lambda_.42} parent=5 // pred_region
        %s649 = ssub.s32 %s9, 2
        // Predicated region
        $region119: #{_lambda_.42} parent=117 // pred_check
          %p650 = pneg %p130
        $region120: #{_lambda_.42} parent=117 // pred_check_branch
          %652 = sbr.rel (%p650) target = $region122
        $region121: #{_lambda_.42} parent=117 // pred_region
          %s653 = sand.u32 %s115, 1
          %s654 = sand.u32 %s115, 1
          %s655 = smul.addr %s654, 64
          %s656 = scalar_lea.vmem [#allocation3], %s655
        $region122: #{_lambda_.42} parent=117 // pred_fallthru
          _
      $region118: #{_lambda_.42} parent=5 // pred_fallthru
        _
    $region6: #{_lambda_.42} parent=1 // loop_footer
      %s13 = sadd.s32 1, %s9
    $region7: #{_lambda_.42} parent=1 // loop_footer_branch
      %8 = sbr.rel target = $region3
    $region8: #{_lambda_.42} parent=1 // loop_exit
      _

// kernel: _lambda_.43
$region0: #{_lambda_.43}
  #allocation0 [shape = 'u32[]', space=smem, size = 0x4, offset = 0x4, fixed_abs, tag = 'smem constant byte address 0x4 - core index']
  #allocation1 [shape = 'u32[72,128]{1,0:T(1,128)}', space=vmem, size = 0x9000, scoped, tag = 'internal scratch']
  %s0 = inlined_call_operand.vmem [shape: bf16[128,128], index: 0, kind: input, shape index: {}]
  %s1 = inlined_call_operand.vmem [shape: bf16[128,256], index: 1, kind: input, shape index: {}]
  %s2 = inlined_call_operand.vmem [shape: f32[1,256], index: 2, kind: input, shape index: {}]
  %s3 = inlined_call_operand.vmem [shape: bf16[128,256], index: 3, kind: input, shape index: {}]
  %s4 = inlined_call_operand.vmem [shape: bf16[128,256], index: 4, kind: output, shape index: {}]
  %s5 = sld [smem:[#allocation0]]
  $region168: #{_lambda_.43} parent=0
    _
  %s7 = ssub.s32 1, %s5
  %s8 = scalar_select 0, %s7, %s5
  $region1: #{_lambda_.43} parent=0
    #allocation2 [shape = 'u8[65536]{0}', space=vmem, size = 0x10000, scoped, tag = 'input window, operand 1']
    #allocation3 [shape = 'u8[65536]{0}', space=vmem, size = 0x10000, scoped, tag = 'input window, operand 3']
    #allocation4 [shape = 'u8[65536]{0}', space=vmem, size = 0x10000, scoped, tag = 'output window, operand 0']
    loop: start=0, step=1, limit=4
    $region2: #{_lambda_.43} parent=1 // loop_pre_header
      _
    $region3: #{_lambda_.43} parent=1 // loop_header
      %s10 = sphi 0, %s14
      %p11 = scmp.ge.s32.totalorder %s10, 4
      %s17 = sphi 0, %s29
      %s18 = sphi 0, %s25
      %s19 = sphi 0, %s17
      %s20 = sphi 0, %s18
      %s21 = sphi 0, %s19
      %s22 = sphi 0, %s20
      %s32 = sphi 0, %s34
      %s35 = sphi 0, %s32
      %s36 = sphi 0, %s35
      %s52 = sphi 0, %s36
      %s58 = sphi 0, %s60
      %s61 = sphi 0, %s58
      %s62 = sphi 0, %s61
      %s78 = sphi 0, %s62
      %s84 = sphi 0, %s86
      %s87 = sphi 0, %s84
      %s88 = sphi 0, %s87
      %s104 = sphi 0, %s88
      %s112 = sphi 0, %s114
      %s115 = sphi 0, %s112
      %s116 = sphi 0, %s115
      %s132 = sphi 0, %s116
      %s140 = sphi 0, %s142
      %s143 = sphi 0, %s140
      %s144 = sphi 0, %s143
      %s160 = sphi 0, %s144
    $region4: #{_lambda_.43} parent=1 // loop_header_branch
      %13 = sbr.rel (%p11) target = $region8
    $region5: #{_lambda_.43} parent=1 // loop_body
      %s15 = ssub.s32 %s10, 1
      %s16 = ssub.s32 %s10, 2
      %s23 = sadd.s32 1, %s18
      %p24 = scmp.ge.s32.totalorder %s23, 2
      %s25 = scalar_select %p24, 0, %s23
      %s26 = sadd.s32 1, %s17
      %s27 = scalar_select %p24, %s26, %s17
      %p28 = scmp.ge.s32.totalorder %s27, 1
      %s29 = scalar_select %p28, 0, %s27
      %s30 = ssub.s32 %s17, %s29
      %p31 = scmp.eq.s32.totalorder %s30, 0
      %s33 = sadd.s32 %s32, 1
      %s34 = scalar_select %p31, %s32, %s33
      %p37 = pneg %p31
      %p38 = scmp.eq.s32.totalorder %s10, 1
      %p39 = por %p37, %p38
      %p40 = scmp.ne.s32.totalorder %s32, %s35
      %p41 = scmp.eq.s32.totalorder %s10, 0
      %p42 = por %p40, %p41
      %p43 = scmp.ne.s32.totalorder %s32, %s35
      %p44 = scmp.eq.s32.totalorder %s15, 1
      %p45 = por %p43, %p44
      %p46 = scmp.ne.s32.totalorder %s35, %s36
      %p47 = scmp.eq.s32.totalorder %s15, 0
      %p48 = por %p46, %p47
      %p49 = scmp.ne.s32.totalorder %s35, %s36
      %p50 = scmp.eq.s32.totalorder %s16, 1
      %p51 = por %p49, %p50
      %p53 = scmp.ne.s32.totalorder %s36, %s52
      %p54 = scmp.eq.s32.totalorder %s16, 0
      %p55 = por %p53, %p54
      %s56 = ssub.s32 %s18, %s25
      %p57 = scmp.eq.s32.totalorder %s56, 0
      %s59 = sadd.s32 %s58, 1
      %s60 = scalar_select %p57, %s58, %s59
      %p63 = pneg %p57
      %p64 = scmp.eq.s32.totalorder %s10, 1
      %p65 = por %p63, %p64
      %p66 = scmp.ne.s32.totalorder %s58, %s61
      %p67 = scmp.eq.s32.totalorder %s10, 0
      %p68 = por %p66, %p67
      %p69 = scmp.ne.s32.totalorder %s58, %s61
      %p70 = scmp.eq.s32.totalorder %s15, 1
      %p71 = por %p69, %p70
      %p72 = scmp.ne.s32.totalorder %s61, %s62
      %p73 = scmp.eq.s32.totalorder %s15, 0
      %p74 = por %p72, %p73
      %p75 = scmp.ne.s32.totalorder %s61, %s62
      %p76 = scmp.eq.s32.totalorder %s16, 1
      %p77 = por %p75, %p76
      %p79 = scmp.ne.s32.totalorder %s62, %s78
      %p80 = scmp.eq.s32.totalorder %s16, 0
      %p81 = por %p79, %p80
      %s82 = ssub.s32 %s18, %s25
      %p83 = scmp.eq.s32.totalorder %s82, 0
      %s85 = sadd.s32 %s84, 1
      %s86 = scalar_select %p83, %s84, %s85
      %p89 = pneg %p83
      %p90 = scmp.eq.s32.totalorder %s10, 1
      %p91 = por %p89, %p90
      %p92 = scmp.ne.s32.totalorder %s84, %s87
      %p93 = scmp.eq.s32.totalorder %s10, 0
      %p94 = por %p92, %p93
      %p95 = scmp.ne.s32.totalorder %s84, %s87
      %p96 = scmp.eq.s32.totalorder %s15, 1
      %p97 = por %p95, %p96
      %p98 = scmp.ne.s32.totalorder %s87, %s88
      %p99 = scmp.eq.s32.totalorder %s15, 0
      %p100 = por %p98, %p99
      %p101 = scmp.ne.s32.totalorder %s87, %s88
      %p102 = scmp.eq.s32.totalorder %s16, 1
      %p103 = por %p101, %p102
      %p105 = scmp.ne.s32.totalorder %s88, %s104
      %p106 = scmp.eq.s32.totalorder %s16, 0
      %p107 = por %p105, %p106
      %s108 = ssub.s32 %s17, %s29
      %s109 = ssub.s32 %s18, %s25
      %s110 = sor.u32 %s108, %s109
      %p111 = scmp.eq.s32.totalorder %s110, 0
      %s113 = sadd.s32 %s112, 1
      %s114 = scalar_select %p111, %s112, %s113
      %p117 = pneg %p111
      %p118 = scmp.eq.s32.totalorder %s10, 1
      %p119 = por %p117, %p118
      %p120 = scmp.ne.s32.totalorder %s112, %s115
      %p121 = scmp.eq.s32.totalorder %s10, 0
      %p122 = por %p120, %p121
      %p123 = scmp.ne.s32.totalorder %s112, %s115
      %p124 = scmp.eq.s32.totalorder %s15, 1
      %p125 = por %p123, %p124
      %p126 = scmp.ne.s32.totalorder %s115, %s116
      %p127 = scmp.eq.s32.totalorder %s15, 0
      %p128 = por %p126, %p127
      %p129 = scmp.ne.s32.totalorder %s115, %s116
      %p130 = scmp.eq.s32.totalorder %s16, 1
      %p131 = por %p129, %p130
      %p133 = scmp.ne.s32.totalorder %s116, %s132
      %p134 = scmp.eq.s32.totalorder %s16, 0
      %p135 = por %p133, %p134
      %s136 = ssub.s32 %s17, %s29
      %s137 = ssub.s32 %s18, %s25
      %s138 = sor.u32 %s136, %s137
      %p139 = scmp.eq.s32.totalorder %s138, 0
      %s141 = sadd.s32 %s140, 1
      %s142 = scalar_select %p139, %s140, %s141
      %p145 = pneg %p139
      %p146 = scmp.eq.s32.totalorder %s10, 1
      %p147 = por %p145, %p146
      %p148 = scmp.ne.s32.totalorder %s140, %s143
      %p149 = scmp.eq.s32.totalorder %s10, 0
      %p150 = por %p148, %p149
      %p151 = scmp.ne.s32.totalorder %s140, %s143
      %p152 = scmp.eq.s32.totalorder %s15, 1
      %p153 = por %p151, %p152
      %p154 = scmp.ne.s32.totalorder %s143, %s144
      %p155 = scmp.eq.s32.totalorder %s15, 0
      %p156 = por %p154, %p155
      %p157 = scmp.ne.s32.totalorder %s143, %s144
      %p158 = scmp.eq.s32.totalorder %s16, 1
      %p159 = por %p157, %p158
      %p161 = scmp.ne.s32.totalorder %s144, %s160
      %p162 = scmp.eq.s32.totalorder %s16, 0
      %p163 = por %p161, %p162
      %p164 = scmp.le.s32.totalorder 1, %s10
      %p165 = scmp.lt.s32.totalorder %s10, 3
      %p166 = pnand %p164, %p165
      %p167 = pneg %p166
      // Predicated region
      $region9: #{_lambda_.43} parent=5 // pred_check
        _
      $region10: #{_lambda_.43} parent=5 // pred_check_branch
        %169 = sbr.rel (%p166) target = $region12
      $region11: #{_lambda_.43} parent=5 // pred_region
        %s170 = ssub.s32 %s10, 1
        // Predicated region
        $region13: #{_lambda_.43} parent=11 // pred_check
          %p171 = pneg %p48
        $region14: #{_lambda_.43} parent=11 // pred_check_branch
          %173 = sbr.rel (%p171) target = $region16
        $region15: #{_lambda_.43} parent=11 // pred_region
          %s174 = smul.u32 16, %s19
          %p175 = scmp.lt.s32.totalorder %s174, 15
          %s176 = scalar_select %p175, %s174, 15
          %s177 = smul.addr %s176, 4
          %s178 = scalar_lea.vmem %s0, %s177
          %s179 = smul.u32 16, %s19
        $region16: #{_lambda_.43} parent=11 // pred_fallthru
          _
      $region12: #{_lambda_.43} parent=5 // pred_fallthru
        _
      %p180 = scmp.lt.s32.totalorder %s10, 2
      // Predicated region
      $region17: #{_lambda_.43} parent=5 // pred_check
        %p181 = pneg %p180
      $region18: #{_lambda_.43} parent=5 // pred_check_branch
        %183 = sbr.rel (%p181) target = $region20
      $region19: #{_lambda_.43} parent=5 // pred_region
        // Predicated region
        $region21: #{_lambda_.43} parent=19 // pred_check
          %p184 = pneg %p68
        $region22: #{_lambda_.43} parent=19 // pred_check_branch
          %186 = sbr.rel (%p184) target = $region24
        $region23: #{_lambda_.43} parent=19 // pred_region
          %s187 = sand.u32 %s58, 1
          %s188 = sand.u32 %s58, 1
          %s189 = smul.addr %s188, 64
          %s190 = scalar_lea.vmem [#allocation2], %s189
          %s191 = smul.addr %s18, 4
          %s192 = scalar_lea.vmem %s1, %s191
          // Predicated region
          $region25: #{_lambda_.43} parent=23 // pred_check
            _
          $region26: #{_lambda_.43} parent=23 // pred_check_branch
            %194 = sbr.rel (0) target = $region28
          $region27: #{_lambda_.43} parent=23 // pred_region
            // Predicated region
            $region29: #{_lambda_.43} parent=27 // pred_check
              _
            $region30: #{_lambda_.43} parent=27 // pred_check_branch
              %196 = sbr.rel target = $region32
            $region31: #{_lambda_.43} parent=27 // pred_region
              // Predicated region
              $region44: #{_lambda_.43} parent=31 // pred_check
                _
              $region45: #{_lambda_.43} parent=31 // pred_check_branch
                %242 = sbr.rel (0) target = $region47
              $region46: #{_lambda_.43} parent=31 // pred_region
                loop: start=0, step=1, limit=1
                $region48: #{_lambda_.43} parent=46 // loop_pre_header
                  _
                $region49: #{_lambda_.43} parent=46 // loop_header
                  %s244 = sphi 0, %s248
                  %p245 = scmp.ge.s32.totalorder %s244, 1
                  %s249 = sphi %s192, %s192
                  %s250 = sphi %s190, %s190
                $region50: #{_lambda_.43} parent=46 // loop_header_branch
                  %247 = sbr.rel (%p245) target = $region54
                $region51: #{_lambda_.43} parent=46 // loop_body
                  _
                $region52: #{_lambda_.43} parent=46 // loop_footer
                  %s248 = sadd.s32 1, %s244
                $region53: #{_lambda_.43} parent=46 // loop_footer_branch
                  %243 = sbr.rel target = $region49
                $region54: #{_lambda_.43} parent=46 // loop_exit
                  _
                %s252 = ssub.s32 16, 1
                loop: start=0, step=1, limit=1
                $region55: #{_lambda_.43} parent=46 // loop_pre_header
                  _
                $region56: #{_lambda_.43} parent=46 // loop_header
                  %s254 = sphi 0, %s258
                  %p255 = scmp.ge.s32.totalorder %s254, 1
                  %s259 = sphi %s192, %s192
                  %s260 = sphi %s190, %s190
                $region57: #{_lambda_.43} parent=46 // loop_header_branch
                  %257 = sbr.rel (%p255) target = $region61
                $region58: #{_lambda_.43} parent=46 // loop_body
                  %v261 = vld [vmem:[%s259] sm:%s252]
                  %262 = vst [vmem:[%s260] sm:%s252] %v261
                  %v263 = vld [vmem:[%s259 + $0x8] sm:%s252]
                  %264 = vst [vmem:[%s260 + $0x4] sm:%s252] %v263
                  %v265 = vld [vmem:[%s259 + $0x10] sm:%s252]
                  %266 = vst [vmem:[%s260 + $0x8] sm:%s252] %v265
                  %v267 = vld [vmem:[%s259 + $0x18] sm:%s252]
                  %268 = vst [vmem:[%s260 + $0xc] sm:%s252] %v267
                  %v269 = vld [vmem:[%s259 + $0x20] sm:%s252]
                  %270 = vst [vmem:[%s260 + $0x10] sm:%s252] %v269
                  %v271 = vld [vmem:[%s259 + $0x28] sm:%s252]
                  %272 = vst [vmem:[%s260 + $0x14] sm:%s252] %v271
                  %v273 = vld [vmem:[%s259 + $0x30] sm:%s252]
                  %274 = vst [vmem:[%s260 + $0x18] sm:%s252] %v273
                  %v275 = vld [vmem:[%s259 + $0x38] sm:%s252]
                  %276 = vst [vmem:[%s260 + $0x1c] sm:%s252] %v275
                  %v277 = vld [vmem:[%s259 + $0x40] sm:%s252]
                  %278 = vst [vmem:[%s260 + $0x20] sm:%s252] %v277
                  %v279 = vld [vmem:[%s259 + $0x48] sm:%s252]
                  %280 = vst [vmem:[%s260 + $0x24] sm:%s252] %v279
                  %v281 = vld [vmem:[%s259 + $0x50] sm:%s252]
                  %282 = vst [vmem:[%s260 + $0x28] sm:%s252] %v281
                  %v283 = vld [vmem:[%s259 + $0x58] sm:%s252]
                  %284 = vst [vmem:[%s260 + $0x2c] sm:%s252] %v283
                  %v285 = vld [vmem:[%s259 + $0x60] sm:%s252]
                  %286 = vst [vmem:[%s260 + $0x30] sm:%s252] %v285
                  %v287 = vld [vmem:[%s259 + $0x68] sm:%s252]
                  %288 = vst [vmem:[%s260 + $0x34] sm:%s252] %v287
                  %v289 = vld [vmem:[%s259 + $0x70] sm:%s252]
                  %290 = vst [vmem:[%s260 + $0x38] sm:%s252] %v289
                  %v291 = vld [vmem:[%s259 + $0x78] sm:%s252]
                  %292 = vst [vmem:[%s260 + $0x3c] sm:%s252] %v291
                $region59: #{_lambda_.43} parent=46 // loop_footer
                  %s258 = sadd.s32 1, %s254
                $region60: #{_lambda_.43} parent=46 // loop_footer_branch
                  %253 = sbr.rel target = $region56
                $region61: #{_lambda_.43} parent=46 // loop_exit
                  _
              $region47: #{_lambda_.43} parent=31 // pred_fallthru
                _
            $region32: #{_lambda_.43} parent=27 // pred_fallthru
              _
            // Predicated region
            $region33: #{_lambda_.43} parent=27 // pred_check
              _
            $region34: #{_lambda_.43} parent=27 // pred_check_branch
              %198 = sbr.rel (0) target = $region36
            $region35: #{_lambda_.43} parent=27 // pred_region
              %s200 = ssub.s32 16, 1
              loop: start=0, step=1, limit=1
              $region37: #{_lambda_.43} parent=35 // loop_pre_header
                _
              $region38: #{_lambda_.43} parent=35 // loop_header
                %s202 = sphi 0, %s206
                %p203 = scmp.ge.s32.totalorder %s202, 1
                %s207 = sphi %s192, %s192
                %s208 = sphi %s190, %s190
              $region39: #{_lambda_.43} parent=35 // loop_header_branch
                %205 = sbr.rel (%p203) target = $region43
              $region40: #{_lambda_.43} parent=35 // loop_body
                %v209 = vld [vmem:[%s207] sm:%s200]
                %210 = vst [vmem:[%s208] sm:%s200] %v209
                %v211 = vld [vmem:[%s207 + $0x8] sm:%s200]
                %212 = vst [vmem:[%s208 + $0x4] sm:%s200] %v211
                %v213 = vld [vmem:[%s207 + $0x10] sm:%s200]
                %214 = vst [vmem:[%s208 + $0x8] sm:%s200] %v213
                %v215 = vld [vmem:[%s207 + $0x18] sm:%s200]
                %216 = vst [vmem:[%s208 + $0xc] sm:%s200] %v215
                %v217 = vld [vmem:[%s207 + $0x20] sm:%s200]
                %218 = vst [vmem:[%s208 + $0x10] sm:%s200] %v217
                %v219 = vld [vmem:[%s207 + $0x28] sm:%s200]
                %220 = vst [vmem:[%s208 + $0x14] sm:%s200] %v219
                %v221 = vld [vmem:[%s207 + $0x30] sm:%s200]
                %222 = vst [vmem:[%s208 + $0x18] sm:%s200] %v221
                %v223 = vld [vmem:[%s207 + $0x38] sm:%s200]
                %224 = vst [vmem:[%s208 + $0x1c] sm:%s200] %v223
                %v225 = vld [vmem:[%s207 + $0x40] sm:%s200]
                %226 = vst [vmem:[%s208 + $0x20] sm:%s200] %v225
                %v227 = vld [vmem:[%s207 + $0x48] sm:%s200]
                %228 = vst [vmem:[%s208 + $0x24] sm:%s200] %v227
                %v229 = vld [vmem:[%s207 + $0x50] sm:%s200]
                %230 = vst [vmem:[%s208 + $0x28] sm:%s200] %v229
                %v231 = vld [vmem:[%s207 + $0x58] sm:%s200]
                %232 = vst [vmem:[%s208 + $0x2c] sm:%s200] %v231
                %v233 = vld [vmem:[%s207 + $0x60] sm:%s200]
                %234 = vst [vmem:[%s208 + $0x30] sm:%s200] %v233
                %v235 = vld [vmem:[%s207 + $0x68] sm:%s200]
                %236 = vst [vmem:[%s208 + $0x34] sm:%s200] %v235
                %v237 = vld [vmem:[%s207 + $0x70] sm:%s200]
                %238 = vst [vmem:[%s208 + $0x38] sm:%s200] %v237
                %v239 = vld [vmem:[%s207 + $0x78] sm:%s200]
                %240 = vst [vmem:[%s208 + $0x3c] sm:%s200] %v239
              $region41: #{_lambda_.43} parent=35 // loop_footer
                %s206 = sadd.s32 1, %s202
              $region42: #{_lambda_.43} parent=35 // loop_footer_branch
                %201 = sbr.rel target = $region38
              $region43: #{_lambda_.43} parent=35 // loop_exit
                _
            $region36: #{_lambda_.43} parent=27 // pred_fallthru
              _
          $region28: #{_lambda_.43} parent=23 // pred_fallthru
            _
          %293 = vnop
        $region24: #{_lambda_.43} parent=19 // pred_fallthru
          _
        // Predicated region
        $region62: #{_lambda_.43} parent=19 // pred_check
          %p294 = pneg %p94
        $region63: #{_lambda_.43} parent=19 // pred_check_branch
          %296 = sbr.rel (%p294) target = $region65
        $region64: #{_lambda_.43} parent=19 // pred_region
          %p297 = scmp.lt.s32.totalorder %s18, 1
          %s298 = scalar_select %p297, %s18, 1
          %s299 = scalar_lea.vmem %s2, %s298
        $region65: #{_lambda_.43} parent=19 // pred_fallthru
          _
        // Predicated region
        $region66: #{_lambda_.43} parent=19 // pred_check
          %p300 = pneg %p122
        $region67: #{_lambda_.43} parent=19 // pred_check_branch
          %302 = sbr.rel (%p300) target = $region69
        $region68: #{_lambda_.43} parent=19 // pred_region
          %s303 = sand.u32 %s112, 1
          %s304 = sand.u32 %s112, 1
          %s305 = smul.addr %s304, 64
          %s306 = scalar_lea.vmem [#allocation3], %s305
          %s307 = smul.u32 16, %s17
          %s308 = smul.addr %s307, 2
          %s309 = sadd.s32 %s18, %s308
          %s310 = smul.addr %s309, 4
          %s311 = scalar_lea.vmem %s3, %s310
          // Predicated region
          $region70: #{_lambda_.43} parent=68 // pred_check
            _
          $region71: #{_lambda_.43} parent=68 // pred_check_branch
            %313 = sbr.rel (0) target = $region73
          $region72: #{_lambda_.43} parent=68 // pred_region
            // Predicated region
            $region74: #{_lambda_.43} parent=72 // pred_check
              _
            $region75: #{_lambda_.43} parent=72 // pred_check_branch
              %315 = sbr.rel target = $region77
            $region76: #{_lambda_.43} parent=72 // pred_region
              // Predicated region
              $region89: #{_lambda_.43} parent=76 // pred_check
                _
              $region90: #{_lambda_.43} parent=76 // pred_check_branch
                %361 = sbr.rel (0) target = $region92
              $region91: #{_lambda_.43} parent=76 // pred_region
                loop: start=0, step=1, limit=1
                $region93: #{_lambda_.43} parent=91 // loop_pre_header
                  _
                $region94: #{_lambda_.43} parent=91 // loop_header
                  %s363 = sphi 0, %s367
                  %p364 = scmp.ge.s32.totalorder %s363, 1
                  %s368 = sphi %s311, %s311
                  %s369 = sphi %s306, %s306
                $region95: #{_lambda_.43} parent=91 // loop_header_branch
                  %366 = sbr.rel (%p364) target = $region99
                $region96: #{_lambda_.43} parent=91 // loop_body
                  _
                $region97: #{_lambda_.43} parent=91 // loop_footer
                  %s367 = sadd.s32 1, %s363
                $region98: #{_lambda_.43} parent=91 // loop_footer_branch
                  %362 = sbr.rel target = $region94
                $region99: #{_lambda_.43} parent=91 // loop_exit
                  _
                %s371 = ssub.s32 16, 1
                loop: start=0, step=1, limit=1
                $region100: #{_lambda_.43} parent=91 // loop_pre_header
                  _
                $region101: #{_lambda_.43} parent=91 // loop_header
                  %s373 = sphi 0, %s377
                  %p374 = scmp.ge.s32.totalorder %s373, 1
                  %s378 = sphi %s311, %s311
                  %s379 = sphi %s306, %s306
                $region102: #{_lambda_.43} parent=91 // loop_header_branch
                  %376 = sbr.rel (%p374) target = $region106
                $region103: #{_lambda_.43} parent=91 // loop_body
                  %v380 = vld [vmem:[%s378] sm:%s371]
                  %381 = vst [vmem:[%s379] sm:%s371] %v380
                  %v382 = vld [vmem:[%s378 + $0x8] sm:%s371]
                  %383 = vst [vmem:[%s379 + $0x4] sm:%s371] %v382
                  %v384 = vld [vmem:[%s378 + $0x10] sm:%s371]
                  %385 = vst [vmem:[%s379 + $0x8] sm:%s371] %v384
                  %v386 = vld [vmem:[%s378 + $0x18] sm:%s371]
                  %387 = vst [vmem:[%s379 + $0xc] sm:%s371] %v386
                  %v388 = vld [vmem:[%s378 + $0x20] sm:%s371]
                  %389 = vst [vmem:[%s379 + $0x10] sm:%s371] %v388
                  %v390 = vld [vmem:[%s378 + $0x28] sm:%s371]
                  %391 = vst [vmem:[%s379 + $0x14] sm:%s371] %v390
                  %v392 = vld [vmem:[%s378 + $0x30] sm:%s371]
                  %393 = vst [vmem:[%s379 + $0x18] sm:%s371] %v392
                  %v394 = vld [vmem:[%s378 + $0x38] sm:%s371]
                  %395 = vst [vmem:[%s379 + $0x1c] sm:%s371] %v394
                  %v396 = vld [vmem:[%s378 + $0x40] sm:%s371]
                  %397 = vst [vmem:[%s379 + $0x20] sm:%s371] %v396
                  %v398 = vld [vmem:[%s378 + $0x48] sm:%s371]
                  %399 = vst [vmem:[%s379 + $0x24] sm:%s371] %v398
                  %v400 = vld [vmem:[%s378 + $0x50] sm:%s371]
                  %401 = vst [vmem:[%s379 + $0x28] sm:%s371] %v400
                  %v402 = vld [vmem:[%s378 + $0x58] sm:%s371]
                  %403 = vst [vmem:[%s379 + $0x2c] sm:%s371] %v402
                  %v404 = vld [vmem:[%s378 + $0x60] sm:%s371]
                  %405 = vst [vmem:[%s379 + $0x30] sm:%s371] %v404
                  %v406 = vld [vmem:[%s378 + $0x68] sm:%s371]
                  %407 = vst [vmem:[%s379 + $0x34] sm:%s371] %v406
                  %v408 = vld [vmem:[%s378 + $0x70] sm:%s371]
                  %409 = vst [vmem:[%s379 + $0x38] sm:%s371] %v408
                  %v410 = vld [vmem:[%s378 + $0x78] sm:%s371]
                  %411 = vst [vmem:[%s379 + $0x3c] sm:%s371] %v410
                $region104: #{_lambda_.43} parent=91 // loop_footer
                  %s377 = sadd.s32 1, %s373
                $region105: #{_lambda_.43} parent=91 // loop_footer_branch
                  %372 = sbr.rel target = $region101
                $region106: #{_lambda_.43} parent=91 // loop_exit
                  _
              $region92: #{_lambda_.43} parent=76 // pred_fallthru
                _
            $region77: #{_lambda_.43} parent=72 // pred_fallthru
              _
            // Predicated region
            $region78: #{_lambda_.43} parent=72 // pred_check
              _
            $region79: #{_lambda_.43} parent=72 // pred_check_branch
              %317 = sbr.rel (0) target = $region81
            $region80: #{_lambda_.43} parent=72 // pred_region
              %s319 = ssub.s32 16, 1
              loop: start=0, step=1, limit=1
              $region82: #{_lambda_.43} parent=80 // loop_pre_header
                _
              $region83: #{_lambda_.43} parent=80 // loop_header
                %s321 = sphi 0, %s325
                %p322 = scmp.ge.s32.totalorder %s321, 1
                %s326 = sphi %s311, %s311
                %s327 = sphi %s306, %s306
              $region84: #{_lambda_.43} parent=80 // loop_header_branch
                %324 = sbr.rel (%p322) target = $region88
              $region85: #{_lambda_.43} parent=80 // loop_body
                %v328 = vld [vmem:[%s326] sm:%s319]
                %329 = vst [vmem:[%s327] sm:%s319] %v328
                %v330 = vld [vmem:[%s326 + $0x8] sm:%s319]
                %331 = vst [vmem:[%s327 + $0x4] sm:%s319] %v330
                %v332 = vld [vmem:[%s326 + $0x10] sm:%s319]
                %333 = vst [vmem:[%s327 + $0x8] sm:%s319] %v332
                %v334 = vld [vmem:[%s326 + $0x18] sm:%s319]
                %335 = vst [vmem:[%s327 + $0xc] sm:%s319] %v334
                %v336 = vld [vmem:[%s326 + $0x20] sm:%s319]
                %337 = vst [vmem:[%s327 + $0x10] sm:%s319] %v336
                %v338 = vld [vmem:[%s326 + $0x28] sm:%s319]
                %339 = vst [vmem:[%s327 + $0x14] sm:%s319] %v338
                %v340 = vld [vmem:[%s326 + $0x30] sm:%s319]
                %341 = vst [vmem:[%s327 + $0x18] sm:%s319] %v340
                %v342 = vld [vmem:[%s326 + $0x38] sm:%s319]
                %343 = vst [vmem:[%s327 + $0x1c] sm:%s319] %v342
                %v344 = vld [vmem:[%s326 + $0x40] sm:%s319]
                %345 = vst [vmem:[%s327 + $0x20] sm:%s319] %v344
                %v346 = vld [vmem:[%s326 + $0x48] sm:%s319]
                %347 = vst [vmem:[%s327 + $0x24] sm:%s319] %v346
                %v348 = vld [vmem:[%s326 + $0x50] sm:%s319]
                %349 = vst [vmem:[%s327 + $0x28] sm:%s319] %v348
                %v350 = vld [vmem:[%s326 + $0x58] sm:%s319]
                %351 = vst [vmem:[%s327 + $0x2c] sm:%s319] %v350
                %v352 = vld [vmem:[%s326 + $0x60] sm:%s319]
                %353 = vst [vmem:[%s327 + $0x30] sm:%s319] %v352
                %v354 = vld [vmem:[%s326 + $0x68] sm:%s319]
                %355 = vst [vmem:[%s327 + $0x34] sm:%s319] %v354
                %v356 = vld [vmem:[%s326 + $0x70] sm:%s319]
                %357 = vst [vmem:[%s327 + $0x38] sm:%s319] %v356
                %v358 = vld [vmem:[%s326 + $0x78] sm:%s319]
                %359 = vst [vmem:[%s327 + $0x3c] sm:%s319] %v358
              $region86: #{_lambda_.43} parent=80 // loop_footer
                %s325 = sadd.s32 1, %s321
              $region87: #{_lambda_.43} parent=80 // loop_footer_branch
                %320 = sbr.rel target = $region83
              $region88: #{_lambda_.43} parent=80 // loop_exit
                _
            $region81: #{_lambda_.43} parent=72 // pred_fallthru
              _
          $region73: #{_lambda_.43} parent=68 // pred_fallthru
            _
          %412 = vnop
        $region69: #{_lambda_.43} parent=19 // pred_fallthru
          _
      $region20: #{_lambda_.43} parent=5 // pred_fallthru
        _
      %p413 = scmp.le.s32.totalorder 1, %s10
      %p414 = scmp.lt.s32.totalorder %s10, 3
      %p415 = pnand %p413, %p414
      %p416 = pneg %p415
      // Predicated region
      $region107: #{_lambda_.43} parent=5 // pred_check
        _
      $region108: #{_lambda_.43} parent=5 // pred_check_branch
        %418 = sbr.rel (%p415) target = $region110
      $region109: #{_lambda_.43} parent=5 // pred_region
        %s419 = ssub.s32 %s10, 1
        %s420 = sand.u32 %s61, 1
        %s421 = sand.u32 %s61, 1
        %s422 = smul.addr %s421, 64
        %s423 = scalar_lea.vmem [#allocation2], %s422
        // Predicated region
        $region111: #{_lambda_.43} parent=109 // pred_check
          %p424 = pneg %p74
        $region112: #{_lambda_.43} parent=109 // pred_check_branch
          %426 = sbr.rel (%p424) target = $region114
        $region113: #{_lambda_.43} parent=109 // pred_region
          _
        $region114: #{_lambda_.43} parent=109 // pred_fallthru
          _
        %s427 = sand.u32 %s115, 1
        %s428 = sand.u32 %s115, 1
        %s429 = smul.addr %s428, 64
        %s430 = scalar_lea.vmem [#allocation3], %s429
        // Predicated region
        $region115: #{_lambda_.43} parent=109 // pred_check
          %p431 = pneg %p128
        $region116: #{_lambda_.43} parent=109 // pred_check_branch
          %433 = sbr.rel (%p431) target = $region118
        $region117: #{_lambda_.43} parent=109 // pred_region
          _
        $region118: #{_lambda_.43} parent=109 // pred_fallthru
          _
        %s434 = smul.u32 16, %s19
        %p435 = scmp.lt.s32.totalorder %s434, 15
        %s436 = scalar_select %p435, %s434, 15
        %s437 = smul.addr %s436, 4
        %s438 = scalar_lea.vmem %s0, %s437
        %p439 = pneg %p48
        %p440 = pneg %p45
        %s441 = sand.u32 %s61, 1
        %s442 = sand.u32 %s61, 1
        %s443 = smul.addr %s442, 64
        %s444 = scalar_lea.vmem [#allocation2], %s443
        %p445 = pneg %p74
        %p446 = pneg %p71
        %p447 = scmp.lt.s32.totalorder %s20, 1
        %s448 = scalar_select %p447, %s20, 1
        %s449 = scalar_lea.vmem %s2, %s448
        %p450 = pneg %p100
        %p451 = pneg %p97
        %s452 = sand.u32 %s115, 1
        %s453 = sand.u32 %s115, 1
        %s454 = smul.addr %s453, 64
        %s455 = scalar_lea.vmem [#allocation3], %s454
        %p456 = pneg %p128
        %p457 = pneg %p125
        %p458 = pneg %p156
        %p459 = pneg %p153
        %s460 = sand.u32 %s143, 1
        %s461 = sand.u32 %s143, 1
        %s462 = smul.addr %s461, 64
        %s463 = scalar_lea.vmem [#allocation4], %s462
        %s464 = smul.u32 16, %s19
        %p465 = scmp.lt.s32.totalorder %s464, 15
        %s466 = scalar_select %p465, %s464, 15
        %s467 = smul.addr %s466, 4
        %s468 = scalar_lea.vmem %s0, %s467
        %s469 = smul.u32 16, %s19
        %p470 = scmp.lt.s32.totalorder %s20, 1
        %s471 = scalar_select %p470, %s20, 1
        %s472 = scalar_lea.vmem %s2, %s471
        %s473 = smul.u32 16, %s19
        %s474 = smul.u32 16, %s19
        %v475 = vld [vmem:[%s468] sm:$0xf]
        %v476 = vld [vmem:[%s468 + $0x4] sm:$0xf]
        %v477 = vld [vmem:[%s468 + $0x8] sm:$0xf]
        %v478 = vld [vmem:[%s468 + $0xc] sm:$0xf]
        %v479 = vld [vmem:[%s468 + $0x10] sm:$0xf]
        %v480 = vld [vmem:[%s468 + $0x14] sm:$0xf]
        %v481 = vld [vmem:[%s468 + $0x18] sm:$0xf]
        %v482 = vld [vmem:[%s468 + $0x1c] sm:$0xf]
        %v483 = vld [vmem:[%s468 + $0x20] sm:$0xf]
        %v484 = vld [vmem:[%s468 + $0x24] sm:$0xf]
        %v485 = vld [vmem:[%s468 + $0x28] sm:$0xf]
        %v486 = vld [vmem:[%s468 + $0x2c] sm:$0xf]
        %v487 = vld [vmem:[%s468 + $0x30] sm:$0xf]
        %v488 = vld [vmem:[%s468 + $0x34] sm:$0xf]
        %v489 = vld [vmem:[%s468 + $0x38] sm:$0xf]
        %v490 = vld [vmem:[%s468 + $0x3c] sm:$0xf]
        %v491 = vld [vmem:[%s423] sm:$0xf]
        %v492 = vld [vmem:[%s423 + $0x4] sm:$0xf]
        %v493 = vld [vmem:[%s423 + $0x8] sm:$0xf]
        %v494 = vld [vmem:[%s423 + $0xc] sm:$0xf]
        %v495 = vld [vmem:[%s423 + $0x10] sm:$0xf]
        %v496 = vld [vmem:[%s423 + $0x14] sm:$0xf]
        %v497 = vld [vmem:[%s423 + $0x18] sm:$0xf]
        %v498 = vld [vmem:[%s423 + $0x1c] sm:$0xf]
        %v499 = vld [vmem:[%s423 + $0x20] sm:$0xf]
        %v500 = vld [vmem:[%s423 + $0x24] sm:$0xf]
        %v501 = vld [vmem:[%s423 + $0x28] sm:$0xf]
        %v502 = vld [vmem:[%s423 + $0x2c] sm:$0xf]
        %v503 = vld [vmem:[%s423 + $0x30] sm:$0xf]
        %v504 = vld [vmem:[%s423 + $0x34] sm:$0xf]
        %v505 = vld [vmem:[%s423 + $0x38] sm:$0xf]
        %v506 = vld [vmem:[%s423 + $0x3c] sm:$0xf]
        %v507 = vld [vmem:[%s472] sm:$0x1]
        %v509 = vperm.slane %v507, 0
        %v527 = vunpack.c.l.b16 %v475
        %v528 = vunpack.c.l.b16 %v476
        %v529 = vunpack.c.l.b16 %v477
        %v530 = vunpack.c.l.b16 %v478
        %v531 = vunpack.c.l.b16 %v479
        %v532 = vunpack.c.l.b16 %v480
        %v533 = vunpack.c.l.b16 %v481
        %v534 = vunpack.c.l.b16 %v482
        %v535 = vunpack.c.l.b16 %v483
        %v536 = vunpack.c.l.b16 %v484
        %v537 = vunpack.c.l.b16 %v485
        %v538 = vunpack.c.l.b16 %v486
        %v539 = vunpack.c.l.b16 %v487
        %v540 = vunpack.c.l.b16 %v488
        %v541 = vunpack.c.l.b16 %v489
        %v542 = vunpack.c.l.b16 %v490
        %v543 = vpack.c.b16 %v528, %v527
        %v544 = vpack.c.b16 %v530, %v529
        %v545 = vpack.c.b16 %v532, %v531
        %v546 = vpack.c.b16 %v534, %v533
        %v547 = vpack.c.b16 %v536, %v535
        %v548 = vpack.c.b16 %v538, %v537
        %v549 = vpack.c.b16 %v540, %v539
        %v550 = vpack.c.b16 %v542, %v541
        %v575 = vunpack.c.l.b16 %v491
        %v576 = vunpack.c.l.b16 %v492
        %v577 = vunpack.c.l.b16 %v493
        %v578 = vunpack.c.l.b16 %v494
        %v579 = vunpack.c.l.b16 %v495
        %v580 = vunpack.c.l.b16 %v496
        %v581 = vunpack.c.l.b16 %v497
        %v582 = vunpack.c.l.b16 %v498
        %v583 = vunpack.c.l.b16 %v499
        %v584 = vunpack.c.l.b16 %v500
        %v585 = vunpack.c.l.b16 %v501
        %v586 = vunpack.c.l.b16 %v502
        %v587 = vunpack.c.l.b16 %v503
        %v588 = vunpack.c.l.b16 %v504
        %v589 = vunpack.c.l.b16 %v505
        %v590 = vunpack.c.l.b16 %v506
        %v591 = vpack.c.b16 %v576, %v575
        %v592 = vpack.c.b16 %v578, %v577
        %v593 = vpack.c.b16 %v580, %v579
        %v594 = vpack.c.b16 %v582, %v581
        %v595 = vpack.c.b16 %v584, %v583
        %v596 = vpack.c.b16 %v586, %v585
        %v597 = vpack.c.b16 %v588, %v587
        %v598 = vpack.c.b16 %v590, %v589
        %607 = vmatpush.bf16.msra.mxu0 %v598
        %608 = vmatpush.bf16.msra.mxu0 %v597
        %609 = vmatpush.bf16.msra.mxu0 %v596
        %610 = vmatpush.bf16.msra.mxu0 %v595
        %611 = vmatpush.bf16.msra.mxu0 %v594
        %612 = vmatpush.bf16.msra.mxu0 %v593
        %613 = vmatpush.bf16.msra.mxu0 %v592
        %614 = vmatpush.bf16.msra.mxu0 %v591
        %615 = vmatmul.bf16.gmra.mxu0 %v543
        %v616 = vpop.f32.mrf.mxu0
        %v617 = vadd.f32 %v509, %v616
        %v618 = vpop.f32.mrf.mxu0
        %v619 = vadd.f32 %v509, %v618
        %620 = vmatmul.bf16.gmra.mxu0 %v544
        %v621 = vpop.f32.mrf.mxu0
        %v622 = vadd.f32 %v509, %v621
        %v623 = vpop.f32.mrf.mxu0
        %v624 = vadd.f32 %v509, %v623
        %625 = vmatmul.bf16.gmra.mxu0 %v545
        %v626 = vpop.f32.mrf.mxu0
        %v627 = vadd.f32 %v509, %v626
        %v628 = vpop.f32.mrf.mxu0
        %v629 = vadd.f32 %v509, %v628
        %630 = vmatmul.bf16.gmra.mxu0 %v546
        %v631 = vpop.f32.mrf.mxu0
        %v632 = vadd.f32 %v509, %v631
        %v633 = vpop.f32.mrf.mxu0
        %v634 = vadd.f32 %v509, %v633
        %635 = vmatmul.bf16.gmra.mxu0 %v547
        %v636 = vpop.f32.mrf.mxu0
        %v637 = vadd.f32 %v509, %v636
        %v638 = vpop.f32.mrf.mxu0
        %v639 = vadd.f32 %v509, %v638
        %640 = vmatmul.bf16.gmra.mxu0 %v548
        %v641 = vpop.f32.mrf.mxu0
        %v642 = vadd.f32 %v509, %v641
        %v643 = vpop.f32.mrf.mxu0
        %v644 = vadd.f32 %v509, %v643
        %645 = vmatmul.bf16.gmra.mxu0 %v549
        %v646 = vpop.f32.mrf.mxu0
        %v647 = vadd.f32 %v509, %v646
        %v648 = vpop.f32.mrf.mxu0
        %v649 = vadd.f32 %v509, %v648
        %650 = vmatmul.bf16.gmra.mxu0 %v550
        %v651 = vpop.f32.mrf.mxu0
        %v652 = vadd.f32 %v509, %v651
        %v653 = vpop.f32.mrf.mxu0
        %v654 = vadd.f32 %v509, %v653
        %655 = vdwg.mxu0
        %v656 = vld [vmem:[%s430] sm:$0xf]
        %v657 = vld [vmem:[%s430 + $0x4] sm:$0xf]
        %v658 = vld [vmem:[%s430 + $0x8] sm:$0xf]
        %v659 = vld [vmem:[%s430 + $0xc] sm:$0xf]
        %v660 = vld [vmem:[%s430 + $0x10] sm:$0xf]
        %v661 = vld [vmem:[%s430 + $0x14] sm:$0xf]
        %v662 = vld [vmem:[%s430 + $0x18] sm:$0xf]
        %v663 = vld [vmem:[%s430 + $0x1c] sm:$0xf]
        %v664 = vld [vmem:[%s430 + $0x20] sm:$0xf]
        %v665 = vld [vmem:[%s430 + $0x24] sm:$0xf]
        %v666 = vld [vmem:[%s430 + $0x28] sm:$0xf]
        %v667 = vld [vmem:[%s430 + $0x2c] sm:$0xf]
        %v668 = vld [vmem:[%s430 + $0x30] sm:$0xf]
        %v669 = vld [vmem:[%s430 + $0x34] sm:$0xf]
        %v670 = vld [vmem:[%s430 + $0x38] sm:$0xf]
        %v671 = vld [vmem:[%s430 + $0x3c] sm:$0xf]
        %v672 = vunpack.c.l.bf16 %v656
        %v673 = vunpack.c.l.bf16 %v657
        %v674 = vunpack.c.l.bf16 %v658
        %v675 = vunpack.c.l.bf16 %v659
        %v676 = vunpack.c.l.bf16 %v660
        %v677 = vunpack.c.l.bf16 %v661
        %v678 = vunpack.c.l.bf16 %v662
        %v679 = vunpack.c.l.bf16 %v663
        %v680 = vunpack.c.l.bf16 %v664
        %v681 = vunpack.c.l.bf16 %v665
        %v682 = vunpack.c.l.bf16 %v666
        %v683 = vunpack.c.l.bf16 %v667
        %v684 = vunpack.c.l.bf16 %v668
        %v685 = vunpack.c.l.bf16 %v669
        %v686 = vunpack.c.l.bf16 %v670
        %v687 = vunpack.c.l.bf16 %v671
        %v688 = vadd.f32 %v617, %v672
        %v689 = vadd.f32 %v619, %v673
        %v690 = vadd.f32 %v622, %v674
        %v691 = vadd.f32 %v624, %v675
        %v692 = vadd.f32 %v627, %v676
        %v693 = vadd.f32 %v629, %v677
        %v694 = vadd.f32 %v632, %v678
        %v695 = vadd.f32 %v634, %v679
        %v696 = vadd.f32 %v637, %v680
        %v697 = vadd.f32 %v639, %v681
        %v698 = vadd.f32 %v642, %v682
        %v699 = vadd.f32 %v644, %v683
        %v700 = vadd.f32 %v647, %v684
        %v701 = vadd.f32 %v649, %v685
        %v702 = vadd.f32 %v652, %v686
        %v703 = vadd.f32 %v654, %v687
        %v704 = vmax.f32 %v688, 0.0
        %v705 = vmax.f32 %v689, 0.0
        %v706 = vmax.f32 %v690, 0.0
        %v707 = vmax.f32 %v691, 0.0
        %v708 = vmax.f32 %v692, 0.0
        %v709 = vmax.f32 %v693, 0.0
        %v710 = vmax.f32 %v694, 0.0
        %v711 = vmax.f32 %v695, 0.0
        %v712 = vmax.f32 %v696, 0.0
        %v713 = vmax.f32 %v697, 0.0
        %v714 = vmax.f32 %v698, 0.0
        %v715 = vmax.f32 %v699, 0.0
        %v716 = vmax.f32 %v700, 0.0
        %v717 = vmax.f32 %v701, 0.0
        %v718 = vmax.f32 %v702, 0.0
        %v719 = vmax.f32 %v703, 0.0
        %v720 = vpack.c.bf16 %v704, %v704
        %v721 = vpack.c.bf16 %v705, %v705
        %v722 = vpack.c.bf16 %v706, %v706
        %v723 = vpack.c.bf16 %v707, %v707
        %v724 = vpack.c.bf16 %v708, %v708
        %v725 = vpack.c.bf16 %v709, %v709
        %v726 = vpack.c.bf16 %v710, %v710
        %v727 = vpack.c.bf16 %v711, %v711
        %v728 = vpack.c.bf16 %v712, %v712
        %v729 = vpack.c.bf16 %v713, %v713
        %v730 = vpack.c.bf16 %v714, %v714
        %v731 = vpack.c.bf16 %v715, %v715
        %v732 = vpack.c.bf16 %v716, %v716
        %v733 = vpack.c.bf16 %v717, %v717
        %v734 = vpack.c.bf16 %v718, %v718
        %v735 = vpack.c.bf16 %v719, %v719
        %736 = vst [vmem:[%s463] sm:$0xf] %v720
        %737 = vst [vmem:[%s463 + $0x4] sm:$0xf] %v721
        %738 = vst [vmem:[%s463 + $0x8] sm:$0xf] %v722
        %739 = vst [vmem:[%s463 + $0xc] sm:$0xf] %v723
        %740 = vst [vmem:[%s463 + $0x10] sm:$0xf] %v724
        %741 = vst [vmem:[%s463 + $0x14] sm:$0xf] %v725
        %742 = vst [vmem:[%s463 + $0x18] sm:$0xf] %v726
        %743 = vst [vmem:[%s463 + $0x1c] sm:$0xf] %v727
        %744 = vst [vmem:[%s463 + $0x20] sm:$0xf] %v728
        %745 = vst [vmem:[%s463 + $0x24] sm:$0xf] %v729
        %746 = vst [vmem:[%s463 + $0x28] sm:$0xf] %v730
        %747 = vst [vmem:[%s463 + $0x2c] sm:$0xf] %v731
        %748 = vst [vmem:[%s463 + $0x30] sm:$0xf] %v732
        %749 = vst [vmem:[%s463 + $0x34] sm:$0xf] %v733
        %750 = vst [vmem:[%s463 + $0x38] sm:$0xf] %v734
        %751 = vst [vmem:[%s463 + $0x3c] sm:$0xf] %v735
        %s752 = sand.u32 %s143, 1
        %s753 = sand.u32 %s143, 1
        %s754 = smul.addr %s753, 64
        %s755 = scalar_lea.vmem [#allocation4], %s754
        // Predicated region
        $region119: #{_lambda_.43} parent=109 // pred_check
          %p756 = pneg %p153
        $region120: #{_lambda_.43} parent=109 // pred_check_branch
          %758 = sbr.rel (%p756) target = $region122
        $region121: #{_lambda_.43} parent=109 // pred_region
          %s759 = smul.u32 16, %s19
          %s760 = smul.addr %s759, 2
          %s761 = sadd.s32 %s20, %s760
          %s762 = smul.addr %s761, 4
          %s763 = scalar_lea.vmem %s4, %s762
          // Predicated region
          $region123: #{_lambda_.43} parent=121 // pred_check
            _
          $region124: #{_lambda_.43} parent=121 // pred_check_branch
            %765 = sbr.rel (0) target = $region126
          $region125: #{_lambda_.43} parent=121 // pred_region
            // Predicated region
            $region127: #{_lambda_.43} parent=125 // pred_check
              _
            $region128: #{_lambda_.43} parent=125 // pred_check_branch
              %767 = sbr.rel target = $region130
            $region129: #{_lambda_.43} parent=125 // pred_region
              // Predicated region
              $region142: #{_lambda_.43} parent=129 // pred_check
                _
              $region143: #{_lambda_.43} parent=129 // pred_check_branch
                %813 = sbr.rel (0) target = $region145
              $region144: #{_lambda_.43} parent=129 // pred_region
                loop: start=0, step=1, limit=1
                $region146: #{_lambda_.43} parent=144 // loop_pre_header
                  _
                $region147: #{_lambda_.43} parent=144 // loop_header
                  %s815 = sphi 0, %s819
                  %p816 = scmp.ge.s32.totalorder %s815, 1
                  %s820 = sphi %s755, %s755
                  %s821 = sphi %s763, %s763
                $region148: #{_lambda_.43} parent=144 // loop_header_branch
                  %818 = sbr.rel (%p816) target = $region152
                $region149: #{_lambda_.43} parent=144 // loop_body
                  _
                $region150: #{_lambda_.43} parent=144 // loop_footer
                  %s819 = sadd.s32 1, %s815
                $region151: #{_lambda_.43} parent=144 // loop_footer_branch
                  %814 = sbr.rel target = $region147
                $region152: #{_lambda_.43} parent=144 // loop_exit
                  _
                %s823 = ssub.s32 16, 1
                loop: start=0, step=1, limit=1
                $region153: #{_lambda_.43} parent=144 // loop_pre_header
                  _
                $region154: #{_lambda_.43} parent=144 // loop_header
                  %s825 = sphi 0, %s829
                  %p826 = scmp.ge.s32.totalorder %s825, 1
                  %s830 = sphi %s755, %s755
                  %s831 = sphi %s763, %s763
                $region155: #{_lambda_.43} parent=144 // loop_header_branch
                  %828 = sbr.rel (%p826) target = $region159
                $region156: #{_lambda_.43} parent=144 // loop_body
                  %v832 = vld [vmem:[%s830] sm:%s823]
                  %833 = vst [vmem:[%s831] sm:%s823] %v832
                  %v834 = vld [vmem:[%s830 + $0x4] sm:%s823]
                  %835 = vst [vmem:[%s831 + $0x8] sm:%s823] %v834
                  %v836 = vld [vmem:[%s830 + $0x8] sm:%s823]
                  %837 = vst [vmem:[%s831 + $0x10] sm:%s823] %v836
                  %v838 = vld [vmem:[%s830 + $0xc] sm:%s823]
                  %839 = vst [vmem:[%s831 + $0x18] sm:%s823] %v838
                  %v840 = vld [vmem:[%s830 + $0x10] sm:%s823]
                  %841 = vst [vmem:[%s831 + $0x20] sm:%s823] %v840
                  %v842 = vld [vmem:[%s830 + $0x14] sm:%s823]
                  %843 = vst [vmem:[%s831 + $0x28] sm:%s823] %v842
                  %v844 = vld [vmem:[%s830 + $0x18] sm:%s823]
                  %845 = vst [vmem:[%s831 + $0x30] sm:%s823] %v844
                  %v846 = vld [vmem:[%s830 + $0x1c] sm:%s823]
                  %847 = vst [vmem:[%s831 + $0x38] sm:%s823] %v846
                  %v848 = vld [vmem:[%s830 + $0x20] sm:%s823]
                  %849 = vst [vmem:[%s831 + $0x40] sm:%s823] %v848
                  %v850 = vld [vmem:[%s830 + $0x24] sm:%s823]
                  %851 = vst [vmem:[%s831 + $0x48] sm:%s823] %v850
                  %v852 = vld [vmem:[%s830 + $0x28] sm:%s823]
                  %853 = vst [vmem:[%s831 + $0x50] sm:%s823] %v852
                  %v854 = vld [vmem:[%s830 + $0x2c] sm:%s823]
                  %855 = vst [vmem:[%s831 + $0x58] sm:%s823] %v854
                  %v856 = vld [vmem:[%s830 + $0x30] sm:%s823]
                  %857 = vst [vmem:[%s831 + $0x60] sm:%s823] %v856
                  %v858 = vld [vmem:[%s830 + $0x34] sm:%s823]
                  %859 = vst [vmem:[%s831 + $0x68] sm:%s823] %v858
                  %v860 = vld [vmem:[%s830 + $0x38] sm:%s823]
                  %861 = vst [vmem:[%s831 + $0x70] sm:%s823] %v860
                  %v862 = vld [vmem:[%s830 + $0x3c] sm:%s823]
                  %863 = vst [vmem:[%s831 + $0x78] sm:%s823] %v862
                $region157: #{_lambda_.43} parent=144 // loop_footer
                  %s829 = sadd.s32 1, %s825
                $region158: #{_lambda_.43} parent=144 // loop_footer_branch
                  %824 = sbr.rel target = $region154
                $region159: #{_lambda_.43} parent=144 // loop_exit
                  _
              $region145: #{_lambda_.43} parent=129 // pred_fallthru
                _
            $region130: #{_lambda_.43} parent=125 // pred_fallthru
              _
            // Predicated region
            $region131: #{_lambda_.43} parent=125 // pred_check
              _
            $region132: #{_lambda_.43} parent=125 // pred_check_branch
              %769 = sbr.rel (0) target = $region134
            $region133: #{_lambda_.43} parent=125 // pred_region
              %s771 = ssub.s32 16, 1
              loop: start=0, step=1, limit=1
              $region135: #{_lambda_.43} parent=133 // loop_pre_header
                _
              $region136: #{_lambda_.43} parent=133 // loop_header
                %s773 = sphi 0, %s777
                %p774 = scmp.ge.s32.totalorder %s773, 1
                %s778 = sphi %s755, %s755
                %s779 = sphi %s763, %s763
              $region137: #{_lambda_.43} parent=133 // loop_header_branch
                %776 = sbr.rel (%p774) target = $region141
              $region138: #{_lambda_.43} parent=133 // loop_body
                %v780 = vld [vmem:[%s778] sm:%s771]
                %781 = vst [vmem:[%s779] sm:%s771] %v780
                %v782 = vld [vmem:[%s778 + $0x4] sm:%s771]
                %783 = vst [vmem:[%s779 + $0x8] sm:%s771] %v782
                %v784 = vld [vmem:[%s778 + $0x8] sm:%s771]
                %785 = vst [vmem:[%s779 + $0x10] sm:%s771] %v784
                %v786 = vld [vmem:[%s778 + $0xc] sm:%s771]
                %787 = vst [vmem:[%s779 + $0x18] sm:%s771] %v786
                %v788 = vld [vmem:[%s778 + $0x10] sm:%s771]
                %789 = vst [vmem:[%s779 + $0x20] sm:%s771] %v788
                %v790 = vld [vmem:[%s778 + $0x14] sm:%s771]
                %791 = vst [vmem:[%s779 + $0x28] sm:%s771] %v790
                %v792 = vld [vmem:[%s778 + $0x18] sm:%s771]
                %793 = vst [vmem:[%s779 + $0x30] sm:%s771] %v792
                %v794 = vld [vmem:[%s778 + $0x1c] sm:%s771]
                %795 = vst [vmem:[%s779 + $0x38] sm:%s771] %v794
                %v796 = vld [vmem:[%s778 + $0x20] sm:%s771]
                %797 = vst [vmem:[%s779 + $0x40] sm:%s771] %v796
                %v798 = vld [vmem:[%s778 + $0x24] sm:%s771]
                %799 = vst [vmem:[%s779 + $0x48] sm:%s771] %v798
                %v800 = vld [vmem:[%s778 + $0x28] sm:%s771]
                %801 = vst [vmem:[%s779 + $0x50] sm:%s771] %v800
                %v802 = vld [vmem:[%s778 + $0x2c] sm:%s771]
                %803 = vst [vmem:[%s779 + $0x58] sm:%s771] %v802
                %v804 = vld [vmem:[%s778 + $0x30] sm:%s771]
                %805 = vst [vmem:[%s779 + $0x60] sm:%s771] %v804
                %v806 = vld [vmem:[%s778 + $0x34] sm:%s771]
                %807 = vst [vmem:[%s779 + $0x68] sm:%s771] %v806
                %v808 = vld [vmem:[%s778 + $0x38] sm:%s771]
                %809 = vst [vmem:[%s779 + $0x70] sm:%s771] %v808
                %v810 = vld [vmem:[%s778 + $0x3c] sm:%s771]
                %811 = vst [vmem:[%s779 + $0x78] sm:%s771] %v810
              $region139: #{_lambda_.43} parent=133 // loop_footer
                %s777 = sadd.s32 1, %s773
              $region140: #{_lambda_.43} parent=133 // loop_footer_branch
                %772 = sbr.rel target = $region136
              $region141: #{_lambda_.43} parent=133 // loop_exit
                _
            $region134: #{_lambda_.43} parent=125 // pred_fallthru
              _
          $region126: #{_lambda_.43} parent=121 // pred_fallthru
            _
          %864 = vnop
        $region122: #{_lambda_.43} parent=109 // pred_fallthru
          _
      $region110: #{_lambda_.43} parent=5 // pred_fallthru
        _
      %p865 = scmp.le.s32.totalorder 2, %s10
      // Predicated region
      $region160: #{_lambda_.43} parent=5 // pred_check
        %p866 = pneg %p865
      $region161: #{_lambda_.43} parent=5 // pred_check_branch
        %868 = sbr.rel (%p866) target = $region163
      $region162: #{_lambda_.43} parent=5 // pred_region
        %s869 = ssub.s32 %s10, 2
        // Predicated region
        $region164: #{_lambda_.43} parent=162 // pred_check
          %p870 = pneg %p159
        $region165: #{_lambda_.43} parent=162 // pred_check_branch
          %872 = sbr.rel (%p870) target = $region167
        $region166: #{_lambda_.43} parent=162 // pred_region
          %s873 = sand.u32 %s144, 1
          %s874 = sand.u32 %s144, 1
          %s875 = smul.addr %s874, 64
          %s876 = scalar_lea.vmem [#allocation4], %s875
        $region167: #{_lambda_.43} parent=162 // pred_fallthru
          _
      $region163: #{_lambda_.43} parent=5 // pred_fallthru
        _
    $region6: #{_lambda_.43} parent=1 // loop_footer
      %s14 = sadd.s32 1, %s10
    $region7: #{_lambda_.43} parent=1 // loop_footer_branch
      %9 = sbr.rel target = $region3
    $region8: #{_lambda_.43} parent=1 // loop_exit
      _

// kernel: _lambda_.44
$region0: #{_lambda_.44}
  #allocation0 [shape = 'u32[]', space=smem, size = 0x4, offset = 0x4, fixed_abs, tag = 'smem constant byte address 0x4 - core index']
  #allocation1 [shape = 'u32[72,128]{1,0:T(1,128)}', space=vmem, size = 0x9000, scoped, tag = 'internal scratch']
  %s0 = inlined_call_operand.vmem [shape: bf16[2,4,256], index: 0, kind: input, shape index: {}]
  %s1 = inlined_call_operand.vmem [shape: f32[2,256], index: 1, kind: output, shape index: {}]
  %s2 = sld [smem:[#allocation0]]
  $region71: #{_lambda_.44} parent=0
    _
  %s4 = ssub.s32 1, %s2
  %s5 = scalar_select 0, %s4, %s2
  $region1: #{_lambda_.44} parent=0
    #allocation2 [shape = 'u8[4096]{0}', space=vmem, size = 0x1000, scoped, tag = 'input window, operand 0']
    loop: start=0, step=1, limit=4
    $region2: #{_lambda_.44} parent=1 // loop_pre_header
      _
    $region3: #{_lambda_.44} parent=1 // loop_header
      %s7 = sphi 0, %s11
      %p8 = scmp.ge.s32.totalorder %s7, 4
      %s17 = sphi 0, %s19
      %s20 = sphi 0, %s17
      %s21 = sphi 0, %s20
      %s37 = sphi 0, %s21
      %s43 = sphi 0, %s45
      %s46 = sphi 0, %s43
      %s47 = sphi 0, %s46
      %s63 = sphi 0, %s47
    $region4: #{_lambda_.44} parent=1 // loop_header_branch
      %10 = sbr.rel (%p8) target = $region8
    $region5: #{_lambda_.44} parent=1 // loop_body
      %s12 = ssub.s32 %s7, 1
      %s13 = ssub.s32 %s7, 2
      %s14 = sadd.s32 %s7, 1
      %s15 = ssub.s32 %s7, %s14
      %p16 = scmp.eq.s32.totalorder %s15, 0
      %s18 = sadd.s32 %s17, 1
      %s19 = scalar_select %p16, %s17, %s18
      %p22 = pneg %p16
      %p23 = scmp.eq.s32.totalorder %s7, 1
      %p24 = por %p22, %p23
      %p25 = scmp.ne.s32.totalorder %s17, %s20
      %p26 = scmp.eq.s32.totalorder %s7, 0
      %p27 = por %p25, %p26
      %p28 = scmp.ne.s32.totalorder %s17, %s20
      %p29 = scmp.eq.s32.totalorder %s12, 1
      %p30 = por %p28, %p29
      %p31 = scmp.ne.s32.totalorder %s20, %s21
      %p32 = scmp.eq.s32.totalorder %s12, 0
      %p33 = por %p31, %p32
      %p34 = scmp.ne.s32.totalorder %s20, %s21
      %p35 = scmp.eq.s32.totalorder %s13, 1
      %p36 = por %p34, %p35
      %p38 = scmp.ne.s32.totalorder %s21, %s37
      %p39 = scmp.eq.s32.totalorder %s13, 0
      %p40 = por %p38, %p39
      %s41 = ssub.s32 %s7, %s14
      %p42 = scmp.eq.s32.totalorder %s41, 0
      %s44 = sadd.s32 %s43, 1
      %s45 = scalar_select %p42, %s43, %s44
      %p48 = pneg %p42
      %p49 = scmp.eq.s32.totalorder %s7, 1
      %p50 = por %p48, %p49
      %p51 = scmp.ne.s32.totalorder %s43, %s46
      %p52 = scmp.eq.s32.totalorder %s7, 0
      %p53 = por %p51, %p52
      %p54 = scmp.ne.s32.totalorder %s43, %s46
      %p55 = scmp.eq.s32.totalorder %s12, 1
      %p56 = por %p54, %p55
      %p57 = scmp.ne.s32.totalorder %s46, %s47
      %p58 = scmp.eq.s32.totalorder %s12, 0
      %p59 = por %p57, %p58
      %p60 = scmp.ne.s32.totalorder %s46, %s47
      %p61 = scmp.eq.s32.totalorder %s13, 1
      %p62 = por %p60, %p61
      %p64 = scmp.ne.s32.totalorder %s47, %s63
      %p65 = scmp.eq.s32.totalorder %s13, 0
      %p66 = por %p64, %p65
      %p67 = scmp.le.s32.totalorder 1, %s7
      %p68 = scmp.lt.s32.totalorder %s7, 3
      %p69 = pnand %p67, %p68
      %p70 = pneg %p69
      // Predicated region
      $region9: #{_lambda_.44} parent=5 // pred_check
        _
      $region10: #{_lambda_.44} parent=5 // pred_check_branch
        %72 = sbr.rel (%p69) target = $region12
      $region11: #{_lambda_.44} parent=5 // pred_region
        %s73 = ssub.s32 %s7, 1
      $region12: #{_lambda_.44} parent=5 // pred_fallthru
        _
      %p74 = scmp.lt.s32.totalorder %s7, 2
      // Predicated region
      $region13: #{_lambda_.44} parent=5 // pred_check
        %p75 = pneg %p74
      $region14: #{_lambda_.44} parent=5 // pred_check_branch
        %77 = sbr.rel (%p75) target = $region16
      $region15: #{_lambda_.44} parent=5 // pred_region
        // Predicated region
        $region17: #{_lambda_.44} parent=15 // pred_check
          %p78 = pneg %p27
        $region18: #{_lambda_.44} parent=15 // pred_check_branch
          %80 = sbr.rel (%p78) target = $region20
        $region19: #{_lambda_.44} parent=15 // pred_region
          %s81 = sand.u32 %s17, 1
          %s82 = sand.u32 %s17, 1
          %s83 = smul.addr %s82, 4
          %s84 = scalar_lea.vmem [#allocation2], %s83
          %s85 = smul.addr %s7, 2
          %s86 = scalar_lea.vmem %s0, %s85
          // Predicated region
          $region21: #{_lambda_.44} parent=19 // pred_check
            _
          $region22: #{_lambda_.44} parent=19 // pred_check_branch
            %88 = sbr.rel (0) target = $region24
          $region23: #{_lambda_.44} parent=19 // pred_region
            // Predicated region
            $region25: #{_lambda_.44} parent=23 // pred_check
              _
            $region26: #{_lambda_.44} parent=23 // pred_check_branch
              %90 = sbr.rel target = $region28
            $region27: #{_lambda_.44} parent=23 // pred_region
              // Predicated region
              $region40: #{_lambda_.44} parent=27 // pred_check
                _
              $region41: #{_lambda_.44} parent=27 // pred_check_branch
                %108 = sbr.rel (0) target = $region43
              $region42: #{_lambda_.44} parent=27 // pred_region
                %s110 = ssub.s32 4, 1
                loop: start=0, step=1, limit=1
                $region44: #{_lambda_.44} parent=42 // loop_pre_header
                  _
                $region45: #{_lambda_.44} parent=42 // loop_header
                  %s112 = sphi 0, %s116
                  %p113 = scmp.ge.s32.totalorder %s112, 1
                  %s117 = sphi %s86, %s86
                  %s118 = sphi %s84, %s84
                $region46: #{_lambda_.44} parent=42 // loop_header_branch
                  %115 = sbr.rel (%p113) target = $region50
                $region47: #{_lambda_.44} parent=42 // loop_body
                  %v119 = vld [vmem:[%s117] sm:%s110]
                  %120 = vst [vmem:[%s118] sm:%s110] %v119
                  %v121 = vld [vmem:[%s117 + $0x4] sm:%s110]
                  %122 = vst [vmem:[%s118 + $0x2] sm:%s110] %v121
                $region48: #{_lambda_.44} parent=42 // loop_footer
                  %s116 = sadd.s32 1, %s112
                $region49: #{_lambda_.44} parent=42 // loop_footer_branch
                  %111 = sbr.rel target = $region45
                $region50: #{_lambda_.44} parent=42 // loop_exit
                  _
              $region43: #{_lambda_.44} parent=27 // pred_fallthru
                _
            $region28: #{_lambda_.44} parent=23 // pred_fallthru
              _
            // Predicated region
            $region29: #{_lambda_.44} parent=23 // pred_check
              _
            $region30: #{_lambda_.44} parent=23 // pred_check_branch
              %92 = sbr.rel (0) target = $region32
            $region31: #{_lambda_.44} parent=23 // pred_region
              %s94 = ssub.s32 4, 1
              loop: start=0, step=1, limit=1
              $region33: #{_lambda_.44} parent=31 // loop_pre_header
                _
              $region34: #{_lambda_.44} parent=31 // loop_header
                %s96 = sphi 0, %s100
                %p97 = scmp.ge.s32.totalorder %s96, 1
                %s101 = sphi %s86, %s86
                %s102 = sphi %s84, %s84
              $region35: #{_lambda_.44} parent=31 // loop_header_branch
                %99 = sbr.rel (%p97) target = $region39
              $region36: #{_lambda_.44} parent=31 // loop_body
                %v103 = vld [vmem:[%s101] sm:%s94]
                %104 = vst [vmem:[%s102] sm:%s94] %v103
                %v105 = vld [vmem:[%s101 + $0x4] sm:%s94]
                %106 = vst [vmem:[%s102 + $0x2] sm:%s94] %v105
              $region37: #{_lambda_.44} parent=31 // loop_footer
                %s100 = sadd.s32 1, %s96
              $region38: #{_lambda_.44} parent=31 // loop_footer_branch
                %95 = sbr.rel target = $region34
              $region39: #{_lambda_.44} parent=31 // loop_exit
                _
            $region32: #{_lambda_.44} parent=23 // pred_fallthru
              _
          $region24: #{_lambda_.44} parent=19 // pred_fallthru
            _
          %123 = vnop
        $region20: #{_lambda_.44} parent=15 // pred_fallthru
          _
      $region16: #{_lambda_.44} parent=5 // pred_fallthru
        _
      %p124 = scmp.le.s32.totalorder 1, %s7
      %p125 = scmp.lt.s32.totalorder %s7, 3
      %p126 = pnand %p124, %p125
      %p127 = pneg %p126
      // Predicated region
      $region51: #{_lambda_.44} parent=5 // pred_check
        _
      $region52: #{_lambda_.44} parent=5 // pred_check_branch
        %129 = sbr.rel (%p126) target = $region54
      $region53: #{_lambda_.44} parent=5 // pred_region
        %s130 = ssub.s32 %s7, 1
        %s131 = sand.u32 %s20, 1
        %s132 = sand.u32 %s20, 1
        %s133 = smul.addr %s132, 4
        %s134 = scalar_lea.vmem [#allocation2], %s133
        // Predicated region
        $region55: #{_lambda_.44} parent=53 // pred_check
          %p135 = pneg %p33
        $region56: #{_lambda_.44} parent=53 // pred_check_branch
          %137 = sbr.rel (%p135) target = $region58
        $region57: #{_lambda_.44} parent=53 // pred_region
          _
        $region58: #{_lambda_.44} parent=53 // pred_fallthru
          _
        %s138 = sand.u32 %s20, 1
        %s139 = sand.u32 %s20, 1
        %s140 = smul.addr %s139, 4
        %s141 = scalar_lea.vmem [#allocation2], %s140
        %p142 = pneg %p33
        %p143 = pneg %p30
        %p144 = pneg %p59
        %p145 = pneg %p56
        %p146 = scmp.lt.s32.totalorder %s12, 1
        %s147 = scalar_select %p146, %s12, 1
        %s148 = smul.addr %s147, 2
        %s149 = scalar_lea.vmem %s1, %s148
        %p150 = scmp.lt.s32.totalorder %s12, 1
        %s151 = scalar_select %p150, %s12, 1
        %s152 = smul.addr %s151, 2
        %s153 = scalar_lea.vmem %s1, %s152
        %v154 = vld [vmem:[%s134] sm:$0x3]
        %v155 = vld [vmem:[%s134 + $0x2] sm:$0x3]
        %v156 = vunpack.c.l.bf16 %v154
        %v157 = vunpack.c.l.bf16 %v155
        %vm158 = vcmask 1043456
        %v159 = vsel %vm158, %v156, 0.0
        %v160 = vrot.slane %v159, 4
        %v161 = vadd.f32 %v159, %v160
        %v162 = vrot.slane %v161, 2
        %v163 = vadd.f32 %v161, %v162
        %v164 = vrot.slane %v163, 1
        %v165 = vadd.f32 %v163, %v164
        %v166 = vsel %vm158, %v157, 0.0
        %v167 = vrot.slane %v166, 4
        %v168 = vadd.f32 %v166, %v167
        %v169 = vrot.slane %v168, 2
        %v170 = vadd.f32 %v168, %v169
        %v171 = vrot.slane %v170, 1
        %v172 = vadd.f32 %v170, %v171
        %v173 = vrcp.pop 4.0
        %v174 = vmul.f32 4.0, %v173
        %v175 = vsub.f32 1.0, %v174
        %v176 = vmul.f32 %v173, %v175
        %v177 = vadd.f32 %v173, %v176
        %vm178 = vweird.f32 %v173
        %v179 = vsel %vm178, %v173, %v177
        %v180 = vmul.f32 %v165, %v179
        %v181 = vmul.f32 %v172, %v179
        %vm184 = vcmask 1041409
        %v185 = vsel %vm184, %v181, %v180
        %187 = vst [vmem:[%s153] sm:$0x3] %v185
        %p188 = scmp.lt.s32.totalorder %s12, 1
        %s189 = scalar_select %p188, %s12, 1
        %s190 = smul.addr %s189, 2
        %s191 = scalar_lea.vmem %s1, %s190
        // Predicated region
        $region59: #{_lambda_.44} parent=53 // pred_check
          %p192 = pneg %p56
        $region60: #{_lambda_.44} parent=53 // pred_check_branch
          %194 = sbr.rel (%p192) target = $region62
        $region61: #{_lambda_.44} parent=53 // pred_region
          _
        $region62: #{_lambda_.44} parent=53 // pred_fallthru
          _
      $region54: #{_lambda_.44} parent=5 // pred_fallthru
        _
      %p195 = scmp.le.s32.totalorder 2, %s7
      // Predicated region
      $region63: #{_lambda_.44} parent=5 // pred_check
        %p196 = pneg %p195
      $region64: #{_lambda_.44} parent=5 // pred_check_branch
        %198 = sbr.rel (%p196) target = $region66
      $region65: #{_lambda_.44} parent=5 // pred_region
        %s199 = ssub.s32 %s7, 2
        // Predicated region
        $region67: #{_lambda_.44} parent=65 // pred_check
          %p200 = pneg %p62
        $region68: #{_lambda_.44} parent=65 // pred_check_branch
          %202 = sbr.rel (%p200) target = $region70
        $region69: #{_lambda_.44} parent=65 // pred_region
          %p203 = scmp.lt.s32.totalorder %s13, 1
          %s204 = scalar_select %p203, %s13, 1
          %s205 = smul.addr %s204, 2
          %s206 = scalar_lea.vmem %s1, %s205
        $region70: #{_lambda_.44} parent=65 // pred_fallthru
          _
      $region66: #{_lambda_.44} parent=5 // pred_fallthru
        _
    $region6: #{_lambda_.44} parent=1 // loop_footer
      %s11 = sadd.s32 1, %s7
    $region7: #{_lambda_.44} parent=1 // loop_footer_branch
      %6 = sbr.rel target = $region3
    $region8: #{_lambda_.44} parent=1 // loop_exit
      _

// kernel: _lambda_.45
$region0: #{_lambda_.45}
  #allocation0 [shape = 'u32[]', space=smem, size = 0x4, offset = 0x4, fixed_abs, tag = 'smem constant byte address 0x4 - core index']
  #allocation1 [shape = 'u32[72,128]{1,0:T(1,128)}', space=vmem, size = 0x9000, scoped, tag = 'internal scratch']
  %s0 = inlined_call_operand.vmem [shape: f32[2,256], index: 0, kind: input, shape index: {}]
  %s1 = inlined_call_operand.vmem [shape: f32[1,256], index: 1, kind: input, shape index: {}]
  %s2 = inlined_call_operand.vmem [shape: f32[1,256], index: 2, kind: input, shape index: {}]
  %s3 = inlined_call_operand.hbm [shape: f32[2,256], index: 3, kind: output, shape index: {}]
  %s4 = sld [smem:[#allocation0]]
  $region22: #{_lambda_.45} parent=0
    _
  %s6 = ssub.s32 1, %s4
  %s7 = scalar_select 0, %s6, %s4
  $region1: #{_lambda_.45} parent=0
    #allocation2 [shape = 'u8[2048]{0}', space=vmem, size = 0x800, scoped, tag = 'output window, operand 0, single buffered']
    #allocation3 [shape = 's32[1]{0}', space=sflag, size = 0x4, scoped, tag = 'scoped memory for _lambda_.45']
    %8 = vsyncpa [#allocation3], 0
    // Predicated region
    $region2: #{_lambda_.45} parent=1 // pred_check
      _
    $region3: #{_lambda_.45} parent=1 // pred_check_branch
      %10 = sbr.rel (0) target = $region5
    $region4: #{_lambda_.45} parent=1 // pred_region
      _
    $region5: #{_lambda_.45} parent=1 // pred_fallthru
      _
    // Predicated region
    $region6: #{_lambda_.45} parent=1 // pred_check
      _
    $region7: #{_lambda_.45} parent=1 // pred_check_branch
      %12 = sbr.rel (0) target = $region9
    $region8: #{_lambda_.45} parent=1 // pred_region
      _
    $region9: #{_lambda_.45} parent=1 // pred_fallthru
      _
    // Predicated region
    $region10: #{_lambda_.45} parent=1 // pred_check
      _
    $region11: #{_lambda_.45} parent=1 // pred_check_branch
      %14 = sbr.rel (0) target = $region13
    $region12: #{_lambda_.45} parent=1 // pred_region
      _
    $region13: #{_lambda_.45} parent=1 // pred_fallthru
      _
    %v15 = vld [vmem:[%s0] sm:$0xf]
    %v16 = vld [vmem:[%s1] sm:$0x3]
    %v18 = vperm.slane %v16, 0
    %v19 = vperm.slane %v16, 1
    %v20 = vrot.slane %v19, 6
    %vm21 = vcmask 1041408
    %v22 = vsel %vm21, %v18, %v20
    %v24 = vmul.f32 %v15, %v22
    %v25 = vld [vmem:[%s2] sm:$0x3]
    %v27 = vperm.slane %v25, 0
    %v28 = vperm.slane %v25, 1
    %v29 = vrot.slane %v28, 6
    %v30 = vsel %vm21, %v27, %v29
    %v32 = vadd.f32 %v24, %v30
    %v33 = vmul.f32 %v32, %v32
    %35 = vst [vmem:[#allocation1] ss:$4 sm:$0xff] %v33
    %v36 = vld.sshfl [vmem:[#allocation1] sm:$0xff pattern:$0x73625140]
    %v37 = vld.sshfl [vmem:[#allocation1 + $0x8] sm:$0xff pattern:$0x73625140]
    %v40 = vsel %vm21, %v36, 0.0
    %v41 = vsel %vm21, %v37, 0.0
    %v42 = vadd.f32 %v40, %v41
    %43 = vadd.xlane.f32.xlu0 %v42
    %v44 = vpop.xlane.xlu0 %43
    %v45 = vrsqrt.pop %v44
    %v46 = vmul.f32 %v45, %v44
    %v47 = vmul.f32 %v46, %v45
    %v48 = vmul.f32 0.5, %v47
    %v49 = vsub.f32 1.5, %v48
    %v50 = vmul.f32 %v45, %v49
    %v51 = vmul.f32 %v44, %v50
    %vm52 = vcmp.eq.f32.partialorder %v44, inf
    %v53 = vsel %vm52, %v44, %v51
    %vm54 = vcmp.eq.f32.partialorder %v44, 0.0
    %v55 = vand.u32 %v44, 2147483648
    %v56 = vsel %vm54, %v55, %v53
    %v57 = vmax.f32 %v56, 1e-12
    %v60 = vunpack.c.l.s4 269488144
    %v61 = vunpack.c.0.s8 %v60
    %v62 = vperm.slane %v57, %v61
    %v64 = vrcp.pop %v62
    %v65 = vmul.f32 %v62, %v64
    %v66 = vsub.f32 1.0, %v65
    %v67 = vmul.f32 %v64, %v66
    %v68 = vadd.f32 %v64, %v67
    %vm69 = vweird.f32 %v62
    %vm70 = vweird.f32 %v64
    %vm71 = vmor %vm69, %vm70
    %v72 = vsel %vm71, %v64, %v68
    %v73 = vand.u32 2147483647, %v62
    %vm74 = vcmp.eq.f32.partialorder %v73, 8.507059e+37
    %v75 = vand.u32 %v62, 2147483648
    %v76 = vor.u32 1.1754944e-38, %v75
    %v77 = vsel %vm74, %v76, %v72
    %v78 = vmul.f32 %v32, %v77
    %79 = vst [vmem:[#allocation2] sm:$0xf] %v78
    // Predicated region
    $region14: #{_lambda_.45} parent=1 // pred_check
      _
    $region15: #{_lambda_.45} parent=1 // pred_check_branch
      %81 = sbr.rel (0) target = $region17
    $region16: #{_lambda_.45} parent=1 // pred_region
      %83 = vsyncadd [#allocation3], 0
      %s85 = sshll.u32 [#allocation2], 4
      %s86 = int_to_ptr.vmem [resolvable:$true] %s85
      %s87 = sshll.u32 %s3, 4
      %s88 = int_to_ptr.hbm [resolvable:$true] %s87
      %90 = dma.vmem_to_hbm [thread:$0]  %s86, 64, %s88, [#allocation3]
    $region17: #{_lambda_.45} parent=1 // pred_fallthru
      _
    // Predicated region
    $region18: #{_lambda_.45} parent=1 // pred_check
      _
    $region19: #{_lambda_.45} parent=1 // pred_check_branch
      %92 = sbr.rel (0) target = $region21
    $region20: #{_lambda_.45} parent=1 // pred_region
      %94 = dma.done [#allocation3], 64
    $region21: #{_lambda_.45} parent=1 // pred_fallthru
      _
    %95 = vsyncpa [#allocation3], 1

</llo_original>
